<compile_context>
chip_gen: v7x
topology: tpu7x:2x2x1
jax: 0.10.0
libtpu: 0.0.40
codegen_flags: <defaults>
</compile_context>

<pallas_src>
import functools
import math

import jax
import jax.numpy as jnp
from jax.experimental import pallas as pl
from jax.experimental.pallas import tpu as pltpu


def _round_up(v, m):
    return (v + m - 1) // m * m


def _fused_block_kernel(x_ref, mask_ref, w1_ref, w2_ref,
                        g1_ref, be1_ref, g2_ref, be2_ref,
                        o_ref, stg_ref, acc_ref, buf_ref, *,
                        offsets, cinp, cpad, lcomp, ltile, align, shift0,
                        inv_n, eps, neg_slope):
    """Fused StyledConvBlock3 forward for one batch element.

    x_ref:    (1, cinp, lx)        bf16  zero-padded input volume, flattened
    mask_ref: (1, lcomp)           f32   1.0 at flat indices decoding to interior voxels
    w1_ref:   (cpad, 27*cinp)      bf16  tap-fused conv1 weight (equal-lr scaled)
    w2_ref:   (cpad, 27*cpad)      bf16  tap-fused conv2 weight (equal-lr scaled)
    g*/be*:   (1, cpad, 1)         f32   AdaIN gamma/beta (EqualLinear done on host)
    o_ref:    (1, cpad, lcomp)     bf16  flat output (interior lanes hold the result)
    stg_ref:  (27*maxC, ltile)     bf16  tap-fused staging block (shared by both stages)
    acc_ref:  (cpad, lcomp)        f32   conv accumulator (shared by both stages)
    buf_ref:  (cpad, lbuf)         bf16  zero-bordered stage-1 activation
    """
    mask = mask_ref[...]                                   # (1, lcomp) f32
    nchunks = lcomp // ltile
    nk1 = 27 * cinp
    nk2 = 27 * cpad

    def inorm_adain_lrelu(acc, g, be):
        # InstanceNorm3d (biased var, eps=1e-5) over the masked interior, then
        # AdaIN (gamma * x_hat + beta) and LeakyReLU(0.2).  All f32; rsqrt on EUP.
        # One masked pass feeds both moments: sum((x-m)*x*mask) == sum((x-m)^2*mask).
        am = acc * mask
        mean = jnp.sum(am, axis=1, keepdims=True) * inv_n
        cen = acc - mean
        var = jnp.sum(cen * am, axis=1, keepdims=True) * inv_n
        out = g * (cen * jax.lax.rsqrt(var + eps)) + be
        return jnp.where(out >= 0, out, neg_slope * out)

    def conv_stage(load, w_ref, kgroup, krows):
        # 3x3x3 conv as ONE fused MXU contraction per lane chunk: the 27 taps are
        # folded into the K dimension, so the MXU accumulates across taps instead
        # of a 26-deep f32 VPU add chain, and every misaligned shifted load is
        # done exactly once per chunk and reused by the single big dot.
        for c in range(nchunks):
            s = c * ltile
            for o, f in enumerate(offsets):
                stg_ref[o * kgroup:(o + 1) * kgroup, :] = load(s + f)
            acc_ref[:, s:s + ltile] = jnp.dot(
                w_ref[...], stg_ref[:krows, :],
                preferred_element_type=jnp.float32)

    # ---- stage 1: conv1 -> IN -> AdaIN -> LeakyReLU --------------------------
    conv_stage(lambda p: x_ref[0, :, p:p + ltile], w1_ref, cinp, nk1)
    act1 = inorm_adain_lrelu(acc_ref[...], g1_ref[0], be1_ref[0]) * mask

    # Stage-2 input = stage-1 activation re-embedded in a zero border.  Output
    # base index i lives at padded-flat index i + shift0; we park act1 at the
    # lane-aligned offset `align` and fold (-shift0) into the stage-2 tap
    # offsets.  Only the narrow halos are zeroed (per step, so a megacore-split
    # batch axis stays safe); the interior is fully rewritten every step.
    lbuf = buf_ref.shape[1]
    buf_ref[:, :align] = jnp.zeros((cpad, align), buf_ref.dtype)
    buf_ref[:, align + lcomp:] = jnp.zeros((cpad, lbuf - align - lcomp), buf_ref.dtype)
    buf_ref[:, align:align + lcomp] = act1.astype(buf_ref.dtype)

    # ---- stage 2: conv2 -> IN -> AdaIN -> LeakyReLU --------------------------
    base2 = align - shift0
    conv_stage(lambda p: buf_ref[:, base2 + p:base2 + p + ltile], w2_ref, cpad, nk2)
    out = inorm_adain_lrelu(acc_ref[...], g2_ref[0], be2_ref[0])
    o_ref[0] = out.astype(o_ref.dtype)


def init_params(key, in_channel, out_channel, style_dim):
    """Deterministic init mirroring the PyTorch module's __init__."""
    k1, k2, k3, k4 = jax.random.split(key, 4)
    bst = jnp.concatenate(
        [jnp.ones((out_channel,), jnp.float32), jnp.zeros((out_channel,), jnp.float32)])
    return {
        # EqualConv3d: weight ~ N(0,1), bias = 0
        "w1": jax.random.normal(k1, (out_channel, in_channel, 3, 3, 3), jnp.float32),
        "b1": jnp.zeros((out_channel,), jnp.float32),
        "w2": jax.random.normal(k2, (out_channel, out_channel, 3, 3, 3), jnp.float32),
        "b2": jnp.zeros((out_channel,), jnp.float32),
        # AdaIN style EqualLinear: weight ~ N(0,1) (torch layout (2C, S)),
        # bias[:C] = 1, bias[C:] = 0
        "wst1": jax.random.normal(k3, (2 * out_channel, style_dim), jnp.float32),
        "bst1": bst,
        "wst2": jax.random.normal(k4, (2 * out_channel, style_dim), jnp.float32),
        "bst2": bst,
    }


def styled_conv_block3(x_ncdhw, style, params):
    """Forward of StyledConvBlock3 (initial=False): x is NCDHW, style is (B, S)."""
    B, Cin, D, H, W = x_ncdhw.shape
    C = params["w1"].shape[0]
    S = style.shape[-1]
    Dp, Hp, Wp = D + 2, H + 2, W + 2
    Lf = Dp * Hp * Wp                         # flattened zero-padded volume length
    lcomp = _round_up(Lf, 128)                # lane-dense compute / output width
    ltile = next(t for t in (2048, 1024, 512, 256, 128) if lcomp % t == 0)
    shift0 = Hp * Wp + Wp + 1                 # flat offset of padded voxel (1,1,1)
    maxoff = 2 * shift0                       # flat offset of tap (2,2,2)
    align = _round_up(shift0, 128)            # lane-aligned park offset for act1
    lx = _round_up(lcomp + maxoff, 128)
    lbuf = _round_up(align + lcomp + shift0, 128)
    offsets = tuple(kd * Hp * Wp + kh * Wp + kw
                    for kd in range(3) for kh in range(3) for kw in range(3))

    cinp = _round_up(Cin, 16)                 # bf16 sublane packing (stage-1 staging rows)
    cpad = _round_up(C, 16)                   # bf16 packing for act1 / stage-2 staging rows
    krows = 27 * max(cinp, cpad)

    # Zero-padded (spatial + channel), flattened, zero-extended bf16 input.
    xp = jnp.pad(x_ncdhw, ((0, 0), (0, cinp - Cin), (1, 1), (1, 1), (1, 1)))
    xflat = jnp.pad(xp.reshape(B, cinp, Lf), ((0, 0), (0, 0), (0, lx - Lf)))
    xflat = xflat.astype(jnp.bfloat16)

    # Interior mask over flat base indices (shared by both stages' statistics).
    idx = jnp.arange(lcomp)
    mask = ((idx // (Hp * Wp) < D) & ((idx // Wp) % Hp < H) & (idx % Wp < W))
    mask = mask.astype(jnp.float32).reshape(1, lcomp)

    def fuse_taps(w, cin_p):
        # torch layout (Cout, Cin_, 3, 3, 3), equal-lr scaled, -> (cpad, 27*cin_p):
        # the 27 taps are folded into the MXU contraction dim (one dot per chunk).
        cout, cin = w.shape[0], w.shape[1]
        scale = math.sqrt(2.0 / (cin * 27))
        wt = (w * scale).transpose(2, 3, 4, 1, 0).reshape(27, cin, cout)
        wt = jnp.pad(wt, ((0, 0), (0, cin_p - cin), (0, cpad - cout)))
        return wt.reshape(27 * cin_p, cpad).T.astype(jnp.bfloat16)

    def adain_coeffs(w_lin, b_lin):
        # EqualLinear(style) -> gamma, beta (computed once on host, f32, padded).
        styled = style @ (w_lin * math.sqrt(2.0 / S)).T + b_lin      # (B, 2C)
        pad = ((0, 0), (0, cpad - C))
        return (jnp.pad(styled[:, :C], pad).reshape(B, cpad, 1),
                jnp.pad(styled[:, C:], pad).reshape(B, cpad, 1))

    g1, be1 = adain_coeffs(params["wst1"], params["bst1"])
    g2, be2 = adain_coeffs(params["wst2"], params["bst2"])
    w1f = fuse_taps(params["w1"], cinp)
    w2f = fuse_taps(params["w2"], cpad)

    kernel = functools.partial(
        _fused_block_kernel, offsets=offsets, cinp=cinp, cpad=cpad, lcomp=lcomp,
        ltile=ltile, align=align, shift0=shift0,
        inv_n=1.0 / (D * H * W), eps=1e-5, neg_slope=0.2)

    # Explicit VMEM budget (double-buffered blocks + resident scratch) + headroom.
    vmem_bytes = (
        2 * cinp * lx * 2 + 2 * lcomp * 4
        + 2 * cpad * (27 * cinp) * 2 + 2 * cpad * (27 * cpad) * 2
        + 8 * cpad * 4
        + 2 * cpad * lcomp * 2
        + krows * ltile * 2 + cpad * lcomp * 4 + cpad * lbuf * 2)
    vmem_limit = max(32 << 20, min(int(vmem_bytes * 1.5) + (8 << 20), 100 << 20))

    out_flat = pl.pallas_call(
        kernel,
        out_shape=jax.ShapeDtypeStruct((B, cpad, lcomp), jnp.bfloat16),
        grid_spec=pltpu.PrefetchScalarGridSpec(
            num_scalar_prefetch=0,
            grid=(B,),
            in_specs=[
                pl.BlockSpec((1, cinp, lx), lambda b: (b, 0, 0)),      # padded input (flat)
                pl.BlockSpec((1, lcomp), lambda b: (0, 0)),            # interior mask
                pl.BlockSpec((cpad, 27 * cinp), lambda b: (0, 0)),     # tap-fused conv1 weight
                pl.BlockSpec((cpad, 27 * cpad), lambda b: (0, 0)),     # tap-fused conv2 weight
                pl.BlockSpec((1, cpad, 1), lambda b: (b, 0, 0)),       # gamma1
                pl.BlockSpec((1, cpad, 1), lambda b: (b, 0, 0)),       # beta1
                pl.BlockSpec((1, cpad, 1), lambda b: (b, 0, 0)),       # gamma2
                pl.BlockSpec((1, cpad, 1), lambda b: (b, 0, 0)),       # beta2
            ],
            out_specs=pl.BlockSpec((1, cpad, lcomp), lambda b: (b, 0, 0)),
            scratch_shapes=[
                pltpu.VMEM((krows, ltile), jnp.bfloat16),   # tap-fused staging block
                pltpu.VMEM((cpad, lcomp), jnp.float32),     # shared conv accumulator
                pltpu.VMEM((cpad, lbuf), jnp.bfloat16),     # zero-bordered act1
            ],
        ),
        compiler_params=pltpu.CompilerParams(
            dimension_semantics=("parallel",),
            vmem_limit_bytes=vmem_limit),
    )(xflat, mask, w1f, w2f, g1, be1, g2, be2)

    # Un-flatten (in bf16): flat base index i = z*Hp*Wp + y*Wp + x holds voxel (z,y,x).
    out = out_flat[:, :C, :Lf].reshape(B, C, Dp, Hp, Wp)[:, :, :D, :H, :W]
    return out.astype(jnp.float32)


def reference(x, style, params):
    """Pure-JAX f32 reference matching the PyTorch semantics (for validation)."""
    S = style.shape[-1]

    def conv3d(x, w, b):
        cin = w.shape[1]
        scale = math.sqrt(2.0 / (cin * 27))
        out = jax.lax.conv_general_dilated(
            x, w * scale, window_strides=(1, 1, 1),
            padding=((1, 1), (1, 1), (1, 1)),
            dimension_numbers=("NCDHW", "OIDHW", "NCDHW"),
            precision=jax.lax.Precision.HIGHEST)
        return out + b[None, :, None, None, None]

    def adain(x, w_lin, b_lin):
        styled = style @ (w_lin * math.sqrt(2.0 / S)).T + b_lin   # (B, 2C)
        C = x.shape[1]
        gamma = styled[:, :C][:, :, None, None, None]
        beta = styled[:, C:][:, :, None, None, None]
        mean = x.mean(axis=(2, 3, 4), keepdims=True)
        var = jnp.square(x - mean).mean(axis=(2, 3, 4), keepdims=True)
        return gamma * (x - mean) / jnp.sqrt(var + 1e-5) + beta

    def lrelu(x):
        return jnp.where(x >= 0, x, 0.2 * x)

    out = lrelu(adain(conv3d(x, params["w1"], params["b1"]), params["wst1"], params["bst1"]))
    out = lrelu(adain(conv3d(out, params["w2"], params["b2"]), params["wst2"], params["bst2"]))
    return out


if __name__ == "__main__":
    B, Cin, Cout, Dsp, Sdim = 2, 4, 8, 8, 32   # small shapes (style_dim default 512 shrunk to 32)

    key = jax.random.PRNGKey(0)
    kx, ks, kp = jax.random.split(key, 3)
    x = jax.random.normal(kx, (B, Cin, Dsp, Dsp, Dsp), jnp.float32)     # NCDHW
    style = jax.random.normal(ks, (B, Sdim), jnp.float32)
    params = init_params(kp, Cin, Cout, Sdim)

    out = jax.block_until_ready(jax.jit(styled_conv_block3)(x, style, params))
    ref = jax.block_until_ready(reference(x, style, params))

    assert out.shape == (B, Cout, Dsp, Dsp, Dsp), out.shape
    # bf16 MXU operands, bf16 intermediate activation and bf16 output store vs an
    # f32 HIGHEST-precision reference: check max error vs the output's dynamic range.
    max_err = float(jnp.max(jnp.abs(out - ref)))
    tol = 1.5e-2 * float(jnp.max(jnp.abs(ref))) + 1e-3
    assert max_err <= tol, (max_err, tol)

    print("KERNEL_OK")
</pallas_src>

<mosaic_0001>
module attributes {stable_mosaic.version = 11 : i64} {
  func.func @_fused_block_kernel(%arg0: i32, %arg1: memref<1x16x1280xbf16, #tpu.memory_space<vmem>>, %arg2: memref<1x1024xf32, #tpu.memory_space<vmem>>, %arg3: memref<16x432xbf16, #tpu.memory_space<vmem>>, %arg4: memref<16x432xbf16, #tpu.memory_space<vmem>>, %arg5: memref<1x16x1xf32, #tpu.memory_space<vmem>>, %arg6: memref<1x16x1xf32, #tpu.memory_space<vmem>>, %arg7: memref<1x16x1xf32, #tpu.memory_space<vmem>>, %arg8: memref<1x16x1xf32, #tpu.memory_space<vmem>>, %arg9: memref<1x16x1024xbf16, #tpu.memory_space<vmem>>, %arg10: memref<432x1024xbf16, #tpu.memory_space<vmem>>, %arg11: memref<16x1024xf32, #tpu.memory_space<vmem>>, %arg12: memref<16x1280xbf16, #tpu.memory_space<vmem>>) attributes {dimension_semantics = [#tpu.dimension_semantics<parallel>], iteration_bounds = array<i64: 2>, scalar_prefetch = 0 : i64, scratch_operands = 3 : i64, tpu.core_type = #tpu.core_type<tc>, window_params = [{transform_indices = @transform_0, window_bounds = array<i64: 1, 16, 1280>}, {pipeline_mode = #tpu.pipeline_mode<synchronous>, transform_indices = @transform_1, window_bounds = array<i64: 1, 1024>}, {pipeline_mode = #tpu.pipeline_mode<synchronous>, transform_indices = @transform_2, window_bounds = array<i64: 16, 432>}, {pipeline_mode = #tpu.pipeline_mode<synchronous>, transform_indices = @transform_3, window_bounds = array<i64: 16, 432>}, {transform_indices = @transform_4, window_bounds = array<i64: 1, 16, 1>}, {transform_indices = @transform_5, window_bounds = array<i64: 1, 16, 1>}, {transform_indices = @transform_6, window_bounds = array<i64: 1, 16, 1>}, {transform_indices = @transform_7, window_bounds = array<i64: 1, 16, 1>}, {transform_indices = @transform_8, window_bounds = array<i64: 1, 16, 1024>}]} {
    %c0 = arith.constant 0 : index
    %c0_0 = arith.constant 0 : index
    %0 = vector.load %arg2[%c0, %c0_0] : memref<1x1024xf32, #tpu.memory_space<vmem>>, vector<1x1024xf32>
    %c0_1 = arith.constant 0 : index
    %c0_2 = arith.constant 0 : index
    %c0_3 = arith.constant 0 : index
    %1 = vector.load %arg1[%c0_1, %c0_2, %c0_3] : memref<1x16x1280xbf16, #tpu.memory_space<vmem>>, vector<1x16x1024xbf16>
    %2 = vector.shape_cast %1 : vector<1x16x1024xbf16> to vector<16x1024xbf16>
    %c0_4 = arith.constant 0 : index
    %c0_5 = arith.constant 0 : index
    %3 = vector.load %arg10[%c0_4, %c0_5] : memref<432x1024xbf16, #tpu.memory_space<vmem>>, vector<16x1024xbf16>
    tpu.vector_store %arg10[%c0_4, %c0_5], %2 {strides = array<i32>} : memref<432x1024xbf16, #tpu.memory_space<vmem>>, vector<16x1024xbf16>,
    %c0_6 = arith.constant 0 : index
    %c0_7 = arith.constant 0 : index
    %c1 = arith.constant 1 : index
    %4 = vector.load %arg1[%c0_6, %c0_7, %c1] : memref<1x16x1280xbf16, #tpu.memory_space<vmem>>, vector<1x16x1024xbf16>
    %5 = vector.shape_cast %4 : vector<1x16x1024xbf16> to vector<16x1024xbf16>
    %c16 = arith.constant 16 : index
    %c0_8 = arith.constant 0 : index
    %6 = vector.load %arg10[%c16, %c0_8] : memref<432x1024xbf16, #tpu.memory_space<vmem>>, vector<16x1024xbf16>
    tpu.vector_store %arg10[%c16, %c0_8], %5 {strides = array<i32>} : memref<432x1024xbf16, #tpu.memory_space<vmem>>, vector<16x1024xbf16>,
    %c0_9 = arith.constant 0 : index
    %c0_10 = arith.constant 0 : index
    %c2 = arith.constant 2 : index
    %7 = vector.load %arg1[%c0_9, %c0_10, %c2] : memref<1x16x1280xbf16, #tpu.memory_space<vmem>>, vector<1x16x1024xbf16>
    %8 = vector.shape_cast %7 : vector<1x16x1024xbf16> to vector<16x1024xbf16>
    %c32 = arith.constant 32 : index
    %c0_11 = arith.constant 0 : index
    %9 = vector.load %arg10[%c32, %c0_11] : memref<432x1024xbf16, #tpu.memory_space<vmem>>, vector<16x1024xbf16>
    tpu.vector_store %arg10[%c32, %c0_11], %8 {strides = array<i32>} : memref<432x1024xbf16, #tpu.memory_space<vmem>>, vector<16x1024xbf16>,
    %c0_12 = arith.constant 0 : index
    %c0_13 = arith.constant 0 : index
    %c10 = arith.constant 10 : index
    %10 = vector.load %arg1[%c0_12, %c0_13, %c10] : memref<1x16x1280xbf16, #tpu.memory_space<vmem>>, vector<1x16x1024xbf16>
    %11 = vector.shape_cast %10 : vector<1x16x1024xbf16> to vector<16x1024xbf16>
    %c48 = arith.constant 48 : index
    %c0_14 = arith.constant 0 : index
    %12 = vector.load %arg10[%c48, %c0_14] : memref<432x1024xbf16, #tpu.memory_space<vmem>>, vector<16x1024xbf16>
    tpu.vector_store %arg10[%c48, %c0_14], %11 {strides = array<i32>} : memref<432x1024xbf16, #tpu.memory_space<vmem>>, vector<16x1024xbf16>,
    %c0_15 = arith.constant 0 : index
    %c0_16 = arith.constant 0 : index
    %c11 = arith.constant 11 : index
    %13 = vector.load %arg1[%c0_15, %c0_16, %c11] : memref<1x16x1280xbf16, #tpu.memory_space<vmem>>, vector<1x16x1024xbf16>
    %14 = vector.shape_cast %13 : vector<1x16x1024xbf16> to vector<16x1024xbf16>
    %c64 = arith.constant 64 : index
    %c0_17 = arith.constant 0 : index
    %15 = vector.load %arg10[%c64, %c0_17] : memref<432x1024xbf16, #tpu.memory_space<vmem>>, vector<16x1024xbf16>
    tpu.vector_store %arg10[%c64, %c0_17], %14 {strides = array<i32>} : memref<432x1024xbf16, #tpu.memory_space<vmem>>, vector<16x1024xbf16>,
    %c0_18 = arith.constant 0 : index
    %c0_19 = arith.constant 0 : index
    %c12 = arith.constant 12 : index
    %16 = vector.load %arg1[%c0_18, %c0_19, %c12] : memref<1x16x1280xbf16, #tpu.memory_space<vmem>>, vector<1x16x1024xbf16>
    %17 = vector.shape_cast %16 : vector<1x16x1024xbf16> to vector<16x1024xbf16>
    %c80 = arith.constant 80 : index
    %c0_20 = arith.constant 0 : index
    %18 = vector.load %arg10[%c80, %c0_20] : memref<432x1024xbf16, #tpu.memory_space<vmem>>, vector<16x1024xbf16>
    tpu.vector_store %arg10[%c80, %c0_20], %17 {strides = array<i32>} : memref<432x1024xbf16, #tpu.memory_space<vmem>>, vector<16x1024xbf16>,
    %c0_21 = arith.constant 0 : index
    %c0_22 = arith.constant 0 : index
    %c20 = arith.constant 20 : index
    %19 = vector.load %arg1[%c0_21, %c0_22, %c20] : memref<1x16x1280xbf16, #tpu.memory_space<vmem>>, vector<1x16x1024xbf16>
    %20 = vector.shape_cast %19 : vector<1x16x1024xbf16> to vector<16x1024xbf16>
    %c96 = arith.constant 96 : index
    %c0_23 = arith.constant 0 : index
    %21 = vector.load %arg10[%c96, %c0_23] : memref<432x1024xbf16, #tpu.memory_space<vmem>>, vector<16x1024xbf16>
    tpu.vector_store %arg10[%c96, %c0_23], %20 {strides = array<i32>} : memref<432x1024xbf16, #tpu.memory_space<vmem>>, vector<16x1024xbf16>,
    %c0_24 = arith.constant 0 : index
    %c0_25 = arith.constant 0 : index
    %c21 = arith.constant 21 : index
    %22 = vector.load %arg1[%c0_24, %c0_25, %c21] : memref<1x16x1280xbf16, #tpu.memory_space<vmem>>, vector<1x16x1024xbf16>
    %23 = vector.shape_cast %22 : vector<1x16x1024xbf16> to vector<16x1024xbf16>
    %c112 = arith.constant 112 : index
    %c0_26 = arith.constant 0 : index
    %24 = vector.load %arg10[%c112, %c0_26] : memref<432x1024xbf16, #tpu.memory_space<vmem>>, vector<16x1024xbf16>
    tpu.vector_store %arg10[%c112, %c0_26], %23 {strides = array<i32>} : memref<432x1024xbf16, #tpu.memory_space<vmem>>, vector<16x1024xbf16>,
    %c0_27 = arith.constant 0 : index
    %c0_28 = arith.constant 0 : index
    %c22 = arith.constant 22 : index
    %25 = vector.load %arg1[%c0_27, %c0_28, %c22] : memref<1x16x1280xbf16, #tpu.memory_space<vmem>>, vector<1x16x1024xbf16>
    %26 = vector.shape_cast %25 : vector<1x16x1024xbf16> to vector<16x1024xbf16>
    %c128 = arith.constant 128 : index
    %c0_29 = arith.constant 0 : index
    %27 = vector.load %arg10[%c128, %c0_29] : memref<432x1024xbf16, #tpu.memory_space<vmem>>, vector<16x1024xbf16>
    tpu.vector_store %arg10[%c128, %c0_29], %26 {strides = array<i32>} : memref<432x1024xbf16, #tpu.memory_space<vmem>>, vector<16x1024xbf16>,
    %c0_30 = arith.constant 0 : index
    %c0_31 = arith.constant 0 : index
    %c100 = arith.constant 100 : index
    %28 = vector.load %arg1[%c0_30, %c0_31, %c100] : memref<1x16x1280xbf16, #tpu.memory_space<vmem>>, vector<1x16x1024xbf16>
    %29 = vector.shape_cast %28 : vector<1x16x1024xbf16> to vector<16x1024xbf16>
    %c144 = arith.constant 144 : index
    %c0_32 = arith.constant 0 : index
    %30 = vector.load %arg10[%c144, %c0_32] : memref<432x1024xbf16, #tpu.memory_space<vmem>>, vector<16x1024xbf16>
    tpu.vector_store %arg10[%c144, %c0_32], %29 {strides = array<i32>} : memref<432x1024xbf16, #tpu.memory_space<vmem>>, vector<16x1024xbf16>,
    %c0_33 = arith.constant 0 : index
    %c0_34 = arith.constant 0 : index
    %c101 = arith.constant 101 : index
    %31 = vector.load %arg1[%c0_33, %c0_34, %c101] : memref<1x16x1280xbf16, #tpu.memory_space<vmem>>, vector<1x16x1024xbf16>
    %32 = vector.shape_cast %31 : vector<1x16x1024xbf16> to vector<16x1024xbf16>
    %c160 = arith.constant 160 : index
    %c0_35 = arith.constant 0 : index
    %33 = vector.load %arg10[%c160, %c0_35] : memref<432x1024xbf16, #tpu.memory_space<vmem>>, vector<16x1024xbf16>
    tpu.vector_store %arg10[%c160, %c0_35], %32 {strides = array<i32>} : memref<432x1024xbf16, #tpu.memory_space<vmem>>, vector<16x1024xbf16>,
    %c0_36 = arith.constant 0 : index
    %c0_37 = arith.constant 0 : index
    %c102 = arith.constant 102 : index
    %34 = vector.load %arg1[%c0_36, %c0_37, %c102] : memref<1x16x1280xbf16, #tpu.memory_space<vmem>>, vector<1x16x1024xbf16>
    %35 = vector.shape_cast %34 : vector<1x16x1024xbf16> to vector<16x1024xbf16>
    %c176 = arith.constant 176 : index
    %c0_38 = arith.constant 0 : index
    %36 = vector.load %arg10[%c176, %c0_38] : memref<432x1024xbf16, #tpu.memory_space<vmem>>, vector<16x1024xbf16>
    tpu.vector_store %arg10[%c176, %c0_38], %35 {strides = array<i32>} : memref<432x1024xbf16, #tpu.memory_space<vmem>>, vector<16x1024xbf16>,
    %c0_39 = arith.constant 0 : index
    %c0_40 = arith.constant 0 : index
    %c110 = arith.constant 110 : index
    %37 = vector.load %arg1[%c0_39, %c0_40, %c110] : memref<1x16x1280xbf16, #tpu.memory_space<vmem>>, vector<1x16x1024xbf16>
    %38 = vector.shape_cast %37 : vector<1x16x1024xbf16> to vector<16x1024xbf16>
    %c192 = arith.constant 192 : index
    %c0_41 = arith.constant 0 : index
    %39 = vector.load %arg10[%c192, %c0_41] : memref<432x1024xbf16, #tpu.memory_space<vmem>>, vector<16x1024xbf16>
    tpu.vector_store %arg10[%c192, %c0_41], %38 {strides = array<i32>} : memref<432x1024xbf16, #tpu.memory_space<vmem>>, vector<16x1024xbf16>,
    %c0_42 = arith.constant 0 : index
    %c0_43 = arith.constant 0 : index
    %c111 = arith.constant 111 : index
    %40 = vector.load %arg1[%c0_42, %c0_43, %c111] : memref<1x16x1280xbf16, #tpu.memory_space<vmem>>, vector<1x16x1024xbf16>
    %41 = vector.shape_cast %40 : vector<1x16x1024xbf16> to vector<16x1024xbf16>
    %c208 = arith.constant 208 : index
    %c0_44 = arith.constant 0 : index
    %42 = vector.load %arg10[%c208, %c0_44] : memref<432x1024xbf16, #tpu.memory_space<vmem>>, vector<16x1024xbf16>
    tpu.vector_store %arg10[%c208, %c0_44], %41 {strides = array<i32>} : memref<432x1024xbf16, #tpu.memory_space<vmem>>, vector<16x1024xbf16>,
    %c0_45 = arith.constant 0 : index
    %c0_46 = arith.constant 0 : index
    %c112_47 = arith.constant 112 : index
    %43 = vector.load %arg1[%c0_45, %c0_46, %c112_47] : memref<1x16x1280xbf16, #tpu.memory_space<vmem>>, vector<1x16x1024xbf16>
    %44 = vector.shape_cast %43 : vector<1x16x1024xbf16> to vector<16x1024xbf16>
    %c224 = arith.constant 224 : index
    %c0_48 = arith.constant 0 : index
    %45 = vector.load %arg10[%c224, %c0_48] : memref<432x1024xbf16, #tpu.memory_space<vmem>>, vector<16x1024xbf16>
    tpu.vector_store %arg10[%c224, %c0_48], %44 {strides = array<i32>} : memref<432x1024xbf16, #tpu.memory_space<vmem>>, vector<16x1024xbf16>,
    %c0_49 = arith.constant 0 : index
    %c0_50 = arith.constant 0 : index
    %c120 = arith.constant 120 : index
    %46 = vector.load %arg1[%c0_49, %c0_50, %c120] : memref<1x16x1280xbf16, #tpu.memory_space<vmem>>, vector<1x16x1024xbf16>
    %47 = vector.shape_cast %46 : vector<1x16x1024xbf16> to vector<16x1024xbf16>
    %c240 = arith.constant 240 : index
    %c0_51 = arith.constant 0 : index
    %48 = vector.load %arg10[%c240, %c0_51] : memref<432x1024xbf16, #tpu.memory_space<vmem>>, vector<16x1024xbf16>
    tpu.vector_store %arg10[%c240, %c0_51], %47 {strides = array<i32>} : memref<432x1024xbf16, #tpu.memory_space<vmem>>, vector<16x1024xbf16>,
    %c0_52 = arith.constant 0 : index
    %c0_53 = arith.constant 0 : index
    %c121 = arith.constant 121 : index
    %49 = vector.load %arg1[%c0_52, %c0_53, %c121] : memref<1x16x1280xbf16, #tpu.memory_space<vmem>>, vector<1x16x1024xbf16>
    %50 = vector.shape_cast %49 : vector<1x16x1024xbf16> to vector<16x1024xbf16>
    %c256 = arith.constant 256 : index
    %c0_54 = arith.constant 0 : index
    %51 = vector.load %arg10[%c256, %c0_54] : memref<432x1024xbf16, #tpu.memory_space<vmem>>, vector<16x1024xbf16>
    tpu.vector_store %arg10[%c256, %c0_54], %50 {strides = array<i32>} : memref<432x1024xbf16, #tpu.memory_space<vmem>>, vector<16x1024xbf16>,
    %c0_55 = arith.constant 0 : index
    %c0_56 = arith.constant 0 : index
    %c122 = arith.constant 122 : index
    %52 = vector.load %arg1[%c0_55, %c0_56, %c122] : memref<1x16x1280xbf16, #tpu.memory_space<vmem>>, vector<1x16x1024xbf16>
    %53 = vector.shape_cast %52 : vector<1x16x1024xbf16> to vector<16x1024xbf16>
    %c272 = arith.constant 272 : index
    %c0_57 = arith.constant 0 : index
    %54 = vector.load %arg10[%c272, %c0_57] : memref<432x1024xbf16, #tpu.memory_space<vmem>>, vector<16x1024xbf16>
    tpu.vector_store %arg10[%c272, %c0_57], %53 {strides = array<i32>} : memref<432x1024xbf16, #tpu.memory_space<vmem>>, vector<16x1024xbf16>,
    %c0_58 = arith.constant 0 : index
    %c0_59 = arith.constant 0 : index
    %c200 = arith.constant 200 : index
    %55 = vector.load %arg1[%c0_58, %c0_59, %c200] : memref<1x16x1280xbf16, #tpu.memory_space<vmem>>, vector<1x16x1024xbf16>
    %56 = vector.shape_cast %55 : vector<1x16x1024xbf16> to vector<16x1024xbf16>
    %c288 = arith.constant 288 : index
    %c0_60 = arith.constant 0 : index
    %57 = vector.load %arg10[%c288, %c0_60] : memref<432x1024xbf16, #tpu.memory_space<vmem>>, vector<16x1024xbf16>
    tpu.vector_store %arg10[%c288, %c0_60], %56 {strides = array<i32>} : memref<432x1024xbf16, #tpu.memory_space<vmem>>, vector<16x1024xbf16>,
    %c0_61 = arith.constant 0 : index
    %c0_62 = arith.constant 0 : index
    %c201 = arith.constant 201 : index
    %58 = vector.load %arg1[%c0_61, %c0_62, %c201] : memref<1x16x1280xbf16, #tpu.memory_space<vmem>>, vector<1x16x1024xbf16>
    %59 = vector.shape_cast %58 : vector<1x16x1024xbf16> to vector<16x1024xbf16>
    %c304 = arith.constant 304 : index
    %c0_63 = arith.constant 0 : index
    %60 = vector.load %arg10[%c304, %c0_63] : memref<432x1024xbf16, #tpu.memory_space<vmem>>, vector<16x1024xbf16>
    tpu.vector_store %arg10[%c304, %c0_63], %59 {strides = array<i32>} : memref<432x1024xbf16, #tpu.memory_space<vmem>>, vector<16x1024xbf16>,
    %c0_64 = arith.constant 0 : index
    %c0_65 = arith.constant 0 : index
    %c202 = arith.constant 202 : index
    %61 = vector.load %arg1[%c0_64, %c0_65, %c202] : memref<1x16x1280xbf16, #tpu.memory_space<vmem>>, vector<1x16x1024xbf16>
    %62 = vector.shape_cast %61 : vector<1x16x1024xbf16> to vector<16x1024xbf16>
    %c320 = arith.constant 320 : index
    %c0_66 = arith.constant 0 : index
    %63 = vector.load %arg10[%c320, %c0_66] : memref<432x1024xbf16, #tpu.memory_space<vmem>>, vector<16x1024xbf16>
    tpu.vector_store %arg10[%c320, %c0_66], %62 {strides = array<i32>} : memref<432x1024xbf16, #tpu.memory_space<vmem>>, vector<16x1024xbf16>,
    %c0_67 = arith.constant 0 : index
    %c0_68 = arith.constant 0 : index
    %c210 = arith.constant 210 : index
    %64 = vector.load %arg1[%c0_67, %c0_68, %c210] : memref<1x16x1280xbf16, #tpu.memory_space<vmem>>, vector<1x16x1024xbf16>
    %65 = vector.shape_cast %64 : vector<1x16x1024xbf16> to vector<16x1024xbf16>
    %c336 = arith.constant 336 : index
    %c0_69 = arith.constant 0 : index
    %66 = vector.load %arg10[%c336, %c0_69] : memref<432x1024xbf16, #tpu.memory_space<vmem>>, vector<16x1024xbf16>
    tpu.vector_store %arg10[%c336, %c0_69], %65 {strides = array<i32>} : memref<432x1024xbf16, #tpu.memory_space<vmem>>, vector<16x1024xbf16>,
    %c0_70 = arith.constant 0 : index
    %c0_71 = arith.constant 0 : index
    %c211 = arith.constant 211 : index
    %67 = vector.load %arg1[%c0_70, %c0_71, %c211] : memref<1x16x1280xbf16, #tpu.memory_space<vmem>>, vector<1x16x1024xbf16>
    %68 = vector.shape_cast %67 : vector<1x16x1024xbf16> to vector<16x1024xbf16>
    %c352 = arith.constant 352 : index
    %c0_72 = arith.constant 0 : index
    %69 = vector.load %arg10[%c352, %c0_72] : memref<432x1024xbf16, #tpu.memory_space<vmem>>, vector<16x1024xbf16>
    tpu.vector_store %arg10[%c352, %c0_72], %68 {strides = array<i32>} : memref<432x1024xbf16, #tpu.memory_space<vmem>>, vector<16x1024xbf16>,
    %c0_73 = arith.constant 0 : index
    %c0_74 = arith.constant 0 : index
    %c212 = arith.constant 212 : index
    %70 = vector.load %arg1[%c0_73, %c0_74, %c212] : memref<1x16x1280xbf16, #tpu.memory_space<vmem>>, vector<1x16x1024xbf16>
    %71 = vector.shape_cast %70 : vector<1x16x1024xbf16> to vector<16x1024xbf16>
    %c368 = arith.constant 368 : index
    %c0_75 = arith.constant 0 : index
    %72 = vector.load %arg10[%c368, %c0_75] : memref<432x1024xbf16, #tpu.memory_space<vmem>>, vector<16x1024xbf16>
    tpu.vector_store %arg10[%c368, %c0_75], %71 {strides = array<i32>} : memref<432x1024xbf16, #tpu.memory_space<vmem>>, vector<16x1024xbf16>,
    %c0_76 = arith.constant 0 : index
    %c0_77 = arith.constant 0 : index
    %c220 = arith.constant 220 : index
    %73 = vector.load %arg1[%c0_76, %c0_77, %c220] : memref<1x16x1280xbf16, #tpu.memory_space<vmem>>, vector<1x16x1024xbf16>
    %74 = vector.shape_cast %73 : vector<1x16x1024xbf16> to vector<16x1024xbf16>
    %c384 = arith.constant 384 : index
    %c0_78 = arith.constant 0 : index
    %75 = vector.load %arg10[%c384, %c0_78] : memref<432x1024xbf16, #tpu.memory_space<vmem>>, vector<16x1024xbf16>
    tpu.vector_store %arg10[%c384, %c0_78], %74 {strides = array<i32>} : memref<432x1024xbf16, #tpu.memory_space<vmem>>, vector<16x1024xbf16>,
    %c0_79 = arith.constant 0 : index
    %c0_80 = arith.constant 0 : index
    %c221 = arith.constant 221 : index
    %76 = vector.load %arg1[%c0_79, %c0_80, %c221] : memref<1x16x1280xbf16, #tpu.memory_space<vmem>>, vector<1x16x1024xbf16>
    %77 = vector.shape_cast %76 : vector<1x16x1024xbf16> to vector<16x1024xbf16>
    %c400 = arith.constant 400 : index
    %c0_81 = arith.constant 0 : index
    %78 = vector.load %arg10[%c400, %c0_81] : memref<432x1024xbf16, #tpu.memory_space<vmem>>, vector<16x1024xbf16>
    tpu.vector_store %arg10[%c400, %c0_81], %77 {strides = array<i32>} : memref<432x1024xbf16, #tpu.memory_space<vmem>>, vector<16x1024xbf16>,
    %c0_82 = arith.constant 0 : index
    %c0_83 = arith.constant 0 : index
    %c222 = arith.constant 222 : index
    %79 = vector.load %arg1[%c0_82, %c0_83, %c222] : memref<1x16x1280xbf16, #tpu.memory_space<vmem>>, vector<1x16x1024xbf16>
    %80 = vector.shape_cast %79 : vector<1x16x1024xbf16> to vector<16x1024xbf16>
    %c416 = arith.constant 416 : index
    %c0_84 = arith.constant 0 : index
    %81 = vector.load %arg10[%c416, %c0_84] : memref<432x1024xbf16, #tpu.memory_space<vmem>>, vector<16x1024xbf16>
    tpu.vector_store %arg10[%c416, %c0_84], %80 {strides = array<i32>} : memref<432x1024xbf16, #tpu.memory_space<vmem>>, vector<16x1024xbf16>,
    %c0_85 = arith.constant 0 : index
    %c0_86 = arith.constant 0 : index
    %82 = vector.load %arg3[%c0_85, %c0_86] : memref<16x432xbf16, #tpu.memory_space<vmem>>, vector<16x432xbf16>
    %c0_87 = arith.constant 0 : index
    %c0_88 = arith.constant 0 : index
    %83 = vector.load %arg10[%c0_87, %c0_88] : memref<432x1024xbf16, #tpu.memory_space<vmem>>, vector<432x1024xbf16>
    %cst = arith.constant dense<0.000000e+00> : vector<16x1024xf32>
    %84 = tpu.matmul %82, %83, %cst {dimension_numbers = #tpu.dot_dimension_numbers<[1], [0], [0], [1], [0, 0, 1, 1], [], []>} : vector<16x432xbf16>, vector<432x1024xbf16>, vector<16x1024xf32> -> vector<16x1024xf32>
    %c0_89 = arith.constant 0 : index
    %c0_90 = arith.constant 0 : index
    %85 = vector.load %arg11[%c0_89, %c0_90] : memref<16x1024xf32, #tpu.memory_space<vmem>>, vector<16x1024xf32>
    tpu.vector_store %arg11[%c0_89, %c0_90], %84 {strides = array<i32>} : memref<16x1024xf32, #tpu.memory_space<vmem>>, vector<16x1024xf32>,
    %c0_91 = arith.constant 0 : index
    %c0_92 = arith.constant 0 : index
    %86 = vector.load %arg11[%c0_91, %c0_92] : memref<16x1024xf32, #tpu.memory_space<vmem>>, vector<16x1024xf32>
    %c0_93 = arith.constant 0 : index
    %c0_94 = arith.constant 0 : index
    %c0_95 = arith.constant 0 : index
    %87 = vector.load %arg5[%c0_93, %c0_94, %c0_95] : memref<1x16x1xf32, #tpu.memory_space<vmem>>, vector<1x16x1xf32>
    %88 = vector.shape_cast %87 : vector<1x16x1xf32> to vector<16x1xf32>
    %c0_96 = arith.constant 0 : index
    %c0_97 = arith.constant 0 : index
    %c0_98 = arith.constant 0 : index
    %89 = vector.load %arg6[%c0_96, %c0_97, %c0_98] : memref<1x16x1xf32, #tpu.memory_space<vmem>>, vector<1x16x1xf32>
    %90 = vector.shape_cast %89 : vector<1x16x1xf32> to vector<16x1xf32>
    %91 = vector.broadcast %0 : vector<1x1024xf32> to vector<16x1024xf32>
    %92 = arith.mulf %86, %91 : vector<16x1024xf32>
    %cst_99 = arith.constant dense<0.000000e+00> : vector<16xf32>
    %93 = vector.multi_reduction <add>, %92, %cst_99 [1] : vector<16x1024xf32> to vector<16xf32>
    %94 = vector.shape_cast %93 : vector<16xf32> to vector<16x1xf32>
    %cst_100 = arith.constant 0.001953125 : f32
    %95 = vector.broadcast %cst_100 : f32 to vector<16x1xf32>
    %96 = arith.mulf %94, %95 : vector<16x1xf32>
    %97 = vector.broadcast %96 : vector<16x1xf32> to vector<16x1024xf32>
    %98 = arith.subf %86, %97 : vector<16x1024xf32>
    %99 = arith.mulf %98, %92 : vector<16x1024xf32>
    %cst_101 = arith.constant dense<0.000000e+00> : vector<16xf32>
    %100 = vector.multi_reduction <add>, %99, %cst_101 [1] : vector<16x1024xf32> to vector<16xf32>
    %101 = vector.shape_cast %100 : vector<16xf32> to vector<16x1xf32>
    %cst_102 = arith.constant 0.001953125 : f32
    %102 = vector.broadcast %cst_102 : f32 to vector<16x1xf32>
    %103 = arith.mulf %101, %102 : vector<16x1xf32>
    %cst_103 = arith.constant 9.99999974E-6 : f32
    %104 = vector.broadcast %cst_103 : f32 to vector<16x1xf32>
    %105 = arith.addf %103, %104 : vector<16x1xf32>
    %106 = math.rsqrt %105 : vector<16x1xf32>
    %107 = vector.broadcast %106 : vector<16x1xf32> to vector<16x1024xf32>
    %108 = arith.mulf %98, %107 : vector<16x1024xf32>
    %109 = vector.broadcast %88 : vector<16x1xf32> to vector<16x1024xf32>
    %110 = arith.mulf %109, %108 : vector<16x1024xf32>
    %111 = vector.broadcast %90 : vector<16x1xf32> to vector<16x1024xf32>
    %112 = arith.addf %110, %111 : vector<16x1024xf32>
    %cst_104 = arith.constant 0.000000e+00 : f32
    %113 = vector.broadcast %cst_104 : f32 to vector<16x1024xf32>
    %114 = arith.cmpf oge, %112, %113 : vector<16x1024xf32>
    %cst_105 = arith.constant 2.000000e-01 : f32
    %115 = vector.broadcast %cst_105 : f32 to vector<16x1024xf32>
    %116 = arith.mulf %115, %112 : vector<16x1024xf32>
    %117 = arith.select %114, %112, %116 : vector<16x1024xi1>, vector<16x1024xf32>
    %118 = vector.broadcast %0 : vector<1x1024xf32> to vector<16x1024xf32>
    %119 = arith.mulf %117, %118 : vector<16x1024xf32>
    %cst_106 = arith.constant 0.000000e+00 : bf16
    %120 = vector.broadcast %cst_106 : bf16 to vector<16x128xbf16>
    %c0_107 = arith.constant 0 : index
    %c0_108 = arith.constant 0 : index
    %121 = vector.load %arg12[%c0_107, %c0_108] : memref<16x1280xbf16, #tpu.memory_space<vmem>>, vector<16x128xbf16>
    tpu.vector_store %arg12[%c0_107, %c0_108], %120 {strides = array<i32>} : memref<16x1280xbf16, #tpu.memory_space<vmem>>, vector<16x128xbf16>,
    %cst_109 = arith.constant 0.000000e+00 : bf16
    %122 = vector.broadcast %cst_109 : bf16 to vector<16x128xbf16>
    %c0_110 = arith.constant 0 : index
    %c1152 = arith.constant 1152 : index
    %123 = vector.load %arg12[%c0_110, %c1152] : memref<16x1280xbf16, #tpu.memory_space<vmem>>, vector<16x128xbf16>
    tpu.vector_store %arg12[%c0_110, %c1152], %122 {strides = array<i32>} : memref<16x1280xbf16, #tpu.memory_space<vmem>>, vector<16x128xbf16>,
    %124 = arith.truncf %119 : vector<16x1024xf32> to vector<16x1024xbf16>
    %c0_111 = arith.constant 0 : index
    %c128_112 = arith.constant 128 : index
    %125 = vector.load %arg12[%c0_111, %c128_112] : memref<16x1280xbf16, #tpu.memory_space<vmem>>, vector<16x1024xbf16>
    tpu.vector_store %arg12[%c0_111, %c128_112], %124 {strides = array<i32>} : memref<16x1280xbf16, #tpu.memory_space<vmem>>, vector<16x1024xbf16>,
    %c0_113 = arith.constant 0 : index
    %c17 = arith.constant 17 : index
    %126 = vector.load %arg12[%c0_113, %c17] : memref<16x1280xbf16, #tpu.memory_space<vmem>>, vector<16x1024xbf16>
    %c0_114 = arith.constant 0 : index
    %c0_115 = arith.constant 0 : index
    %127 = vector.load %arg10[%c0_114, %c0_115] : memref<432x1024xbf16, #tpu.memory_space<vmem>>, vector<16x1024xbf16>
    tpu.vector_store %arg10[%c0_114, %c0_115], %126 {strides = array<i32>} : memref<432x1024xbf16, #tpu.memory_space<vmem>>, vector<16x1024xbf16>,
    %c0_116 = arith.constant 0 : index
    %c18 = arith.constant 18 : index
    %128 = vector.load %arg12[%c0_116, %c18] : memref<16x1280xbf16, #tpu.memory_space<vmem>>, vector<16x1024xbf16>
    %c16_117 = arith.constant 16 : index
    %c0_118 = arith.constant 0 : index
    %129 = vector.load %arg10[%c16_117, %c0_118] : memref<432x1024xbf16, #tpu.memory_space<vmem>>, vector<16x1024xbf16>
    tpu.vector_store %arg10[%c16_117, %c0_118], %128 {strides = array<i32>} : memref<432x1024xbf16, #tpu.memory_space<vmem>>, vector<16x1024xbf16>,
    %c0_119 = arith.constant 0 : index
    %c19 = arith.constant 19 : index
    %130 = vector.load %arg12[%c0_119, %c19] : memref<16x1280xbf16, #tpu.memory_space<vmem>>, vector<16x1024xbf16>
    %c32_120 = arith.constant 32 : index
    %c0_121 = arith.constant 0 : index
    %131 = vector.load %arg10[%c32_120, %c0_121] : memref<432x1024xbf16, #tpu.memory_space<vmem>>, vector<16x1024xbf16>
    tpu.vector_store %arg10[%c32_120, %c0_121], %130 {strides = array<i32>} : memref<432x1024xbf16, #tpu.memory_space<vmem>>, vector<16x1024xbf16>,
    %c0_122 = arith.constant 0 : index
    %c27 = arith.constant 27 : index
    %132 = vector.load %arg12[%c0_122, %c27] : memref<16x1280xbf16, #tpu.memory_space<vmem>>, vector<16x1024xbf16>
    %c48_123 = arith.constant 48 : index
    %c0_124 = arith.constant 0 : index
    %133 = vector.load %arg10[%c48_123, %c0_124] : memref<432x1024xbf16, #tpu.memory_space<vmem>>, vector<16x1024xbf16>
    tpu.vector_store %arg10[%c48_123, %c0_124], %132 {strides = array<i32>} : memref<432x1024xbf16, #tpu.memory_space<vmem>>, vector<16x1024xbf16>,
    %c0_125 = arith.constant 0 : index
    %c28 = arith.constant 28 : index
    %134 = vector.load %arg12[%c0_125, %c28] : memref<16x1280xbf16, #tpu.memory_space<vmem>>, vector<16x1024xbf16>
    %c64_126 = arith.constant 64 : index
    %c0_127 = arith.constant 0 : index
    %135 = vector.load %arg10[%c64_126, %c0_127] : memref<432x1024xbf16, #tpu.memory_space<vmem>>, vector<16x1024xbf16>
    tpu.vector_store %arg10[%c64_126, %c0_127], %134 {strides = array<i32>} : memref<432x1024xbf16, #tpu.memory_space<vmem>>, vector<16x1024xbf16>,
    %c0_128 = arith.constant 0 : index
    %c29 = arith.constant 29 : index
    %136 = vector.load %arg12[%c0_128, %c29] : memref<16x1280xbf16, #tpu.memory_space<vmem>>, vector<16x1024xbf16>
    %c80_129 = arith.constant 80 : index
    %c0_130 = arith.constant 0 : index
    %137 = vector.load %arg10[%c80_129, %c0_130] : memref<432x1024xbf16, #tpu.memory_space<vmem>>, vector<16x1024xbf16>
    tpu.vector_store %arg10[%c80_129, %c0_130], %136 {strides = array<i32>} : memref<432x1024xbf16, #tpu.memory_space<vmem>>, vector<16x1024xbf16>,
    %c0_131 = arith.constant 0 : index
    %c37 = arith.constant 37 : index
    %138 = vector.load %arg12[%c0_131, %c37] : memref<16x1280xbf16, #tpu.memory_space<vmem>>, vector<16x1024xbf16>
    %c96_132 = arith.constant 96 : index
    %c0_133 = arith.constant 0 : index
    %139 = vector.load %arg10[%c96_132, %c0_133] : memref<432x1024xbf16, #tpu.memory_space<vmem>>, vector<16x1024xbf16>
    tpu.vector_store %arg10[%c96_132, %c0_133], %138 {strides = array<i32>} : memref<432x1024xbf16, #tpu.memory_space<vmem>>, vector<16x1024xbf16>,
    %c0_134 = arith.constant 0 : index
    %c38 = arith.constant 38 : index
    %140 = vector.load %arg12[%c0_134, %c38] : memref<16x1280xbf16, #tpu.memory_space<vmem>>, vector<16x1024xbf16>
    %c112_135 = arith.constant 112 : index
    %c0_136 = arith.constant 0 : index
    %141 = vector.load %arg10[%c112_135, %c0_136] : memref<432x1024xbf16, #tpu.memory_space<vmem>>, vector<16x1024xbf16>
    tpu.vector_store %arg10[%c112_135, %c0_136], %140 {strides = array<i32>} : memref<432x1024xbf16, #tpu.memory_space<vmem>>, vector<16x1024xbf16>,
    %c0_137 = arith.constant 0 : index
    %c39 = arith.constant 39 : index
    %142 = vector.load %arg12[%c0_137, %c39] : memref<16x1280xbf16, #tpu.memory_space<vmem>>, vector<16x1024xbf16>
    %c128_138 = arith.constant 128 : index
    %c0_139 = arith.constant 0 : index
    %143 = vector.load %arg10[%c128_138, %c0_139] : memref<432x1024xbf16, #tpu.memory_space<vmem>>, vector<16x1024xbf16>
    tpu.vector_store %arg10[%c128_138, %c0_139], %142 {strides = array<i32>} : memref<432x1024xbf16, #tpu.memory_space<vmem>>, vector<16x1024xbf16>,
    %c0_140 = arith.constant 0 : index
    %c117 = arith.constant 117 : index
    %144 = vector.load %arg12[%c0_140, %c117] : memref<16x1280xbf16, #tpu.memory_space<vmem>>, vector<16x1024xbf16>
    %c144_141 = arith.constant 144 : index
    %c0_142 = arith.constant 0 : index
    %145 = vector.load %arg10[%c144_141, %c0_142] : memref<432x1024xbf16, #tpu.memory_space<vmem>>, vector<16x1024xbf16>
    tpu.vector_store %arg10[%c144_141, %c0_142], %144 {strides = array<i32>} : memref<432x1024xbf16, #tpu.memory_space<vmem>>, vector<16x1024xbf16>,
    %c0_143 = arith.constant 0 : index
    %c118 = arith.constant 118 : index
    %146 = vector.load %arg12[%c0_143, %c118] : memref<16x1280xbf16, #tpu.memory_space<vmem>>, vector<16x1024xbf16>
    %c160_144 = arith.constant 160 : index
    %c0_145 = arith.constant 0 : index
    %147 = vector.load %arg10[%c160_144, %c0_145] : memref<432x1024xbf16, #tpu.memory_space<vmem>>, vector<16x1024xbf16>
    tpu.vector_store %arg10[%c160_144, %c0_145], %146 {strides = array<i32>} : memref<432x1024xbf16, #tpu.memory_space<vmem>>, vector<16x1024xbf16>,
    %c0_146 = arith.constant 0 : index
    %c119 = arith.constant 119 : index
    %148 = vector.load %arg12[%c0_146, %c119] : memref<16x1280xbf16, #tpu.memory_space<vmem>>, vector<16x1024xbf16>
    %c176_147 = arith.constant 176 : index
    %c0_148 = arith.constant 0 : index
    %149 = vector.load %arg10[%c176_147, %c0_148] : memref<432x1024xbf16, #tpu.memory_space<vmem>>, vector<16x1024xbf16>
    tpu.vector_store %arg10[%c176_147, %c0_148], %148 {strides = array<i32>} : memref<432x1024xbf16, #tpu.memory_space<vmem>>, vector<16x1024xbf16>,
    %c0_149 = arith.constant 0 : index
    %c127 = arith.constant 127 : index
    %150 = vector.load %arg12[%c0_149, %c127] : memref<16x1280xbf16, #tpu.memory_space<vmem>>, vector<16x1024xbf16>
    %c192_150 = arith.constant 192 : index
    %c0_151 = arith.constant 0 : index
    %151 = vector.load %arg10[%c192_150, %c0_151] : memref<432x1024xbf16, #tpu.memory_space<vmem>>, vector<16x1024xbf16>
    tpu.vector_store %arg10[%c192_150, %c0_151], %150 {strides = array<i32>} : memref<432x1024xbf16, #tpu.memory_space<vmem>>, vector<16x1024xbf16>,
    %c0_152 = arith.constant 0 : index
    %c128_153 = arith.constant 128 : index
    %152 = vector.load %arg12[%c0_152, %c128_153] : memref<16x1280xbf16, #tpu.memory_space<vmem>>, vector<16x1024xbf16>
    %c208_154 = arith.constant 208 : index
    %c0_155 = arith.constant 0 : index
    %153 = vector.load %arg10[%c208_154, %c0_155] : memref<432x1024xbf16, #tpu.memory_space<vmem>>, vector<16x1024xbf16>
    tpu.vector_store %arg10[%c208_154, %c0_155], %152 {strides = array<i32>} : memref<432x1024xbf16, #tpu.memory_space<vmem>>, vector<16x1024xbf16>,
    %c0_156 = arith.constant 0 : index
    %c129 = arith.constant 129 : index
    %154 = vector.load %arg12[%c0_156, %c129] : memref<16x1280xbf16, #tpu.memory_space<vmem>>, vector<16x1024xbf16>
    %c224_157 = arith.constant 224 : index
    %c0_158 = arith.constant 0 : index
    %155 = vector.load %arg10[%c224_157, %c0_158] : memref<432x1024xbf16, #tpu.memory_space<vmem>>, vector<16x1024xbf16>
    tpu.vector_store %arg10[%c224_157, %c0_158], %154 {strides = array<i32>} : memref<432x1024xbf16, #tpu.memory_space<vmem>>, vector<16x1024xbf16>,
    %c0_159 = arith.constant 0 : index
    %c137 = arith.constant 137 : index
    %156 = vector.load %arg12[%c0_159, %c137] : memref<16x1280xbf16, #tpu.memory_space<vmem>>, vector<16x1024xbf16>
    %c240_160 = arith.constant 240 : index
    %c0_161 = arith.constant 0 : index
    %157 = vector.load %arg10[%c240_160, %c0_161] : memref<432x1024xbf16, #tpu.memory_space<vmem>>, vector<16x1024xbf16>
    tpu.vector_store %arg10[%c240_160, %c0_161], %156 {strides = array<i32>} : memref<432x1024xbf16, #tpu.memory_space<vmem>>, vector<16x1024xbf16>,
    %c0_162 = arith.constant 0 : index
    %c138 = arith.constant 138 : index
    %158 = vector.load %arg12[%c0_162, %c138] : memref<16x1280xbf16, #tpu.memory_space<vmem>>, vector<16x1024xbf16>
    %c256_163 = arith.constant 256 : index
    %c0_164 = arith.constant 0 : index
    %159 = vector.load %arg10[%c256_163, %c0_164] : memref<432x1024xbf16, #tpu.memory_space<vmem>>, vector<16x1024xbf16>
    tpu.vector_store %arg10[%c256_163, %c0_164], %158 {strides = array<i32>} : memref<432x1024xbf16, #tpu.memory_space<vmem>>, vector<16x1024xbf16>,
    %c0_165 = arith.constant 0 : index
    %c139 = arith.constant 139 : index
    %160 = vector.load %arg12[%c0_165, %c139] : memref<16x1280xbf16, #tpu.memory_space<vmem>>, vector<16x1024xbf16>
    %c272_166 = arith.constant 272 : index
    %c0_167 = arith.constant 0 : index
    %161 = vector.load %arg10[%c272_166, %c0_167] : memref<432x1024xbf16, #tpu.memory_space<vmem>>, vector<16x1024xbf16>
    tpu.vector_store %arg10[%c272_166, %c0_167], %160 {strides = array<i32>} : memref<432x1024xbf16, #tpu.memory_space<vmem>>, vector<16x1024xbf16>,
    %c0_168 = arith.constant 0 : index
    %c217 = arith.constant 217 : index
    %162 = vector.load %arg12[%c0_168, %c217] : memref<16x1280xbf16, #tpu.memory_space<vmem>>, vector<16x1024xbf16>
    %c288_169 = arith.constant 288 : index
    %c0_170 = arith.constant 0 : index
    %163 = vector.load %arg10[%c288_169, %c0_170] : memref<432x1024xbf16, #tpu.memory_space<vmem>>, vector<16x1024xbf16>
    tpu.vector_store %arg10[%c288_169, %c0_170], %162 {strides = array<i32>} : memref<432x1024xbf16, #tpu.memory_space<vmem>>, vector<16x1024xbf16>,
    %c0_171 = arith.constant 0 : index
    %c218 = arith.constant 218 : index
    %164 = vector.load %arg12[%c0_171, %c218] : memref<16x1280xbf16, #tpu.memory_space<vmem>>, vector<16x1024xbf16>
    %c304_172 = arith.constant 304 : index
    %c0_173 = arith.constant 0 : index
    %165 = vector.load %arg10[%c304_172, %c0_173] : memref<432x1024xbf16, #tpu.memory_space<vmem>>, vector<16x1024xbf16>
    tpu.vector_store %arg10[%c304_172, %c0_173], %164 {strides = array<i32>} : memref<432x1024xbf16, #tpu.memory_space<vmem>>, vector<16x1024xbf16>,
    %c0_174 = arith.constant 0 : index
    %c219 = arith.constant 219 : index
    %166 = vector.load %arg12[%c0_174, %c219] : memref<16x1280xbf16, #tpu.memory_space<vmem>>, vector<16x1024xbf16>
    %c320_175 = arith.constant 320 : index
    %c0_176 = arith.constant 0 : index
    %167 = vector.load %arg10[%c320_175, %c0_176] : memref<432x1024xbf16, #tpu.memory_space<vmem>>, vector<16x1024xbf16>
    tpu.vector_store %arg10[%c320_175, %c0_176], %166 {strides = array<i32>} : memref<432x1024xbf16, #tpu.memory_space<vmem>>, vector<16x1024xbf16>,
    %c0_177 = arith.constant 0 : index
    %c227 = arith.constant 227 : index
    %168 = vector.load %arg12[%c0_177, %c227] : memref<16x1280xbf16, #tpu.memory_space<vmem>>, vector<16x1024xbf16>
    %c336_178 = arith.constant 336 : index
    %c0_179 = arith.constant 0 : index
    %169 = vector.load %arg10[%c336_178, %c0_179] : memref<432x1024xbf16, #tpu.memory_space<vmem>>, vector<16x1024xbf16>
    tpu.vector_store %arg10[%c336_178, %c0_179], %168 {strides = array<i32>} : memref<432x1024xbf16, #tpu.memory_space<vmem>>, vector<16x1024xbf16>,
    %c0_180 = arith.constant 0 : index
    %c228 = arith.constant 228 : index
    %170 = vector.load %arg12[%c0_180, %c228] : memref<16x1280xbf16, #tpu.memory_space<vmem>>, vector<16x1024xbf16>
    %c352_181 = arith.constant 352 : index
    %c0_182 = arith.constant 0 : index
    %171 = vector.load %arg10[%c352_181, %c0_182] : memref<432x1024xbf16, #tpu.memory_space<vmem>>, vector<16x1024xbf16>
    tpu.vector_store %arg10[%c352_181, %c0_182], %170 {strides = array<i32>} : memref<432x1024xbf16, #tpu.memory_space<vmem>>, vector<16x1024xbf16>,
    %c0_183 = arith.constant 0 : index
    %c229 = arith.constant 229 : index
    %172 = vector.load %arg12[%c0_183, %c229] : memref<16x1280xbf16, #tpu.memory_space<vmem>>, vector<16x1024xbf16>
    %c368_184 = arith.constant 368 : index
    %c0_185 = arith.constant 0 : index
    %173 = vector.load %arg10[%c368_184, %c0_185] : memref<432x1024xbf16, #tpu.memory_space<vmem>>, vector<16x1024xbf16>
    tpu.vector_store %arg10[%c368_184, %c0_185], %172 {strides = array<i32>} : memref<432x1024xbf16, #tpu.memory_space<vmem>>, vector<16x1024xbf16>,
    %c0_186 = arith.constant 0 : index
    %c237 = arith.constant 237 : index
    %174 = vector.load %arg12[%c0_186, %c237] : memref<16x1280xbf16, #tpu.memory_space<vmem>>, vector<16x1024xbf16>
    %c384_187 = arith.constant 384 : index
    %c0_188 = arith.constant 0 : index
    %175 = vector.load %arg10[%c384_187, %c0_188] : memref<432x1024xbf16, #tpu.memory_space<vmem>>, vector<16x1024xbf16>
    tpu.vector_store %arg10[%c384_187, %c0_188], %174 {strides = array<i32>} : memref<432x1024xbf16, #tpu.memory_space<vmem>>, vector<16x1024xbf16>,
    %c0_189 = arith.constant 0 : index
    %c238 = arith.constant 238 : index
    %176 = vector.load %arg12[%c0_189, %c238] : memref<16x1280xbf16, #tpu.memory_space<vmem>>, vector<16x1024xbf16>
    %c400_190 = arith.constant 400 : index
    %c0_191 = arith.constant 0 : index
    %177 = vector.load %arg10[%c400_190, %c0_191] : memref<432x1024xbf16, #tpu.memory_space<vmem>>, vector<16x1024xbf16>
    tpu.vector_store %arg10[%c400_190, %c0_191], %176 {strides = array<i32>} : memref<432x1024xbf16, #tpu.memory_space<vmem>>, vector<16x1024xbf16>,
    %c0_192 = arith.constant 0 : index
    %c239 = arith.constant 239 : index
    %178 = vector.load %arg12[%c0_192, %c239] : memref<16x1280xbf16, #tpu.memory_space<vmem>>, vector<16x1024xbf16>
    %c416_193 = arith.constant 416 : index
    %c0_194 = arith.constant 0 : index
    %179 = vector.load %arg10[%c416_193, %c0_194] : memref<432x1024xbf16, #tpu.memory_space<vmem>>, vector<16x1024xbf16>
    tpu.vector_store %arg10[%c416_193, %c0_194], %178 {strides = array<i32>} : memref<432x1024xbf16, #tpu.memory_space<vmem>>, vector<16x1024xbf16>,
    %c0_195 = arith.constant 0 : index
    %c0_196 = arith.constant 0 : index
    %180 = vector.load %arg4[%c0_195, %c0_196] : memref<16x432xbf16, #tpu.memory_space<vmem>>, vector<16x432xbf16>
    %c0_197 = arith.constant 0 : index
    %c0_198 = arith.constant 0 : index
    %181 = vector.load %arg10[%c0_197, %c0_198] : memref<432x1024xbf16, #tpu.memory_space<vmem>>, vector<432x1024xbf16>
    %cst_199 = arith.constant dense<0.000000e+00> : vector<16x1024xf32>
    %182 = tpu.matmul %180, %181, %cst_199 {dimension_numbers = #tpu.dot_dimension_numbers<[1], [0], [0], [1], [0, 0, 1, 1], [], []>} : vector<16x432xbf16>, vector<432x1024xbf16>, vector<16x1024xf32> -> vector<16x1024xf32>
    %c0_200 = arith.constant 0 : index
    %c0_201 = arith.constant 0 : index
    %183 = vector.load %arg11[%c0_200, %c0_201] : memref<16x1024xf32, #tpu.memory_space<vmem>>, vector<16x1024xf32>
    tpu.vector_store %arg11[%c0_200, %c0_201], %182 {strides = array<i32>} : memref<16x1024xf32, #tpu.memory_space<vmem>>, vector<16x1024xf32>,
    %c0_202 = arith.constant 0 : index
    %c0_203 = arith.constant 0 : index
    %184 = vector.load %arg11[%c0_202, %c0_203] : memref<16x1024xf32, #tpu.memory_space<vmem>>, vector<16x1024xf32>
    %c0_204 = arith.constant 0 : index
    %c0_205 = arith.constant 0 : index
    %c0_206 = arith.constant 0 : index
    %185 = vector.load %arg7[%c0_204, %c0_205, %c0_206] : memref<1x16x1xf32, #tpu.memory_space<vmem>>, vector<1x16x1xf32>
    %186 = vector.shape_cast %185 : vector<1x16x1xf32> to vector<16x1xf32>
    %c0_207 = arith.constant 0 : index
    %c0_208 = arith.constant 0 : index
    %c0_209 = arith.constant 0 : index
    %187 = vector.load %arg8[%c0_207, %c0_208, %c0_209] : memref<1x16x1xf32, #tpu.memory_space<vmem>>, vector<1x16x1xf32>
    %188 = vector.shape_cast %187 : vector<1x16x1xf32> to vector<16x1xf32>
    %189 = vector.broadcast %0 : vector<1x1024xf32> to vector<16x1024xf32>
    %190 = arith.mulf %184, %189 : vector<16x1024xf32>
    %cst_210 = arith.constant dense<0.000000e+00> : vector<16xf32>
    %191 = vector.multi_reduction <add>, %190, %cst_210 [1] : vector<16x1024xf32> to vector<16xf32>
    %192 = vector.shape_cast %191 : vector<16xf32> to vector<16x1xf32>
    %cst_211 = arith.constant 0.001953125 : f32
    %193 = vector.broadcast %cst_211 : f32 to vector<16x1xf32>
    %194 = arith.mulf %192, %193 : vector<16x1xf32>
    %195 = vector.broadcast %194 : vector<16x1xf32> to vector<16x1024xf32>
    %196 = arith.subf %184, %195 : vector<16x1024xf32>
    %197 = arith.mulf %196, %190 : vector<16x1024xf32>
    %cst_212 = arith.constant dense<0.000000e+00> : vector<16xf32>
    %198 = vector.multi_reduction <add>, %197, %cst_212 [1] : vector<16x1024xf32> to vector<16xf32>
    %199 = vector.shape_cast %198 : vector<16xf32> to vector<16x1xf32>
    %cst_213 = arith.constant 0.001953125 : f32
    %200 = vector.broadcast %cst_213 : f32 to vector<16x1xf32>
    %201 = arith.mulf %199, %200 : vector<16x1xf32>
    %cst_214 = arith.constant 9.99999974E-6 : f32
    %202 = vector.broadcast %cst_214 : f32 to vector<16x1xf32>
    %203 = arith.addf %201, %202 : vector<16x1xf32>
    %204 = math.rsqrt %203 : vector<16x1xf32>
    %205 = vector.broadcast %204 : vector<16x1xf32> to vector<16x1024xf32>
    %206 = arith.mulf %196, %205 : vector<16x1024xf32>
    %207 = vector.broadcast %186 : vector<16x1xf32> to vector<16x1024xf32>
    %208 = arith.mulf %207, %206 : vector<16x1024xf32>
    %209 = vector.broadcast %188 : vector<16x1xf32> to vector<16x1024xf32>
    %210 = arith.addf %208, %209 : vector<16x1024xf32>
    %cst_215 = arith.constant 0.000000e+00 : f32
    %211 = vector.broadcast %cst_215 : f32 to vector<16x1024xf32>
    %212 = arith.cmpf oge, %210, %211 : vector<16x1024xf32>
    %cst_216 = arith.constant 2.000000e-01 : f32
    %213 = vector.broadcast %cst_216 : f32 to vector<16x1024xf32>
    %214 = arith.mulf %213, %210 : vector<16x1024xf32>
    %215 = arith.select %212, %210, %214 : vector<16x1024xi1>, vector<16x1024xf32>
    %216 = arith.truncf %215 : vector<16x1024xf32> to vector<16x1024xbf16>
    %c0_217 = arith.constant 0 : index
    %c0_218 = arith.constant 0 : index
    %c0_219 = arith.constant 0 : index
    %217 = vector.load %arg9[%c0_217, %c0_218, %c0_219] : memref<1x16x1024xbf16, #tpu.memory_space<vmem>>, vector<1x16x1024xbf16>
    %218 = vector.shape_cast %217 : vector<1x16x1024xbf16> to vector<16x1024xbf16>
    %219 = vector.shape_cast %216 : vector<16x1024xbf16> to vector<1x16x1024xbf16>
    tpu.vector_store %arg9[%c0_217, %c0_218, %c0_219], %219 {strides = array<i32>} : memref<1x16x1024xbf16, #tpu.memory_space<vmem>>, vector<1x16x1024xbf16>,
    return
  }
  func.func @transform_0(%arg0: i32) -> (i32, i32, i32) {
    %c0_i32 = arith.constant 0 : i32
    %c0_i32_0 = arith.constant 0 : i32
    %c0_i32_1 = arith.constant 0 : i32
    return %arg0, %c0_i32, %c0_i32_0 : i32, i32, i32
  }
  func.func @transform_1(%arg0: i32) -> (i32, i32) {
    %c0_i32 = arith.constant 0 : i32
    %c0_i32_0 = arith.constant 0 : i32
    %c0_i32_1 = arith.constant 0 : i32
    return %c0_i32, %c0_i32_0 : i32, i32
  }
  func.func @transform_2(%arg0: i32) -> (i32, i32) {
    %c0_i32 = arith.constant 0 : i32
    %c0_i32_0 = arith.constant 0 : i32
    %c0_i32_1 = arith.constant 0 : i32
    return %c0_i32, %c0_i32_0 : i32, i32
  }
  func.func @transform_3(%arg0: i32) -> (i32, i32) {
    %c0_i32 = arith.constant 0 : i32
    %c0_i32_0 = arith.constant 0 : i32
    %c0_i32_1 = arith.constant 0 : i32
    return %c0_i32, %c0_i32_0 : i32, i32
  }
  func.func @transform_4(%arg0: i32) -> (i32, i32, i32) {
    %c0_i32 = arith.constant 0 : i32
    %c0_i32_0 = arith.constant 0 : i32
    %c0_i32_1 = arith.constant 0 : i32
    return %arg0, %c0_i32, %c0_i32_0 : i32, i32, i32
  }
  func.func @transform_5(%arg0: i32) -> (i32, i32, i32) {
    %c0_i32 = arith.constant 0 : i32
    %c0_i32_0 = arith.constant 0 : i32
    %c0_i32_1 = arith.constant 0 : i32
    return %arg0, %c0_i32, %c0_i32_0 : i32, i32, i32
  }
  func.func @transform_6(%arg0: i32) -> (i32, i32, i32) {
    %c0_i32 = arith.constant 0 : i32
    %c0_i32_0 = arith.constant 0 : i32
    %c0_i32_1 = arith.constant 0 : i32
    return %arg0, %c0_i32, %c0_i32_0 : i32, i32, i32
  }
  func.func @transform_7(%arg0: i32) -> (i32, i32, i32) {
    %c0_i32 = arith.constant 0 : i32
    %c0_i32_0 = arith.constant 0 : i32
    %c0_i32_1 = arith.constant 0 : i32
    return %arg0, %c0_i32, %c0_i32_0 : i32, i32, i32
  }
  func.func @transform_8(%arg0: i32) -> (i32, i32, i32) {
    %c0_i32 = arith.constant 0 : i32
    %c0_i32_0 = arith.constant 0 : i32
    %c0_i32_1 = arith.constant 0 : i32
    return %arg0, %c0_i32, %c0_i32_0 : i32, i32, i32
  }
}

</mosaic_0001>

<llo_original>
// kernel: styled_conv_block3.1
$region0: #{styled_conv_block3.1}
  #allocation0 [shape = 'u32[]', space=smem, size = 0x4, offset = 0x4, fixed_abs, tag = 'smem constant byte address 0x4 - core index']
  #allocation1 [shape = 'u32[144,128]{1,0:T(1,128)}', space=vmem, size = 0x12000, scoped, tag = 'internal scratch']
  #allocation2 [shape = 'bf16[432,1024]{1,0:T(16,128)(2,1)}', space=vmem, size = 0xd8000, scoped, tag = 'scratch operand']
  #allocation3 [shape = 'f32[16,1024]{1,0:T(8,128)}', space=vmem, size = 0x10000, scoped, tag = 'scratch operand']
  #allocation4 [shape = 'bf16[16,1280]{1,0:T(16,128)(2,1)}', space=vmem, size = 0xa000, scoped, tag = 'scratch operand']
  %s0 = inlined_call_operand.vmem [shape: bf16[2,16,1280], index: 0, kind: input, shape index: {}]
  %s1 = inlined_call_operand.vmem [shape: f32[1,1024], index: 1, kind: input, shape index: {}]
  %s2 = inlined_call_operand.vmem [shape: bf16[16,432], index: 2, kind: input, shape index: {}]
  %s3 = inlined_call_operand.vmem [shape: bf16[16,432], index: 3, kind: input, shape index: {}]
  %s4 = inlined_call_operand.vmem [shape: f32[2,16,1], index: 4, kind: input, shape index: {}]
  %s5 = inlined_call_operand.vmem [shape: f32[2,16,1], index: 5, kind: input, shape index: {}]
  %s6 = inlined_call_operand.vmem [shape: f32[2,16,1], index: 6, kind: input, shape index: {}]
  %s7 = inlined_call_operand.vmem [shape: f32[2,16,1], index: 7, kind: input, shape index: {}]
  %s8 = inlined_call_operand.vmem [shape: bf16[2,16,1024], index: 8, kind: output, shape index: {}]
  %s9 = sld [smem:[#allocation0]]
  $region65: #{styled_conv_block3.1} parent=0
    _
  %s11 = ssub.s32 1, %s9
  %s12 = scalar_select 0, %s11, %s9
  loop: start=0, step=1, limit=4
  $region2: #{styled_conv_block3.1} parent=0 // loop_pre_header
    _
  $region3: #{styled_conv_block3.1} parent=0 // loop_header
    %s14 = sphi 0, %s18
    %p15 = scmp.ge.s32.totalorder %s14, 4
    %s24 = sphi 0, %s26
    %s27 = sphi 0, %s24
    %s28 = sphi 0, %s27
    %s44 = sphi 0, %s28
    %s48 = sphi 0, %s48
    %s50 = sphi 0, %s48
    %s51 = sphi 0, %s50
    %s65 = sphi 0, %s51
    %s69 = sphi 0, %s69
    %s71 = sphi 0, %s69
    %s72 = sphi 0, %s71
    %s86 = sphi 0, %s72
    %s90 = sphi 0, %s90
    %s92 = sphi 0, %s90
    %s93 = sphi 0, %s92
    %s107 = sphi 0, %s93
    %s113 = sphi 0, %s115
    %s116 = sphi 0, %s113
    %s117 = sphi 0, %s116
    %s133 = sphi 0, %s117
    %s139 = sphi 0, %s141
    %s142 = sphi 0, %s139
    %s143 = sphi 0, %s142
    %s159 = sphi 0, %s143
    %s165 = sphi 0, %s167
    %s168 = sphi 0, %s165
    %s169 = sphi 0, %s168
    %s185 = sphi 0, %s169
    %s191 = sphi 0, %s193
    %s194 = sphi 0, %s191
    %s195 = sphi 0, %s194
    %s211 = sphi 0, %s195
    %s217 = sphi 0, %s219
    %s220 = sphi 0, %s217
    %s221 = sphi 0, %s220
    %s237 = sphi 0, %s221
  $region4: #{styled_conv_block3.1} parent=0 // loop_header_branch
    %17 = sbr.rel (%p15) target = $region8
  $region5: #{styled_conv_block3.1} parent=0 // loop_body
    %s19 = ssub.s32 %s14, 1
    %s20 = ssub.s32 %s14, 2
    %s21 = sadd.s32 %s14, 1
    %s22 = ssub.s32 %s14, %s21
    %p23 = scmp.eq.s32.totalorder %s22, 0
    %s25 = sadd.s32 %s24, 1
    %s26 = scalar_select %p23, %s24, %s25
    %p29 = pneg %p23
    %p30 = scmp.eq.s32.totalorder %s14, 1
    %p31 = por %p29, %p30
    %p32 = scmp.ne.s32.totalorder %s24, %s27
    %p33 = scmp.eq.s32.totalorder %s14, 0
    %p34 = por %p32, %p33
    %p35 = scmp.ne.s32.totalorder %s24, %s27
    %p36 = scmp.eq.s32.totalorder %s19, 1
    %p37 = por %p35, %p36
    %p38 = scmp.ne.s32.totalorder %s27, %s28
    %p39 = scmp.eq.s32.totalorder %s19, 0
    %p40 = por %p38, %p39
    %p41 = scmp.ne.s32.totalorder %s27, %s28
    %p42 = scmp.eq.s32.totalorder %s20, 1
    %p43 = por %p41, %p42
    %p45 = scmp.ne.s32.totalorder %s28, %s44
    %p46 = scmp.eq.s32.totalorder %s20, 0
    %p47 = por %p45, %p46
    %s49 = sadd.s32 %s48, 1
    %p52 = scmp.eq.s32.totalorder %s14, 1
    %p53 = scmp.ne.s32.totalorder %s48, %s50
    %p54 = scmp.eq.s32.totalorder %s14, 0
    %p55 = por %p53, %p54
    %p56 = scmp.ne.s32.totalorder %s48, %s50
    %p57 = scmp.eq.s32.totalorder %s19, 1
    %p58 = por %p56, %p57
    %p59 = scmp.ne.s32.totalorder %s50, %s51
    %p60 = scmp.eq.s32.totalorder %s19, 0
    %p61 = por %p59, %p60
    %p62 = scmp.ne.s32.totalorder %s50, %s51
    %p63 = scmp.eq.s32.totalorder %s20, 1
    %p64 = por %p62, %p63
    %p66 = scmp.ne.s32.totalorder %s51, %s65
    %p67 = scmp.eq.s32.totalorder %s20, 0
    %p68 = por %p66, %p67
    %s70 = sadd.s32 %s69, 1
    %p73 = scmp.eq.s32.totalorder %s14, 1
    %p74 = scmp.ne.s32.totalorder %s69, %s71
    %p75 = scmp.eq.s32.totalorder %s14, 0
    %p76 = por %p74, %p75
    %p77 = scmp.ne.s32.totalorder %s69, %s71
    %p78 = scmp.eq.s32.totalorder %s19, 1
    %p79 = por %p77, %p78
    %p80 = scmp.ne.s32.totalorder %s71, %s72
    %p81 = scmp.eq.s32.totalorder %s19, 0
    %p82 = por %p80, %p81
    %p83 = scmp.ne.s32.totalorder %s71, %s72
    %p84 = scmp.eq.s32.totalorder %s20, 1
    %p85 = por %p83, %p84
    %p87 = scmp.ne.s32.totalorder %s72, %s86
    %p88 = scmp.eq.s32.totalorder %s20, 0
    %p89 = por %p87, %p88
    %s91 = sadd.s32 %s90, 1
    %p94 = scmp.eq.s32.totalorder %s14, 1
    %p95 = scmp.ne.s32.totalorder %s90, %s92
    %p96 = scmp.eq.s32.totalorder %s14, 0
    %p97 = por %p95, %p96
    %p98 = scmp.ne.s32.totalorder %s90, %s92
    %p99 = scmp.eq.s32.totalorder %s19, 1
    %p100 = por %p98, %p99
    %p101 = scmp.ne.s32.totalorder %s92, %s93
    %p102 = scmp.eq.s32.totalorder %s19, 0
    %p103 = por %p101, %p102
    %p104 = scmp.ne.s32.totalorder %s92, %s93
    %p105 = scmp.eq.s32.totalorder %s20, 1
    %p106 = por %p104, %p105
    %p108 = scmp.ne.s32.totalorder %s93, %s107
    %p109 = scmp.eq.s32.totalorder %s20, 0
    %p110 = por %p108, %p109
    %s111 = ssub.s32 %s14, %s21
    %p112 = scmp.eq.s32.totalorder %s111, 0
    %s114 = sadd.s32 %s113, 1
    %s115 = scalar_select %p112, %s113, %s114
    %p118 = pneg %p112
    %p119 = scmp.eq.s32.totalorder %s14, 1
    %p120 = por %p118, %p119
    %p121 = scmp.ne.s32.totalorder %s113, %s116
    %p122 = scmp.eq.s32.totalorder %s14, 0
    %p123 = por %p121, %p122
    %p124 = scmp.ne.s32.totalorder %s113, %s116
    %p125 = scmp.eq.s32.totalorder %s19, 1
    %p126 = por %p124, %p125
    %p127 = scmp.ne.s32.totalorder %s116, %s117
    %p128 = scmp.eq.s32.totalorder %s19, 0
    %p129 = por %p127, %p128
    %p130 = scmp.ne.s32.totalorder %s116, %s117
    %p131 = scmp.eq.s32.totalorder %s20, 1
    %p132 = por %p130, %p131
    %p134 = scmp.ne.s32.totalorder %s117, %s133
    %p135 = scmp.eq.s32.totalorder %s20, 0
    %p136 = por %p134, %p135
    %s137 = ssub.s32 %s14, %s21
    %p138 = scmp.eq.s32.totalorder %s137, 0
    %s140 = sadd.s32 %s139, 1
    %s141 = scalar_select %p138, %s139, %s140
    %p144 = pneg %p138
    %p145 = scmp.eq.s32.totalorder %s14, 1
    %p146 = por %p144, %p145
    %p147 = scmp.ne.s32.totalorder %s139, %s142
    %p148 = scmp.eq.s32.totalorder %s14, 0
    %p149 = por %p147, %p148
    %p150 = scmp.ne.s32.totalorder %s139, %s142
    %p151 = scmp.eq.s32.totalorder %s19, 1
    %p152 = por %p150, %p151
    %p153 = scmp.ne.s32.totalorder %s142, %s143
    %p154 = scmp.eq.s32.totalorder %s19, 0
    %p155 = por %p153, %p154
    %p156 = scmp.ne.s32.totalorder %s142, %s143
    %p157 = scmp.eq.s32.totalorder %s20, 1
    %p158 = por %p156, %p157
    %p160 = scmp.ne.s32.totalorder %s143, %s159
    %p161 = scmp.eq.s32.totalorder %s20, 0
    %p162 = por %p160, %p161
    %s163 = ssub.s32 %s14, %s21
    %p164 = scmp.eq.s32.totalorder %s163, 0
    %s166 = sadd.s32 %s165, 1
    %s167 = scalar_select %p164, %s165, %s166
    %p170 = pneg %p164
    %p171 = scmp.eq.s32.totalorder %s14, 1
    %p172 = por %p170, %p171
    %p173 = scmp.ne.s32.totalorder %s165, %s168
    %p174 = scmp.eq.s32.totalorder %s14, 0
    %p175 = por %p173, %p174
    %p176 = scmp.ne.s32.totalorder %s165, %s168
    %p177 = scmp.eq.s32.totalorder %s19, 1
    %p178 = por %p176, %p177
    %p179 = scmp.ne.s32.totalorder %s168, %s169
    %p180 = scmp.eq.s32.totalorder %s19, 0
    %p181 = por %p179, %p180
    %p182 = scmp.ne.s32.totalorder %s168, %s169
    %p183 = scmp.eq.s32.totalorder %s20, 1
    %p184 = por %p182, %p183
    %p186 = scmp.ne.s32.totalorder %s169, %s185
    %p187 = scmp.eq.s32.totalorder %s20, 0
    %p188 = por %p186, %p187
    %s189 = ssub.s32 %s14, %s21
    %p190 = scmp.eq.s32.totalorder %s189, 0
    %s192 = sadd.s32 %s191, 1
    %s193 = scalar_select %p190, %s191, %s192
    %p196 = pneg %p190
    %p197 = scmp.eq.s32.totalorder %s14, 1
    %p198 = por %p196, %p197
    %p199 = scmp.ne.s32.totalorder %s191, %s194
    %p200 = scmp.eq.s32.totalorder %s14, 0
    %p201 = por %p199, %p200
    %p202 = scmp.ne.s32.totalorder %s191, %s194
    %p203 = scmp.eq.s32.totalorder %s19, 1
    %p204 = por %p202, %p203
    %p205 = scmp.ne.s32.totalorder %s194, %s195
    %p206 = scmp.eq.s32.totalorder %s19, 0
    %p207 = por %p205, %p206
    %p208 = scmp.ne.s32.totalorder %s194, %s195
    %p209 = scmp.eq.s32.totalorder %s20, 1
    %p210 = por %p208, %p209
    %p212 = scmp.ne.s32.totalorder %s195, %s211
    %p213 = scmp.eq.s32.totalorder %s20, 0
    %p214 = por %p212, %p213
    %s215 = ssub.s32 %s14, %s21
    %p216 = scmp.eq.s32.totalorder %s215, 0
    %s218 = sadd.s32 %s217, 1
    %s219 = scalar_select %p216, %s217, %s218
    %p222 = pneg %p216
    %p223 = scmp.eq.s32.totalorder %s14, 1
    %p224 = por %p222, %p223
    %p225 = scmp.ne.s32.totalorder %s217, %s220
    %p226 = scmp.eq.s32.totalorder %s14, 0
    %p227 = por %p225, %p226
    %p228 = scmp.ne.s32.totalorder %s217, %s220
    %p229 = scmp.eq.s32.totalorder %s19, 1
    %p230 = por %p228, %p229
    %p231 = scmp.ne.s32.totalorder %s220, %s221
    %p232 = scmp.eq.s32.totalorder %s19, 0
    %p233 = por %p231, %p232
    %p234 = scmp.ne.s32.totalorder %s220, %s221
    %p235 = scmp.eq.s32.totalorder %s20, 1
    %p236 = por %p234, %p235
    %p238 = scmp.ne.s32.totalorder %s221, %s237
    %p239 = scmp.eq.s32.totalorder %s20, 0
    %p240 = por %p238, %p239
    %p241 = scmp.le.s32.totalorder 1, %s14
    %p242 = scmp.lt.s32.totalorder %s14, 3
    %p243 = pnand %p241, %p242
    %p244 = pneg %p243
    // Predicated region
    $region9: #{styled_conv_block3.1} parent=5 // pred_check
      _
    $region10: #{styled_conv_block3.1} parent=5 // pred_check_branch
      %246 = sbr.rel (%p243) target = $region12
    $region11: #{styled_conv_block3.1} parent=5 // pred_region
      %s247 = ssub.s32 %s14, 1
      // Predicated region
      $region13: #{styled_conv_block3.1} parent=11 // pred_check
        %p248 = pneg %p61
      $region14: #{styled_conv_block3.1} parent=11 // pred_check_branch
        %250 = sbr.rel (%p248) target = $region16
      $region15: #{styled_conv_block3.1} parent=11 // pred_region
        _
      $region16: #{styled_conv_block3.1} parent=11 // pred_fallthru
        _
      // Predicated region
      $region17: #{styled_conv_block3.1} parent=11 // pred_check
        %p251 = pneg %p82
      $region18: #{styled_conv_block3.1} parent=11 // pred_check_branch
        %253 = sbr.rel (%p251) target = $region20
      $region19: #{styled_conv_block3.1} parent=11 // pred_region
        _
      $region20: #{styled_conv_block3.1} parent=11 // pred_fallthru
        _
      // Predicated region
      $region21: #{styled_conv_block3.1} parent=11 // pred_check
        %p254 = pneg %p103
      $region22: #{styled_conv_block3.1} parent=11 // pred_check_branch
        %256 = sbr.rel (%p254) target = $region24
      $region23: #{styled_conv_block3.1} parent=11 // pred_region
        _
      $region24: #{styled_conv_block3.1} parent=11 // pred_fallthru
        _
    $region12: #{styled_conv_block3.1} parent=5 // pred_fallthru
      _
    %p257 = scmp.lt.s32.totalorder %s14, 2
    // Predicated region
    $region25: #{styled_conv_block3.1} parent=5 // pred_check
      %p258 = pneg %p257
    $region26: #{styled_conv_block3.1} parent=5 // pred_check_branch
      %260 = sbr.rel (%p258) target = $region28
    $region27: #{styled_conv_block3.1} parent=5 // pred_region
      // Predicated region
      $region29: #{styled_conv_block3.1} parent=27 // pred_check
        %p261 = pneg %p34
      $region30: #{styled_conv_block3.1} parent=27 // pred_check_branch
        %263 = sbr.rel (%p261) target = $region32
      $region31: #{styled_conv_block3.1} parent=27 // pred_region
        %p264 = scmp.lt.s32.totalorder %s14, 1
        %s265 = scalar_select %p264, %s14, 1
        %s266 = smul.addr %s265, 20
        %s267 = smul.addr %s266, 4
        %s268 = scalar_lea.vmem %s0, %s267
      $region32: #{styled_conv_block3.1} parent=27 // pred_fallthru
        _
      // Predicated region
      $region33: #{styled_conv_block3.1} parent=27 // pred_check
        %p269 = pneg %p123
      $region34: #{styled_conv_block3.1} parent=27 // pred_check_branch
        %271 = sbr.rel (%p269) target = $region36
      $region35: #{styled_conv_block3.1} parent=27 // pred_region
        %p272 = scmp.lt.s32.totalorder %s14, 1
        %s273 = scalar_select %p272, %s14, 1
        %s274 = smul.addr %s273, 2
        %s275 = smul.addr %s274, 8
        %s276 = scalar_lea.vmem %s4, %s275
      $region36: #{styled_conv_block3.1} parent=27 // pred_fallthru
        _
      // Predicated region
      $region37: #{styled_conv_block3.1} parent=27 // pred_check
        %p277 = pneg %p149
      $region38: #{styled_conv_block3.1} parent=27 // pred_check_branch
        %279 = sbr.rel (%p277) target = $region40
      $region39: #{styled_conv_block3.1} parent=27 // pred_region
        %p280 = scmp.lt.s32.totalorder %s14, 1
        %s281 = scalar_select %p280, %s14, 1
        %s282 = smul.addr %s281, 2
        %s283 = smul.addr %s282, 8
        %s284 = scalar_lea.vmem %s5, %s283
      $region40: #{styled_conv_block3.1} parent=27 // pred_fallthru
        _
      // Predicated region
      $region41: #{styled_conv_block3.1} parent=27 // pred_check
        %p285 = pneg %p175
      $region42: #{styled_conv_block3.1} parent=27 // pred_check_branch
        %287 = sbr.rel (%p285) target = $region44
      $region43: #{styled_conv_block3.1} parent=27 // pred_region
        %p288 = scmp.lt.s32.totalorder %s14, 1
        %s289 = scalar_select %p288, %s14, 1
        %s290 = smul.addr %s289, 2
        %s291 = smul.addr %s290, 8
        %s292 = scalar_lea.vmem %s6, %s291
      $region44: #{styled_conv_block3.1} parent=27 // pred_fallthru
        _
      // Predicated region
      $region45: #{styled_conv_block3.1} parent=27 // pred_check
        %p293 = pneg %p201
      $region46: #{styled_conv_block3.1} parent=27 // pred_check_branch
        %295 = sbr.rel (%p293) target = $region48
      $region47: #{styled_conv_block3.1} parent=27 // pred_region
        %p296 = scmp.lt.s32.totalorder %s14, 1
        %s297 = scalar_select %p296, %s14, 1
        %s298 = smul.addr %s297, 2
        %s299 = smul.addr %s298, 8
        %s300 = scalar_lea.vmem %s7, %s299
      $region48: #{styled_conv_block3.1} parent=27 // pred_fallthru
        _
    $region28: #{styled_conv_block3.1} parent=5 // pred_fallthru
      _
    %p301 = scmp.le.s32.totalorder 1, %s14
    %p302 = scmp.lt.s32.totalorder %s14, 3
    %p303 = pnand %p301, %p302
    %p304 = pneg %p303
    // Predicated region
    $region49: #{styled_conv_block3.1} parent=5 // pred_check
      _
    $region50: #{styled_conv_block3.1} parent=5 // pred_check_branch
      %306 = sbr.rel (%p303) target = $region52
    $region51: #{styled_conv_block3.1} parent=5 // pred_region
      %s307 = ssub.s32 %s14, 1
      %p308 = scmp.lt.s32.totalorder %s19, 1
      %s309 = scalar_select %p308, %s19, 1
      %s310 = smul.addr %s309, 20
      %s311 = smul.addr %s310, 4
      %s312 = scalar_lea.vmem %s0, %s311
      %p313 = pneg %p40
      %p314 = pneg %p37
      %p315 = pneg %p61
      %p316 = pneg %p58
      %p317 = pneg %p82
      %p318 = pneg %p79
      %p319 = pneg %p103
      %p320 = pneg %p100
      %p321 = scmp.lt.s32.totalorder %s19, 1
      %s322 = scalar_select %p321, %s19, 1
      %s323 = smul.addr %s322, 2
      %s324 = smul.addr %s323, 8
      %s325 = scalar_lea.vmem %s4, %s324
      %p326 = pneg %p129
      %p327 = pneg %p126
      %p328 = scmp.lt.s32.totalorder %s19, 1
      %s329 = scalar_select %p328, %s19, 1
      %s330 = smul.addr %s329, 2
      %s331 = smul.addr %s330, 8
      %s332 = scalar_lea.vmem %s5, %s331
      %p333 = pneg %p155
      %p334 = pneg %p152
      %p335 = scmp.lt.s32.totalorder %s19, 1
      %s336 = scalar_select %p335, %s19, 1
      %s337 = smul.addr %s336, 2
      %s338 = smul.addr %s337, 8
      %s339 = scalar_lea.vmem %s6, %s338
      %p340 = pneg %p181
      %p341 = pneg %p178
      %p342 = scmp.lt.s32.totalorder %s19, 1
      %s343 = scalar_select %p342, %s19, 1
      %s344 = smul.addr %s343, 2
      %s345 = smul.addr %s344, 8
      %s346 = scalar_lea.vmem %s7, %s345
      %p347 = pneg %p207
      %p348 = pneg %p204
      %p349 = pneg %p233
      %p350 = pneg %p230
      %p351 = scmp.lt.s32.totalorder %s19, 1
      %s352 = scalar_select %p351, %s19, 1
      %s353 = smul.addr %s352, 16
      %s354 = smul.addr %s353, 4
      %s355 = scalar_lea.vmem %s8, %s354
      %p356 = scmp.lt.s32.totalorder %s19, 1
      %s357 = scalar_select %p356, %s19, 1
      %s358 = smul.addr %s357, 20
      %s359 = smul.addr %s358, 4
      %s360 = scalar_lea.vmem %s0, %s359
      %p361 = scmp.lt.s32.totalorder %s19, 1
      %s362 = scalar_select %p361, %s19, 1
      %s363 = smul.addr %s362, 2
      %s364 = smul.addr %s363, 8
      %s365 = scalar_lea.vmem %s4, %s364
      %p366 = scmp.lt.s32.totalorder %s19, 1
      %s367 = scalar_select %p366, %s19, 1
      %s368 = smul.addr %s367, 2
      %s369 = smul.addr %s368, 8
      %s370 = scalar_lea.vmem %s5, %s369
      %p371 = scmp.lt.s32.totalorder %s19, 1
      %s372 = scalar_select %p371, %s19, 1
      %s373 = smul.addr %s372, 2
      %s374 = smul.addr %s373, 8
      %s375 = scalar_lea.vmem %s6, %s374
      %p376 = scmp.lt.s32.totalorder %s19, 1
      %s377 = scalar_select %p376, %s19, 1
      %s378 = smul.addr %s377, 2
      %s379 = smul.addr %s378, 8
      %s380 = scalar_lea.vmem %s7, %s379
      %p381 = scmp.lt.s32.totalorder %s19, 1
      %s382 = scalar_select %p381, %s19, 1
      %s383 = smul.addr %s382, 16
      %s384 = smul.addr %s383, 4
      %s385 = scalar_lea.vmem %s8, %s384
      %v387 = vld [vmem:[%s1] sm:$0xff]
      %v388 = vld [vmem:[%s360] sm:$0xff]
      %v389 = vld [vmem:[%s360 + $0x8] sm:$0xff]
      %v390 = vld [vmem:[%s360 + $0x10] sm:$0xff]
      %v391 = vld [vmem:[%s360 + $0x18] sm:$0xff]
      %v392 = vld [vmem:[%s360 + $0x28] sm:$0xff]
      %v393 = vld [vmem:[%s360 + $0x30] sm:$0xff]
      %v394 = vld [vmem:[%s360 + $0x38] sm:$0xff]
      %v395 = vld [vmem:[%s360 + $0x40] sm:$0xff]
      %v404 = vunpack.c.l.b16 %v388
      %v405 = vunpack.c.h.b16 %v388
      %v406 = vunpack.c.l.b16 %v389
      %v407 = vunpack.c.h.b16 %v389
      %v408 = vunpack.c.l.b16 %v390
      %v409 = vunpack.c.h.b16 %v390
      %v410 = vunpack.c.l.b16 %v391
      %v411 = vunpack.c.h.b16 %v391
      %v412 = vunpack.c.l.b16 %v392
      %v413 = vunpack.c.h.b16 %v392
      %v414 = vunpack.c.l.b16 %v393
      %v415 = vunpack.c.h.b16 %v393
      %v416 = vunpack.c.l.b16 %v394
      %v417 = vunpack.c.h.b16 %v394
      %v418 = vunpack.c.l.b16 %v395
      %v419 = vunpack.c.h.b16 %v395
      %v420 = vpack.c.b16 %v412, %v404
      %v421 = vpack.c.b16 %v413, %v405
      %v422 = vpack.c.b16 %v414, %v406
      %v423 = vpack.c.b16 %v415, %v407
      %v424 = vpack.c.b16 %v416, %v408
      %v425 = vpack.c.b16 %v417, %v409
      %v426 = vpack.c.b16 %v418, %v410
      %v427 = vpack.c.b16 %v419, %v411
      %436 = vst [vmem:[#allocation2] sm:$0xff] %v420
      %437 = vst [vmem:[#allocation2 + $0x8] sm:$0xff] %v421
      %438 = vst [vmem:[#allocation2 + $0x10] sm:$0xff] %v422
      %439 = vst [vmem:[#allocation2 + $0x18] sm:$0xff] %v423
      %440 = vst [vmem:[#allocation2 + $0x20] sm:$0xff] %v424
      %441 = vst [vmem:[#allocation2 + $0x28] sm:$0xff] %v425
      %442 = vst [vmem:[#allocation2 + $0x30] sm:$0xff] %v426
      %443 = vst [vmem:[#allocation2 + $0x38] sm:$0xff] %v427
      %v444 = vld [vmem:[%s360] sm:$0xff]
      %v445 = vld [vmem:[%s360 + $0x8] sm:$0xff]
      %v446 = vld [vmem:[%s360 + $0x10] sm:$0xff]
      %v447 = vld [vmem:[%s360 + $0x18] sm:$0xff]
      %v448 = vld [vmem:[%s360 + $0x20] sm:$0xf]
      %v449 = vld [vmem:[%s360 + $0x28] sm:$0xff]
      %v450 = vld [vmem:[%s360 + $0x30] sm:$0xff]
      %v451 = vld [vmem:[%s360 + $0x38] sm:$0xff]
      %v452 = vld [vmem:[%s360 + $0x40] sm:$0xff]
      %v453 = vld [vmem:[%s360 + $0x48] sm:$0xf]
      %v464 = vunpack.c.l.b16 %v444
      %v465 = vunpack.c.h.b16 %v444
      %v466 = vunpack.c.l.b16 %v445
      %v467 = vunpack.c.h.b16 %v445
      %v468 = vunpack.c.l.b16 %v446
      %v469 = vunpack.c.h.b16 %v446
      %v470 = vunpack.c.l.b16 %v447
      %v471 = vunpack.c.h.b16 %v447
      %v472 = vunpack.c.l.b16 %v448
      %v473 = vunpack.c.l.b16 %v449
      %v474 = vunpack.c.h.b16 %v449
      %v475 = vunpack.c.l.b16 %v450
      %v476 = vunpack.c.h.b16 %v450
      %v477 = vunpack.c.l.b16 %v451
      %v478 = vunpack.c.h.b16 %v451
      %v479 = vunpack.c.l.b16 %v452
      %v480 = vunpack.c.h.b16 %v452
      %v481 = vunpack.c.l.b16 %v453
      %v482 = vpack.c.b16 %v473, %v464
      %v483 = vpack.c.b16 %v474, %v465
      %v484 = vpack.c.b16 %v475, %v466
      %v485 = vpack.c.b16 %v476, %v467
      %v486 = vpack.c.b16 %v477, %v468
      %v487 = vpack.c.b16 %v478, %v469
      %v488 = vpack.c.b16 %v479, %v470
      %v489 = vpack.c.b16 %v480, %v471
      %v490 = vpack.c.b16 %v481, %v472
      %491 = vrot.lane.b32.xlu0 %v482, 127
      %v492 = vpop.permute.xlu0 %491
      %493 = vrot.lane.b32.xlu0 %v483, 127
      %v494 = vpop.permute.xlu0 %493
      %495 = vrot.lane.b32.xlu0 %v484, 127
      %v496 = vpop.permute.xlu0 %495
      %497 = vrot.lane.b32.xlu0 %v485, 127
      %v498 = vpop.permute.xlu0 %497
      %499 = vrot.lane.b32.xlu0 %v486, 127
      %v500 = vpop.permute.xlu0 %499
      %501 = vrot.lane.b32.xlu0 %v487, 127
      %v502 = vpop.permute.xlu0 %501
      %503 = vrot.lane.b32.xlu0 %v488, 127
      %v504 = vpop.permute.xlu0 %503
      %505 = vrot.lane.b32.xlu0 %v489, 127
      %v506 = vpop.permute.xlu0 %505
      %507 = vrot.lane.b32.xlu0 %v490, 127
      %v508 = vpop.permute.xlu0 %507
      %vm509 = vcmask 1039360
      %v510 = vsel %vm509, %v492, %v494
      %v511 = vsel %vm509, %v494, %v496
      %v512 = vsel %vm509, %v496, %v498
      %v513 = vsel %vm509, %v498, %v500
      %v514 = vsel %vm509, %v500, %v502
      %v515 = vsel %vm509, %v502, %v504
      %v516 = vsel %vm509, %v504, %v506
      %v517 = vsel %vm509, %v506, %v508
      %526 = vst [vmem:[#allocation2 + $0x40] sm:$0xff] %v510
      %527 = vst [vmem:[#allocation2 + $0x48] sm:$0xff] %v511
      %528 = vst [vmem:[#allocation2 + $0x50] sm:$0xff] %v512
      %529 = vst [vmem:[#allocation2 + $0x58] sm:$0xff] %v513
      %530 = vst [vmem:[#allocation2 + $0x60] sm:$0xff] %v514
      %531 = vst [vmem:[#allocation2 + $0x68] sm:$0xff] %v515
      %532 = vst [vmem:[#allocation2 + $0x70] sm:$0xff] %v516
      %533 = vst [vmem:[#allocation2 + $0x78] sm:$0xff] %v517
      %v534 = vld [vmem:[%s360] sm:$0xff]
      %v535 = vld [vmem:[%s360 + $0x8] sm:$0xff]
      %v536 = vld [vmem:[%s360 + $0x10] sm:$0xff]
      %v537 = vld [vmem:[%s360 + $0x18] sm:$0xff]
      %v538 = vld [vmem:[%s360 + $0x20] sm:$0xf]
      %v539 = vld [vmem:[%s360 + $0x28] sm:$0xff]
      %v540 = vld [vmem:[%s360 + $0x30] sm:$0xff]
      %v541 = vld [vmem:[%s360 + $0x38] sm:$0xff]
      %v542 = vld [vmem:[%s360 + $0x40] sm:$0xff]
      %v543 = vld [vmem:[%s360 + $0x48] sm:$0xf]
      %v554 = vunpack.c.l.b16 %v534
      %v555 = vunpack.c.h.b16 %v534
      %v556 = vunpack.c.l.b16 %v535
      %v557 = vunpack.c.h.b16 %v535
      %v558 = vunpack.c.l.b16 %v536
      %v559 = vunpack.c.h.b16 %v536
      %v560 = vunpack.c.l.b16 %v537
      %v561 = vunpack.c.h.b16 %v537
      %v562 = vunpack.c.l.b16 %v538
      %v563 = vunpack.c.l.b16 %v539
      %v564 = vunpack.c.h.b16 %v539
      %v565 = vunpack.c.l.b16 %v540
      %v566 = vunpack.c.h.b16 %v540
      %v567 = vunpack.c.l.b16 %v541
      %v568 = vunpack.c.h.b16 %v541
      %v569 = vunpack.c.l.b16 %v542
      %v570 = vunpack.c.h.b16 %v542
      %v571 = vunpack.c.l.b16 %v543
      %v572 = vpack.c.b16 %v563, %v554
      %v573 = vpack.c.b16 %v564, %v555
      %v574 = vpack.c.b16 %v565, %v556
      %v575 = vpack.c.b16 %v566, %v557
      %v576 = vpack.c.b16 %v567, %v558
      %v577 = vpack.c.b16 %v568, %v559
      %v578 = vpack.c.b16 %v569, %v560
      %v579 = vpack.c.b16 %v570, %v561
      %v580 = vpack.c.b16 %v571, %v562
      %581 = vrot.lane.b32.xlu0 %v572, 126
      %v582 = vpop.permute.xlu0 %581
      %583 = vrot.lane.b32.xlu0 %v573, 126
      %v584 = vpop.permute.xlu0 %583
      %585 = vrot.lane.b32.xlu0 %v574, 126
      %v586 = vpop.permute.xlu0 %585
      %587 = vrot.lane.b32.xlu0 %v575, 126
      %v588 = vpop.permute.xlu0 %587
      %589 = vrot.lane.b32.xlu0 %v576, 126
      %v590 = vpop.permute.xlu0 %589
      %591 = vrot.lane.b32.xlu0 %v577, 126
      %v592 = vpop.permute.xlu0 %591
      %593 = vrot.lane.b32.xlu0 %v578, 126
      %v594 = vpop.permute.xlu0 %593
      %595 = vrot.lane.b32.xlu0 %v579, 126
      %v596 = vpop.permute.xlu0 %595
      %597 = vrot.lane.b32.xlu0 %v580, 126
      %v598 = vpop.permute.xlu0 %597
      %vm599 = vcmask 1031168
      %v600 = vsel %vm599, %v582, %v584
      %v601 = vsel %vm599, %v584, %v586
      %v602 = vsel %vm599, %v586, %v588
      %v603 = vsel %vm599, %v588, %v590
      %v604 = vsel %vm599, %v590, %v592
      %v605 = vsel %vm599, %v592, %v594
      %v606 = vsel %vm599, %v594, %v596
      %v607 = vsel %vm599, %v596, %v598
      %616 = vst [vmem:[#allocation2 + $0x80] sm:$0xff] %v600
      %617 = vst [vmem:[#allocation2 + $0x88] sm:$0xff] %v601
      %618 = vst [vmem:[#allocation2 + $0x90] sm:$0xff] %v602
      %619 = vst [vmem:[#allocation2 + $0x98] sm:$0xff] %v603
      %620 = vst [vmem:[#allocation2 + $0xa0] sm:$0xff] %v604
      %621 = vst [vmem:[#allocation2 + $0xa8] sm:$0xff] %v605
      %622 = vst [vmem:[#allocation2 + $0xb0] sm:$0xff] %v606
      %623 = vst [vmem:[#allocation2 + $0xb8] sm:$0xff] %v607
      %v624 = vld [vmem:[%s360] sm:$0xff]
      %v625 = vld [vmem:[%s360 + $0x8] sm:$0xff]
      %v626 = vld [vmem:[%s360 + $0x10] sm:$0xff]
      %v627 = vld [vmem:[%s360 + $0x18] sm:$0xff]
      %v628 = vld [vmem:[%s360 + $0x20] sm:$0xf]
      %v629 = vld [vmem:[%s360 + $0x28] sm:$0xff]
      %v630 = vld [vmem:[%s360 + $0x30] sm:$0xff]
      %v631 = vld [vmem:[%s360 + $0x38] sm:$0xff]
      %v632 = vld [vmem:[%s360 + $0x40] sm:$0xff]
      %v633 = vld [vmem:[%s360 + $0x48] sm:$0xf]
      %v644 = vunpack.c.l.b16 %v624
      %v645 = vunpack.c.h.b16 %v624
      %v646 = vunpack.c.l.b16 %v625
      %v647 = vunpack.c.h.b16 %v625
      %v648 = vunpack.c.l.b16 %v626
      %v649 = vunpack.c.h.b16 %v626
      %v650 = vunpack.c.l.b16 %v627
      %v651 = vunpack.c.h.b16 %v627
      %v652 = vunpack.c.l.b16 %v628
      %v653 = vunpack.c.l.b16 %v629
      %v654 = vunpack.c.h.b16 %v629
      %v655 = vunpack.c.l.b16 %v630
      %v656 = vunpack.c.h.b16 %v630
      %v657 = vunpack.c.l.b16 %v631
      %v658 = vunpack.c.h.b16 %v631
      %v659 = vunpack.c.l.b16 %v632
      %v660 = vunpack.c.h.b16 %v632
      %v661 = vunpack.c.l.b16 %v633
      %v662 = vpack.c.b16 %v653, %v644
      %v663 = vpack.c.b16 %v654, %v645
      %v664 = vpack.c.b16 %v655, %v646
      %v665 = vpack.c.b16 %v656, %v647
      %v666 = vpack.c.b16 %v657, %v648
      %v667 = vpack.c.b16 %v658, %v649
      %v668 = vpack.c.b16 %v659, %v650
      %v669 = vpack.c.b16 %v660, %v651
      %v670 = vpack.c.b16 %v661, %v652
      %671 = vrot.lane.b32.xlu0 %v662, 118
      %v672 = vpop.permute.xlu0 %671
      %673 = vrot.lane.b32.xlu0 %v663, 118
      %v674 = vpop.permute.xlu0 %673
      %675 = vrot.lane.b32.xlu0 %v664, 118
      %v676 = vpop.permute.xlu0 %675
      %677 = vrot.lane.b32.xlu0 %v665, 118
      %v678 = vpop.permute.xlu0 %677
      %679 = vrot.lane.b32.xlu0 %v666, 118
      %v680 = vpop.permute.xlu0 %679
      %681 = vrot.lane.b32.xlu0 %v667, 118
      %v682 = vpop.permute.xlu0 %681
      %683 = vrot.lane.b32.xlu0 %v668, 118
      %v684 = vpop.permute.xlu0 %683
      %685 = vrot.lane.b32.xlu0 %v669, 118
      %v686 = vpop.permute.xlu0 %685
      %687 = vrot.lane.b32.xlu0 %v670, 118
      %v688 = vpop.permute.xlu0 %687
      %vm689 = vcmask 965632
      %v690 = vsel %vm689, %v672, %v674
      %v691 = vsel %vm689, %v674, %v676
      %v692 = vsel %vm689, %v676, %v678
      %v693 = vsel %vm689, %v678, %v680
      %v694 = vsel %vm689, %v680, %v682
      %v695 = vsel %vm689, %v682, %v684
      %v696 = vsel %vm689, %v684, %v686
      %v697 = vsel %vm689, %v686, %v688
      %706 = vst [vmem:[#allocation2 + $0xc0] sm:$0xff] %v690
      %707 = vst [vmem:[#allocation2 + $0xc8] sm:$0xff] %v691
      %708 = vst [vmem:[#allocation2 + $0xd0] sm:$0xff] %v692
      %709 = vst [vmem:[#allocation2 + $0xd8] sm:$0xff] %v693
      %710 = vst [vmem:[#allocation2 + $0xe0] sm:$0xff] %v694
      %711 = vst [vmem:[#allocation2 + $0xe8] sm:$0xff] %v695
      %712 = vst [vmem:[#allocation2 + $0xf0] sm:$0xff] %v696
      %713 = vst [vmem:[#allocation2 + $0xf8] sm:$0xff] %v697
      %v714 = vld [vmem:[%s360] sm:$0xff]
      %v715 = vld [vmem:[%s360 + $0x8] sm:$0xff]
      %v716 = vld [vmem:[%s360 + $0x10] sm:$0xff]
      %v717 = vld [vmem:[%s360 + $0x18] sm:$0xff]
      %v718 = vld [vmem:[%s360 + $0x20] sm:$0xf]
      %v719 = vld [vmem:[%s360 + $0x28] sm:$0xff]
      %v720 = vld [vmem:[%s360 + $0x30] sm:$0xff]
      %v721 = vld [vmem:[%s360 + $0x38] sm:$0xff]
      %v722 = vld [vmem:[%s360 + $0x40] sm:$0xff]
      %v723 = vld [vmem:[%s360 + $0x48] sm:$0xf]
      %v734 = vunpack.c.l.b16 %v714
      %v735 = vunpack.c.h.b16 %v714
      %v736 = vunpack.c.l.b16 %v715
      %v737 = vunpack.c.h.b16 %v715
      %v738 = vunpack.c.l.b16 %v716
      %v739 = vunpack.c.h.b16 %v716
      %v740 = vunpack.c.l.b16 %v717
      %v741 = vunpack.c.h.b16 %v717
      %v742 = vunpack.c.l.b16 %v718
      %v743 = vunpack.c.l.b16 %v719
      %v744 = vunpack.c.h.b16 %v719
      %v745 = vunpack.c.l.b16 %v720
      %v746 = vunpack.c.h.b16 %v720
      %v747 = vunpack.c.l.b16 %v721
      %v748 = vunpack.c.h.b16 %v721
      %v749 = vunpack.c.l.b16 %v722
      %v750 = vunpack.c.h.b16 %v722
      %v751 = vunpack.c.l.b16 %v723
      %v752 = vpack.c.b16 %v743, %v734
      %v753 = vpack.c.b16 %v744, %v735
      %v754 = vpack.c.b16 %v745, %v736
      %v755 = vpack.c.b16 %v746, %v737
      %v756 = vpack.c.b16 %v747, %v738
      %v757 = vpack.c.b16 %v748, %v739
      %v758 = vpack.c.b16 %v749, %v740
      %v759 = vpack.c.b16 %v750, %v741
      %v760 = vpack.c.b16 %v751, %v742
      %761 = vrot.lane.b32.xlu0 %v752, 117
      %v762 = vpop.permute.xlu0 %761
      %763 = vrot.lane.b32.xlu0 %v753, 117
      %v764 = vpop.permute.xlu0 %763
      %765 = vrot.lane.b32.xlu0 %v754, 117
      %v766 = vpop.permute.xlu0 %765
      %767 = vrot.lane.b32.xlu0 %v755, 117
      %v768 = vpop.permute.xlu0 %767
      %769 = vrot.lane.b32.xlu0 %v756, 117
      %v770 = vpop.permute.xlu0 %769
      %771 = vrot.lane.b32.xlu0 %v757, 117
      %v772 = vpop.permute.xlu0 %771
      %773 = vrot.lane.b32.xlu0 %v758, 117
      %v774 = vpop.permute.xlu0 %773
      %775 = vrot.lane.b32.xlu0 %v759, 117
      %v776 = vpop.permute.xlu0 %775
      %777 = vrot.lane.b32.xlu0 %v760, 117
      %v778 = vpop.permute.xlu0 %777
      %vm779 = vcmask 957440
      %v780 = vsel %vm779, %v762, %v764
      %v781 = vsel %vm779, %v764, %v766
      %v782 = vsel %vm779, %v766, %v768
      %v783 = vsel %vm779, %v768, %v770
      %v784 = vsel %vm779, %v770, %v772
      %v785 = vsel %vm779, %v772, %v774
      %v786 = vsel %vm779, %v774, %v776
      %v787 = vsel %vm779, %v776, %v778
      %796 = vst [vmem:[#allocation2 + $0x100] sm:$0xff] %v780
      %797 = vst [vmem:[#allocation2 + $0x108] sm:$0xff] %v781
      %798 = vst [vmem:[#allocation2 + $0x110] sm:$0xff] %v782
      %799 = vst [vmem:[#allocation2 + $0x118] sm:$0xff] %v783
      %800 = vst [vmem:[#allocation2 + $0x120] sm:$0xff] %v784
      %801 = vst [vmem:[#allocation2 + $0x128] sm:$0xff] %v785
      %802 = vst [vmem:[#allocation2 + $0x130] sm:$0xff] %v786
      %803 = vst [vmem:[#allocation2 + $0x138] sm:$0xff] %v787
      %v804 = vld [vmem:[%s360] sm:$0xff]
      %v805 = vld [vmem:[%s360 + $0x8] sm:$0xff]
      %v806 = vld [vmem:[%s360 + $0x10] sm:$0xff]
      %v807 = vld [vmem:[%s360 + $0x18] sm:$0xff]
      %v808 = vld [vmem:[%s360 + $0x20] sm:$0xf]
      %v809 = vld [vmem:[%s360 + $0x28] sm:$0xff]
      %v810 = vld [vmem:[%s360 + $0x30] sm:$0xff]
      %v811 = vld [vmem:[%s360 + $0x38] sm:$0xff]
      %v812 = vld [vmem:[%s360 + $0x40] sm:$0xff]
      %v813 = vld [vmem:[%s360 + $0x48] sm:$0xf]
      %v824 = vunpack.c.l.b16 %v804
      %v825 = vunpack.c.h.b16 %v804
      %v826 = vunpack.c.l.b16 %v805
      %v827 = vunpack.c.h.b16 %v805
      %v828 = vunpack.c.l.b16 %v806
      %v829 = vunpack.c.h.b16 %v806
      %v830 = vunpack.c.l.b16 %v807
      %v831 = vunpack.c.h.b16 %v807
      %v832 = vunpack.c.l.b16 %v808
      %v833 = vunpack.c.l.b16 %v809
      %v834 = vunpack.c.h.b16 %v809
      %v835 = vunpack.c.l.b16 %v810
      %v836 = vunpack.c.h.b16 %v810
      %v837 = vunpack.c.l.b16 %v811
      %v838 = vunpack.c.h.b16 %v811
      %v839 = vunpack.c.l.b16 %v812
      %v840 = vunpack.c.h.b16 %v812
      %v841 = vunpack.c.l.b16 %v813
      %v842 = vpack.c.b16 %v833, %v824
      %v843 = vpack.c.b16 %v834, %v825
      %v844 = vpack.c.b16 %v835, %v826
      %v845 = vpack.c.b16 %v836, %v827
      %v846 = vpack.c.b16 %v837, %v828
      %v847 = vpack.c.b16 %v838, %v829
      %v848 = vpack.c.b16 %v839, %v830
      %v849 = vpack.c.b16 %v840, %v831
      %v850 = vpack.c.b16 %v841, %v832
      %851 = vrot.lane.b32.xlu0 %v842, 116
      %v852 = vpop.permute.xlu0 %851
      %853 = vrot.lane.b32.xlu0 %v843, 116
      %v854 = vpop.permute.xlu0 %853
      %855 = vrot.lane.b32.xlu0 %v844, 116
      %v856 = vpop.permute.xlu0 %855
      %857 = vrot.lane.b32.xlu0 %v845, 116
      %v858 = vpop.permute.xlu0 %857
      %859 = vrot.lane.b32.xlu0 %v846, 116
      %v860 = vpop.permute.xlu0 %859
      %861 = vrot.lane.b32.xlu0 %v847, 116
      %v862 = vpop.permute.xlu0 %861
      %863 = vrot.lane.b32.xlu0 %v848, 116
      %v864 = vpop.permute.xlu0 %863
      %865 = vrot.lane.b32.xlu0 %v849, 116
      %v866 = vpop.permute.xlu0 %865
      %867 = vrot.lane.b32.xlu0 %v850, 116
      %v868 = vpop.permute.xlu0 %867
      %vm869 = vcmask 949248
      %v870 = vsel %vm869, %v852, %v854
      %v871 = vsel %vm869, %v854, %v856
      %v872 = vsel %vm869, %v856, %v858
      %v873 = vsel %vm869, %v858, %v860
      %v874 = vsel %vm869, %v860, %v862
      %v875 = vsel %vm869, %v862, %v864
      %v876 = vsel %vm869, %v864, %v866
      %v877 = vsel %vm869, %v866, %v868
      %886 = vst [vmem:[#allocation2 + $0x140] sm:$0xff] %v870
      %887 = vst [vmem:[#allocation2 + $0x148] sm:$0xff] %v871
      %888 = vst [vmem:[#allocation2 + $0x150] sm:$0xff] %v872
      %889 = vst [vmem:[#allocation2 + $0x158] sm:$0xff] %v873
      %890 = vst [vmem:[#allocation2 + $0x160] sm:$0xff] %v874
      %891 = vst [vmem:[#allocation2 + $0x168] sm:$0xff] %v875
      %892 = vst [vmem:[#allocation2 + $0x170] sm:$0xff] %v876
      %893 = vst [vmem:[#allocation2 + $0x178] sm:$0xff] %v877
      %v894 = vld [vmem:[%s360] sm:$0xff]
      %v895 = vld [vmem:[%s360 + $0x8] sm:$0xff]
      %v896 = vld [vmem:[%s360 + $0x10] sm:$0xff]
      %v897 = vld [vmem:[%s360 + $0x18] sm:$0xff]
      %v898 = vld [vmem:[%s360 + $0x20] sm:$0xf]
      %v899 = vld [vmem:[%s360 + $0x28] sm:$0xff]
      %v900 = vld [vmem:[%s360 + $0x30] sm:$0xff]
      %v901 = vld [vmem:[%s360 + $0x38] sm:$0xff]
      %v902 = vld [vmem:[%s360 + $0x40] sm:$0xff]
      %v903 = vld [vmem:[%s360 + $0x48] sm:$0xf]
      %v914 = vunpack.c.l.b16 %v894
      %v915 = vunpack.c.h.b16 %v894
      %v916 = vunpack.c.l.b16 %v895
      %v917 = vunpack.c.h.b16 %v895
      %v918 = vunpack.c.l.b16 %v896
      %v919 = vunpack.c.h.b16 %v896
      %v920 = vunpack.c.l.b16 %v897
      %v921 = vunpack.c.h.b16 %v897
      %v922 = vunpack.c.l.b16 %v898
      %v923 = vunpack.c.l.b16 %v899
      %v924 = vunpack.c.h.b16 %v899
      %v925 = vunpack.c.l.b16 %v900
      %v926 = vunpack.c.h.b16 %v900
      %v927 = vunpack.c.l.b16 %v901
      %v928 = vunpack.c.h.b16 %v901
      %v929 = vunpack.c.l.b16 %v902
      %v930 = vunpack.c.h.b16 %v902
      %v931 = vunpack.c.l.b16 %v903
      %v932 = vpack.c.b16 %v923, %v914
      %v933 = vpack.c.b16 %v924, %v915
      %v934 = vpack.c.b16 %v925, %v916
      %v935 = vpack.c.b16 %v926, %v917
      %v936 = vpack.c.b16 %v927, %v918
      %v937 = vpack.c.b16 %v928, %v919
      %v938 = vpack.c.b16 %v929, %v920
      %v939 = vpack.c.b16 %v930, %v921
      %v940 = vpack.c.b16 %v931, %v922
      %941 = vrot.lane.b32.xlu0 %v932, 108
      %v942 = vpop.permute.xlu0 %941
      %943 = vrot.lane.b32.xlu0 %v933, 108
      %v944 = vpop.permute.xlu0 %943
      %945 = vrot.lane.b32.xlu0 %v934, 108
      %v946 = vpop.permute.xlu0 %945
      %947 = vrot.lane.b32.xlu0 %v935, 108
      %v948 = vpop.permute.xlu0 %947
      %949 = vrot.lane.b32.xlu0 %v936, 108
      %v950 = vpop.permute.xlu0 %949
      %951 = vrot.lane.b32.xlu0 %v937, 108
      %v952 = vpop.permute.xlu0 %951
      %953 = vrot.lane.b32.xlu0 %v938, 108
      %v954 = vpop.permute.xlu0 %953
      %955 = vrot.lane.b32.xlu0 %v939, 108
      %v956 = vpop.permute.xlu0 %955
      %957 = vrot.lane.b32.xlu0 %v940, 108
      %v958 = vpop.permute.xlu0 %957
      %vm959 = vcmask 883712
      %v960 = vsel %vm959, %v942, %v944
      %v961 = vsel %vm959, %v944, %v946
      %v962 = vsel %vm959, %v946, %v948
      %v963 = vsel %vm959, %v948, %v950
      %v964 = vsel %vm959, %v950, %v952
      %v965 = vsel %vm959, %v952, %v954
      %v966 = vsel %vm959, %v954, %v956
      %v967 = vsel %vm959, %v956, %v958
      %976 = vst [vmem:[#allocation2 + $0x180] sm:$0xff] %v960
      %977 = vst [vmem:[#allocation2 + $0x188] sm:$0xff] %v961
      %978 = vst [vmem:[#allocation2 + $0x190] sm:$0xff] %v962
      %979 = vst [vmem:[#allocation2 + $0x198] sm:$0xff] %v963
      %980 = vst [vmem:[#allocation2 + $0x1a0] sm:$0xff] %v964
      %981 = vst [vmem:[#allocation2 + $0x1a8] sm:$0xff] %v965
      %982 = vst [vmem:[#allocation2 + $0x1b0] sm:$0xff] %v966
      %983 = vst [vmem:[#allocation2 + $0x1b8] sm:$0xff] %v967
      %v984 = vld [vmem:[%s360] sm:$0xff]
      %v985 = vld [vmem:[%s360 + $0x8] sm:$0xff]
      %v986 = vld [vmem:[%s360 + $0x10] sm:$0xff]
      %v987 = vld [vmem:[%s360 + $0x18] sm:$0xff]
      %v988 = vld [vmem:[%s360 + $0x20] sm:$0xf]
      %v989 = vld [vmem:[%s360 + $0x28] sm:$0xff]
      %v990 = vld [vmem:[%s360 + $0x30] sm:$0xff]
      %v991 = vld [vmem:[%s360 + $0x38] sm:$0xff]
      %v992 = vld [vmem:[%s360 + $0x40] sm:$0xff]
      %v993 = vld [vmem:[%s360 + $0x48] sm:$0xf]
      %v1004 = vunpack.c.l.b16 %v984
      %v1005 = vunpack.c.h.b16 %v984
      %v1006 = vunpack.c.l.b16 %v985
      %v1007 = vunpack.c.h.b16 %v985
      %v1008 = vunpack.c.l.b16 %v986
      %v1009 = vunpack.c.h.b16 %v986
      %v1010 = vunpack.c.l.b16 %v987
      %v1011 = vunpack.c.h.b16 %v987
      %v1012 = vunpack.c.l.b16 %v988
      %v1013 = vunpack.c.l.b16 %v989
      %v1014 = vunpack.c.h.b16 %v989
      %v1015 = vunpack.c.l.b16 %v990
      %v1016 = vunpack.c.h.b16 %v990
      %v1017 = vunpack.c.l.b16 %v991
      %v1018 = vunpack.c.h.b16 %v991
      %v1019 = vunpack.c.l.b16 %v992
      %v1020 = vunpack.c.h.b16 %v992
      %v1021 = vunpack.c.l.b16 %v993
      %v1022 = vpack.c.b16 %v1013, %v1004
      %v1023 = vpack.c.b16 %v1014, %v1005
      %v1024 = vpack.c.b16 %v1015, %v1006
      %v1025 = vpack.c.b16 %v1016, %v1007
      %v1026 = vpack.c.b16 %v1017, %v1008
      %v1027 = vpack.c.b16 %v1018, %v1009
      %v1028 = vpack.c.b16 %v1019, %v1010
      %v1029 = vpack.c.b16 %v1020, %v1011
      %v1030 = vpack.c.b16 %v1021, %v1012
      %1031 = vrot.lane.b32.xlu0 %v1022, 107
      %v1032 = vpop.permute.xlu0 %1031
      %1033 = vrot.lane.b32.xlu0 %v1023, 107
      %v1034 = vpop.permute.xlu0 %1033
      %1035 = vrot.lane.b32.xlu0 %v1024, 107
      %v1036 = vpop.permute.xlu0 %1035
      %1037 = vrot.lane.b32.xlu0 %v1025, 107
      %v1038 = vpop.permute.xlu0 %1037
      %1039 = vrot.lane.b32.xlu0 %v1026, 107
      %v1040 = vpop.permute.xlu0 %1039
      %1041 = vrot.lane.b32.xlu0 %v1027, 107
      %v1042 = vpop.permute.xlu0 %1041
      %1043 = vrot.lane.b32.xlu0 %v1028, 107
      %v1044 = vpop.permute.xlu0 %1043
      %1045 = vrot.lane.b32.xlu0 %v1029, 107
      %v1046 = vpop.permute.xlu0 %1045
      %1047 = vrot.lane.b32.xlu0 %v1030, 107
      %v1048 = vpop.permute.xlu0 %1047
      %vm1049 = vcmask 875520
      %v1050 = vsel %vm1049, %v1032, %v1034
      %v1051 = vsel %vm1049, %v1034, %v1036
      %v1052 = vsel %vm1049, %v1036, %v1038
      %v1053 = vsel %vm1049, %v1038, %v1040
      %v1054 = vsel %vm1049, %v1040, %v1042
      %v1055 = vsel %vm1049, %v1042, %v1044
      %v1056 = vsel %vm1049, %v1044, %v1046
      %v1057 = vsel %vm1049, %v1046, %v1048
      %1066 = vst [vmem:[#allocation2 + $0x1c0] sm:$0xff] %v1050
      %1067 = vst [vmem:[#allocation2 + $0x1c8] sm:$0xff] %v1051
      %1068 = vst [vmem:[#allocation2 + $0x1d0] sm:$0xff] %v1052
      %1069 = vst [vmem:[#allocation2 + $0x1d8] sm:$0xff] %v1053
      %1070 = vst [vmem:[#allocation2 + $0x1e0] sm:$0xff] %v1054
      %1071 = vst [vmem:[#allocation2 + $0x1e8] sm:$0xff] %v1055
      %1072 = vst [vmem:[#allocation2 + $0x1f0] sm:$0xff] %v1056
      %1073 = vst [vmem:[#allocation2 + $0x1f8] sm:$0xff] %v1057
      %v1074 = vld [vmem:[%s360] sm:$0xff]
      %v1075 = vld [vmem:[%s360 + $0x8] sm:$0xff]
      %v1076 = vld [vmem:[%s360 + $0x10] sm:$0xff]
      %v1077 = vld [vmem:[%s360 + $0x18] sm:$0xff]
      %v1078 = vld [vmem:[%s360 + $0x20] sm:$0xf]
      %v1079 = vld [vmem:[%s360 + $0x28] sm:$0xff]
      %v1080 = vld [vmem:[%s360 + $0x30] sm:$0xff]
      %v1081 = vld [vmem:[%s360 + $0x38] sm:$0xff]
      %v1082 = vld [vmem:[%s360 + $0x40] sm:$0xff]
      %v1083 = vld [vmem:[%s360 + $0x48] sm:$0xf]
      %v1094 = vunpack.c.l.b16 %v1074
      %v1095 = vunpack.c.h.b16 %v1074
      %v1096 = vunpack.c.l.b16 %v1075
      %v1097 = vunpack.c.h.b16 %v1075
      %v1098 = vunpack.c.l.b16 %v1076
      %v1099 = vunpack.c.h.b16 %v1076
      %v1100 = vunpack.c.l.b16 %v1077
      %v1101 = vunpack.c.h.b16 %v1077
      %v1102 = vunpack.c.l.b16 %v1078
      %v1103 = vunpack.c.l.b16 %v1079
      %v1104 = vunpack.c.h.b16 %v1079
      %v1105 = vunpack.c.l.b16 %v1080
      %v1106 = vunpack.c.h.b16 %v1080
      %v1107 = vunpack.c.l.b16 %v1081
      %v1108 = vunpack.c.h.b16 %v1081
      %v1109 = vunpack.c.l.b16 %v1082
      %v1110 = vunpack.c.h.b16 %v1082
      %v1111 = vunpack.c.l.b16 %v1083
      %v1112 = vpack.c.b16 %v1103, %v1094
      %v1113 = vpack.c.b16 %v1104, %v1095
      %v1114 = vpack.c.b16 %v1105, %v1096
      %v1115 = vpack.c.b16 %v1106, %v1097
      %v1116 = vpack.c.b16 %v1107, %v1098
      %v1117 = vpack.c.b16 %v1108, %v1099
      %v1118 = vpack.c.b16 %v1109, %v1100
      %v1119 = vpack.c.b16 %v1110, %v1101
      %v1120 = vpack.c.b16 %v1111, %v1102
      %1121 = vrot.lane.b32.xlu0 %v1112, 106
      %v1122 = vpop.permute.xlu0 %1121
      %1123 = vrot.lane.b32.xlu0 %v1113, 106
      %v1124 = vpop.permute.xlu0 %1123
      %1125 = vrot.lane.b32.xlu0 %v1114, 106
      %v1126 = vpop.permute.xlu0 %1125
      %1127 = vrot.lane.b32.xlu0 %v1115, 106
      %v1128 = vpop.permute.xlu0 %1127
      %1129 = vrot.lane.b32.xlu0 %v1116, 106
      %v1130 = vpop.permute.xlu0 %1129
      %1131 = vrot.lane.b32.xlu0 %v1117, 106
      %v1132 = vpop.permute.xlu0 %1131
      %1133 = vrot.lane.b32.xlu0 %v1118, 106
      %v1134 = vpop.permute.xlu0 %1133
      %1135 = vrot.lane.b32.xlu0 %v1119, 106
      %v1136 = vpop.permute.xlu0 %1135
      %1137 = vrot.lane.b32.xlu0 %v1120, 106
      %v1138 = vpop.permute.xlu0 %1137
      %vm1139 = vcmask 867328
      %v1140 = vsel %vm1139, %v1122, %v1124
      %v1141 = vsel %vm1139, %v1124, %v1126
      %v1142 = vsel %vm1139, %v1126, %v1128
      %v1143 = vsel %vm1139, %v1128, %v1130
      %v1144 = vsel %vm1139, %v1130, %v1132
      %v1145 = vsel %vm1139, %v1132, %v1134
      %v1146 = vsel %vm1139, %v1134, %v1136
      %v1147 = vsel %vm1139, %v1136, %v1138
      %1156 = vst [vmem:[#allocation2 + $0x200] sm:$0xff] %v1140
      %1157 = vst [vmem:[#allocation2 + $0x208] sm:$0xff] %v1141
      %1158 = vst [vmem:[#allocation2 + $0x210] sm:$0xff] %v1142
      %1159 = vst [vmem:[#allocation2 + $0x218] sm:$0xff] %v1143
      %1160 = vst [vmem:[#allocation2 + $0x220] sm:$0xff] %v1144
      %1161 = vst [vmem:[#allocation2 + $0x228] sm:$0xff] %v1145
      %1162 = vst [vmem:[#allocation2 + $0x230] sm:$0xff] %v1146
      %1163 = vst [vmem:[#allocation2 + $0x238] sm:$0xff] %v1147
      %v1164 = vld [vmem:[%s360] sm:$0xff]
      %v1165 = vld [vmem:[%s360 + $0x8] sm:$0xff]
      %v1166 = vld [vmem:[%s360 + $0x10] sm:$0xff]
      %v1167 = vld [vmem:[%s360 + $0x18] sm:$0xff]
      %v1168 = vld [vmem:[%s360 + $0x20] sm:$0xf]
      %v1169 = vld [vmem:[%s360 + $0x28] sm:$0xff]
      %v1170 = vld [vmem:[%s360 + $0x30] sm:$0xff]
      %v1171 = vld [vmem:[%s360 + $0x38] sm:$0xff]
      %v1172 = vld [vmem:[%s360 + $0x40] sm:$0xff]
      %v1173 = vld [vmem:[%s360 + $0x48] sm:$0xf]
      %v1184 = vunpack.c.l.b16 %v1164
      %v1185 = vunpack.c.h.b16 %v1164
      %v1186 = vunpack.c.l.b16 %v1165
      %v1187 = vunpack.c.h.b16 %v1165
      %v1188 = vunpack.c.l.b16 %v1166
      %v1189 = vunpack.c.h.b16 %v1166
      %v1190 = vunpack.c.l.b16 %v1167
      %v1191 = vunpack.c.h.b16 %v1167
      %v1192 = vunpack.c.l.b16 %v1168
      %v1193 = vunpack.c.l.b16 %v1169
      %v1194 = vunpack.c.h.b16 %v1169
      %v1195 = vunpack.c.l.b16 %v1170
      %v1196 = vunpack.c.h.b16 %v1170
      %v1197 = vunpack.c.l.b16 %v1171
      %v1198 = vunpack.c.h.b16 %v1171
      %v1199 = vunpack.c.l.b16 %v1172
      %v1200 = vunpack.c.h.b16 %v1172
      %v1201 = vunpack.c.l.b16 %v1173
      %v1202 = vpack.c.b16 %v1193, %v1184
      %v1203 = vpack.c.b16 %v1194, %v1185
      %v1204 = vpack.c.b16 %v1195, %v1186
      %v1205 = vpack.c.b16 %v1196, %v1187
      %v1206 = vpack.c.b16 %v1197, %v1188
      %v1207 = vpack.c.b16 %v1198, %v1189
      %v1208 = vpack.c.b16 %v1199, %v1190
      %v1209 = vpack.c.b16 %v1200, %v1191
      %v1210 = vpack.c.b16 %v1201, %v1192
      %1211 = vrot.lane.b32.xlu0 %v1202, 28
      %v1212 = vpop.permute.xlu0 %1211
      %1213 = vrot.lane.b32.xlu0 %v1203, 28
      %v1214 = vpop.permute.xlu0 %1213
      %1215 = vrot.lane.b32.xlu0 %v1204, 28
      %v1216 = vpop.permute.xlu0 %1215
      %1217 = vrot.lane.b32.xlu0 %v1205, 28
      %v1218 = vpop.permute.xlu0 %1217
      %1219 = vrot.lane.b32.xlu0 %v1206, 28
      %v1220 = vpop.permute.xlu0 %1219
      %1221 = vrot.lane.b32.xlu0 %v1207, 28
      %v1222 = vpop.permute.xlu0 %1221
      %1223 = vrot.lane.b32.xlu0 %v1208, 28
      %v1224 = vpop.permute.xlu0 %1223
      %1225 = vrot.lane.b32.xlu0 %v1209, 28
      %v1226 = vpop.permute.xlu0 %1225
      %1227 = vrot.lane.b32.xlu0 %v1210, 28
      %v1228 = vpop.permute.xlu0 %1227
      %vm1229 = vcmask 228352
      %v1230 = vsel %vm1229, %v1212, %v1214
      %v1231 = vsel %vm1229, %v1214, %v1216
      %v1232 = vsel %vm1229, %v1216, %v1218
      %v1233 = vsel %vm1229, %v1218, %v1220
      %v1234 = vsel %vm1229, %v1220, %v1222
      %v1235 = vsel %vm1229, %v1222, %v1224
      %v1236 = vsel %vm1229, %v1224, %v1226
      %v1237 = vsel %vm1229, %v1226, %v1228
      %1246 = vst [vmem:[#allocation2 + $0x240] sm:$0xff] %v1230
      %1247 = vst [vmem:[#allocation2 + $0x248] sm:$0xff] %v1231
      %1248 = vst [vmem:[#allocation2 + $0x250] sm:$0xff] %v1232
      %1249 = vst [vmem:[#allocation2 + $0x258] sm:$0xff] %v1233
      %1250 = vst [vmem:[#allocation2 + $0x260] sm:$0xff] %v1234
      %1251 = vst [vmem:[#allocation2 + $0x268] sm:$0xff] %v1235
      %1252 = vst [vmem:[#allocation2 + $0x270] sm:$0xff] %v1236
      %1253 = vst [vmem:[#allocation2 + $0x278] sm:$0xff] %v1237
      %v1254 = vld [vmem:[%s360] sm:$0xff]
      %v1255 = vld [vmem:[%s360 + $0x8] sm:$0xff]
      %v1256 = vld [vmem:[%s360 + $0x10] sm:$0xff]
      %v1257 = vld [vmem:[%s360 + $0x18] sm:$0xff]
      %v1258 = vld [vmem:[%s360 + $0x20] sm:$0xf]
      %v1259 = vld [vmem:[%s360 + $0x28] sm:$0xff]
      %v1260 = vld [vmem:[%s360 + $0x30] sm:$0xff]
      %v1261 = vld [vmem:[%s360 + $0x38] sm:$0xff]
      %v1262 = vld [vmem:[%s360 + $0x40] sm:$0xff]
      %v1263 = vld [vmem:[%s360 + $0x48] sm:$0xf]
      %v1274 = vunpack.c.l.b16 %v1254
      %v1275 = vunpack.c.h.b16 %v1254
      %v1276 = vunpack.c.l.b16 %v1255
      %v1277 = vunpack.c.h.b16 %v1255
      %v1278 = vunpack.c.l.b16 %v1256
      %v1279 = vunpack.c.h.b16 %v1256
      %v1280 = vunpack.c.l.b16 %v1257
      %v1281 = vunpack.c.h.b16 %v1257
      %v1282 = vunpack.c.l.b16 %v1258
      %v1283 = vunpack.c.l.b16 %v1259
      %v1284 = vunpack.c.h.b16 %v1259
      %v1285 = vunpack.c.l.b16 %v1260
      %v1286 = vunpack.c.h.b16 %v1260
      %v1287 = vunpack.c.l.b16 %v1261
      %v1288 = vunpack.c.h.b16 %v1261
      %v1289 = vunpack.c.l.b16 %v1262
      %v1290 = vunpack.c.h.b16 %v1262
      %v1291 = vunpack.c.l.b16 %v1263
      %v1292 = vpack.c.b16 %v1283, %v1274
      %v1293 = vpack.c.b16 %v1284, %v1275
      %v1294 = vpack.c.b16 %v1285, %v1276
      %v1295 = vpack.c.b16 %v1286, %v1277
      %v1296 = vpack.c.b16 %v1287, %v1278
      %v1297 = vpack.c.b16 %v1288, %v1279
      %v1298 = vpack.c.b16 %v1289, %v1280
      %v1299 = vpack.c.b16 %v1290, %v1281
      %v1300 = vpack.c.b16 %v1291, %v1282
      %1301 = vrot.lane.b32.xlu0 %v1292, 27
      %v1302 = vpop.permute.xlu0 %1301
      %1303 = vrot.lane.b32.xlu0 %v1293, 27
      %v1304 = vpop.permute.xlu0 %1303
      %1305 = vrot.lane.b32.xlu0 %v1294, 27
      %v1306 = vpop.permute.xlu0 %1305
      %1307 = vrot.lane.b32.xlu0 %v1295, 27
      %v1308 = vpop.permute.xlu0 %1307
      %1309 = vrot.lane.b32.xlu0 %v1296, 27
      %v1310 = vpop.permute.xlu0 %1309
      %1311 = vrot.lane.b32.xlu0 %v1297, 27
      %v1312 = vpop.permute.xlu0 %1311
      %1313 = vrot.lane.b32.xlu0 %v1298, 27
      %v1314 = vpop.permute.xlu0 %1313
      %1315 = vrot.lane.b32.xlu0 %v1299, 27
      %v1316 = vpop.permute.xlu0 %1315
      %1317 = vrot.lane.b32.xlu0 %v1300, 27
      %v1318 = vpop.permute.xlu0 %1317
      %vm1319 = vcmask 220160
      %v1320 = vsel %vm1319, %v1302, %v1304
      %v1321 = vsel %vm1319, %v1304, %v1306
      %v1322 = vsel %vm1319, %v1306, %v1308
      %v1323 = vsel %vm1319, %v1308, %v1310
      %v1324 = vsel %vm1319, %v1310, %v1312
      %v1325 = vsel %vm1319, %v1312, %v1314
      %v1326 = vsel %vm1319, %v1314, %v1316
      %v1327 = vsel %vm1319, %v1316, %v1318
      %1336 = vst [vmem:[#allocation2 + $0x280] sm:$0xff] %v1320
      %1337 = vst [vmem:[#allocation2 + $0x288] sm:$0xff] %v1321
      %1338 = vst [vmem:[#allocation2 + $0x290] sm:$0xff] %v1322
      %1339 = vst [vmem:[#allocation2 + $0x298] sm:$0xff] %v1323
      %1340 = vst [vmem:[#allocation2 + $0x2a0] sm:$0xff] %v1324
      %1341 = vst [vmem:[#allocation2 + $0x2a8] sm:$0xff] %v1325
      %1342 = vst [vmem:[#allocation2 + $0x2b0] sm:$0xff] %v1326
      %1343 = vst [vmem:[#allocation2 + $0x2b8] sm:$0xff] %v1327
      %v1344 = vld [vmem:[%s360] sm:$0xff]
      %v1345 = vld [vmem:[%s360 + $0x8] sm:$0xff]
      %v1346 = vld [vmem:[%s360 + $0x10] sm:$0xff]
      %v1347 = vld [vmem:[%s360 + $0x18] sm:$0xff]
      %v1348 = vld [vmem:[%s360 + $0x20] sm:$0xf]
      %v1349 = vld [vmem:[%s360 + $0x28] sm:$0xff]
      %v1350 = vld [vmem:[%s360 + $0x30] sm:$0xff]
      %v1351 = vld [vmem:[%s360 + $0x38] sm:$0xff]
      %v1352 = vld [vmem:[%s360 + $0x40] sm:$0xff]
      %v1353 = vld [vmem:[%s360 + $0x48] sm:$0xf]
      %v1364 = vunpack.c.l.b16 %v1344
      %v1365 = vunpack.c.h.b16 %v1344
      %v1366 = vunpack.c.l.b16 %v1345
      %v1367 = vunpack.c.h.b16 %v1345
      %v1368 = vunpack.c.l.b16 %v1346
      %v1369 = vunpack.c.h.b16 %v1346
      %v1370 = vunpack.c.l.b16 %v1347
      %v1371 = vunpack.c.h.b16 %v1347
      %v1372 = vunpack.c.l.b16 %v1348
      %v1373 = vunpack.c.l.b16 %v1349
      %v1374 = vunpack.c.h.b16 %v1349
      %v1375 = vunpack.c.l.b16 %v1350
      %v1376 = vunpack.c.h.b16 %v1350
      %v1377 = vunpack.c.l.b16 %v1351
      %v1378 = vunpack.c.h.b16 %v1351
      %v1379 = vunpack.c.l.b16 %v1352
      %v1380 = vunpack.c.h.b16 %v1352
      %v1381 = vunpack.c.l.b16 %v1353
      %v1382 = vpack.c.b16 %v1373, %v1364
      %v1383 = vpack.c.b16 %v1374, %v1365
      %v1384 = vpack.c.b16 %v1375, %v1366
      %v1385 = vpack.c.b16 %v1376, %v1367
      %v1386 = vpack.c.b16 %v1377, %v1368
      %v1387 = vpack.c.b16 %v1378, %v1369
      %v1388 = vpack.c.b16 %v1379, %v1370
      %v1389 = vpack.c.b16 %v1380, %v1371
      %v1390 = vpack.c.b16 %v1381, %v1372
      %1391 = vrot.lane.b32.xlu0 %v1382, 26
      %v1392 = vpop.permute.xlu0 %1391
      %1393 = vrot.lane.b32.xlu0 %v1383, 26
      %v1394 = vpop.permute.xlu0 %1393
      %1395 = vrot.lane.b32.xlu0 %v1384, 26
      %v1396 = vpop.permute.xlu0 %1395
      %1397 = vrot.lane.b32.xlu0 %v1385, 26
      %v1398 = vpop.permute.xlu0 %1397
      %1399 = vrot.lane.b32.xlu0 %v1386, 26
      %v1400 = vpop.permute.xlu0 %1399
      %1401 = vrot.lane.b32.xlu0 %v1387, 26
      %v1402 = vpop.permute.xlu0 %1401
      %1403 = vrot.lane.b32.xlu0 %v1388, 26
      %v1404 = vpop.permute.xlu0 %1403
      %1405 = vrot.lane.b32.xlu0 %v1389, 26
      %v1406 = vpop.permute.xlu0 %1405
      %1407 = vrot.lane.b32.xlu0 %v1390, 26
      %v1408 = vpop.permute.xlu0 %1407
      %vm1409 = vcmask 211968
      %v1410 = vsel %vm1409, %v1392, %v1394
      %v1411 = vsel %vm1409, %v1394, %v1396
      %v1412 = vsel %vm1409, %v1396, %v1398
      %v1413 = vsel %vm1409, %v1398, %v1400
      %v1414 = vsel %vm1409, %v1400, %v1402
      %v1415 = vsel %vm1409, %v1402, %v1404
      %v1416 = vsel %vm1409, %v1404, %v1406
      %v1417 = vsel %vm1409, %v1406, %v1408
      %1426 = vst [vmem:[#allocation2 + $0x2c0] sm:$0xff] %v1410
      %1427 = vst [vmem:[#allocation2 + $0x2c8] sm:$0xff] %v1411
      %1428 = vst [vmem:[#allocation2 + $0x2d0] sm:$0xff] %v1412
      %1429 = vst [vmem:[#allocation2 + $0x2d8] sm:$0xff] %v1413
      %1430 = vst [vmem:[#allocation2 + $0x2e0] sm:$0xff] %v1414
      %1431 = vst [vmem:[#allocation2 + $0x2e8] sm:$0xff] %v1415
      %1432 = vst [vmem:[#allocation2 + $0x2f0] sm:$0xff] %v1416
      %1433 = vst [vmem:[#allocation2 + $0x2f8] sm:$0xff] %v1417
      %v1434 = vld [vmem:[%s360] sm:$0xff]
      %v1435 = vld [vmem:[%s360 + $0x8] sm:$0xff]
      %v1436 = vld [vmem:[%s360 + $0x10] sm:$0xff]
      %v1437 = vld [vmem:[%s360 + $0x18] sm:$0xff]
      %v1438 = vld [vmem:[%s360 + $0x20] sm:$0xf]
      %v1439 = vld [vmem:[%s360 + $0x28] sm:$0xff]
      %v1440 = vld [vmem:[%s360 + $0x30] sm:$0xff]
      %v1441 = vld [vmem:[%s360 + $0x38] sm:$0xff]
      %v1442 = vld [vmem:[%s360 + $0x40] sm:$0xff]
      %v1443 = vld [vmem:[%s360 + $0x48] sm:$0xf]
      %v1454 = vunpack.c.l.b16 %v1434
      %v1455 = vunpack.c.h.b16 %v1434
      %v1456 = vunpack.c.l.b16 %v1435
      %v1457 = vunpack.c.h.b16 %v1435
      %v1458 = vunpack.c.l.b16 %v1436
      %v1459 = vunpack.c.h.b16 %v1436
      %v1460 = vunpack.c.l.b16 %v1437
      %v1461 = vunpack.c.h.b16 %v1437
      %v1462 = vunpack.c.l.b16 %v1438
      %v1463 = vunpack.c.l.b16 %v1439
      %v1464 = vunpack.c.h.b16 %v1439
      %v1465 = vunpack.c.l.b16 %v1440
      %v1466 = vunpack.c.h.b16 %v1440
      %v1467 = vunpack.c.l.b16 %v1441
      %v1468 = vunpack.c.h.b16 %v1441
      %v1469 = vunpack.c.l.b16 %v1442
      %v1470 = vunpack.c.h.b16 %v1442
      %v1471 = vunpack.c.l.b16 %v1443
      %v1472 = vpack.c.b16 %v1463, %v1454
      %v1473 = vpack.c.b16 %v1464, %v1455
      %v1474 = vpack.c.b16 %v1465, %v1456
      %v1475 = vpack.c.b16 %v1466, %v1457
      %v1476 = vpack.c.b16 %v1467, %v1458
      %v1477 = vpack.c.b16 %v1468, %v1459
      %v1478 = vpack.c.b16 %v1469, %v1460
      %v1479 = vpack.c.b16 %v1470, %v1461
      %v1480 = vpack.c.b16 %v1471, %v1462
      %1481 = vrot.lane.b32.xlu0 %v1472, 18
      %v1482 = vpop.permute.xlu0 %1481
      %1483 = vrot.lane.b32.xlu0 %v1473, 18
      %v1484 = vpop.permute.xlu0 %1483
      %1485 = vrot.lane.b32.xlu0 %v1474, 18
      %v1486 = vpop.permute.xlu0 %1485
      %1487 = vrot.lane.b32.xlu0 %v1475, 18
      %v1488 = vpop.permute.xlu0 %1487
      %1489 = vrot.lane.b32.xlu0 %v1476, 18
      %v1490 = vpop.permute.xlu0 %1489
      %1491 = vrot.lane.b32.xlu0 %v1477, 18
      %v1492 = vpop.permute.xlu0 %1491
      %1493 = vrot.lane.b32.xlu0 %v1478, 18
      %v1494 = vpop.permute.xlu0 %1493
      %1495 = vrot.lane.b32.xlu0 %v1479, 18
      %v1496 = vpop.permute.xlu0 %1495
      %1497 = vrot.lane.b32.xlu0 %v1480, 18
      %v1498 = vpop.permute.xlu0 %1497
      %vm1499 = vcmask 146432
      %v1500 = vsel %vm1499, %v1482, %v1484
      %v1501 = vsel %vm1499, %v1484, %v1486
      %v1502 = vsel %vm1499, %v1486, %v1488
      %v1503 = vsel %vm1499, %v1488, %v1490
      %v1504 = vsel %vm1499, %v1490, %v1492
      %v1505 = vsel %vm1499, %v1492, %v1494
      %v1506 = vsel %vm1499, %v1494, %v1496
      %v1507 = vsel %vm1499, %v1496, %v1498
      %1516 = vst [vmem:[#allocation2 + $0x300] sm:$0xff] %v1500
      %1517 = vst [vmem:[#allocation2 + $0x308] sm:$0xff] %v1501
      %1518 = vst [vmem:[#allocation2 + $0x310] sm:$0xff] %v1502
      %1519 = vst [vmem:[#allocation2 + $0x318] sm:$0xff] %v1503
      %1520 = vst [vmem:[#allocation2 + $0x320] sm:$0xff] %v1504
      %1521 = vst [vmem:[#allocation2 + $0x328] sm:$0xff] %v1505
      %1522 = vst [vmem:[#allocation2 + $0x330] sm:$0xff] %v1506
      %1523 = vst [vmem:[#allocation2 + $0x338] sm:$0xff] %v1507
      %v1524 = vld [vmem:[%s360] sm:$0xff]
      %v1525 = vld [vmem:[%s360 + $0x8] sm:$0xff]
      %v1526 = vld [vmem:[%s360 + $0x10] sm:$0xff]
      %v1527 = vld [vmem:[%s360 + $0x18] sm:$0xff]
      %v1528 = vld [vmem:[%s360 + $0x20] sm:$0xf]
      %v1529 = vld [vmem:[%s360 + $0x28] sm:$0xff]
      %v1530 = vld [vmem:[%s360 + $0x30] sm:$0xff]
      %v1531 = vld [vmem:[%s360 + $0x38] sm:$0xff]
      %v1532 = vld [vmem:[%s360 + $0x40] sm:$0xff]
      %v1533 = vld [vmem:[%s360 + $0x48] sm:$0xf]
      %v1544 = vunpack.c.l.b16 %v1524
      %v1545 = vunpack.c.h.b16 %v1524
      %v1546 = vunpack.c.l.b16 %v1525
      %v1547 = vunpack.c.h.b16 %v1525
      %v1548 = vunpack.c.l.b16 %v1526
      %v1549 = vunpack.c.h.b16 %v1526
      %v1550 = vunpack.c.l.b16 %v1527
      %v1551 = vunpack.c.h.b16 %v1527
      %v1552 = vunpack.c.l.b16 %v1528
      %v1553 = vunpack.c.l.b16 %v1529
      %v1554 = vunpack.c.h.b16 %v1529
      %v1555 = vunpack.c.l.b16 %v1530
      %v1556 = vunpack.c.h.b16 %v1530
      %v1557 = vunpack.c.l.b16 %v1531
      %v1558 = vunpack.c.h.b16 %v1531
      %v1559 = vunpack.c.l.b16 %v1532
      %v1560 = vunpack.c.h.b16 %v1532
      %v1561 = vunpack.c.l.b16 %v1533
      %v1562 = vpack.c.b16 %v1553, %v1544
      %v1563 = vpack.c.b16 %v1554, %v1545
      %v1564 = vpack.c.b16 %v1555, %v1546
      %v1565 = vpack.c.b16 %v1556, %v1547
      %v1566 = vpack.c.b16 %v1557, %v1548
      %v1567 = vpack.c.b16 %v1558, %v1549
      %v1568 = vpack.c.b16 %v1559, %v1550
      %v1569 = vpack.c.b16 %v1560, %v1551
      %v1570 = vpack.c.b16 %v1561, %v1552
      %1571 = vrot.lane.b32.xlu0 %v1562, 17
      %v1572 = vpop.permute.xlu0 %1571
      %1573 = vrot.lane.b32.xlu0 %v1563, 17
      %v1574 = vpop.permute.xlu0 %1573
      %1575 = vrot.lane.b32.xlu0 %v1564, 17
      %v1576 = vpop.permute.xlu0 %1575
      %1577 = vrot.lane.b32.xlu0 %v1565, 17
      %v1578 = vpop.permute.xlu0 %1577
      %1579 = vrot.lane.b32.xlu0 %v1566, 17
      %v1580 = vpop.permute.xlu0 %1579
      %1581 = vrot.lane.b32.xlu0 %v1567, 17
      %v1582 = vpop.permute.xlu0 %1581
      %1583 = vrot.lane.b32.xlu0 %v1568, 17
      %v1584 = vpop.permute.xlu0 %1583
      %1585 = vrot.lane.b32.xlu0 %v1569, 17
      %v1586 = vpop.permute.xlu0 %1585
      %1587 = vrot.lane.b32.xlu0 %v1570, 17
      %v1588 = vpop.permute.xlu0 %1587
      %vm1589 = vcmask 138240
      %v1590 = vsel %vm1589, %v1572, %v1574
      %v1591 = vsel %vm1589, %v1574, %v1576
      %v1592 = vsel %vm1589, %v1576, %v1578
      %v1593 = vsel %vm1589, %v1578, %v1580
      %v1594 = vsel %vm1589, %v1580, %v1582
      %v1595 = vsel %vm1589, %v1582, %v1584
      %v1596 = vsel %vm1589, %v1584, %v1586
      %v1597 = vsel %vm1589, %v1586, %v1588
      %1606 = vst [vmem:[#allocation2 + $0x340] sm:$0xff] %v1590
      %1607 = vst [vmem:[#allocation2 + $0x348] sm:$0xff] %v1591
      %1608 = vst [vmem:[#allocation2 + $0x350] sm:$0xff] %v1592
      %1609 = vst [vmem:[#allocation2 + $0x358] sm:$0xff] %v1593
      %1610 = vst [vmem:[#allocation2 + $0x360] sm:$0xff] %v1594
      %1611 = vst [vmem:[#allocation2 + $0x368] sm:$0xff] %v1595
      %1612 = vst [vmem:[#allocation2 + $0x370] sm:$0xff] %v1596
      %1613 = vst [vmem:[#allocation2 + $0x378] sm:$0xff] %v1597
      %v1614 = vld [vmem:[%s360] sm:$0xff]
      %v1615 = vld [vmem:[%s360 + $0x8] sm:$0xff]
      %v1616 = vld [vmem:[%s360 + $0x10] sm:$0xff]
      %v1617 = vld [vmem:[%s360 + $0x18] sm:$0xff]
      %v1618 = vld [vmem:[%s360 + $0x20] sm:$0xf]
      %v1619 = vld [vmem:[%s360 + $0x28] sm:$0xff]
      %v1620 = vld [vmem:[%s360 + $0x30] sm:$0xff]
      %v1621 = vld [vmem:[%s360 + $0x38] sm:$0xff]
      %v1622 = vld [vmem:[%s360 + $0x40] sm:$0xff]
      %v1623 = vld [vmem:[%s360 + $0x48] sm:$0xf]
      %v1634 = vunpack.c.l.b16 %v1614
      %v1635 = vunpack.c.h.b16 %v1614
      %v1636 = vunpack.c.l.b16 %v1615
      %v1637 = vunpack.c.h.b16 %v1615
      %v1638 = vunpack.c.l.b16 %v1616
      %v1639 = vunpack.c.h.b16 %v1616
      %v1640 = vunpack.c.l.b16 %v1617
      %v1641 = vunpack.c.h.b16 %v1617
      %v1642 = vunpack.c.l.b16 %v1618
      %v1643 = vunpack.c.l.b16 %v1619
      %v1644 = vunpack.c.h.b16 %v1619
      %v1645 = vunpack.c.l.b16 %v1620
      %v1646 = vunpack.c.h.b16 %v1620
      %v1647 = vunpack.c.l.b16 %v1621
      %v1648 = vunpack.c.h.b16 %v1621
      %v1649 = vunpack.c.l.b16 %v1622
      %v1650 = vunpack.c.h.b16 %v1622
      %v1651 = vunpack.c.l.b16 %v1623
      %v1652 = vpack.c.b16 %v1643, %v1634
      %v1653 = vpack.c.b16 %v1644, %v1635
      %v1654 = vpack.c.b16 %v1645, %v1636
      %v1655 = vpack.c.b16 %v1646, %v1637
      %v1656 = vpack.c.b16 %v1647, %v1638
      %v1657 = vpack.c.b16 %v1648, %v1639
      %v1658 = vpack.c.b16 %v1649, %v1640
      %v1659 = vpack.c.b16 %v1650, %v1641
      %v1660 = vpack.c.b16 %v1651, %v1642
      %1661 = vrot.lane.b32.xlu0 %v1652, 16
      %v1662 = vpop.permute.xlu0 %1661
      %1663 = vrot.lane.b32.xlu0 %v1653, 16
      %v1664 = vpop.permute.xlu0 %1663
      %1665 = vrot.lane.b32.xlu0 %v1654, 16
      %v1666 = vpop.permute.xlu0 %1665
      %1667 = vrot.lane.b32.xlu0 %v1655, 16
      %v1668 = vpop.permute.xlu0 %1667
      %1669 = vrot.lane.b32.xlu0 %v1656, 16
      %v1670 = vpop.permute.xlu0 %1669
      %1671 = vrot.lane.b32.xlu0 %v1657, 16
      %v1672 = vpop.permute.xlu0 %1671
      %1673 = vrot.lane.b32.xlu0 %v1658, 16
      %v1674 = vpop.permute.xlu0 %1673
      %1675 = vrot.lane.b32.xlu0 %v1659, 16
      %v1676 = vpop.permute.xlu0 %1675
      %1677 = vrot.lane.b32.xlu0 %v1660, 16
      %v1678 = vpop.permute.xlu0 %1677
      %vm1679 = vcmask 130048
      %v1680 = vsel %vm1679, %v1662, %v1664
      %v1681 = vsel %vm1679, %v1664, %v1666
      %v1682 = vsel %vm1679, %v1666, %v1668
      %v1683 = vsel %vm1679, %v1668, %v1670
      %v1684 = vsel %vm1679, %v1670, %v1672
      %v1685 = vsel %vm1679, %v1672, %v1674
      %v1686 = vsel %vm1679, %v1674, %v1676
      %v1687 = vsel %vm1679, %v1676, %v1678
      %1696 = vst [vmem:[#allocation2 + $0x380] sm:$0xff] %v1680
      %1697 = vst [vmem:[#allocation2 + $0x388] sm:$0xff] %v1681
      %1698 = vst [vmem:[#allocation2 + $0x390] sm:$0xff] %v1682
      %1699 = vst [vmem:[#allocation2 + $0x398] sm:$0xff] %v1683
      %1700 = vst [vmem:[#allocation2 + $0x3a0] sm:$0xff] %v1684
      %1701 = vst [vmem:[#allocation2 + $0x3a8] sm:$0xff] %v1685
      %1702 = vst [vmem:[#allocation2 + $0x3b0] sm:$0xff] %v1686
      %1703 = vst [vmem:[#allocation2 + $0x3b8] sm:$0xff] %v1687
      %v1704 = vld [vmem:[%s360] sm:$0xff]
      %v1705 = vld [vmem:[%s360 + $0x8] sm:$0xff]
      %v1706 = vld [vmem:[%s360 + $0x10] sm:$0xff]
      %v1707 = vld [vmem:[%s360 + $0x18] sm:$0xff]
      %v1708 = vld [vmem:[%s360 + $0x20] sm:$0xf]
      %v1709 = vld [vmem:[%s360 + $0x28] sm:$0xff]
      %v1710 = vld [vmem:[%s360 + $0x30] sm:$0xff]
      %v1711 = vld [vmem:[%s360 + $0x38] sm:$0xff]
      %v1712 = vld [vmem:[%s360 + $0x40] sm:$0xff]
      %v1713 = vld [vmem:[%s360 + $0x48] sm:$0xf]
      %v1724 = vunpack.c.l.b16 %v1704
      %v1725 = vunpack.c.h.b16 %v1704
      %v1726 = vunpack.c.l.b16 %v1705
      %v1727 = vunpack.c.h.b16 %v1705
      %v1728 = vunpack.c.l.b16 %v1706
      %v1729 = vunpack.c.h.b16 %v1706
      %v1730 = vunpack.c.l.b16 %v1707
      %v1731 = vunpack.c.h.b16 %v1707
      %v1732 = vunpack.c.l.b16 %v1708
      %v1733 = vunpack.c.l.b16 %v1709
      %v1734 = vunpack.c.h.b16 %v1709
      %v1735 = vunpack.c.l.b16 %v1710
      %v1736 = vunpack.c.h.b16 %v1710
      %v1737 = vunpack.c.l.b16 %v1711
      %v1738 = vunpack.c.h.b16 %v1711
      %v1739 = vunpack.c.l.b16 %v1712
      %v1740 = vunpack.c.h.b16 %v1712
      %v1741 = vunpack.c.l.b16 %v1713
      %v1742 = vpack.c.b16 %v1733, %v1724
      %v1743 = vpack.c.b16 %v1734, %v1725
      %v1744 = vpack.c.b16 %v1735, %v1726
      %v1745 = vpack.c.b16 %v1736, %v1727
      %v1746 = vpack.c.b16 %v1737, %v1728
      %v1747 = vpack.c.b16 %v1738, %v1729
      %v1748 = vpack.c.b16 %v1739, %v1730
      %v1749 = vpack.c.b16 %v1740, %v1731
      %v1750 = vpack.c.b16 %v1741, %v1732
      %1751 = vrot.lane.b32.xlu0 %v1742, 8
      %v1752 = vpop.permute.xlu0 %1751
      %1753 = vrot.lane.b32.xlu0 %v1743, 8
      %v1754 = vpop.permute.xlu0 %1753
      %1755 = vrot.lane.b32.xlu0 %v1744, 8
      %v1756 = vpop.permute.xlu0 %1755
      %1757 = vrot.lane.b32.xlu0 %v1745, 8
      %v1758 = vpop.permute.xlu0 %1757
      %1759 = vrot.lane.b32.xlu0 %v1746, 8
      %v1760 = vpop.permute.xlu0 %1759
      %1761 = vrot.lane.b32.xlu0 %v1747, 8
      %v1762 = vpop.permute.xlu0 %1761
      %1763 = vrot.lane.b32.xlu0 %v1748, 8
      %v1764 = vpop.permute.xlu0 %1763
      %1765 = vrot.lane.b32.xlu0 %v1749, 8
      %v1766 = vpop.permute.xlu0 %1765
      %1767 = vrot.lane.b32.xlu0 %v1750, 8
      %v1768 = vpop.permute.xlu0 %1767
      %vm1769 = vcmask 64512
      %v1770 = vsel %vm1769, %v1752, %v1754
      %v1771 = vsel %vm1769, %v1754, %v1756
      %v1772 = vsel %vm1769, %v1756, %v1758
      %v1773 = vsel %vm1769, %v1758, %v1760
      %v1774 = vsel %vm1769, %v1760, %v1762
      %v1775 = vsel %vm1769, %v1762, %v1764
      %v1776 = vsel %vm1769, %v1764, %v1766
      %v1777 = vsel %vm1769, %v1766, %v1768
      %1786 = vst [vmem:[#allocation2 + $0x3c0] sm:$0xff] %v1770
      %1787 = vst [vmem:[#allocation2 + $0x3c8] sm:$0xff] %v1771
      %1788 = vst [vmem:[#allocation2 + $0x3d0] sm:$0xff] %v1772
      %1789 = vst [vmem:[#allocation2 + $0x3d8] sm:$0xff] %v1773
      %1790 = vst [vmem:[#allocation2 + $0x3e0] sm:$0xff] %v1774
      %1791 = vst [vmem:[#allocation2 + $0x3e8] sm:$0xff] %v1775
      %1792 = vst [vmem:[#allocation2 + $0x3f0] sm:$0xff] %v1776
      %1793 = vst [vmem:[#allocation2 + $0x3f8] sm:$0xff] %v1777
      %v1794 = vld [vmem:[%s360] sm:$0xff]
      %v1795 = vld [vmem:[%s360 + $0x8] sm:$0xff]
      %v1796 = vld [vmem:[%s360 + $0x10] sm:$0xff]
      %v1797 = vld [vmem:[%s360 + $0x18] sm:$0xff]
      %v1798 = vld [vmem:[%s360 + $0x20] sm:$0xf]
      %v1799 = vld [vmem:[%s360 + $0x28] sm:$0xff]
      %v1800 = vld [vmem:[%s360 + $0x30] sm:$0xff]
      %v1801 = vld [vmem:[%s360 + $0x38] sm:$0xff]
      %v1802 = vld [vmem:[%s360 + $0x40] sm:$0xff]
      %v1803 = vld [vmem:[%s360 + $0x48] sm:$0xf]
      %v1814 = vunpack.c.l.b16 %v1794
      %v1815 = vunpack.c.h.b16 %v1794
      %v1816 = vunpack.c.l.b16 %v1795
      %v1817 = vunpack.c.h.b16 %v1795
      %v1818 = vunpack.c.l.b16 %v1796
      %v1819 = vunpack.c.h.b16 %v1796
      %v1820 = vunpack.c.l.b16 %v1797
      %v1821 = vunpack.c.h.b16 %v1797
      %v1822 = vunpack.c.l.b16 %v1798
      %v1823 = vunpack.c.l.b16 %v1799
      %v1824 = vunpack.c.h.b16 %v1799
      %v1825 = vunpack.c.l.b16 %v1800
      %v1826 = vunpack.c.h.b16 %v1800
      %v1827 = vunpack.c.l.b16 %v1801
      %v1828 = vunpack.c.h.b16 %v1801
      %v1829 = vunpack.c.l.b16 %v1802
      %v1830 = vunpack.c.h.b16 %v1802
      %v1831 = vunpack.c.l.b16 %v1803
      %v1832 = vpack.c.b16 %v1823, %v1814
      %v1833 = vpack.c.b16 %v1824, %v1815
      %v1834 = vpack.c.b16 %v1825, %v1816
      %v1835 = vpack.c.b16 %v1826, %v1817
      %v1836 = vpack.c.b16 %v1827, %v1818
      %v1837 = vpack.c.b16 %v1828, %v1819
      %v1838 = vpack.c.b16 %v1829, %v1820
      %v1839 = vpack.c.b16 %v1830, %v1821
      %v1840 = vpack.c.b16 %v1831, %v1822
      %1841 = vrot.lane.b32.xlu0 %v1832, 7
      %v1842 = vpop.permute.xlu0 %1841
      %1843 = vrot.lane.b32.xlu0 %v1833, 7
      %v1844 = vpop.permute.xlu0 %1843
      %1845 = vrot.lane.b32.xlu0 %v1834, 7
      %v1846 = vpop.permute.xlu0 %1845
      %1847 = vrot.lane.b32.xlu0 %v1835, 7
      %v1848 = vpop.permute.xlu0 %1847
      %1849 = vrot.lane.b32.xlu0 %v1836, 7
      %v1850 = vpop.permute.xlu0 %1849
      %1851 = vrot.lane.b32.xlu0 %v1837, 7
      %v1852 = vpop.permute.xlu0 %1851
      %1853 = vrot.lane.b32.xlu0 %v1838, 7
      %v1854 = vpop.permute.xlu0 %1853
      %1855 = vrot.lane.b32.xlu0 %v1839, 7
      %v1856 = vpop.permute.xlu0 %1855
      %1857 = vrot.lane.b32.xlu0 %v1840, 7
      %v1858 = vpop.permute.xlu0 %1857
      %vm1859 = vcmask 56320
      %v1860 = vsel %vm1859, %v1842, %v1844
      %v1861 = vsel %vm1859, %v1844, %v1846
      %v1862 = vsel %vm1859, %v1846, %v1848
      %v1863 = vsel %vm1859, %v1848, %v1850
      %v1864 = vsel %vm1859, %v1850, %v1852
      %v1865 = vsel %vm1859, %v1852, %v1854
      %v1866 = vsel %vm1859, %v1854, %v1856
      %v1867 = vsel %vm1859, %v1856, %v1858
      %1876 = vst [vmem:[#allocation2 + $0x400] sm:$0xff] %v1860
      %1877 = vst [vmem:[#allocation2 + $0x408] sm:$0xff] %v1861
      %1878 = vst [vmem:[#allocation2 + $0x410] sm:$0xff] %v1862
      %1879 = vst [vmem:[#allocation2 + $0x418] sm:$0xff] %v1863
      %1880 = vst [vmem:[#allocation2 + $0x420] sm:$0xff] %v1864
      %1881 = vst [vmem:[#allocation2 + $0x428] sm:$0xff] %v1865
      %1882 = vst [vmem:[#allocation2 + $0x430] sm:$0xff] %v1866
      %1883 = vst [vmem:[#allocation2 + $0x438] sm:$0xff] %v1867
      %v1884 = vld [vmem:[%s360] sm:$0xff]
      %v1885 = vld [vmem:[%s360 + $0x8] sm:$0xff]
      %v1886 = vld [vmem:[%s360 + $0x10] sm:$0xff]
      %v1887 = vld [vmem:[%s360 + $0x18] sm:$0xff]
      %v1888 = vld [vmem:[%s360 + $0x20] sm:$0xf]
      %v1889 = vld [vmem:[%s360 + $0x28] sm:$0xff]
      %v1890 = vld [vmem:[%s360 + $0x30] sm:$0xff]
      %v1891 = vld [vmem:[%s360 + $0x38] sm:$0xff]
      %v1892 = vld [vmem:[%s360 + $0x40] sm:$0xff]
      %v1893 = vld [vmem:[%s360 + $0x48] sm:$0xf]
      %v1904 = vunpack.c.l.b16 %v1884
      %v1905 = vunpack.c.h.b16 %v1884
      %v1906 = vunpack.c.l.b16 %v1885
      %v1907 = vunpack.c.h.b16 %v1885
      %v1908 = vunpack.c.l.b16 %v1886
      %v1909 = vunpack.c.h.b16 %v1886
      %v1910 = vunpack.c.l.b16 %v1887
      %v1911 = vunpack.c.h.b16 %v1887
      %v1912 = vunpack.c.l.b16 %v1888
      %v1913 = vunpack.c.l.b16 %v1889
      %v1914 = vunpack.c.h.b16 %v1889
      %v1915 = vunpack.c.l.b16 %v1890
      %v1916 = vunpack.c.h.b16 %v1890
      %v1917 = vunpack.c.l.b16 %v1891
      %v1918 = vunpack.c.h.b16 %v1891
      %v1919 = vunpack.c.l.b16 %v1892
      %v1920 = vunpack.c.h.b16 %v1892
      %v1921 = vunpack.c.l.b16 %v1893
      %v1922 = vpack.c.b16 %v1913, %v1904
      %v1923 = vpack.c.b16 %v1914, %v1905
      %v1924 = vpack.c.b16 %v1915, %v1906
      %v1925 = vpack.c.b16 %v1916, %v1907
      %v1926 = vpack.c.b16 %v1917, %v1908
      %v1927 = vpack.c.b16 %v1918, %v1909
      %v1928 = vpack.c.b16 %v1919, %v1910
      %v1929 = vpack.c.b16 %v1920, %v1911
      %v1930 = vpack.c.b16 %v1921, %v1912
      %1931 = vrot.lane.b32.xlu0 %v1922, 6
      %v1932 = vpop.permute.xlu0 %1931
      %1933 = vrot.lane.b32.xlu0 %v1923, 6
      %v1934 = vpop.permute.xlu0 %1933
      %1935 = vrot.lane.b32.xlu0 %v1924, 6
      %v1936 = vpop.permute.xlu0 %1935
      %1937 = vrot.lane.b32.xlu0 %v1925, 6
      %v1938 = vpop.permute.xlu0 %1937
      %1939 = vrot.lane.b32.xlu0 %v1926, 6
      %v1940 = vpop.permute.xlu0 %1939
      %1941 = vrot.lane.b32.xlu0 %v1927, 6
      %v1942 = vpop.permute.xlu0 %1941
      %1943 = vrot.lane.b32.xlu0 %v1928, 6
      %v1944 = vpop.permute.xlu0 %1943
      %1945 = vrot.lane.b32.xlu0 %v1929, 6
      %v1946 = vpop.permute.xlu0 %1945
      %1947 = vrot.lane.b32.xlu0 %v1930, 6
      %v1948 = vpop.permute.xlu0 %1947
      %vm1949 = vcmask 48128
      %v1950 = vsel %vm1949, %v1932, %v1934
      %v1951 = vsel %vm1949, %v1934, %v1936
      %v1952 = vsel %vm1949, %v1936, %v1938
      %v1953 = vsel %vm1949, %v1938, %v1940
      %v1954 = vsel %vm1949, %v1940, %v1942
      %v1955 = vsel %vm1949, %v1942, %v1944
      %v1956 = vsel %vm1949, %v1944, %v1946
      %v1957 = vsel %vm1949, %v1946, %v1948
      %1966 = vst [vmem:[#allocation2 + $0x440] sm:$0xff] %v1950
      %1967 = vst [vmem:[#allocation2 + $0x448] sm:$0xff] %v1951
      %1968 = vst [vmem:[#allocation2 + $0x450] sm:$0xff] %v1952
      %1969 = vst [vmem:[#allocation2 + $0x458] sm:$0xff] %v1953
      %1970 = vst [vmem:[#allocation2 + $0x460] sm:$0xff] %v1954
      %1971 = vst [vmem:[#allocation2 + $0x468] sm:$0xff] %v1955
      %1972 = vst [vmem:[#allocation2 + $0x470] sm:$0xff] %v1956
      %1973 = vst [vmem:[#allocation2 + $0x478] sm:$0xff] %v1957
      %v1974 = vld [vmem:[%s360 + $0x4] sm:$0xff]
      %v1975 = vld [vmem:[%s360 + $0xc] sm:$0xff]
      %v1976 = vld [vmem:[%s360 + $0x14] sm:$0xff]
      %v1977 = vld [vmem:[%s360 + $0x1c] sm:$0xff]
      %v1978 = vld [vmem:[%s360 + $0x24] sm:$0xf]
      %v1979 = vld [vmem:[%s360 + $0x2c] sm:$0xff]
      %v1980 = vld [vmem:[%s360 + $0x34] sm:$0xff]
      %v1981 = vld [vmem:[%s360 + $0x3c] sm:$0xff]
      %v1982 = vld [vmem:[%s360 + $0x44] sm:$0xff]
      %v1983 = vld [vmem:[%s360 + $0x4c] sm:$0xf]
      %v1994 = vunpack.c.l.b16 %v1974
      %v1995 = vunpack.c.h.b16 %v1974
      %v1996 = vunpack.c.l.b16 %v1975
      %v1997 = vunpack.c.h.b16 %v1975
      %v1998 = vunpack.c.l.b16 %v1976
      %v1999 = vunpack.c.h.b16 %v1976
      %v2000 = vunpack.c.l.b16 %v1977
      %v2001 = vunpack.c.h.b16 %v1977
      %v2002 = vunpack.c.l.b16 %v1978
      %v2003 = vunpack.c.l.b16 %v1979
      %v2004 = vunpack.c.h.b16 %v1979
      %v2005 = vunpack.c.l.b16 %v1980
      %v2006 = vunpack.c.h.b16 %v1980
      %v2007 = vunpack.c.l.b16 %v1981
      %v2008 = vunpack.c.h.b16 %v1981
      %v2009 = vunpack.c.l.b16 %v1982
      %v2010 = vunpack.c.h.b16 %v1982
      %v2011 = vunpack.c.l.b16 %v1983
      %v2012 = vpack.c.b16 %v2003, %v1994
      %v2013 = vpack.c.b16 %v2004, %v1995
      %v2014 = vpack.c.b16 %v2005, %v1996
      %v2015 = vpack.c.b16 %v2006, %v1997
      %v2016 = vpack.c.b16 %v2007, %v1998
      %v2017 = vpack.c.b16 %v2008, %v1999
      %v2018 = vpack.c.b16 %v2009, %v2000
      %v2019 = vpack.c.b16 %v2010, %v2001
      %v2020 = vpack.c.b16 %v2011, %v2002
      %2021 = vrot.lane.b32.xlu0 %v2012, 56
      %v2022 = vpop.permute.xlu0 %2021
      %2023 = vrot.lane.b32.xlu0 %v2013, 56
      %v2024 = vpop.permute.xlu0 %2023
      %2025 = vrot.lane.b32.xlu0 %v2014, 56
      %v2026 = vpop.permute.xlu0 %2025
      %2027 = vrot.lane.b32.xlu0 %v2015, 56
      %v2028 = vpop.permute.xlu0 %2027
      %2029 = vrot.lane.b32.xlu0 %v2016, 56
      %v2030 = vpop.permute.xlu0 %2029
      %2031 = vrot.lane.b32.xlu0 %v2017, 56
      %v2032 = vpop.permute.xlu0 %2031
      %2033 = vrot.lane.b32.xlu0 %v2018, 56
      %v2034 = vpop.permute.xlu0 %2033
      %2035 = vrot.lane.b32.xlu0 %v2019, 56
      %v2036 = vpop.permute.xlu0 %2035
      %2037 = vrot.lane.b32.xlu0 %v2020, 56
      %v2038 = vpop.permute.xlu0 %2037
      %vm2039 = vcmask 457728
      %v2040 = vsel %vm2039, %v2022, %v2024
      %v2041 = vsel %vm2039, %v2024, %v2026
      %v2042 = vsel %vm2039, %v2026, %v2028
      %v2043 = vsel %vm2039, %v2028, %v2030
      %v2044 = vsel %vm2039, %v2030, %v2032
      %v2045 = vsel %vm2039, %v2032, %v2034
      %v2046 = vsel %vm2039, %v2034, %v2036
      %v2047 = vsel %vm2039, %v2036, %v2038
      %2056 = vst [vmem:[#allocation2 + $0x480] sm:$0xff] %v2040
      %2057 = vst [vmem:[#allocation2 + $0x488] sm:$0xff] %v2041
      %2058 = vst [vmem:[#allocation2 + $0x490] sm:$0xff] %v2042
      %2059 = vst [vmem:[#allocation2 + $0x498] sm:$0xff] %v2043
      %2060 = vst [vmem:[#allocation2 + $0x4a0] sm:$0xff] %v2044
      %2061 = vst [vmem:[#allocation2 + $0x4a8] sm:$0xff] %v2045
      %2062 = vst [vmem:[#allocation2 + $0x4b0] sm:$0xff] %v2046
      %2063 = vst [vmem:[#allocation2 + $0x4b8] sm:$0xff] %v2047
      %v2064 = vld [vmem:[%s360 + $0x4] sm:$0xff]
      %v2065 = vld [vmem:[%s360 + $0xc] sm:$0xff]
      %v2066 = vld [vmem:[%s360 + $0x14] sm:$0xff]
      %v2067 = vld [vmem:[%s360 + $0x1c] sm:$0xff]
      %v2068 = vld [vmem:[%s360 + $0x24] sm:$0xf]
      %v2069 = vld [vmem:[%s360 + $0x2c] sm:$0xff]
      %v2070 = vld [vmem:[%s360 + $0x34] sm:$0xff]
      %v2071 = vld [vmem:[%s360 + $0x3c] sm:$0xff]
      %v2072 = vld [vmem:[%s360 + $0x44] sm:$0xff]
      %v2073 = vld [vmem:[%s360 + $0x4c] sm:$0xf]
      %v2084 = vunpack.c.l.b16 %v2064
      %v2085 = vunpack.c.h.b16 %v2064
      %v2086 = vunpack.c.l.b16 %v2065
      %v2087 = vunpack.c.h.b16 %v2065
      %v2088 = vunpack.c.l.b16 %v2066
      %v2089 = vunpack.c.h.b16 %v2066
      %v2090 = vunpack.c.l.b16 %v2067
      %v2091 = vunpack.c.h.b16 %v2067
      %v2092 = vunpack.c.l.b16 %v2068
      %v2093 = vunpack.c.l.b16 %v2069
      %v2094 = vunpack.c.h.b16 %v2069
      %v2095 = vunpack.c.l.b16 %v2070
      %v2096 = vunpack.c.h.b16 %v2070
      %v2097 = vunpack.c.l.b16 %v2071
      %v2098 = vunpack.c.h.b16 %v2071
      %v2099 = vunpack.c.l.b16 %v2072
      %v2100 = vunpack.c.h.b16 %v2072
      %v2101 = vunpack.c.l.b16 %v2073
      %v2102 = vpack.c.b16 %v2093, %v2084
      %v2103 = vpack.c.b16 %v2094, %v2085
      %v2104 = vpack.c.b16 %v2095, %v2086
      %v2105 = vpack.c.b16 %v2096, %v2087
      %v2106 = vpack.c.b16 %v2097, %v2088
      %v2107 = vpack.c.b16 %v2098, %v2089
      %v2108 = vpack.c.b16 %v2099, %v2090
      %v2109 = vpack.c.b16 %v2100, %v2091
      %v2110 = vpack.c.b16 %v2101, %v2092
      %2111 = vrot.lane.b32.xlu0 %v2102, 55
      %v2112 = vpop.permute.xlu0 %2111
      %2113 = vrot.lane.b32.xlu0 %v2103, 55
      %v2114 = vpop.permute.xlu0 %2113
      %2115 = vrot.lane.b32.xlu0 %v2104, 55
      %v2116 = vpop.permute.xlu0 %2115
      %2117 = vrot.lane.b32.xlu0 %v2105, 55
      %v2118 = vpop.permute.xlu0 %2117
      %2119 = vrot.lane.b32.xlu0 %v2106, 55
      %v2120 = vpop.permute.xlu0 %2119
      %2121 = vrot.lane.b32.xlu0 %v2107, 55
      %v2122 = vpop.permute.xlu0 %2121
      %2123 = vrot.lane.b32.xlu0 %v2108, 55
      %v2124 = vpop.permute.xlu0 %2123
      %2125 = vrot.lane.b32.xlu0 %v2109, 55
      %v2126 = vpop.permute.xlu0 %2125
      %2127 = vrot.lane.b32.xlu0 %v2110, 55
      %v2128 = vpop.permute.xlu0 %2127
      %vm2129 = vcmask 449536
      %v2130 = vsel %vm2129, %v2112, %v2114
      %v2131 = vsel %vm2129, %v2114, %v2116
      %v2132 = vsel %vm2129, %v2116, %v2118
      %v2133 = vsel %vm2129, %v2118, %v2120
      %v2134 = vsel %vm2129, %v2120, %v2122
      %v2135 = vsel %vm2129, %v2122, %v2124
      %v2136 = vsel %vm2129, %v2124, %v2126
      %v2137 = vsel %vm2129, %v2126, %v2128
      %2146 = vst [vmem:[#allocation2 + $0x4c0] sm:$0xff] %v2130
      %2147 = vst [vmem:[#allocation2 + $0x4c8] sm:$0xff] %v2131
      %2148 = vst [vmem:[#allocation2 + $0x4d0] sm:$0xff] %v2132
      %2149 = vst [vmem:[#allocation2 + $0x4d8] sm:$0xff] %v2133
      %2150 = vst [vmem:[#allocation2 + $0x4e0] sm:$0xff] %v2134
      %2151 = vst [vmem:[#allocation2 + $0x4e8] sm:$0xff] %v2135
      %2152 = vst [vmem:[#allocation2 + $0x4f0] sm:$0xff] %v2136
      %2153 = vst [vmem:[#allocation2 + $0x4f8] sm:$0xff] %v2137
      %v2154 = vld [vmem:[%s360 + $0x4] sm:$0xff]
      %v2155 = vld [vmem:[%s360 + $0xc] sm:$0xff]
      %v2156 = vld [vmem:[%s360 + $0x14] sm:$0xff]
      %v2157 = vld [vmem:[%s360 + $0x1c] sm:$0xff]
      %v2158 = vld [vmem:[%s360 + $0x24] sm:$0xf]
      %v2159 = vld [vmem:[%s360 + $0x2c] sm:$0xff]
      %v2160 = vld [vmem:[%s360 + $0x34] sm:$0xff]
      %v2161 = vld [vmem:[%s360 + $0x3c] sm:$0xff]
      %v2162 = vld [vmem:[%s360 + $0x44] sm:$0xff]
      %v2163 = vld [vmem:[%s360 + $0x4c] sm:$0xf]
      %v2174 = vunpack.c.l.b16 %v2154
      %v2175 = vunpack.c.h.b16 %v2154
      %v2176 = vunpack.c.l.b16 %v2155
      %v2177 = vunpack.c.h.b16 %v2155
      %v2178 = vunpack.c.l.b16 %v2156
      %v2179 = vunpack.c.h.b16 %v2156
      %v2180 = vunpack.c.l.b16 %v2157
      %v2181 = vunpack.c.h.b16 %v2157
      %v2182 = vunpack.c.l.b16 %v2158
      %v2183 = vunpack.c.l.b16 %v2159
      %v2184 = vunpack.c.h.b16 %v2159
      %v2185 = vunpack.c.l.b16 %v2160
      %v2186 = vunpack.c.h.b16 %v2160
      %v2187 = vunpack.c.l.b16 %v2161
      %v2188 = vunpack.c.h.b16 %v2161
      %v2189 = vunpack.c.l.b16 %v2162
      %v2190 = vunpack.c.h.b16 %v2162
      %v2191 = vunpack.c.l.b16 %v2163
      %v2192 = vpack.c.b16 %v2183, %v2174
      %v2193 = vpack.c.b16 %v2184, %v2175
      %v2194 = vpack.c.b16 %v2185, %v2176
      %v2195 = vpack.c.b16 %v2186, %v2177
      %v2196 = vpack.c.b16 %v2187, %v2178
      %v2197 = vpack.c.b16 %v2188, %v2179
      %v2198 = vpack.c.b16 %v2189, %v2180
      %v2199 = vpack.c.b16 %v2190, %v2181
      %v2200 = vpack.c.b16 %v2191, %v2182
      %2201 = vrot.lane.b32.xlu0 %v2192, 54
      %v2202 = vpop.permute.xlu0 %2201
      %2203 = vrot.lane.b32.xlu0 %v2193, 54
      %v2204 = vpop.permute.xlu0 %2203
      %2205 = vrot.lane.b32.xlu0 %v2194, 54
      %v2206 = vpop.permute.xlu0 %2205
      %2207 = vrot.lane.b32.xlu0 %v2195, 54
      %v2208 = vpop.permute.xlu0 %2207
      %2209 = vrot.lane.b32.xlu0 %v2196, 54
      %v2210 = vpop.permute.xlu0 %2209
      %2211 = vrot.lane.b32.xlu0 %v2197, 54
      %v2212 = vpop.permute.xlu0 %2211
      %2213 = vrot.lane.b32.xlu0 %v2198, 54
      %v2214 = vpop.permute.xlu0 %2213
      %2215 = vrot.lane.b32.xlu0 %v2199, 54
      %v2216 = vpop.permute.xlu0 %2215
      %2217 = vrot.lane.b32.xlu0 %v2200, 54
      %v2218 = vpop.permute.xlu0 %2217
      %vm2219 = vcmask 441344
      %v2220 = vsel %vm2219, %v2202, %v2204
      %v2221 = vsel %vm2219, %v2204, %v2206
      %v2222 = vsel %vm2219, %v2206, %v2208
      %v2223 = vsel %vm2219, %v2208, %v2210
      %v2224 = vsel %vm2219, %v2210, %v2212
      %v2225 = vsel %vm2219, %v2212, %v2214
      %v2226 = vsel %vm2219, %v2214, %v2216
      %v2227 = vsel %vm2219, %v2216, %v2218
      %2236 = vst [vmem:[#allocation2 + $0x500] sm:$0xff] %v2220
      %2237 = vst [vmem:[#allocation2 + $0x508] sm:$0xff] %v2221
      %2238 = vst [vmem:[#allocation2 + $0x510] sm:$0xff] %v2222
      %2239 = vst [vmem:[#allocation2 + $0x518] sm:$0xff] %v2223
      %2240 = vst [vmem:[#allocation2 + $0x520] sm:$0xff] %v2224
      %2241 = vst [vmem:[#allocation2 + $0x528] sm:$0xff] %v2225
      %2242 = vst [vmem:[#allocation2 + $0x530] sm:$0xff] %v2226
      %2243 = vst [vmem:[#allocation2 + $0x538] sm:$0xff] %v2227
      %v2244 = vld [vmem:[%s360 + $0x4] sm:$0xff]
      %v2245 = vld [vmem:[%s360 + $0xc] sm:$0xff]
      %v2246 = vld [vmem:[%s360 + $0x14] sm:$0xff]
      %v2247 = vld [vmem:[%s360 + $0x1c] sm:$0xff]
      %v2248 = vld [vmem:[%s360 + $0x24] sm:$0xf]
      %v2249 = vld [vmem:[%s360 + $0x2c] sm:$0xff]
      %v2250 = vld [vmem:[%s360 + $0x34] sm:$0xff]
      %v2251 = vld [vmem:[%s360 + $0x3c] sm:$0xff]
      %v2252 = vld [vmem:[%s360 + $0x44] sm:$0xff]
      %v2253 = vld [vmem:[%s360 + $0x4c] sm:$0xf]
      %v2264 = vunpack.c.l.b16 %v2244
      %v2265 = vunpack.c.h.b16 %v2244
      %v2266 = vunpack.c.l.b16 %v2245
      %v2267 = vunpack.c.h.b16 %v2245
      %v2268 = vunpack.c.l.b16 %v2246
      %v2269 = vunpack.c.h.b16 %v2246
      %v2270 = vunpack.c.l.b16 %v2247
      %v2271 = vunpack.c.h.b16 %v2247
      %v2272 = vunpack.c.l.b16 %v2248
      %v2273 = vunpack.c.l.b16 %v2249
      %v2274 = vunpack.c.h.b16 %v2249
      %v2275 = vunpack.c.l.b16 %v2250
      %v2276 = vunpack.c.h.b16 %v2250
      %v2277 = vunpack.c.l.b16 %v2251
      %v2278 = vunpack.c.h.b16 %v2251
      %v2279 = vunpack.c.l.b16 %v2252
      %v2280 = vunpack.c.h.b16 %v2252
      %v2281 = vunpack.c.l.b16 %v2253
      %v2282 = vpack.c.b16 %v2273, %v2264
      %v2283 = vpack.c.b16 %v2274, %v2265
      %v2284 = vpack.c.b16 %v2275, %v2266
      %v2285 = vpack.c.b16 %v2276, %v2267
      %v2286 = vpack.c.b16 %v2277, %v2268
      %v2287 = vpack.c.b16 %v2278, %v2269
      %v2288 = vpack.c.b16 %v2279, %v2270
      %v2289 = vpack.c.b16 %v2280, %v2271
      %v2290 = vpack.c.b16 %v2281, %v2272
      %2291 = vrot.lane.b32.xlu0 %v2282, 46
      %v2292 = vpop.permute.xlu0 %2291
      %2293 = vrot.lane.b32.xlu0 %v2283, 46
      %v2294 = vpop.permute.xlu0 %2293
      %2295 = vrot.lane.b32.xlu0 %v2284, 46
      %v2296 = vpop.permute.xlu0 %2295
      %2297 = vrot.lane.b32.xlu0 %v2285, 46
      %v2298 = vpop.permute.xlu0 %2297
      %2299 = vrot.lane.b32.xlu0 %v2286, 46
      %v2300 = vpop.permute.xlu0 %2299
      %2301 = vrot.lane.b32.xlu0 %v2287, 46
      %v2302 = vpop.permute.xlu0 %2301
      %2303 = vrot.lane.b32.xlu0 %v2288, 46
      %v2304 = vpop.permute.xlu0 %2303
      %2305 = vrot.lane.b32.xlu0 %v2289, 46
      %v2306 = vpop.permute.xlu0 %2305
      %2307 = vrot.lane.b32.xlu0 %v2290, 46
      %v2308 = vpop.permute.xlu0 %2307
      %vm2309 = vcmask 375808
      %v2310 = vsel %vm2309, %v2292, %v2294
      %v2311 = vsel %vm2309, %v2294, %v2296
      %v2312 = vsel %vm2309, %v2296, %v2298
      %v2313 = vsel %vm2309, %v2298, %v2300
      %v2314 = vsel %vm2309, %v2300, %v2302
      %v2315 = vsel %vm2309, %v2302, %v2304
      %v2316 = vsel %vm2309, %v2304, %v2306
      %v2317 = vsel %vm2309, %v2306, %v2308
      %2326 = vst [vmem:[#allocation2 + $0x540] sm:$0xff] %v2310
      %2327 = vst [vmem:[#allocation2 + $0x548] sm:$0xff] %v2311
      %2328 = vst [vmem:[#allocation2 + $0x550] sm:$0xff] %v2312
      %2329 = vst [vmem:[#allocation2 + $0x558] sm:$0xff] %v2313
      %2330 = vst [vmem:[#allocation2 + $0x560] sm:$0xff] %v2314
      %2331 = vst [vmem:[#allocation2 + $0x568] sm:$0xff] %v2315
      %2332 = vst [vmem:[#allocation2 + $0x570] sm:$0xff] %v2316
      %2333 = vst [vmem:[#allocation2 + $0x578] sm:$0xff] %v2317
      %v2334 = vld [vmem:[%s360 + $0x4] sm:$0xff]
      %v2335 = vld [vmem:[%s360 + $0xc] sm:$0xff]
      %v2336 = vld [vmem:[%s360 + $0x14] sm:$0xff]
      %v2337 = vld [vmem:[%s360 + $0x1c] sm:$0xff]
      %v2338 = vld [vmem:[%s360 + $0x24] sm:$0xf]
      %v2339 = vld [vmem:[%s360 + $0x2c] sm:$0xff]
      %v2340 = vld [vmem:[%s360 + $0x34] sm:$0xff]
      %v2341 = vld [vmem:[%s360 + $0x3c] sm:$0xff]
      %v2342 = vld [vmem:[%s360 + $0x44] sm:$0xff]
      %v2343 = vld [vmem:[%s360 + $0x4c] sm:$0xf]
      %v2354 = vunpack.c.l.b16 %v2334
      %v2355 = vunpack.c.h.b16 %v2334
      %v2356 = vunpack.c.l.b16 %v2335
      %v2357 = vunpack.c.h.b16 %v2335
      %v2358 = vunpack.c.l.b16 %v2336
      %v2359 = vunpack.c.h.b16 %v2336
      %v2360 = vunpack.c.l.b16 %v2337
      %v2361 = vunpack.c.h.b16 %v2337
      %v2362 = vunpack.c.l.b16 %v2338
      %v2363 = vunpack.c.l.b16 %v2339
      %v2364 = vunpack.c.h.b16 %v2339
      %v2365 = vunpack.c.l.b16 %v2340
      %v2366 = vunpack.c.h.b16 %v2340
      %v2367 = vunpack.c.l.b16 %v2341
      %v2368 = vunpack.c.h.b16 %v2341
      %v2369 = vunpack.c.l.b16 %v2342
      %v2370 = vunpack.c.h.b16 %v2342
      %v2371 = vunpack.c.l.b16 %v2343
      %v2372 = vpack.c.b16 %v2363, %v2354
      %v2373 = vpack.c.b16 %v2364, %v2355
      %v2374 = vpack.c.b16 %v2365, %v2356
      %v2375 = vpack.c.b16 %v2366, %v2357
      %v2376 = vpack.c.b16 %v2367, %v2358
      %v2377 = vpack.c.b16 %v2368, %v2359
      %v2378 = vpack.c.b16 %v2369, %v2360
      %v2379 = vpack.c.b16 %v2370, %v2361
      %v2380 = vpack.c.b16 %v2371, %v2362
      %2381 = vrot.lane.b32.xlu0 %v2372, 45
      %v2382 = vpop.permute.xlu0 %2381
      %2383 = vrot.lane.b32.xlu0 %v2373, 45
      %v2384 = vpop.permute.xlu0 %2383
      %2385 = vrot.lane.b32.xlu0 %v2374, 45
      %v2386 = vpop.permute.xlu0 %2385
      %2387 = vrot.lane.b32.xlu0 %v2375, 45
      %v2388 = vpop.permute.xlu0 %2387
      %2389 = vrot.lane.b32.xlu0 %v2376, 45
      %v2390 = vpop.permute.xlu0 %2389
      %2391 = vrot.lane.b32.xlu0 %v2377, 45
      %v2392 = vpop.permute.xlu0 %2391
      %2393 = vrot.lane.b32.xlu0 %v2378, 45
      %v2394 = vpop.permute.xlu0 %2393
      %2395 = vrot.lane.b32.xlu0 %v2379, 45
      %v2396 = vpop.permute.xlu0 %2395
      %2397 = vrot.lane.b32.xlu0 %v2380, 45
      %v2398 = vpop.permute.xlu0 %2397
      %vm2399 = vcmask 367616
      %v2400 = vsel %vm2399, %v2382, %v2384
      %v2401 = vsel %vm2399, %v2384, %v2386
      %v2402 = vsel %vm2399, %v2386, %v2388
      %v2403 = vsel %vm2399, %v2388, %v2390
      %v2404 = vsel %vm2399, %v2390, %v2392
      %v2405 = vsel %vm2399, %v2392, %v2394
      %v2406 = vsel %vm2399, %v2394, %v2396
      %v2407 = vsel %vm2399, %v2396, %v2398
      %2416 = vst [vmem:[#allocation2 + $0x580] sm:$0xff] %v2400
      %2417 = vst [vmem:[#allocation2 + $0x588] sm:$0xff] %v2401
      %2418 = vst [vmem:[#allocation2 + $0x590] sm:$0xff] %v2402
      %2419 = vst [vmem:[#allocation2 + $0x598] sm:$0xff] %v2403
      %2420 = vst [vmem:[#allocation2 + $0x5a0] sm:$0xff] %v2404
      %2421 = vst [vmem:[#allocation2 + $0x5a8] sm:$0xff] %v2405
      %2422 = vst [vmem:[#allocation2 + $0x5b0] sm:$0xff] %v2406
      %2423 = vst [vmem:[#allocation2 + $0x5b8] sm:$0xff] %v2407
      %v2424 = vld [vmem:[%s360 + $0x4] sm:$0xff]
      %v2425 = vld [vmem:[%s360 + $0xc] sm:$0xff]
      %v2426 = vld [vmem:[%s360 + $0x14] sm:$0xff]
      %v2427 = vld [vmem:[%s360 + $0x1c] sm:$0xff]
      %v2428 = vld [vmem:[%s360 + $0x24] sm:$0xf]
      %v2429 = vld [vmem:[%s360 + $0x2c] sm:$0xff]
      %v2430 = vld [vmem:[%s360 + $0x34] sm:$0xff]
      %v2431 = vld [vmem:[%s360 + $0x3c] sm:$0xff]
      %v2432 = vld [vmem:[%s360 + $0x44] sm:$0xff]
      %v2433 = vld [vmem:[%s360 + $0x4c] sm:$0xf]
      %v2444 = vunpack.c.l.b16 %v2424
      %v2445 = vunpack.c.h.b16 %v2424
      %v2446 = vunpack.c.l.b16 %v2425
      %v2447 = vunpack.c.h.b16 %v2425
      %v2448 = vunpack.c.l.b16 %v2426
      %v2449 = vunpack.c.h.b16 %v2426
      %v2450 = vunpack.c.l.b16 %v2427
      %v2451 = vunpack.c.h.b16 %v2427
      %v2452 = vunpack.c.l.b16 %v2428
      %v2453 = vunpack.c.l.b16 %v2429
      %v2454 = vunpack.c.h.b16 %v2429
      %v2455 = vunpack.c.l.b16 %v2430
      %v2456 = vunpack.c.h.b16 %v2430
      %v2457 = vunpack.c.l.b16 %v2431
      %v2458 = vunpack.c.h.b16 %v2431
      %v2459 = vunpack.c.l.b16 %v2432
      %v2460 = vunpack.c.h.b16 %v2432
      %v2461 = vunpack.c.l.b16 %v2433
      %v2462 = vpack.c.b16 %v2453, %v2444
      %v2463 = vpack.c.b16 %v2454, %v2445
      %v2464 = vpack.c.b16 %v2455, %v2446
      %v2465 = vpack.c.b16 %v2456, %v2447
      %v2466 = vpack.c.b16 %v2457, %v2448
      %v2467 = vpack.c.b16 %v2458, %v2449
      %v2468 = vpack.c.b16 %v2459, %v2450
      %v2469 = vpack.c.b16 %v2460, %v2451
      %v2470 = vpack.c.b16 %v2461, %v2452
      %2471 = vrot.lane.b32.xlu0 %v2462, 44
      %v2472 = vpop.permute.xlu0 %2471
      %2473 = vrot.lane.b32.xlu0 %v2463, 44
      %v2474 = vpop.permute.xlu0 %2473
      %2475 = vrot.lane.b32.xlu0 %v2464, 44
      %v2476 = vpop.permute.xlu0 %2475
      %2477 = vrot.lane.b32.xlu0 %v2465, 44
      %v2478 = vpop.permute.xlu0 %2477
      %2479 = vrot.lane.b32.xlu0 %v2466, 44
      %v2480 = vpop.permute.xlu0 %2479
      %2481 = vrot.lane.b32.xlu0 %v2467, 44
      %v2482 = vpop.permute.xlu0 %2481
      %2483 = vrot.lane.b32.xlu0 %v2468, 44
      %v2484 = vpop.permute.xlu0 %2483
      %2485 = vrot.lane.b32.xlu0 %v2469, 44
      %v2486 = vpop.permute.xlu0 %2485
      %2487 = vrot.lane.b32.xlu0 %v2470, 44
      %v2488 = vpop.permute.xlu0 %2487
      %vm2489 = vcmask 359424
      %v2490 = vsel %vm2489, %v2472, %v2474
      %v2491 = vsel %vm2489, %v2474, %v2476
      %v2492 = vsel %vm2489, %v2476, %v2478
      %v2493 = vsel %vm2489, %v2478, %v2480
      %v2494 = vsel %vm2489, %v2480, %v2482
      %v2495 = vsel %vm2489, %v2482, %v2484
      %v2496 = vsel %vm2489, %v2484, %v2486
      %v2497 = vsel %vm2489, %v2486, %v2488
      %2506 = vst [vmem:[#allocation2 + $0x5c0] sm:$0xff] %v2490
      %2507 = vst [vmem:[#allocation2 + $0x5c8] sm:$0xff] %v2491
      %2508 = vst [vmem:[#allocation2 + $0x5d0] sm:$0xff] %v2492
      %2509 = vst [vmem:[#allocation2 + $0x5d8] sm:$0xff] %v2493
      %2510 = vst [vmem:[#allocation2 + $0x5e0] sm:$0xff] %v2494
      %2511 = vst [vmem:[#allocation2 + $0x5e8] sm:$0xff] %v2495
      %2512 = vst [vmem:[#allocation2 + $0x5f0] sm:$0xff] %v2496
      %2513 = vst [vmem:[#allocation2 + $0x5f8] sm:$0xff] %v2497
      %v2514 = vld [vmem:[%s360 + $0x4] sm:$0xff]
      %v2515 = vld [vmem:[%s360 + $0xc] sm:$0xff]
      %v2516 = vld [vmem:[%s360 + $0x14] sm:$0xff]
      %v2517 = vld [vmem:[%s360 + $0x1c] sm:$0xff]
      %v2518 = vld [vmem:[%s360 + $0x24] sm:$0xf]
      %v2519 = vld [vmem:[%s360 + $0x2c] sm:$0xff]
      %v2520 = vld [vmem:[%s360 + $0x34] sm:$0xff]
      %v2521 = vld [vmem:[%s360 + $0x3c] sm:$0xff]
      %v2522 = vld [vmem:[%s360 + $0x44] sm:$0xff]
      %v2523 = vld [vmem:[%s360 + $0x4c] sm:$0xf]
      %v2534 = vunpack.c.l.b16 %v2514
      %v2535 = vunpack.c.h.b16 %v2514
      %v2536 = vunpack.c.l.b16 %v2515
      %v2537 = vunpack.c.h.b16 %v2515
      %v2538 = vunpack.c.l.b16 %v2516
      %v2539 = vunpack.c.h.b16 %v2516
      %v2540 = vunpack.c.l.b16 %v2517
      %v2541 = vunpack.c.h.b16 %v2517
      %v2542 = vunpack.c.l.b16 %v2518
      %v2543 = vunpack.c.l.b16 %v2519
      %v2544 = vunpack.c.h.b16 %v2519
      %v2545 = vunpack.c.l.b16 %v2520
      %v2546 = vunpack.c.h.b16 %v2520
      %v2547 = vunpack.c.l.b16 %v2521
      %v2548 = vunpack.c.h.b16 %v2521
      %v2549 = vunpack.c.l.b16 %v2522
      %v2550 = vunpack.c.h.b16 %v2522
      %v2551 = vunpack.c.l.b16 %v2523
      %v2552 = vpack.c.b16 %v2543, %v2534
      %v2553 = vpack.c.b16 %v2544, %v2535
      %v2554 = vpack.c.b16 %v2545, %v2536
      %v2555 = vpack.c.b16 %v2546, %v2537
      %v2556 = vpack.c.b16 %v2547, %v2538
      %v2557 = vpack.c.b16 %v2548, %v2539
      %v2558 = vpack.c.b16 %v2549, %v2540
      %v2559 = vpack.c.b16 %v2550, %v2541
      %v2560 = vpack.c.b16 %v2551, %v2542
      %2561 = vrot.lane.b32.xlu0 %v2552, 36
      %v2562 = vpop.permute.xlu0 %2561
      %2563 = vrot.lane.b32.xlu0 %v2553, 36
      %v2564 = vpop.permute.xlu0 %2563
      %2565 = vrot.lane.b32.xlu0 %v2554, 36
      %v2566 = vpop.permute.xlu0 %2565
      %2567 = vrot.lane.b32.xlu0 %v2555, 36
      %v2568 = vpop.permute.xlu0 %2567
      %2569 = vrot.lane.b32.xlu0 %v2556, 36
      %v2570 = vpop.permute.xlu0 %2569
      %2571 = vrot.lane.b32.xlu0 %v2557, 36
      %v2572 = vpop.permute.xlu0 %2571
      %2573 = vrot.lane.b32.xlu0 %v2558, 36
      %v2574 = vpop.permute.xlu0 %2573
      %2575 = vrot.lane.b32.xlu0 %v2559, 36
      %v2576 = vpop.permute.xlu0 %2575
      %2577 = vrot.lane.b32.xlu0 %v2560, 36
      %v2578 = vpop.permute.xlu0 %2577
      %vm2579 = vcmask 293888
      %v2580 = vsel %vm2579, %v2562, %v2564
      %v2581 = vsel %vm2579, %v2564, %v2566
      %v2582 = vsel %vm2579, %v2566, %v2568
      %v2583 = vsel %vm2579, %v2568, %v2570
      %v2584 = vsel %vm2579, %v2570, %v2572
      %v2585 = vsel %vm2579, %v2572, %v2574
      %v2586 = vsel %vm2579, %v2574, %v2576
      %v2587 = vsel %vm2579, %v2576, %v2578
      %2596 = vst [vmem:[#allocation2 + $0x600] sm:$0xff] %v2580
      %2597 = vst [vmem:[#allocation2 + $0x608] sm:$0xff] %v2581
      %2598 = vst [vmem:[#allocation2 + $0x610] sm:$0xff] %v2582
      %2599 = vst [vmem:[#allocation2 + $0x618] sm:$0xff] %v2583
      %2600 = vst [vmem:[#allocation2 + $0x620] sm:$0xff] %v2584
      %2601 = vst [vmem:[#allocation2 + $0x628] sm:$0xff] %v2585
      %2602 = vst [vmem:[#allocation2 + $0x630] sm:$0xff] %v2586
      %2603 = vst [vmem:[#allocation2 + $0x638] sm:$0xff] %v2587
      %v2604 = vld [vmem:[%s360 + $0x4] sm:$0xff]
      %v2605 = vld [vmem:[%s360 + $0xc] sm:$0xff]
      %v2606 = vld [vmem:[%s360 + $0x14] sm:$0xff]
      %v2607 = vld [vmem:[%s360 + $0x1c] sm:$0xff]
      %v2608 = vld [vmem:[%s360 + $0x24] sm:$0xf]
      %v2609 = vld [vmem:[%s360 + $0x2c] sm:$0xff]
      %v2610 = vld [vmem:[%s360 + $0x34] sm:$0xff]
      %v2611 = vld [vmem:[%s360 + $0x3c] sm:$0xff]
      %v2612 = vld [vmem:[%s360 + $0x44] sm:$0xff]
      %v2613 = vld [vmem:[%s360 + $0x4c] sm:$0xf]
      %v2624 = vunpack.c.l.b16 %v2604
      %v2625 = vunpack.c.h.b16 %v2604
      %v2626 = vunpack.c.l.b16 %v2605
      %v2627 = vunpack.c.h.b16 %v2605
      %v2628 = vunpack.c.l.b16 %v2606
      %v2629 = vunpack.c.h.b16 %v2606
      %v2630 = vunpack.c.l.b16 %v2607
      %v2631 = vunpack.c.h.b16 %v2607
      %v2632 = vunpack.c.l.b16 %v2608
      %v2633 = vunpack.c.l.b16 %v2609
      %v2634 = vunpack.c.h.b16 %v2609
      %v2635 = vunpack.c.l.b16 %v2610
      %v2636 = vunpack.c.h.b16 %v2610
      %v2637 = vunpack.c.l.b16 %v2611
      %v2638 = vunpack.c.h.b16 %v2611
      %v2639 = vunpack.c.l.b16 %v2612
      %v2640 = vunpack.c.h.b16 %v2612
      %v2641 = vunpack.c.l.b16 %v2613
      %v2642 = vpack.c.b16 %v2633, %v2624
      %v2643 = vpack.c.b16 %v2634, %v2625
      %v2644 = vpack.c.b16 %v2635, %v2626
      %v2645 = vpack.c.b16 %v2636, %v2627
      %v2646 = vpack.c.b16 %v2637, %v2628
      %v2647 = vpack.c.b16 %v2638, %v2629
      %v2648 = vpack.c.b16 %v2639, %v2630
      %v2649 = vpack.c.b16 %v2640, %v2631
      %v2650 = vpack.c.b16 %v2641, %v2632
      %2651 = vrot.lane.b32.xlu0 %v2642, 35
      %v2652 = vpop.permute.xlu0 %2651
      %2653 = vrot.lane.b32.xlu0 %v2643, 35
      %v2654 = vpop.permute.xlu0 %2653
      %2655 = vrot.lane.b32.xlu0 %v2644, 35
      %v2656 = vpop.permute.xlu0 %2655
      %2657 = vrot.lane.b32.xlu0 %v2645, 35
      %v2658 = vpop.permute.xlu0 %2657
      %2659 = vrot.lane.b32.xlu0 %v2646, 35
      %v2660 = vpop.permute.xlu0 %2659
      %2661 = vrot.lane.b32.xlu0 %v2647, 35
      %v2662 = vpop.permute.xlu0 %2661
      %2663 = vrot.lane.b32.xlu0 %v2648, 35
      %v2664 = vpop.permute.xlu0 %2663
      %2665 = vrot.lane.b32.xlu0 %v2649, 35
      %v2666 = vpop.permute.xlu0 %2665
      %2667 = vrot.lane.b32.xlu0 %v2650, 35
      %v2668 = vpop.permute.xlu0 %2667
      %vm2669 = vcmask 285696
      %v2670 = vsel %vm2669, %v2652, %v2654
      %v2671 = vsel %vm2669, %v2654, %v2656
      %v2672 = vsel %vm2669, %v2656, %v2658
      %v2673 = vsel %vm2669, %v2658, %v2660
      %v2674 = vsel %vm2669, %v2660, %v2662
      %v2675 = vsel %vm2669, %v2662, %v2664
      %v2676 = vsel %vm2669, %v2664, %v2666
      %v2677 = vsel %vm2669, %v2666, %v2668
      %2686 = vst [vmem:[#allocation2 + $0x640] sm:$0xff] %v2670
      %2687 = vst [vmem:[#allocation2 + $0x648] sm:$0xff] %v2671
      %2688 = vst [vmem:[#allocation2 + $0x650] sm:$0xff] %v2672
      %2689 = vst [vmem:[#allocation2 + $0x658] sm:$0xff] %v2673
      %2690 = vst [vmem:[#allocation2 + $0x660] sm:$0xff] %v2674
      %2691 = vst [vmem:[#allocation2 + $0x668] sm:$0xff] %v2675
      %2692 = vst [vmem:[#allocation2 + $0x670] sm:$0xff] %v2676
      %2693 = vst [vmem:[#allocation2 + $0x678] sm:$0xff] %v2677
      %v2694 = vld [vmem:[%s360 + $0x4] sm:$0xff]
      %v2695 = vld [vmem:[%s360 + $0xc] sm:$0xff]
      %v2696 = vld [vmem:[%s360 + $0x14] sm:$0xff]
      %v2697 = vld [vmem:[%s360 + $0x1c] sm:$0xff]
      %v2698 = vld [vmem:[%s360 + $0x24] sm:$0xf]
      %v2699 = vld [vmem:[%s360 + $0x2c] sm:$0xff]
      %v2700 = vld [vmem:[%s360 + $0x34] sm:$0xff]
      %v2701 = vld [vmem:[%s360 + $0x3c] sm:$0xff]
      %v2702 = vld [vmem:[%s360 + $0x44] sm:$0xff]
      %v2703 = vld [vmem:[%s360 + $0x4c] sm:$0xf]
      %v2714 = vunpack.c.l.b16 %v2694
      %v2715 = vunpack.c.h.b16 %v2694
      %v2716 = vunpack.c.l.b16 %v2695
      %v2717 = vunpack.c.h.b16 %v2695
      %v2718 = vunpack.c.l.b16 %v2696
      %v2719 = vunpack.c.h.b16 %v2696
      %v2720 = vunpack.c.l.b16 %v2697
      %v2721 = vunpack.c.h.b16 %v2697
      %v2722 = vunpack.c.l.b16 %v2698
      %v2723 = vunpack.c.l.b16 %v2699
      %v2724 = vunpack.c.h.b16 %v2699
      %v2725 = vunpack.c.l.b16 %v2700
      %v2726 = vunpack.c.h.b16 %v2700
      %v2727 = vunpack.c.l.b16 %v2701
      %v2728 = vunpack.c.h.b16 %v2701
      %v2729 = vunpack.c.l.b16 %v2702
      %v2730 = vunpack.c.h.b16 %v2702
      %v2731 = vunpack.c.l.b16 %v2703
      %v2732 = vpack.c.b16 %v2723, %v2714
      %v2733 = vpack.c.b16 %v2724, %v2715
      %v2734 = vpack.c.b16 %v2725, %v2716
      %v2735 = vpack.c.b16 %v2726, %v2717
      %v2736 = vpack.c.b16 %v2727, %v2718
      %v2737 = vpack.c.b16 %v2728, %v2719
      %v2738 = vpack.c.b16 %v2729, %v2720
      %v2739 = vpack.c.b16 %v2730, %v2721
      %v2740 = vpack.c.b16 %v2731, %v2722
      %2741 = vrot.lane.b32.xlu0 %v2732, 34
      %v2742 = vpop.permute.xlu0 %2741
      %2743 = vrot.lane.b32.xlu0 %v2733, 34
      %v2744 = vpop.permute.xlu0 %2743
      %2745 = vrot.lane.b32.xlu0 %v2734, 34
      %v2746 = vpop.permute.xlu0 %2745
      %2747 = vrot.lane.b32.xlu0 %v2735, 34
      %v2748 = vpop.permute.xlu0 %2747
      %2749 = vrot.lane.b32.xlu0 %v2736, 34
      %v2750 = vpop.permute.xlu0 %2749
      %2751 = vrot.lane.b32.xlu0 %v2737, 34
      %v2752 = vpop.permute.xlu0 %2751
      %2753 = vrot.lane.b32.xlu0 %v2738, 34
      %v2754 = vpop.permute.xlu0 %2753
      %2755 = vrot.lane.b32.xlu0 %v2739, 34
      %v2756 = vpop.permute.xlu0 %2755
      %2757 = vrot.lane.b32.xlu0 %v2740, 34
      %v2758 = vpop.permute.xlu0 %2757
      %vm2759 = vcmask 277504
      %v2760 = vsel %vm2759, %v2742, %v2744
      %v2761 = vsel %vm2759, %v2744, %v2746
      %v2762 = vsel %vm2759, %v2746, %v2748
      %v2763 = vsel %vm2759, %v2748, %v2750
      %v2764 = vsel %vm2759, %v2750, %v2752
      %v2765 = vsel %vm2759, %v2752, %v2754
      %v2766 = vsel %vm2759, %v2754, %v2756
      %v2767 = vsel %vm2759, %v2756, %v2758
      %2776 = vst [vmem:[#allocation2 + $0x680] sm:$0xff] %v2760
      %2777 = vst [vmem:[#allocation2 + $0x688] sm:$0xff] %v2761
      %2778 = vst [vmem:[#allocation2 + $0x690] sm:$0xff] %v2762
      %2779 = vst [vmem:[#allocation2 + $0x698] sm:$0xff] %v2763
      %2780 = vst [vmem:[#allocation2 + $0x6a0] sm:$0xff] %v2764
      %2781 = vst [vmem:[#allocation2 + $0x6a8] sm:$0xff] %v2765
      %2782 = vst [vmem:[#allocation2 + $0x6b0] sm:$0xff] %v2766
      %2783 = vst [vmem:[#allocation2 + $0x6b8] sm:$0xff] %v2767
      %v2784 = vld [vmem:[%s2] sm:$0xff]
      %v2785 = vld [vmem:[%s2 + $0x8] sm:$0xff]
      %v2786 = vld [vmem:[%s2 + $0x10] sm:$0xff]
      %v2787 = vld [vmem:[%s2 + $0x18] sm:$0xff]
      %v2788 = vld [vmem:[#allocation2] sm:$0xff]
      %v2789 = vld [vmem:[#allocation2 + $0x8] sm:$0xff]
      %v2790 = vld [vmem:[#allocation2 + $0x10] sm:$0xff]
      %v2791 = vld [vmem:[#allocation2 + $0x18] sm:$0xff]
      %v2792 = vld [vmem:[#allocation2 + $0x20] sm:$0xff]
      %v2793 = vld [vmem:[#allocation2 + $0x28] sm:$0xff]
      %v2794 = vld [vmem:[#allocation2 + $0x30] sm:$0xff]
      %v2795 = vld [vmem:[#allocation2 + $0x38] sm:$0xff]
      %v2796 = vld [vmem:[#allocation2 + $0x40] sm:$0xff]
      %v2797 = vld [vmem:[#allocation2 + $0x48] sm:$0xff]
      %v2798 = vld [vmem:[#allocation2 + $0x50] sm:$0xff]
      %v2799 = vld [vmem:[#allocation2 + $0x58] sm:$0xff]
      %v2800 = vld [vmem:[#allocation2 + $0x60] sm:$0xff]
      %v2801 = vld [vmem:[#allocation2 + $0x68] sm:$0xff]
      %v2802 = vld [vmem:[#allocation2 + $0x70] sm:$0xff]
      %v2803 = vld [vmem:[#allocation2 + $0x78] sm:$0xff]
      %v2804 = vld [vmem:[#allocation2 + $0x80] sm:$0xff]
      %v2805 = vld [vmem:[#allocation2 + $0x88] sm:$0xff]
      %v2806 = vld [vmem:[#allocation2 + $0x90] sm:$0xff]
      %v2807 = vld [vmem:[#allocation2 + $0x98] sm:$0xff]
      %v2808 = vld [vmem:[#allocation2 + $0xa0] sm:$0xff]
      %v2809 = vld [vmem:[#allocation2 + $0xa8] sm:$0xff]
      %v2810 = vld [vmem:[#allocation2 + $0xb0] sm:$0xff]
      %v2811 = vld [vmem:[#allocation2 + $0xb8] sm:$0xff]
      %v2812 = vld [vmem:[#allocation2 + $0xc0] sm:$0xff]
      %v2813 = vld [vmem:[#allocation2 + $0xc8] sm:$0xff]
      %v2814 = vld [vmem:[#allocation2 + $0xd0] sm:$0xff]
      %v2815 = vld [vmem:[#allocation2 + $0xd8] sm:$0xff]
      %v2816 = vld [vmem:[#allocation2 + $0xe0] sm:$0xff]
      %v2817 = vld [vmem:[#allocation2 + $0xe8] sm:$0xff]
      %v2818 = vld [vmem:[#allocation2 + $0xf0] sm:$0xff]
      %v2819 = vld [vmem:[#allocation2 + $0xf8] sm:$0xff]
      %v2820 = vld [vmem:[#allocation2 + $0x100] sm:$0xff]
      %v2821 = vld [vmem:[#allocation2 + $0x108] sm:$0xff]
      %v2822 = vld [vmem:[#allocation2 + $0x110] sm:$0xff]
      %v2823 = vld [vmem:[#allocation2 + $0x118] sm:$0xff]
      %v2824 = vld [vmem:[#allocation2 + $0x120] sm:$0xff]
      %v2825 = vld [vmem:[#allocation2 + $0x128] sm:$0xff]
      %v2826 = vld [vmem:[#allocation2 + $0x130] sm:$0xff]
      %v2827 = vld [vmem:[#allocation2 + $0x138] sm:$0xff]
      %v2828 = vld [vmem:[#allocation2 + $0x140] sm:$0xff]
      %v2829 = vld [vmem:[#allocation2 + $0x148] sm:$0xff]
      %v2830 = vld [vmem:[#allocation2 + $0x150] sm:$0xff]
      %v2831 = vld [vmem:[#allocation2 + $0x158] sm:$0xff]
      %v2832 = vld [vmem:[#allocation2 + $0x160] sm:$0xff]
      %v2833 = vld [vmem:[#allocation2 + $0x168] sm:$0xff]
      %v2834 = vld [vmem:[#allocation2 + $0x170] sm:$0xff]
      %v2835 = vld [vmem:[#allocation2 + $0x178] sm:$0xff]
      %v2836 = vld [vmem:[#allocation2 + $0x180] sm:$0xff]
      %v2837 = vld [vmem:[#allocation2 + $0x188] sm:$0xff]
      %v2838 = vld [vmem:[#allocation2 + $0x190] sm:$0xff]
      %v2839 = vld [vmem:[#allocation2 + $0x198] sm:$0xff]
      %v2840 = vld [vmem:[#allocation2 + $0x1a0] sm:$0xff]
      %v2841 = vld [vmem:[#allocation2 + $0x1a8] sm:$0xff]
      %v2842 = vld [vmem:[#allocation2 + $0x1b0] sm:$0xff]
      %v2843 = vld [vmem:[#allocation2 + $0x1b8] sm:$0xff]
      %v2844 = vld [vmem:[#allocation2 + $0x1c0] sm:$0xff]
      %v2845 = vld [vmem:[#allocation2 + $0x1c8] sm:$0xff]
      %v2846 = vld [vmem:[#allocation2 + $0x1d0] sm:$0xff]
      %v2847 = vld [vmem:[#allocation2 + $0x1d8] sm:$0xff]
      %v2848 = vld [vmem:[#allocation2 + $0x1e0] sm:$0xff]
      %v2849 = vld [vmem:[#allocation2 + $0x1e8] sm:$0xff]
      %v2850 = vld [vmem:[#allocation2 + $0x1f0] sm:$0xff]
      %v2851 = vld [vmem:[#allocation2 + $0x1f8] sm:$0xff]
      %v2852 = vld [vmem:[#allocation2 + $0x200] sm:$0xff]
      %v2853 = vld [vmem:[#allocation2 + $0x208] sm:$0xff]
      %v2854 = vld [vmem:[#allocation2 + $0x210] sm:$0xff]
      %v2855 = vld [vmem:[#allocation2 + $0x218] sm:$0xff]
      %v2856 = vld [vmem:[#allocation2 + $0x220] sm:$0xff]
      %v2857 = vld [vmem:[#allocation2 + $0x228] sm:$0xff]
      %v2858 = vld [vmem:[#allocation2 + $0x230] sm:$0xff]
      %v2859 = vld [vmem:[#allocation2 + $0x238] sm:$0xff]
      %v2860 = vld [vmem:[#allocation2 + $0x240] sm:$0xff]
      %v2861 = vld [vmem:[#allocation2 + $0x248] sm:$0xff]
      %v2862 = vld [vmem:[#allocation2 + $0x250] sm:$0xff]
      %v2863 = vld [vmem:[#allocation2 + $0x258] sm:$0xff]
      %v2864 = vld [vmem:[#allocation2 + $0x260] sm:$0xff]
      %v2865 = vld [vmem:[#allocation2 + $0x268] sm:$0xff]
      %v2866 = vld [vmem:[#allocation2 + $0x270] sm:$0xff]
      %v2867 = vld [vmem:[#allocation2 + $0x278] sm:$0xff]
      %v2868 = vld [vmem:[#allocation2 + $0x280] sm:$0xff]
      %v2869 = vld [vmem:[#allocation2 + $0x288] sm:$0xff]
      %v2870 = vld [vmem:[#allocation2 + $0x290] sm:$0xff]
      %v2871 = vld [vmem:[#allocation2 + $0x298] sm:$0xff]
      %v2872 = vld [vmem:[#allocation2 + $0x2a0] sm:$0xff]
      %v2873 = vld [vmem:[#allocation2 + $0x2a8] sm:$0xff]
      %v2874 = vld [vmem:[#allocation2 + $0x2b0] sm:$0xff]
      %v2875 = vld [vmem:[#allocation2 + $0x2b8] sm:$0xff]
      %v2876 = vld [vmem:[#allocation2 + $0x2c0] sm:$0xff]
      %v2877 = vld [vmem:[#allocation2 + $0x2c8] sm:$0xff]
      %v2878 = vld [vmem:[#allocation2 + $0x2d0] sm:$0xff]
      %v2879 = vld [vmem:[#allocation2 + $0x2d8] sm:$0xff]
      %v2880 = vld [vmem:[#allocation2 + $0x2e0] sm:$0xff]
      %v2881 = vld [vmem:[#allocation2 + $0x2e8] sm:$0xff]
      %v2882 = vld [vmem:[#allocation2 + $0x2f0] sm:$0xff]
      %v2883 = vld [vmem:[#allocation2 + $0x2f8] sm:$0xff]
      %v2884 = vld [vmem:[#allocation2 + $0x300] sm:$0xff]
      %v2885 = vld [vmem:[#allocation2 + $0x308] sm:$0xff]
      %v2886 = vld [vmem:[#allocation2 + $0x310] sm:$0xff]
      %v2887 = vld [vmem:[#allocation2 + $0x318] sm:$0xff]
      %v2888 = vld [vmem:[#allocation2 + $0x320] sm:$0xff]
      %v2889 = vld [vmem:[#allocation2 + $0x328] sm:$0xff]
      %v2890 = vld [vmem:[#allocation2 + $0x330] sm:$0xff]
      %v2891 = vld [vmem:[#allocation2 + $0x338] sm:$0xff]
      %v2892 = vld [vmem:[#allocation2 + $0x340] sm:$0xff]
      %v2893 = vld [vmem:[#allocation2 + $0x348] sm:$0xff]
      %v2894 = vld [vmem:[#allocation2 + $0x350] sm:$0xff]
      %v2895 = vld [vmem:[#allocation2 + $0x358] sm:$0xff]
      %v2896 = vld [vmem:[#allocation2 + $0x360] sm:$0xff]
      %v2897 = vld [vmem:[#allocation2 + $0x368] sm:$0xff]
      %v2898 = vld [vmem:[#allocation2 + $0x370] sm:$0xff]
      %v2899 = vld [vmem:[#allocation2 + $0x378] sm:$0xff]
      %v2900 = vld [vmem:[#allocation2 + $0x380] sm:$0xff]
      %v2901 = vld [vmem:[#allocation2 + $0x388] sm:$0xff]
      %v2902 = vld [vmem:[#allocation2 + $0x390] sm:$0xff]
      %v2903 = vld [vmem:[#allocation2 + $0x398] sm:$0xff]
      %v2904 = vld [vmem:[#allocation2 + $0x3a0] sm:$0xff]
      %v2905 = vld [vmem:[#allocation2 + $0x3a8] sm:$0xff]
      %v2906 = vld [vmem:[#allocation2 + $0x3b0] sm:$0xff]
      %v2907 = vld [vmem:[#allocation2 + $0x3b8] sm:$0xff]
      %v2908 = vld [vmem:[#allocation2 + $0x3c0] sm:$0xff]
      %v2909 = vld [vmem:[#allocation2 + $0x3c8] sm:$0xff]
      %v2910 = vld [vmem:[#allocation2 + $0x3d0] sm:$0xff]
      %v2911 = vld [vmem:[#allocation2 + $0x3d8] sm:$0xff]
      %v2912 = vld [vmem:[#allocation2 + $0x3e0] sm:$0xff]
      %v2913 = vld [vmem:[#allocation2 + $0x3e8] sm:$0xff]
      %v2914 = vld [vmem:[#allocation2 + $0x3f0] sm:$0xff]
      %v2915 = vld [vmem:[#allocation2 + $0x3f8] sm:$0xff]
      %v2916 = vld [vmem:[#allocation2 + $0x400] sm:$0xff]
      %v2917 = vld [vmem:[#allocation2 + $0x408] sm:$0xff]
      %v2918 = vld [vmem:[#allocation2 + $0x410] sm:$0xff]
      %v2919 = vld [vmem:[#allocation2 + $0x418] sm:$0xff]
      %v2920 = vld [vmem:[#allocation2 + $0x420] sm:$0xff]
      %v2921 = vld [vmem:[#allocation2 + $0x428] sm:$0xff]
      %v2922 = vld [vmem:[#allocation2 + $0x430] sm:$0xff]
      %v2923 = vld [vmem:[#allocation2 + $0x438] sm:$0xff]
      %v2924 = vld [vmem:[#allocation2 + $0x440] sm:$0xff]
      %v2925 = vld [vmem:[#allocation2 + $0x448] sm:$0xff]
      %v2926 = vld [vmem:[#allocation2 + $0x450] sm:$0xff]
      %v2927 = vld [vmem:[#allocation2 + $0x458] sm:$0xff]
      %v2928 = vld [vmem:[#allocation2 + $0x460] sm:$0xff]
      %v2929 = vld [vmem:[#allocation2 + $0x468] sm:$0xff]
      %v2930 = vld [vmem:[#allocation2 + $0x470] sm:$0xff]
      %v2931 = vld [vmem:[#allocation2 + $0x478] sm:$0xff]
      %v2932 = vld [vmem:[#allocation2 + $0x480] sm:$0xff]
      %v2933 = vld [vmem:[#allocation2 + $0x488] sm:$0xff]
      %v2934 = vld [vmem:[#allocation2 + $0x490] sm:$0xff]
      %v2935 = vld [vmem:[#allocation2 + $0x498] sm:$0xff]
      %v2936 = vld [vmem:[#allocation2 + $0x4a0] sm:$0xff]
      %v2937 = vld [vmem:[#allocation2 + $0x4a8] sm:$0xff]
      %v2938 = vld [vmem:[#allocation2 + $0x4b0] sm:$0xff]
      %v2939 = vld [vmem:[#allocation2 + $0x4b8] sm:$0xff]
      %v2940 = vld [vmem:[#allocation2 + $0x4c0] sm:$0xff]
      %v2941 = vld [vmem:[#allocation2 + $0x4c8] sm:$0xff]
      %v2942 = vld [vmem:[#allocation2 + $0x4d0] sm:$0xff]
      %v2943 = vld [vmem:[#allocation2 + $0x4d8] sm:$0xff]
      %v2944 = vld [vmem:[#allocation2 + $0x4e0] sm:$0xff]
      %v2945 = vld [vmem:[#allocation2 + $0x4e8] sm:$0xff]
      %v2946 = vld [vmem:[#allocation2 + $0x4f0] sm:$0xff]
      %v2947 = vld [vmem:[#allocation2 + $0x4f8] sm:$0xff]
      %v2948 = vld [vmem:[#allocation2 + $0x500] sm:$0xff]
      %v2949 = vld [vmem:[#allocation2 + $0x508] sm:$0xff]
      %v2950 = vld [vmem:[#allocation2 + $0x510] sm:$0xff]
      %v2951 = vld [vmem:[#allocation2 + $0x518] sm:$0xff]
      %v2952 = vld [vmem:[#allocation2 + $0x520] sm:$0xff]
      %v2953 = vld [vmem:[#allocation2 + $0x528] sm:$0xff]
      %v2954 = vld [vmem:[#allocation2 + $0x530] sm:$0xff]
      %v2955 = vld [vmem:[#allocation2 + $0x538] sm:$0xff]
      %v2956 = vld [vmem:[#allocation2 + $0x540] sm:$0xff]
      %v2957 = vld [vmem:[#allocation2 + $0x548] sm:$0xff]
      %v2958 = vld [vmem:[#allocation2 + $0x550] sm:$0xff]
      %v2959 = vld [vmem:[#allocation2 + $0x558] sm:$0xff]
      %v2960 = vld [vmem:[#allocation2 + $0x560] sm:$0xff]
      %v2961 = vld [vmem:[#allocation2 + $0x568] sm:$0xff]
      %v2962 = vld [vmem:[#allocation2 + $0x570] sm:$0xff]
      %v2963 = vld [vmem:[#allocation2 + $0x578] sm:$0xff]
      %v2964 = vld [vmem:[#allocation2 + $0x580] sm:$0xff]
      %v2965 = vld [vmem:[#allocation2 + $0x588] sm:$0xff]
      %v2966 = vld [vmem:[#allocation2 + $0x590] sm:$0xff]
      %v2967 = vld [vmem:[#allocation2 + $0x598] sm:$0xff]
      %v2968 = vld [vmem:[#allocation2 + $0x5a0] sm:$0xff]
      %v2969 = vld [vmem:[#allocation2 + $0x5a8] sm:$0xff]
      %v2970 = vld [vmem:[#allocation2 + $0x5b0] sm:$0xff]
      %v2971 = vld [vmem:[#allocation2 + $0x5b8] sm:$0xff]
      %v2972 = vld [vmem:[#allocation2 + $0x5c0] sm:$0xff]
      %v2973 = vld [vmem:[#allocation2 + $0x5c8] sm:$0xff]
      %v2974 = vld [vmem:[#allocation2 + $0x5d0] sm:$0xff]
      %v2975 = vld [vmem:[#allocation2 + $0x5d8] sm:$0xff]
      %v2976 = vld [vmem:[#allocation2 + $0x5e0] sm:$0xff]
      %v2977 = vld [vmem:[#allocation2 + $0x5e8] sm:$0xff]
      %v2978 = vld [vmem:[#allocation2 + $0x5f0] sm:$0xff]
      %v2979 = vld [vmem:[#allocation2 + $0x5f8] sm:$0xff]
      %v2980 = vld [vmem:[#allocation2 + $0x600] sm:$0xff]
      %v2981 = vld [vmem:[#allocation2 + $0x608] sm:$0xff]
      %v2982 = vld [vmem:[#allocation2 + $0x610] sm:$0xff]
      %v2983 = vld [vmem:[#allocation2 + $0x618] sm:$0xff]
      %v2984 = vld [vmem:[#allocation2 + $0x620] sm:$0xff]
      %v2985 = vld [vmem:[#allocation2 + $0x628] sm:$0xff]
      %v2986 = vld [vmem:[#allocation2 + $0x630] sm:$0xff]
      %v2987 = vld [vmem:[#allocation2 + $0x638] sm:$0xff]
      %v2988 = vld [vmem:[#allocation2 + $0x640] sm:$0xff]
      %v2989 = vld [vmem:[#allocation2 + $0x648] sm:$0xff]
      %v2990 = vld [vmem:[#allocation2 + $0x650] sm:$0xff]
      %v2991 = vld [vmem:[#allocation2 + $0x658] sm:$0xff]
      %v2992 = vld [vmem:[#allocation2 + $0x660] sm:$0xff]
      %v2993 = vld [vmem:[#allocation2 + $0x668] sm:$0xff]
      %v2994 = vld [vmem:[#allocation2 + $0x670] sm:$0xff]
      %v2995 = vld [vmem:[#allocation2 + $0x678] sm:$0xff]
      %v2996 = vld [vmem:[#allocation2 + $0x680] sm:$0xff]
      %v2997 = vld [vmem:[#allocation2 + $0x688] sm:$0xff]
      %v2998 = vld [vmem:[#allocation2 + $0x690] sm:$0xff]
      %v2999 = vld [vmem:[#allocation2 + $0x698] sm:$0xff]
      %v3000 = vld [vmem:[#allocation2 + $0x6a0] sm:$0xff]
      %v3001 = vld [vmem:[#allocation2 + $0x6a8] sm:$0xff]
      %v3002 = vld [vmem:[#allocation2 + $0x6b0] sm:$0xff]
      %v3003 = vld [vmem:[#allocation2 + $0x6b8] sm:$0xff]
      %v3008 = vunpack.c.l.b16 %v2784
      %v3009 = vunpack.c.h.b16 %v2784
      %v3010 = vunpack.c.l.b16 %v2785
      %v3011 = vunpack.c.h.b16 %v2785
      %v3012 = vunpack.c.l.b16 %v2786
      %v3013 = vunpack.c.h.b16 %v2786
      %v3014 = vunpack.c.l.b16 %v2787
      %v3015 = vunpack.c.h.b16 %v2787
      %v3016 = vpack.c.b16 %v3012, %v3008
      %v3017 = vpack.c.b16 %v3013, %v3009
      %v3018 = vpack.c.b16 %v3014, %v3010
      %v3019 = vpack.c.b16 %v3015, %v3011
      %vm3023 = vcmask 392192
      %v3025 = vsel %vm3023, %v3019, 0
      %3027 = vmatprep.subr.bf16.mxu0 %v2789
      %3028 = vmatpush1.bf16.msra.mxu0 %v2788
      %3029 = vmatprep.subr.bf16.mxu0 %v2797
      %3030 = vmatpush1.bf16.msra.mxu0 %v2796
      %3031 = vmatprep.subr.bf16.mxu0 %v2805
      %3032 = vmatpush1.bf16.msra.mxu0 %v2804
      %3033 = vmatprep.subr.bf16.mxu0 %v2813
      %3034 = vmatpush1.bf16.msra.mxu0 %v2812
      %3035 = vmatprep.subr.bf16.mxu0 %v2821
      %3036 = vmatpush1.bf16.msra.mxu0 %v2820
      %3037 = vmatprep.subr.bf16.mxu0 %v2829
      %3038 = vmatpush1.bf16.msra.mxu0 %v2828
      %3039 = vmatprep.subr.bf16.mxu0 %v2837
      %3040 = vmatpush1.bf16.msra.mxu0 %v2836
      %3041 = vmatprep.subr.bf16.mxu0 %v2845
      %3042 = vmatpush1.bf16.msra.mxu0 %v2844
      %3043 = vmatprep.subr.bf16.mxu0 %v2853
      %3044 = vmatpush1.bf16.msra.mxu0 %v2852
      %3045 = vmatprep.subr.bf16.mxu0 %v2861
      %3046 = vmatpush1.bf16.msra.mxu0 %v2860
      %3047 = vmatprep.subr.bf16.mxu0 %v2869
      %3048 = vmatpush1.bf16.msra.mxu0 %v2868
      %3049 = vmatprep.subr.bf16.mxu0 %v2877
      %3050 = vmatpush1.bf16.msra.mxu0 %v2876
      %3051 = vmatprep.subr.bf16.mxu0 %v2885
      %3052 = vmatpush1.bf16.msra.mxu0 %v2884
      %3053 = vmatprep.subr.bf16.mxu0 %v2893
      %3054 = vmatpush1.bf16.msra.mxu0 %v2892
      %3055 = vmatprep.subr.bf16.mxu0 %v2901
      %3056 = vmatpush1.bf16.msra.mxu0 %v2900
      %3057 = vmatprep.subr.bf16.mxu0 %v2909
      %3058 = vmatpush1.bf16.msra.mxu0 %v2908
      %3059 = vmatprep.mubr.bf16.mxu0 %v3017
      %3060 = vmatmul.mubr.bf16.gmra.mrb[0].mxu0 %v3016
      %v3061 = vpop.f32.mrb[0].mxu0
      %v3062 = vadd.f32 0.0, %v3061
      %v3063 = vpop.f32.mrb[0].mxu0
      %v3064 = vadd.f32 0.0, %v3063
      %v3065 = vpop.f32.mrb[0].mxu0
      %v3066 = vadd.f32 0.0, %v3065
      %v3067 = vpop.f32.mrb[0].mxu0
      %v3068 = vadd.f32 0.0, %v3067
      %3069 = vdwg.mxu0
      %3070 = vmatprep.subr.bf16.mxu0 %v2917
      %3071 = vmatpush1.bf16.msra.mxu0 %v2916
      %3072 = vmatprep.subr.bf16.mxu0 %v2925
      %3073 = vmatpush1.bf16.msra.mxu0 %v2924
      %3074 = vmatprep.subr.bf16.mxu0 %v2933
      %3075 = vmatpush1.bf16.msra.mxu0 %v2932
      %3076 = vmatprep.subr.bf16.mxu0 %v2941
      %3077 = vmatpush1.bf16.msra.mxu0 %v2940
      %3078 = vmatprep.subr.bf16.mxu0 %v2949
      %3079 = vmatpush1.bf16.msra.mxu0 %v2948
      %3080 = vmatprep.subr.bf16.mxu0 %v2957
      %3081 = vmatpush1.bf16.msra.mxu0 %v2956
      %3082 = vmatprep.subr.bf16.mxu0 %v2965
      %3083 = vmatpush1.bf16.msra.mxu0 %v2964
      %3084 = vmatprep.subr.bf16.mxu0 %v2973
      %3085 = vmatpush1.bf16.msra.mxu0 %v2972
      %3086 = vmatprep.subr.bf16.mxu0 %v2981
      %3087 = vmatpush1.bf16.msra.mxu0 %v2980
      %3088 = vmatprep.subr.bf16.mxu0 %v2989
      %3089 = vmatpush1.bf16.msra.mxu0 %v2988
      %3090 = vmatprep.subr.bf16.mxu0 %v2997
      %3091 = vmatpush1.bf16.msra.mxu0 %v2996
      %3092 = vmatprep.subr.bf16.mxu0 0
      %3093 = vmatpush1.bf16.msra.mxu0 0
      %3094 = vmatprep.subr.bf16.mxu0 0
      %3095 = vmatpush1.bf16.msra.mxu0 0
      %3096 = vmatprep.subr.bf16.mxu0 0
      %3097 = vmatpush1.bf16.msra.mxu0 0
      %3098 = vmatprep.subr.bf16.mxu0 0
      %3099 = vmatpush1.bf16.msra.mxu0 0
      %3100 = vmatprep.subr.bf16.mxu0 0
      %3101 = vmatpush1.bf16.msra.mxu0 0
      %3102 = vmatprep.mubr.bf16.mxu0 %v3025
      %3103 = vmatmul.mubr.bf16.gmra.mrb[0].mxu0 %v3018
      %v3104 = vpop.f32.mrb[0].mxu0
      %v3105 = vadd.f32 %v3062, %v3104
      %v3106 = vpop.f32.mrb[0].mxu0
      %v3107 = vadd.f32 %v3064, %v3106
      %v3108 = vpop.f32.mrb[0].mxu0
      %v3109 = vadd.f32 %v3066, %v3108
      %v3110 = vpop.f32.mrb[0].mxu0
      %v3111 = vadd.f32 %v3068, %v3110
      %3112 = vdwg.mxu0
      %3113 = vmatprep.subr.bf16.mxu0 %v2791
      %3114 = vmatpush1.bf16.msra.mxu0 %v2790
      %3115 = vmatprep.subr.bf16.mxu0 %v2799
      %3116 = vmatpush1.bf16.msra.mxu0 %v2798
      %3117 = vmatprep.subr.bf16.mxu0 %v2807
      %3118 = vmatpush1.bf16.msra.mxu0 %v2806
      %3119 = vmatprep.subr.bf16.mxu0 %v2815
      %3120 = vmatpush1.bf16.msra.mxu0 %v2814
      %3121 = vmatprep.subr.bf16.mxu0 %v2823
      %3122 = vmatpush1.bf16.msra.mxu0 %v2822
      %3123 = vmatprep.subr.bf16.mxu0 %v2831
      %3124 = vmatpush1.bf16.msra.mxu0 %v2830
      %3125 = vmatprep.subr.bf16.mxu0 %v2839
      %3126 = vmatpush1.bf16.msra.mxu0 %v2838
      %3127 = vmatprep.subr.bf16.mxu0 %v2847
      %3128 = vmatpush1.bf16.msra.mxu0 %v2846
      %3129 = vmatprep.subr.bf16.mxu0 %v2855
      %3130 = vmatpush1.bf16.msra.mxu0 %v2854
      %3131 = vmatprep.subr.bf16.mxu0 %v2863
      %3132 = vmatpush1.bf16.msra.mxu0 %v2862
      %3133 = vmatprep.subr.bf16.mxu0 %v2871
      %3134 = vmatpush1.bf16.msra.mxu0 %v2870
      %3135 = vmatprep.subr.bf16.mxu0 %v2879
      %3136 = vmatpush1.bf16.msra.mxu0 %v2878
      %3137 = vmatprep.subr.bf16.mxu0 %v2887
      %3138 = vmatpush1.bf16.msra.mxu0 %v2886
      %3139 = vmatprep.subr.bf16.mxu0 %v2895
      %3140 = vmatpush1.bf16.msra.mxu0 %v2894
      %3141 = vmatprep.subr.bf16.mxu0 %v2903
      %3142 = vmatpush1.bf16.msra.mxu0 %v2902
      %3143 = vmatprep.subr.bf16.mxu0 %v2911
      %3144 = vmatpush1.bf16.msra.mxu0 %v2910
      %3145 = vmatprep.mubr.bf16.mxu0 %v3017
      %3146 = vmatmul.mubr.bf16.gmra.mrb[0].mxu0 %v3016
      %v3147 = vpop.f32.mrb[0].mxu0
      %v3148 = vadd.f32 0.0, %v3147
      %v3149 = vpop.f32.mrb[0].mxu0
      %v3150 = vadd.f32 0.0, %v3149
      %v3151 = vpop.f32.mrb[0].mxu0
      %v3152 = vadd.f32 0.0, %v3151
      %v3153 = vpop.f32.mrb[0].mxu0
      %v3154 = vadd.f32 0.0, %v3153
      %3155 = vdwg.mxu0
      %3156 = vmatprep.subr.bf16.mxu0 %v2919
      %3157 = vmatpush1.bf16.msra.mxu0 %v2918
      %3158 = vmatprep.subr.bf16.mxu0 %v2927
      %3159 = vmatpush1.bf16.msra.mxu0 %v2926
      %3160 = vmatprep.subr.bf16.mxu0 %v2935
      %3161 = vmatpush1.bf16.msra.mxu0 %v2934
      %3162 = vmatprep.subr.bf16.mxu0 %v2943
      %3163 = vmatpush1.bf16.msra.mxu0 %v2942
      %3164 = vmatprep.subr.bf16.mxu0 %v2951
      %3165 = vmatpush1.bf16.msra.mxu0 %v2950
      %3166 = vmatprep.subr.bf16.mxu0 %v2959
      %3167 = vmatpush1.bf16.msra.mxu0 %v2958
      %3168 = vmatprep.subr.bf16.mxu0 %v2967
      %3169 = vmatpush1.bf16.msra.mxu0 %v2966
      %3170 = vmatprep.subr.bf16.mxu0 %v2975
      %3171 = vmatpush1.bf16.msra.mxu0 %v2974
      %3172 = vmatprep.subr.bf16.mxu0 %v2983
      %3173 = vmatpush1.bf16.msra.mxu0 %v2982
      %3174 = vmatprep.subr.bf16.mxu0 %v2991
      %3175 = vmatpush1.bf16.msra.mxu0 %v2990
      %3176 = vmatprep.subr.bf16.mxu0 %v2999
      %3177 = vmatpush1.bf16.msra.mxu0 %v2998
      %3178 = vmatprep.subr.bf16.mxu0 0
      %3179 = vmatpush1.bf16.msra.mxu0 0
      %3180 = vmatprep.subr.bf16.mxu0 0
      %3181 = vmatpush1.bf16.msra.mxu0 0
      %3182 = vmatprep.subr.bf16.mxu0 0
      %3183 = vmatpush1.bf16.msra.mxu0 0
      %3184 = vmatprep.subr.bf16.mxu0 0
      %3185 = vmatpush1.bf16.msra.mxu0 0
      %3186 = vmatprep.subr.bf16.mxu0 0
      %3187 = vmatpush1.bf16.msra.mxu0 0
      %3188 = vmatprep.mubr.bf16.mxu0 %v3025
      %3189 = vmatmul.mubr.bf16.gmra.mrb[0].mxu0 %v3018
      %v3190 = vpop.f32.mrb[0].mxu0
      %v3191 = vadd.f32 %v3148, %v3190
      %v3192 = vpop.f32.mrb[0].mxu0
      %v3193 = vadd.f32 %v3150, %v3192
      %v3194 = vpop.f32.mrb[0].mxu0
      %v3195 = vadd.f32 %v3152, %v3194
      %v3196 = vpop.f32.mrb[0].mxu0
      %v3197 = vadd.f32 %v3154, %v3196
      %3198 = vdwg.mxu0
      %3199 = vmatprep.subr.bf16.mxu0 %v2793
      %3200 = vmatpush1.bf16.msra.mxu0 %v2792
      %3201 = vmatprep.subr.bf16.mxu0 %v2801
      %3202 = vmatpush1.bf16.msra.mxu0 %v2800
      %3203 = vmatprep.subr.bf16.mxu0 %v2809
      %3204 = vmatpush1.bf16.msra.mxu0 %v2808
      %3205 = vmatprep.subr.bf16.mxu0 %v2817
      %3206 = vmatpush1.bf16.msra.mxu0 %v2816
      %3207 = vmatprep.subr.bf16.mxu0 %v2825
      %3208 = vmatpush1.bf16.msra.mxu0 %v2824
      %3209 = vmatprep.subr.bf16.mxu0 %v2833
      %3210 = vmatpush1.bf16.msra.mxu0 %v2832
      %3211 = vmatprep.subr.bf16.mxu0 %v2841
      %3212 = vmatpush1.bf16.msra.mxu0 %v2840
      %3213 = vmatprep.subr.bf16.mxu0 %v2849
      %3214 = vmatpush1.bf16.msra.mxu0 %v2848
      %3215 = vmatprep.subr.bf16.mxu0 %v2857
      %3216 = vmatpush1.bf16.msra.mxu0 %v2856
      %3217 = vmatprep.subr.bf16.mxu0 %v2865
      %3218 = vmatpush1.bf16.msra.mxu0 %v2864
      %3219 = vmatprep.subr.bf16.mxu0 %v2873
      %3220 = vmatpush1.bf16.msra.mxu0 %v2872
      %3221 = vmatprep.subr.bf16.mxu0 %v2881
      %3222 = vmatpush1.bf16.msra.mxu0 %v2880
      %3223 = vmatprep.subr.bf16.mxu0 %v2889
      %3224 = vmatpush1.bf16.msra.mxu0 %v2888
      %3225 = vmatprep.subr.bf16.mxu0 %v2897
      %3226 = vmatpush1.bf16.msra.mxu0 %v2896
      %3227 = vmatprep.subr.bf16.mxu0 %v2905
      %3228 = vmatpush1.bf16.msra.mxu0 %v2904
      %3229 = vmatprep.subr.bf16.mxu0 %v2913
      %3230 = vmatpush1.bf16.msra.mxu0 %v2912
      %3231 = vmatprep.mubr.bf16.mxu0 %v3017
      %3232 = vmatmul.mubr.bf16.gmra.mrb[0].mxu0 %v3016
      %v3233 = vpop.f32.mrb[0].mxu0
      %v3234 = vadd.f32 0.0, %v3233
      %v3235 = vpop.f32.mrb[0].mxu0
      %v3236 = vadd.f32 0.0, %v3235
      %v3237 = vpop.f32.mrb[0].mxu0
      %v3238 = vadd.f32 0.0, %v3237
      %v3239 = vpop.f32.mrb[0].mxu0
      %v3240 = vadd.f32 0.0, %v3239
      %3241 = vdwg.mxu0
      %3242 = vmatprep.subr.bf16.mxu0 %v2921
      %3243 = vmatpush1.bf16.msra.mxu0 %v2920
      %3244 = vmatprep.subr.bf16.mxu0 %v2929
      %3245 = vmatpush1.bf16.msra.mxu0 %v2928
      %3246 = vmatprep.subr.bf16.mxu0 %v2937
      %3247 = vmatpush1.bf16.msra.mxu0 %v2936
      %3248 = vmatprep.subr.bf16.mxu0 %v2945
      %3249 = vmatpush1.bf16.msra.mxu0 %v2944
      %3250 = vmatprep.subr.bf16.mxu0 %v2953
      %3251 = vmatpush1.bf16.msra.mxu0 %v2952
      %3252 = vmatprep.subr.bf16.mxu0 %v2961
      %3253 = vmatpush1.bf16.msra.mxu0 %v2960
      %3254 = vmatprep.subr.bf16.mxu0 %v2969
      %3255 = vmatpush1.bf16.msra.mxu0 %v2968
      %3256 = vmatprep.subr.bf16.mxu0 %v2977
      %3257 = vmatpush1.bf16.msra.mxu0 %v2976
      %3258 = vmatprep.subr.bf16.mxu0 %v2985
      %3259 = vmatpush1.bf16.msra.mxu0 %v2984
      %3260 = vmatprep.subr.bf16.mxu0 %v2993
      %3261 = vmatpush1.bf16.msra.mxu0 %v2992
      %3262 = vmatprep.subr.bf16.mxu0 %v3001
      %3263 = vmatpush1.bf16.msra.mxu0 %v3000
      %3264 = vmatprep.subr.bf16.mxu0 0
      %3265 = vmatpush1.bf16.msra.mxu0 0
      %3266 = vmatprep.subr.bf16.mxu0 0
      %3267 = vmatpush1.bf16.msra.mxu0 0
      %3268 = vmatprep.subr.bf16.mxu0 0
      %3269 = vmatpush1.bf16.msra.mxu0 0
      %3270 = vmatprep.subr.bf16.mxu0 0
      %3271 = vmatpush1.bf16.msra.mxu0 0
      %3272 = vmatprep.subr.bf16.mxu0 0
      %3273 = vmatpush1.bf16.msra.mxu0 0
      %3274 = vmatprep.mubr.bf16.mxu0 %v3025
      %3275 = vmatmul.mubr.bf16.gmra.mrb[0].mxu0 %v3018
      %v3276 = vpop.f32.mrb[0].mxu0
      %v3277 = vadd.f32 %v3234, %v3276
      %v3278 = vpop.f32.mrb[0].mxu0
      %v3279 = vadd.f32 %v3236, %v3278
      %v3280 = vpop.f32.mrb[0].mxu0
      %v3281 = vadd.f32 %v3238, %v3280
      %v3282 = vpop.f32.mrb[0].mxu0
      %v3283 = vadd.f32 %v3240, %v3282
      %3284 = vdwg.mxu0
      %3285 = vmatprep.subr.bf16.mxu0 %v2795
      %3286 = vmatpush1.bf16.msra.mxu0 %v2794
      %3287 = vmatprep.subr.bf16.mxu0 %v2803
      %3288 = vmatpush1.bf16.msra.mxu0 %v2802
      %3289 = vmatprep.subr.bf16.mxu0 %v2811
      %3290 = vmatpush1.bf16.msra.mxu0 %v2810
      %3291 = vmatprep.subr.bf16.mxu0 %v2819
      %3292 = vmatpush1.bf16.msra.mxu0 %v2818
      %3293 = vmatprep.subr.bf16.mxu0 %v2827
      %3294 = vmatpush1.bf16.msra.mxu0 %v2826
      %3295 = vmatprep.subr.bf16.mxu0 %v2835
      %3296 = vmatpush1.bf16.msra.mxu0 %v2834
      %3297 = vmatprep.subr.bf16.mxu0 %v2843
      %3298 = vmatpush1.bf16.msra.mxu0 %v2842
      %3299 = vmatprep.subr.bf16.mxu0 %v2851
      %3300 = vmatpush1.bf16.msra.mxu0 %v2850
      %3301 = vmatprep.subr.bf16.mxu0 %v2859
      %3302 = vmatpush1.bf16.msra.mxu0 %v2858
      %3303 = vmatprep.subr.bf16.mxu0 %v2867
      %3304 = vmatpush1.bf16.msra.mxu0 %v2866
      %3305 = vmatprep.subr.bf16.mxu0 %v2875
      %3306 = vmatpush1.bf16.msra.mxu0 %v2874
      %3307 = vmatprep.subr.bf16.mxu0 %v2883
      %3308 = vmatpush1.bf16.msra.mxu0 %v2882
      %3309 = vmatprep.subr.bf16.mxu0 %v2891
      %3310 = vmatpush1.bf16.msra.mxu0 %v2890
      %3311 = vmatprep.subr.bf16.mxu0 %v2899
      %3312 = vmatpush1.bf16.msra.mxu0 %v2898
      %3313 = vmatprep.subr.bf16.mxu0 %v2907
      %3314 = vmatpush1.bf16.msra.mxu0 %v2906
      %3315 = vmatprep.subr.bf16.mxu0 %v2915
      %3316 = vmatpush1.bf16.msra.mxu0 %v2914
      %3317 = vmatprep.mubr.bf16.mxu0 %v3017
      %3318 = vmatmul.mubr.bf16.gmra.mrb[0].mxu0 %v3016
      %v3319 = vpop.f32.mrb[0].mxu0
      %v3320 = vadd.f32 0.0, %v3319
      %v3321 = vpop.f32.mrb[0].mxu0
      %v3322 = vadd.f32 0.0, %v3321
      %v3323 = vpop.f32.mrb[0].mxu0
      %v3324 = vadd.f32 0.0, %v3323
      %v3325 = vpop.f32.mrb[0].mxu0
      %v3326 = vadd.f32 0.0, %v3325
      %3327 = vdwg.mxu0
      %3328 = vmatprep.subr.bf16.mxu0 %v2923
      %3329 = vmatpush1.bf16.msra.mxu0 %v2922
      %3330 = vmatprep.subr.bf16.mxu0 %v2931
      %3331 = vmatpush1.bf16.msra.mxu0 %v2930
      %3332 = vmatprep.subr.bf16.mxu0 %v2939
      %3333 = vmatpush1.bf16.msra.mxu0 %v2938
      %3334 = vmatprep.subr.bf16.mxu0 %v2947
      %3335 = vmatpush1.bf16.msra.mxu0 %v2946
      %3336 = vmatprep.subr.bf16.mxu0 %v2955
      %3337 = vmatpush1.bf16.msra.mxu0 %v2954
      %3338 = vmatprep.subr.bf16.mxu0 %v2963
      %3339 = vmatpush1.bf16.msra.mxu0 %v2962
      %3340 = vmatprep.subr.bf16.mxu0 %v2971
      %3341 = vmatpush1.bf16.msra.mxu0 %v2970
      %3342 = vmatprep.subr.bf16.mxu0 %v2979
      %3343 = vmatpush1.bf16.msra.mxu0 %v2978
      %3344 = vmatprep.subr.bf16.mxu0 %v2987
      %3345 = vmatpush1.bf16.msra.mxu0 %v2986
      %3346 = vmatprep.subr.bf16.mxu0 %v2995
      %3347 = vmatpush1.bf16.msra.mxu0 %v2994
      %3348 = vmatprep.subr.bf16.mxu0 %v3003
      %3349 = vmatpush1.bf16.msra.mxu0 %v3002
      %3350 = vmatprep.subr.bf16.mxu0 0
      %3351 = vmatpush1.bf16.msra.mxu0 0
      %3352 = vmatprep.subr.bf16.mxu0 0
      %3353 = vmatpush1.bf16.msra.mxu0 0
      %3354 = vmatprep.subr.bf16.mxu0 0
      %3355 = vmatpush1.bf16.msra.mxu0 0
      %3356 = vmatprep.subr.bf16.mxu0 0
      %3357 = vmatpush1.bf16.msra.mxu0 0
      %3358 = vmatprep.subr.bf16.mxu0 0
      %3359 = vmatpush1.bf16.msra.mxu0 0
      %3360 = vmatprep.mubr.bf16.mxu0 %v3025
      %3361 = vmatmul.mubr.bf16.gmra.mrb[0].mxu0 %v3018
      %v3362 = vpop.f32.mrb[0].mxu0
      %v3363 = vadd.f32 %v3320, %v3362
      %v3364 = vpop.f32.mrb[0].mxu0
      %v3365 = vadd.f32 %v3322, %v3364
      %v3366 = vpop.f32.mrb[0].mxu0
      %v3367 = vadd.f32 %v3324, %v3366
      %v3368 = vpop.f32.mrb[0].mxu0
      %v3369 = vadd.f32 %v3326, %v3368
      %3370 = vdwg.mxu0
      %3371 = vst [vmem:[#allocation3] sm:$0xff] %v3105
      %3372 = vst [vmem:[#allocation3 + $0x8] sm:$0xff] %v3107
      %3373 = vst [vmem:[#allocation3 + $0x10] sm:$0xff] %v3191
      %3374 = vst [vmem:[#allocation3 + $0x18] sm:$0xff] %v3193
      %3375 = vst [vmem:[#allocation3 + $0x20] sm:$0xff] %v3277
      %3376 = vst [vmem:[#allocation3 + $0x28] sm:$0xff] %v3279
      %3377 = vst [vmem:[#allocation3 + $0x30] sm:$0xff] %v3363
      %3378 = vst [vmem:[#allocation3 + $0x38] sm:$0xff] %v3365
      %3379 = vst [vmem:[#allocation3 + $0x40] sm:$0xff] %v3109
      %3380 = vst [vmem:[#allocation3 + $0x48] sm:$0xff] %v3111
      %3381 = vst [vmem:[#allocation3 + $0x50] sm:$0xff] %v3195
      %3382 = vst [vmem:[#allocation3 + $0x58] sm:$0xff] %v3197
      %3383 = vst [vmem:[#allocation3 + $0x60] sm:$0xff] %v3281
      %3384 = vst [vmem:[#allocation3 + $0x68] sm:$0xff] %v3283
      %3385 = vst [vmem:[#allocation3 + $0x70] sm:$0xff] %v3367
      %3386 = vst [vmem:[#allocation3 + $0x78] sm:$0xff] %v3369
      %v3387 = vld [vmem:[#allocation3] sm:$0xff]
      %v3388 = vld [vmem:[#allocation3 + $0x8] sm:$0xff]
      %v3389 = vld [vmem:[#allocation3 + $0x10] sm:$0xff]
      %v3390 = vld [vmem:[#allocation3 + $0x18] sm:$0xff]
      %v3391 = vld [vmem:[#allocation3 + $0x20] sm:$0xff]
      %v3392 = vld [vmem:[#allocation3 + $0x28] sm:$0xff]
      %v3393 = vld [vmem:[#allocation3 + $0x30] sm:$0xff]
      %v3394 = vld [vmem:[#allocation3 + $0x38] sm:$0xff]
      %v3395 = vld [vmem:[#allocation3 + $0x40] sm:$0xff]
      %v3396 = vld [vmem:[#allocation3 + $0x48] sm:$0xff]
      %v3397 = vld [vmem:[#allocation3 + $0x50] sm:$0xff]
      %v3398 = vld [vmem:[#allocation3 + $0x58] sm:$0xff]
      %v3399 = vld [vmem:[#allocation3 + $0x60] sm:$0xff]
      %v3400 = vld [vmem:[#allocation3 + $0x68] sm:$0xff]
      %v3401 = vld [vmem:[#allocation3 + $0x70] sm:$0xff]
      %v3402 = vld [vmem:[#allocation3 + $0x78] sm:$0xff]
      %v3403 = vld [vmem:[%s365] sm:$0xff]
      %v3404 = vld [vmem:[%s365 + $0x8] sm:$0xff]
      %v3405 = vld [vmem:[%s370] sm:$0xff]
      %v3406 = vld [vmem:[%s370 + $0x8] sm:$0xff]
      %v3408 = vlaneseq
      %v3409 = vshrl.u32 %v3408, 7
      %v3410 = vsub.s32 0, %v3409
      %v3411 = vrot.slane %v387, %v3410
      %v3412 = vlaneseq
      %v3413 = vshrl.u32 %v3412, 7
      %v3414 = vsub.s32 1, %v3413
      %v3415 = vrot.slane %v387, %v3414
      %v3416 = vlaneseq
      %v3417 = vshrl.u32 %v3416, 7
      %v3418 = vsub.s32 2, %v3417
      %v3419 = vrot.slane %v387, %v3418
      %v3420 = vlaneseq
      %v3421 = vshrl.u32 %v3420, 7
      %v3422 = vsub.s32 3, %v3421
      %v3423 = vrot.slane %v387, %v3422
      %v3424 = vlaneseq
      %v3425 = vshrl.u32 %v3424, 7
      %v3426 = vsub.s32 4, %v3425
      %v3427 = vrot.slane %v387, %v3426
      %v3428 = vlaneseq
      %v3429 = vshrl.u32 %v3428, 7
      %v3430 = vsub.s32 5, %v3429
      %v3431 = vrot.slane %v387, %v3430
      %v3432 = vlaneseq
      %v3433 = vshrl.u32 %v3432, 7
      %v3434 = vsub.s32 6, %v3433
      %v3435 = vrot.slane %v387, %v3434
      %v3436 = vlaneseq
      %v3437 = vshrl.u32 %v3436, 7
      %v3438 = vsub.s32 7, %v3437
      %v3439 = vrot.slane %v387, %v3438
      %v3448 = vmul.f32 %v3387, %v3411
      %v3449 = vmul.f32 %v3388, %v3415
      %v3450 = vmul.f32 %v3389, %v3419
      %v3451 = vmul.f32 %v3390, %v3423
      %v3452 = vmul.f32 %v3391, %v3427
      %v3453 = vmul.f32 %v3392, %v3431
      %v3454 = vmul.f32 %v3393, %v3435
      %v3455 = vmul.f32 %v3394, %v3439
      %v3456 = vmul.f32 %v3395, %v3411
      %v3457 = vmul.f32 %v3396, %v3415
      %v3458 = vmul.f32 %v3397, %v3419
      %v3459 = vmul.f32 %v3398, %v3423
      %v3460 = vmul.f32 %v3399, %v3427
      %v3461 = vmul.f32 %v3400, %v3431
      %v3462 = vmul.f32 %v3401, %v3435
      %v3463 = vmul.f32 %v3402, %v3439
      %v3464 = vadd.f32 %v3448, %v3449
      %v3465 = vadd.f32 %v3464, %v3450
      %v3466 = vadd.f32 %v3465, %v3451
      %v3467 = vadd.f32 %v3466, %v3452
      %v3468 = vadd.f32 %v3467, %v3453
      %v3469 = vadd.f32 %v3468, %v3454
      %v3470 = vadd.f32 %v3469, %v3455
      %3471 = vadd.xlane.f32.xlu0 %v3470
      %v3472 = vpop.xlane.xlu0 %3471
      %v3473 = vadd.f32 %v3456, %v3457
      %v3474 = vadd.f32 %v3473, %v3458
      %v3475 = vadd.f32 %v3474, %v3459
      %v3476 = vadd.f32 %v3475, %v3460
      %v3477 = vadd.f32 %v3476, %v3461
      %v3478 = vadd.f32 %v3477, %v3462
      %v3479 = vadd.f32 %v3478, %v3463
      %3480 = vadd.xlane.f32.xlu0 %v3479
      %v3481 = vpop.xlane.xlu0 %3480
      %v3482 = vmul.f32 %v3472, 0.001953125
      %v3483 = vmul.f32 %v3481, 0.001953125
      %v3484 = vsub.f32 %v3387, %v3482
      %v3485 = vsub.f32 %v3388, %v3482
      %v3486 = vsub.f32 %v3389, %v3482
      %v3487 = vsub.f32 %v3390, %v3482
      %v3488 = vsub.f32 %v3391, %v3482
      %v3489 = vsub.f32 %v3392, %v3482
      %v3490 = vsub.f32 %v3393, %v3482
      %v3491 = vsub.f32 %v3394, %v3482
      %v3492 = vsub.f32 %v3395, %v3483
      %v3493 = vsub.f32 %v3396, %v3483
      %v3494 = vsub.f32 %v3397, %v3483
      %v3495 = vsub.f32 %v3398, %v3483
      %v3496 = vsub.f32 %v3399, %v3483
      %v3497 = vsub.f32 %v3400, %v3483
      %v3498 = vsub.f32 %v3401, %v3483
      %v3499 = vsub.f32 %v3402, %v3483
      %v3500 = vmul.f32 %v3484, %v3448
      %v3501 = vmul.f32 %v3485, %v3449
      %v3502 = vmul.f32 %v3486, %v3450
      %v3503 = vmul.f32 %v3487, %v3451
      %v3504 = vmul.f32 %v3488, %v3452
      %v3505 = vmul.f32 %v3489, %v3453
      %v3506 = vmul.f32 %v3490, %v3454
      %v3507 = vmul.f32 %v3491, %v3455
      %v3508 = vmul.f32 %v3492, %v3456
      %v3509 = vmul.f32 %v3493, %v3457
      %v3510 = vmul.f32 %v3494, %v3458
      %v3511 = vmul.f32 %v3495, %v3459
      %v3512 = vmul.f32 %v3496, %v3460
      %v3513 = vmul.f32 %v3497, %v3461
      %v3514 = vmul.f32 %v3498, %v3462
      %v3515 = vmul.f32 %v3499, %v3463
      %v3516 = vadd.f32 %v3500, %v3501
      %v3517 = vadd.f32 %v3516, %v3502
      %v3518 = vadd.f32 %v3517, %v3503
      %v3519 = vadd.f32 %v3518, %v3504
      %v3520 = vadd.f32 %v3519, %v3505
      %v3521 = vadd.f32 %v3520, %v3506
      %v3522 = vadd.f32 %v3521, %v3507
      %3523 = vadd.xlane.f32.xlu0 %v3522
      %v3524 = vpop.xlane.xlu0 %3523
      %v3525 = vadd.f32 %v3508, %v3509
      %v3526 = vadd.f32 %v3525, %v3510
      %v3527 = vadd.f32 %v3526, %v3511
      %v3528 = vadd.f32 %v3527, %v3512
      %v3529 = vadd.f32 %v3528, %v3513
      %v3530 = vadd.f32 %v3529, %v3514
      %v3531 = vadd.f32 %v3530, %v3515
      %3532 = vadd.xlane.f32.xlu0 %v3531
      %v3533 = vpop.xlane.xlu0 %3532
      %v3534 = vmul.f32 %v3524, 0.001953125
      %v3535 = vmul.f32 %v3533, 0.001953125
      %v3536 = vadd.f32 %v3534, 1e-05
      %v3537 = vadd.f32 %v3535, 1e-05
      %v3538 = vrsqrt.pop %v3536
      %v3539 = vrsqrt.pop %v3537
      %v3540 = vmul.f32 %v3484, %v3538
      %v3541 = vmul.f32 %v3485, %v3538
      %v3542 = vmul.f32 %v3486, %v3538
      %v3543 = vmul.f32 %v3487, %v3538
      %v3544 = vmul.f32 %v3488, %v3538
      %v3545 = vmul.f32 %v3489, %v3538
      %v3546 = vmul.f32 %v3490, %v3538
      %v3547 = vmul.f32 %v3491, %v3538
      %v3548 = vmul.f32 %v3492, %v3539
      %v3549 = vmul.f32 %v3493, %v3539
      %v3550 = vmul.f32 %v3494, %v3539
      %v3551 = vmul.f32 %v3495, %v3539
      %v3552 = vmul.f32 %v3496, %v3539
      %v3553 = vmul.f32 %v3497, %v3539
      %v3554 = vmul.f32 %v3498, %v3539
      %v3555 = vmul.f32 %v3499, %v3539
      %3557 = vset.pattern.permute.xlu0 0
      %3558 = vperm.xlu0 %3557, %v3403
      %v3559 = vpop.permute.xlu0 %3558
      %3562 = vset.pattern.permute.xlu0 0
      %3563 = vperm.xlu0 %3562, %v3404
      %v3564 = vpop.permute.xlu0 %3563
      %v3566 = vmul.f32 %v3559, %v3540
      %v3567 = vmul.f32 %v3559, %v3541
      %v3568 = vmul.f32 %v3559, %v3542
      %v3569 = vmul.f32 %v3559, %v3543
      %v3570 = vmul.f32 %v3559, %v3544
      %v3571 = vmul.f32 %v3559, %v3545
      %v3572 = vmul.f32 %v3559, %v3546
      %v3573 = vmul.f32 %v3559, %v3547
      %v3574 = vmul.f32 %v3564, %v3548
      %v3575 = vmul.f32 %v3564, %v3549
      %v3576 = vmul.f32 %v3564, %v3550
      %v3577 = vmul.f32 %v3564, %v3551
      %v3578 = vmul.f32 %v3564, %v3552
      %v3579 = vmul.f32 %v3564, %v3553
      %v3580 = vmul.f32 %v3564, %v3554
      %v3581 = vmul.f32 %v3564, %v3555
      %3583 = vset.pattern.permute.xlu0 0
      %3584 = vperm.xlu0 %3583, %v3405
      %v3585 = vpop.permute.xlu0 %3584
      %3588 = vset.pattern.permute.xlu0 0
      %3589 = vperm.xlu0 %3588, %v3406
      %v3590 = vpop.permute.xlu0 %3589
      %v3592 = vadd.f32 %v3566, %v3585
      %v3593 = vadd.f32 %v3567, %v3585
      %v3594 = vadd.f32 %v3568, %v3585
      %v3595 = vadd.f32 %v3569, %v3585
      %v3596 = vadd.f32 %v3570, %v3585
      %v3597 = vadd.f32 %v3571, %v3585
      %v3598 = vadd.f32 %v3572, %v3585
      %v3599 = vadd.f32 %v3573, %v3585
      %v3600 = vadd.f32 %v3574, %v3590
      %v3601 = vadd.f32 %v3575, %v3590
      %v3602 = vadd.f32 %v3576, %v3590
      %v3603 = vadd.f32 %v3577, %v3590
      %v3604 = vadd.f32 %v3578, %v3590
      %v3605 = vadd.f32 %v3579, %v3590
      %v3606 = vadd.f32 %v3580, %v3590
      %v3607 = vadd.f32 %v3581, %v3590
      %vm3608 = vcmp.ge.f32.partialorder %v3592, 0.0
      %vm3609 = vcmp.ge.f32.partialorder %v3593, 0.0
      %vm3610 = vcmp.ge.f32.partialorder %v3594, 0.0
      %vm3611 = vcmp.ge.f32.partialorder %v3595, 0.0
      %vm3612 = vcmp.ge.f32.partialorder %v3596, 0.0
      %vm3613 = vcmp.ge.f32.partialorder %v3597, 0.0
      %vm3614 = vcmp.ge.f32.partialorder %v3598, 0.0
      %vm3615 = vcmp.ge.f32.partialorder %v3599, 0.0
      %vm3616 = vcmp.ge.f32.partialorder %v3600, 0.0
      %vm3617 = vcmp.ge.f32.partialorder %v3601, 0.0
      %vm3618 = vcmp.ge.f32.partialorder %v3602, 0.0
      %vm3619 = vcmp.ge.f32.partialorder %v3603, 0.0
      %vm3620 = vcmp.ge.f32.partialorder %v3604, 0.0
      %vm3621 = vcmp.ge.f32.partialorder %v3605, 0.0
      %vm3622 = vcmp.ge.f32.partialorder %v3606, 0.0
      %vm3623 = vcmp.ge.f32.partialorder %v3607, 0.0
      %v3624 = vmul.f32 %v3592, 0.2
      %v3625 = vmul.f32 %v3593, 0.2
      %v3626 = vmul.f32 %v3594, 0.2
      %v3627 = vmul.f32 %v3595, 0.2
      %v3628 = vmul.f32 %v3596, 0.2
      %v3629 = vmul.f32 %v3597, 0.2
      %v3630 = vmul.f32 %v3598, 0.2
      %v3631 = vmul.f32 %v3599, 0.2
      %v3632 = vmul.f32 %v3600, 0.2
      %v3633 = vmul.f32 %v3601, 0.2
      %v3634 = vmul.f32 %v3602, 0.2
      %v3635 = vmul.f32 %v3603, 0.2
      %v3636 = vmul.f32 %v3604, 0.2
      %v3637 = vmul.f32 %v3605, 0.2
      %v3638 = vmul.f32 %v3606, 0.2
      %v3639 = vmul.f32 %v3607, 0.2
      %v3640 = vsel %vm3608, %v3592, %v3624
      %v3641 = vsel %vm3609, %v3593, %v3625
      %v3642 = vsel %vm3610, %v3594, %v3626
      %v3643 = vsel %vm3611, %v3595, %v3627
      %v3644 = vsel %vm3612, %v3596, %v3628
      %v3645 = vsel %vm3613, %v3597, %v3629
      %v3646 = vsel %vm3614, %v3598, %v3630
      %v3647 = vsel %vm3615, %v3599, %v3631
      %v3648 = vsel %vm3616, %v3600, %v3632
      %v3649 = vsel %vm3617, %v3601, %v3633
      %v3650 = vsel %vm3618, %v3602, %v3634
      %v3651 = vsel %vm3619, %v3603, %v3635
      %v3652 = vsel %vm3620, %v3604, %v3636
      %v3653 = vsel %vm3621, %v3605, %v3637
      %v3654 = vsel %vm3622, %v3606, %v3638
      %v3655 = vsel %vm3623, %v3607, %v3639
      %v3656 = vmul.f32 %v3640, %v3411
      %v3657 = vmul.f32 %v3641, %v3415
      %v3658 = vmul.f32 %v3642, %v3419
      %v3659 = vmul.f32 %v3643, %v3423
      %v3660 = vmul.f32 %v3644, %v3427
      %v3661 = vmul.f32 %v3645, %v3431
      %v3662 = vmul.f32 %v3646, %v3435
      %v3663 = vmul.f32 %v3647, %v3439
      %v3664 = vmul.f32 %v3648, %v3411
      %v3665 = vmul.f32 %v3649, %v3415
      %v3666 = vmul.f32 %v3650, %v3419
      %v3667 = vmul.f32 %v3651, %v3423
      %v3668 = vmul.f32 %v3652, %v3427
      %v3669 = vmul.f32 %v3653, %v3431
      %v3670 = vmul.f32 %v3654, %v3435
      %v3671 = vmul.f32 %v3655, %v3439
      %3672 = vst [vmem:[#allocation4] sm:$0xff] 0
      %3673 = vst [vmem:[#allocation4 + $0x48] sm:$0xff] 0
      %v3674 = vpack.c.bf16 %v3664, %v3656
      %v3675 = vpack.c.bf16 %v3665, %v3657
      %v3676 = vpack.c.bf16 %v3666, %v3658
      %v3677 = vpack.c.bf16 %v3667, %v3659
      %v3678 = vpack.c.bf16 %v3668, %v3660
      %v3679 = vpack.c.bf16 %v3669, %v3661
      %v3680 = vpack.c.bf16 %v3670, %v3662
      %v3681 = vpack.c.bf16 %v3671, %v3663
      %3682 = vst [vmem:[#allocation4 + $0x8] sm:$0xff] %v3674
      %3683 = vst [vmem:[#allocation4 + $0x10] sm:$0xff] %v3675
      %3684 = vst [vmem:[#allocation4 + $0x18] sm:$0xff] %v3676
      %3685 = vst [vmem:[#allocation4 + $0x20] sm:$0xff] %v3677
      %3686 = vst [vmem:[#allocation4 + $0x28] sm:$0xff] %v3678
      %3687 = vst [vmem:[#allocation4 + $0x30] sm:$0xff] %v3679
      %3688 = vst [vmem:[#allocation4 + $0x38] sm:$0xff] %v3680
      %3689 = vst [vmem:[#allocation4 + $0x40] sm:$0xff] %v3681
      %v3690 = vld [vmem:[#allocation4] sm:$0xff]
      %v3691 = vld [vmem:[#allocation4 + $0x8] sm:$0xff]
      %v3692 = vld [vmem:[#allocation4 + $0x10] sm:$0xff]
      %v3693 = vld [vmem:[#allocation4 + $0x18] sm:$0xff]
      %v3694 = vld [vmem:[#allocation4 + $0x20] sm:$0xff]
      %v3695 = vld [vmem:[#allocation4 + $0x28] sm:$0xff]
      %v3696 = vld [vmem:[#allocation4 + $0x30] sm:$0xff]
      %v3697 = vld [vmem:[#allocation4 + $0x38] sm:$0xff]
      %v3698 = vld [vmem:[#allocation4 + $0x40] sm:$0xff]
      %3708 = vrot.lane.b32.xlu0 %v3690, 111
      %v3709 = vpop.permute.xlu0 %3708
      %3710 = vrot.lane.b32.xlu0 %v3691, 111
      %v3711 = vpop.permute.xlu0 %3710
      %3712 = vrot.lane.b32.xlu0 %v3692, 111
      %v3713 = vpop.permute.xlu0 %3712
      %3714 = vrot.lane.b32.xlu0 %v3693, 111
      %v3715 = vpop.permute.xlu0 %3714
      %3716 = vrot.lane.b32.xlu0 %v3694, 111
      %v3717 = vpop.permute.xlu0 %3716
      %3718 = vrot.lane.b32.xlu0 %v3695, 111
      %v3719 = vpop.permute.xlu0 %3718
      %3720 = vrot.lane.b32.xlu0 %v3696, 111
      %v3721 = vpop.permute.xlu0 %3720
      %3722 = vrot.lane.b32.xlu0 %v3697, 111
      %v3723 = vpop.permute.xlu0 %3722
      %3724 = vrot.lane.b32.xlu0 %v3698, 111
      %v3725 = vpop.permute.xlu0 %3724
      %vm3726 = vcmask 908288
      %v3727 = vsel %vm3726, %v3709, %v3711
      %v3728 = vsel %vm3726, %v3711, %v3713
      %v3729 = vsel %vm3726, %v3713, %v3715
      %v3730 = vsel %vm3726, %v3715, %v3717
      %v3731 = vsel %vm3726, %v3717, %v3719
      %v3732 = vsel %vm3726, %v3719, %v3721
      %v3733 = vsel %vm3726, %v3721, %v3723
      %v3734 = vsel %vm3726, %v3723, %v3725
      %3743 = vst [vmem:[#allocation2] sm:$0xff] %v3727
      %3744 = vst [vmem:[#allocation2 + $0x8] sm:$0xff] %v3728
      %3745 = vst [vmem:[#allocation2 + $0x10] sm:$0xff] %v3729
      %3746 = vst [vmem:[#allocation2 + $0x18] sm:$0xff] %v3730
      %3747 = vst [vmem:[#allocation2 + $0x20] sm:$0xff] %v3731
      %3748 = vst [vmem:[#allocation2 + $0x28] sm:$0xff] %v3732
      %3749 = vst [vmem:[#allocation2 + $0x30] sm:$0xff] %v3733
      %3750 = vst [vmem:[#allocation2 + $0x38] sm:$0xff] %v3734
      %v3751 = vld [vmem:[#allocation4] sm:$0xff]
      %v3752 = vld [vmem:[#allocation4 + $0x8] sm:$0xff]
      %v3753 = vld [vmem:[#allocation4 + $0x10] sm:$0xff]
      %v3754 = vld [vmem:[#allocation4 + $0x18] sm:$0xff]
      %v3755 = vld [vmem:[#allocation4 + $0x20] sm:$0xff]
      %v3756 = vld [vmem:[#allocation4 + $0x28] sm:$0xff]
      %v3757 = vld [vmem:[#allocation4 + $0x30] sm:$0xff]
      %v3758 = vld [vmem:[#allocation4 + $0x38] sm:$0xff]
      %v3759 = vld [vmem:[#allocation4 + $0x40] sm:$0xff]
      %3769 = vrot.lane.b32.xlu0 %v3751, 110
      %v3770 = vpop.permute.xlu0 %3769
      %3771 = vrot.lane.b32.xlu0 %v3752, 110
      %v3772 = vpop.permute.xlu0 %3771
      %3773 = vrot.lane.b32.xlu0 %v3753, 110
      %v3774 = vpop.permute.xlu0 %3773
      %3775 = vrot.lane.b32.xlu0 %v3754, 110
      %v3776 = vpop.permute.xlu0 %3775
      %3777 = vrot.lane.b32.xlu0 %v3755, 110
      %v3778 = vpop.permute.xlu0 %3777
      %3779 = vrot.lane.b32.xlu0 %v3756, 110
      %v3780 = vpop.permute.xlu0 %3779
      %3781 = vrot.lane.b32.xlu0 %v3757, 110
      %v3782 = vpop.permute.xlu0 %3781
      %3783 = vrot.lane.b32.xlu0 %v3758, 110
      %v3784 = vpop.permute.xlu0 %3783
      %3785 = vrot.lane.b32.xlu0 %v3759, 110
      %v3786 = vpop.permute.xlu0 %3785
      %vm3787 = vcmask 900096
      %v3788 = vsel %vm3787, %v3770, %v3772
      %v3789 = vsel %vm3787, %v3772, %v3774
      %v3790 = vsel %vm3787, %v3774, %v3776
      %v3791 = vsel %vm3787, %v3776, %v3778
      %v3792 = vsel %vm3787, %v3778, %v3780
      %v3793 = vsel %vm3787, %v3780, %v3782
      %v3794 = vsel %vm3787, %v3782, %v3784
      %v3795 = vsel %vm3787, %v3784, %v3786
      %3804 = vst [vmem:[#allocation2 + $0x40] sm:$0xff] %v3788
      %3805 = vst [vmem:[#allocation2 + $0x48] sm:$0xff] %v3789
      %3806 = vst [vmem:[#allocation2 + $0x50] sm:$0xff] %v3790
      %3807 = vst [vmem:[#allocation2 + $0x58] sm:$0xff] %v3791
      %3808 = vst [vmem:[#allocation2 + $0x60] sm:$0xff] %v3792
      %3809 = vst [vmem:[#allocation2 + $0x68] sm:$0xff] %v3793
      %3810 = vst [vmem:[#allocation2 + $0x70] sm:$0xff] %v3794
      %3811 = vst [vmem:[#allocation2 + $0x78] sm:$0xff] %v3795
      %v3812 = vld [vmem:[#allocation4] sm:$0xff]
      %v3813 = vld [vmem:[#allocation4 + $0x8] sm:$0xff]
      %v3814 = vld [vmem:[#allocation4 + $0x10] sm:$0xff]
      %v3815 = vld [vmem:[#allocation4 + $0x18] sm:$0xff]
      %v3816 = vld [vmem:[#allocation4 + $0x20] sm:$0xff]
      %v3817 = vld [vmem:[#allocation4 + $0x28] sm:$0xff]
      %v3818 = vld [vmem:[#allocation4 + $0x30] sm:$0xff]
      %v3819 = vld [vmem:[#allocation4 + $0x38] sm:$0xff]
      %v3820 = vld [vmem:[#allocation4 + $0x40] sm:$0xff]
      %3830 = vrot.lane.b32.xlu0 %v3812, 109
      %v3831 = vpop.permute.xlu0 %3830
      %3832 = vrot.lane.b32.xlu0 %v3813, 109
      %v3833 = vpop.permute.xlu0 %3832
      %3834 = vrot.lane.b32.xlu0 %v3814, 109
      %v3835 = vpop.permute.xlu0 %3834
      %3836 = vrot.lane.b32.xlu0 %v3815, 109
      %v3837 = vpop.permute.xlu0 %3836
      %3838 = vrot.lane.b32.xlu0 %v3816, 109
      %v3839 = vpop.permute.xlu0 %3838
      %3840 = vrot.lane.b32.xlu0 %v3817, 109
      %v3841 = vpop.permute.xlu0 %3840
      %3842 = vrot.lane.b32.xlu0 %v3818, 109
      %v3843 = vpop.permute.xlu0 %3842
      %3844 = vrot.lane.b32.xlu0 %v3819, 109
      %v3845 = vpop.permute.xlu0 %3844
      %3846 = vrot.lane.b32.xlu0 %v3820, 109
      %v3847 = vpop.permute.xlu0 %3846
      %vm3848 = vcmask 891904
      %v3849 = vsel %vm3848, %v3831, %v3833
      %v3850 = vsel %vm3848, %v3833, %v3835
      %v3851 = vsel %vm3848, %v3835, %v3837
      %v3852 = vsel %vm3848, %v3837, %v3839
      %v3853 = vsel %vm3848, %v3839, %v3841
      %v3854 = vsel %vm3848, %v3841, %v3843
      %v3855 = vsel %vm3848, %v3843, %v3845
      %v3856 = vsel %vm3848, %v3845, %v3847
      %3865 = vst [vmem:[#allocation2 + $0x80] sm:$0xff] %v3849
      %3866 = vst [vmem:[#allocation2 + $0x88] sm:$0xff] %v3850
      %3867 = vst [vmem:[#allocation2 + $0x90] sm:$0xff] %v3851
      %3868 = vst [vmem:[#allocation2 + $0x98] sm:$0xff] %v3852
      %3869 = vst [vmem:[#allocation2 + $0xa0] sm:$0xff] %v3853
      %3870 = vst [vmem:[#allocation2 + $0xa8] sm:$0xff] %v3854
      %3871 = vst [vmem:[#allocation2 + $0xb0] sm:$0xff] %v3855
      %3872 = vst [vmem:[#allocation2 + $0xb8] sm:$0xff] %v3856
      %v3873 = vld [vmem:[#allocation4] sm:$0xff]
      %v3874 = vld [vmem:[#allocation4 + $0x8] sm:$0xff]
      %v3875 = vld [vmem:[#allocation4 + $0x10] sm:$0xff]
      %v3876 = vld [vmem:[#allocation4 + $0x18] sm:$0xff]
      %v3877 = vld [vmem:[#allocation4 + $0x20] sm:$0xff]
      %v3878 = vld [vmem:[#allocation4 + $0x28] sm:$0xff]
      %v3879 = vld [vmem:[#allocation4 + $0x30] sm:$0xff]
      %v3880 = vld [vmem:[#allocation4 + $0x38] sm:$0xff]
      %v3881 = vld [vmem:[#allocation4 + $0x40] sm:$0xff]
      %3891 = vrot.lane.b32.xlu0 %v3873, 101
      %v3892 = vpop.permute.xlu0 %3891
      %3893 = vrot.lane.b32.xlu0 %v3874, 101
      %v3894 = vpop.permute.xlu0 %3893
      %3895 = vrot.lane.b32.xlu0 %v3875, 101
      %v3896 = vpop.permute.xlu0 %3895
      %3897 = vrot.lane.b32.xlu0 %v3876, 101
      %v3898 = vpop.permute.xlu0 %3897
      %3899 = vrot.lane.b32.xlu0 %v3877, 101
      %v3900 = vpop.permute.xlu0 %3899
      %3901 = vrot.lane.b32.xlu0 %v3878, 101
      %v3902 = vpop.permute.xlu0 %3901
      %3903 = vrot.lane.b32.xlu0 %v3879, 101
      %v3904 = vpop.permute.xlu0 %3903
      %3905 = vrot.lane.b32.xlu0 %v3880, 101
      %v3906 = vpop.permute.xlu0 %3905
      %3907 = vrot.lane.b32.xlu0 %v3881, 101
      %v3908 = vpop.permute.xlu0 %3907
      %vm3909 = vcmask 826368
      %v3910 = vsel %vm3909, %v3892, %v3894
      %v3911 = vsel %vm3909, %v3894, %v3896
      %v3912 = vsel %vm3909, %v3896, %v3898
      %v3913 = vsel %vm3909, %v3898, %v3900
      %v3914 = vsel %vm3909, %v3900, %v3902
      %v3915 = vsel %vm3909, %v3902, %v3904
      %v3916 = vsel %vm3909, %v3904, %v3906
      %v3917 = vsel %vm3909, %v3906, %v3908
      %3926 = vst [vmem:[#allocation2 + $0xc0] sm:$0xff] %v3910
      %3927 = vst [vmem:[#allocation2 + $0xc8] sm:$0xff] %v3911
      %3928 = vst [vmem:[#allocation2 + $0xd0] sm:$0xff] %v3912
      %3929 = vst [vmem:[#allocation2 + $0xd8] sm:$0xff] %v3913
      %3930 = vst [vmem:[#allocation2 + $0xe0] sm:$0xff] %v3914
      %3931 = vst [vmem:[#allocation2 + $0xe8] sm:$0xff] %v3915
      %3932 = vst [vmem:[#allocation2 + $0xf0] sm:$0xff] %v3916
      %3933 = vst [vmem:[#allocation2 + $0xf8] sm:$0xff] %v3917
      %v3934 = vld [vmem:[#allocation4] sm:$0xff]
      %v3935 = vld [vmem:[#allocation4 + $0x8] sm:$0xff]
      %v3936 = vld [vmem:[#allocation4 + $0x10] sm:$0xff]
      %v3937 = vld [vmem:[#allocation4 + $0x18] sm:$0xff]
      %v3938 = vld [vmem:[#allocation4 + $0x20] sm:$0xff]
      %v3939 = vld [vmem:[#allocation4 + $0x28] sm:$0xff]
      %v3940 = vld [vmem:[#allocation4 + $0x30] sm:$0xff]
      %v3941 = vld [vmem:[#allocation4 + $0x38] sm:$0xff]
      %v3942 = vld [vmem:[#allocation4 + $0x40] sm:$0xff]
      %3952 = vrot.lane.b32.xlu0 %v3934, 100
      %v3953 = vpop.permute.xlu0 %3952
      %3954 = vrot.lane.b32.xlu0 %v3935, 100
      %v3955 = vpop.permute.xlu0 %3954
      %3956 = vrot.lane.b32.xlu0 %v3936, 100
      %v3957 = vpop.permute.xlu0 %3956
      %3958 = vrot.lane.b32.xlu0 %v3937, 100
      %v3959 = vpop.permute.xlu0 %3958
      %3960 = vrot.lane.b32.xlu0 %v3938, 100
      %v3961 = vpop.permute.xlu0 %3960
      %3962 = vrot.lane.b32.xlu0 %v3939, 100
      %v3963 = vpop.permute.xlu0 %3962
      %3964 = vrot.lane.b32.xlu0 %v3940, 100
      %v3965 = vpop.permute.xlu0 %3964
      %3966 = vrot.lane.b32.xlu0 %v3941, 100
      %v3967 = vpop.permute.xlu0 %3966
      %3968 = vrot.lane.b32.xlu0 %v3942, 100
      %v3969 = vpop.permute.xlu0 %3968
      %vm3970 = vcmask 818176
      %v3971 = vsel %vm3970, %v3953, %v3955
      %v3972 = vsel %vm3970, %v3955, %v3957
      %v3973 = vsel %vm3970, %v3957, %v3959
      %v3974 = vsel %vm3970, %v3959, %v3961
      %v3975 = vsel %vm3970, %v3961, %v3963
      %v3976 = vsel %vm3970, %v3963, %v3965
      %v3977 = vsel %vm3970, %v3965, %v3967
      %v3978 = vsel %vm3970, %v3967, %v3969
      %3987 = vst [vmem:[#allocation2 + $0x100] sm:$0xff] %v3971
      %3988 = vst [vmem:[#allocation2 + $0x108] sm:$0xff] %v3972
      %3989 = vst [vmem:[#allocation2 + $0x110] sm:$0xff] %v3973
      %3990 = vst [vmem:[#allocation2 + $0x118] sm:$0xff] %v3974
      %3991 = vst [vmem:[#allocation2 + $0x120] sm:$0xff] %v3975
      %3992 = vst [vmem:[#allocation2 + $0x128] sm:$0xff] %v3976
      %3993 = vst [vmem:[#allocation2 + $0x130] sm:$0xff] %v3977
      %3994 = vst [vmem:[#allocation2 + $0x138] sm:$0xff] %v3978
      %v3995 = vld [vmem:[#allocation4] sm:$0xff]
      %v3996 = vld [vmem:[#allocation4 + $0x8] sm:$0xff]
      %v3997 = vld [vmem:[#allocation4 + $0x10] sm:$0xff]
      %v3998 = vld [vmem:[#allocation4 + $0x18] sm:$0xff]
      %v3999 = vld [vmem:[#allocation4 + $0x20] sm:$0xff]
      %v4000 = vld [vmem:[#allocation4 + $0x28] sm:$0xff]
      %v4001 = vld [vmem:[#allocation4 + $0x30] sm:$0xff]
      %v4002 = vld [vmem:[#allocation4 + $0x38] sm:$0xff]
      %v4003 = vld [vmem:[#allocation4 + $0x40] sm:$0xff]
      %4013 = vrot.lane.b32.xlu0 %v3995, 99
      %v4014 = vpop.permute.xlu0 %4013
      %4015 = vrot.lane.b32.xlu0 %v3996, 99
      %v4016 = vpop.permute.xlu0 %4015
      %4017 = vrot.lane.b32.xlu0 %v3997, 99
      %v4018 = vpop.permute.xlu0 %4017
      %4019 = vrot.lane.b32.xlu0 %v3998, 99
      %v4020 = vpop.permute.xlu0 %4019
      %4021 = vrot.lane.b32.xlu0 %v3999, 99
      %v4022 = vpop.permute.xlu0 %4021
      %4023 = vrot.lane.b32.xlu0 %v4000, 99
      %v4024 = vpop.permute.xlu0 %4023
      %4025 = vrot.lane.b32.xlu0 %v4001, 99
      %v4026 = vpop.permute.xlu0 %4025
      %4027 = vrot.lane.b32.xlu0 %v4002, 99
      %v4028 = vpop.permute.xlu0 %4027
      %4029 = vrot.lane.b32.xlu0 %v4003, 99
      %v4030 = vpop.permute.xlu0 %4029
      %vm4031 = vcmask 809984
      %v4032 = vsel %vm4031, %v4014, %v4016
      %v4033 = vsel %vm4031, %v4016, %v4018
      %v4034 = vsel %vm4031, %v4018, %v4020
      %v4035 = vsel %vm4031, %v4020, %v4022
      %v4036 = vsel %vm4031, %v4022, %v4024
      %v4037 = vsel %vm4031, %v4024, %v4026
      %v4038 = vsel %vm4031, %v4026, %v4028
      %v4039 = vsel %vm4031, %v4028, %v4030
      %4048 = vst [vmem:[#allocation2 + $0x140] sm:$0xff] %v4032
      %4049 = vst [vmem:[#allocation2 + $0x148] sm:$0xff] %v4033
      %4050 = vst [vmem:[#allocation2 + $0x150] sm:$0xff] %v4034
      %4051 = vst [vmem:[#allocation2 + $0x158] sm:$0xff] %v4035
      %4052 = vst [vmem:[#allocation2 + $0x160] sm:$0xff] %v4036
      %4053 = vst [vmem:[#allocation2 + $0x168] sm:$0xff] %v4037
      %4054 = vst [vmem:[#allocation2 + $0x170] sm:$0xff] %v4038
      %4055 = vst [vmem:[#allocation2 + $0x178] sm:$0xff] %v4039
      %v4056 = vld [vmem:[#allocation4] sm:$0xff]
      %v4057 = vld [vmem:[#allocation4 + $0x8] sm:$0xff]
      %v4058 = vld [vmem:[#allocation4 + $0x10] sm:$0xff]
      %v4059 = vld [vmem:[#allocation4 + $0x18] sm:$0xff]
      %v4060 = vld [vmem:[#allocation4 + $0x20] sm:$0xff]
      %v4061 = vld [vmem:[#allocation4 + $0x28] sm:$0xff]
      %v4062 = vld [vmem:[#allocation4 + $0x30] sm:$0xff]
      %v4063 = vld [vmem:[#allocation4 + $0x38] sm:$0xff]
      %v4064 = vld [vmem:[#allocation4 + $0x40] sm:$0xff]
      %4074 = vrot.lane.b32.xlu0 %v4056, 91
      %v4075 = vpop.permute.xlu0 %4074
      %4076 = vrot.lane.b32.xlu0 %v4057, 91
      %v4077 = vpop.permute.xlu0 %4076
      %4078 = vrot.lane.b32.xlu0 %v4058, 91
      %v4079 = vpop.permute.xlu0 %4078
      %4080 = vrot.lane.b32.xlu0 %v4059, 91
      %v4081 = vpop.permute.xlu0 %4080
      %4082 = vrot.lane.b32.xlu0 %v4060, 91
      %v4083 = vpop.permute.xlu0 %4082
      %4084 = vrot.lane.b32.xlu0 %v4061, 91
      %v4085 = vpop.permute.xlu0 %4084
      %4086 = vrot.lane.b32.xlu0 %v4062, 91
      %v4087 = vpop.permute.xlu0 %4086
      %4088 = vrot.lane.b32.xlu0 %v4063, 91
      %v4089 = vpop.permute.xlu0 %4088
      %4090 = vrot.lane.b32.xlu0 %v4064, 91
      %v4091 = vpop.permute.xlu0 %4090
      %vm4092 = vcmask 744448
      %v4093 = vsel %vm4092, %v4075, %v4077
      %v4094 = vsel %vm4092, %v4077, %v4079
      %v4095 = vsel %vm4092, %v4079, %v4081
      %v4096 = vsel %vm4092, %v4081, %v4083
      %v4097 = vsel %vm4092, %v4083, %v4085
      %v4098 = vsel %vm4092, %v4085, %v4087
      %v4099 = vsel %vm4092, %v4087, %v4089
      %v4100 = vsel %vm4092, %v4089, %v4091
      %4109 = vst [vmem:[#allocation2 + $0x180] sm:$0xff] %v4093
      %4110 = vst [vmem:[#allocation2 + $0x188] sm:$0xff] %v4094
      %4111 = vst [vmem:[#allocation2 + $0x190] sm:$0xff] %v4095
      %4112 = vst [vmem:[#allocation2 + $0x198] sm:$0xff] %v4096
      %4113 = vst [vmem:[#allocation2 + $0x1a0] sm:$0xff] %v4097
      %4114 = vst [vmem:[#allocation2 + $0x1a8] sm:$0xff] %v4098
      %4115 = vst [vmem:[#allocation2 + $0x1b0] sm:$0xff] %v4099
      %4116 = vst [vmem:[#allocation2 + $0x1b8] sm:$0xff] %v4100
      %v4117 = vld [vmem:[#allocation4] sm:$0xff]
      %v4118 = vld [vmem:[#allocation4 + $0x8] sm:$0xff]
      %v4119 = vld [vmem:[#allocation4 + $0x10] sm:$0xff]
      %v4120 = vld [vmem:[#allocation4 + $0x18] sm:$0xff]
      %v4121 = vld [vmem:[#allocation4 + $0x20] sm:$0xff]
      %v4122 = vld [vmem:[#allocation4 + $0x28] sm:$0xff]
      %v4123 = vld [vmem:[#allocation4 + $0x30] sm:$0xff]
      %v4124 = vld [vmem:[#allocation4 + $0x38] sm:$0xff]
      %v4125 = vld [vmem:[#allocation4 + $0x40] sm:$0xff]
      %4135 = vrot.lane.b32.xlu0 %v4117, 90
      %v4136 = vpop.permute.xlu0 %4135
      %4137 = vrot.lane.b32.xlu0 %v4118, 90
      %v4138 = vpop.permute.xlu0 %4137
      %4139 = vrot.lane.b32.xlu0 %v4119, 90
      %v4140 = vpop.permute.xlu0 %4139
      %4141 = vrot.lane.b32.xlu0 %v4120, 90
      %v4142 = vpop.permute.xlu0 %4141
      %4143 = vrot.lane.b32.xlu0 %v4121, 90
      %v4144 = vpop.permute.xlu0 %4143
      %4145 = vrot.lane.b32.xlu0 %v4122, 90
      %v4146 = vpop.permute.xlu0 %4145
      %4147 = vrot.lane.b32.xlu0 %v4123, 90
      %v4148 = vpop.permute.xlu0 %4147
      %4149 = vrot.lane.b32.xlu0 %v4124, 90
      %v4150 = vpop.permute.xlu0 %4149
      %4151 = vrot.lane.b32.xlu0 %v4125, 90
      %v4152 = vpop.permute.xlu0 %4151
      %vm4153 = vcmask 736256
      %v4154 = vsel %vm4153, %v4136, %v4138
      %v4155 = vsel %vm4153, %v4138, %v4140
      %v4156 = vsel %vm4153, %v4140, %v4142
      %v4157 = vsel %vm4153, %v4142, %v4144
      %v4158 = vsel %vm4153, %v4144, %v4146
      %v4159 = vsel %vm4153, %v4146, %v4148
      %v4160 = vsel %vm4153, %v4148, %v4150
      %v4161 = vsel %vm4153, %v4150, %v4152
      %4170 = vst [vmem:[#allocation2 + $0x1c0] sm:$0xff] %v4154
      %4171 = vst [vmem:[#allocation2 + $0x1c8] sm:$0xff] %v4155
      %4172 = vst [vmem:[#allocation2 + $0x1d0] sm:$0xff] %v4156
      %4173 = vst [vmem:[#allocation2 + $0x1d8] sm:$0xff] %v4157
      %4174 = vst [vmem:[#allocation2 + $0x1e0] sm:$0xff] %v4158
      %4175 = vst [vmem:[#allocation2 + $0x1e8] sm:$0xff] %v4159
      %4176 = vst [vmem:[#allocation2 + $0x1f0] sm:$0xff] %v4160
      %4177 = vst [vmem:[#allocation2 + $0x1f8] sm:$0xff] %v4161
      %v4178 = vld [vmem:[#allocation4] sm:$0xff]
      %v4179 = vld [vmem:[#allocation4 + $0x8] sm:$0xff]
      %v4180 = vld [vmem:[#allocation4 + $0x10] sm:$0xff]
      %v4181 = vld [vmem:[#allocation4 + $0x18] sm:$0xff]
      %v4182 = vld [vmem:[#allocation4 + $0x20] sm:$0xff]
      %v4183 = vld [vmem:[#allocation4 + $0x28] sm:$0xff]
      %v4184 = vld [vmem:[#allocation4 + $0x30] sm:$0xff]
      %v4185 = vld [vmem:[#allocation4 + $0x38] sm:$0xff]
      %v4186 = vld [vmem:[#allocation4 + $0x40] sm:$0xff]
      %4196 = vrot.lane.b32.xlu0 %v4178, 89
      %v4197 = vpop.permute.xlu0 %4196
      %4198 = vrot.lane.b32.xlu0 %v4179, 89
      %v4199 = vpop.permute.xlu0 %4198
      %4200 = vrot.lane.b32.xlu0 %v4180, 89
      %v4201 = vpop.permute.xlu0 %4200
      %4202 = vrot.lane.b32.xlu0 %v4181, 89
      %v4203 = vpop.permute.xlu0 %4202
      %4204 = vrot.lane.b32.xlu0 %v4182, 89
      %v4205 = vpop.permute.xlu0 %4204
      %4206 = vrot.lane.b32.xlu0 %v4183, 89
      %v4207 = vpop.permute.xlu0 %4206
      %4208 = vrot.lane.b32.xlu0 %v4184, 89
      %v4209 = vpop.permute.xlu0 %4208
      %4210 = vrot.lane.b32.xlu0 %v4185, 89
      %v4211 = vpop.permute.xlu0 %4210
      %4212 = vrot.lane.b32.xlu0 %v4186, 89
      %v4213 = vpop.permute.xlu0 %4212
      %vm4214 = vcmask 728064
      %v4215 = vsel %vm4214, %v4197, %v4199
      %v4216 = vsel %vm4214, %v4199, %v4201
      %v4217 = vsel %vm4214, %v4201, %v4203
      %v4218 = vsel %vm4214, %v4203, %v4205
      %v4219 = vsel %vm4214, %v4205, %v4207
      %v4220 = vsel %vm4214, %v4207, %v4209
      %v4221 = vsel %vm4214, %v4209, %v4211
      %v4222 = vsel %vm4214, %v4211, %v4213
      %4231 = vst [vmem:[#allocation2 + $0x200] sm:$0xff] %v4215
      %4232 = vst [vmem:[#allocation2 + $0x208] sm:$0xff] %v4216
      %4233 = vst [vmem:[#allocation2 + $0x210] sm:$0xff] %v4217
      %4234 = vst [vmem:[#allocation2 + $0x218] sm:$0xff] %v4218
      %4235 = vst [vmem:[#allocation2 + $0x220] sm:$0xff] %v4219
      %4236 = vst [vmem:[#allocation2 + $0x228] sm:$0xff] %v4220
      %4237 = vst [vmem:[#allocation2 + $0x230] sm:$0xff] %v4221
      %4238 = vst [vmem:[#allocation2 + $0x238] sm:$0xff] %v4222
      %v4239 = vld [vmem:[#allocation4] sm:$0xff]
      %v4240 = vld [vmem:[#allocation4 + $0x8] sm:$0xff]
      %v4241 = vld [vmem:[#allocation4 + $0x10] sm:$0xff]
      %v4242 = vld [vmem:[#allocation4 + $0x18] sm:$0xff]
      %v4243 = vld [vmem:[#allocation4 + $0x20] sm:$0xff]
      %v4244 = vld [vmem:[#allocation4 + $0x28] sm:$0xff]
      %v4245 = vld [vmem:[#allocation4 + $0x30] sm:$0xff]
      %v4246 = vld [vmem:[#allocation4 + $0x38] sm:$0xff]
      %v4247 = vld [vmem:[#allocation4 + $0x40] sm:$0xff]
      %4257 = vrot.lane.b32.xlu0 %v4239, 11
      %v4258 = vpop.permute.xlu0 %4257
      %4259 = vrot.lane.b32.xlu0 %v4240, 11
      %v4260 = vpop.permute.xlu0 %4259
      %4261 = vrot.lane.b32.xlu0 %v4241, 11
      %v4262 = vpop.permute.xlu0 %4261
      %4263 = vrot.lane.b32.xlu0 %v4242, 11
      %v4264 = vpop.permute.xlu0 %4263
      %4265 = vrot.lane.b32.xlu0 %v4243, 11
      %v4266 = vpop.permute.xlu0 %4265
      %4267 = vrot.lane.b32.xlu0 %v4244, 11
      %v4268 = vpop.permute.xlu0 %4267
      %4269 = vrot.lane.b32.xlu0 %v4245, 11
      %v4270 = vpop.permute.xlu0 %4269
      %4271 = vrot.lane.b32.xlu0 %v4246, 11
      %v4272 = vpop.permute.xlu0 %4271
      %4273 = vrot.lane.b32.xlu0 %v4247, 11
      %v4274 = vpop.permute.xlu0 %4273
      %vm4275 = vcmask 89088
      %v4276 = vsel %vm4275, %v4258, %v4260
      %v4277 = vsel %vm4275, %v4260, %v4262
      %v4278 = vsel %vm4275, %v4262, %v4264
      %v4279 = vsel %vm4275, %v4264, %v4266
      %v4280 = vsel %vm4275, %v4266, %v4268
      %v4281 = vsel %vm4275, %v4268, %v4270
      %v4282 = vsel %vm4275, %v4270, %v4272
      %v4283 = vsel %vm4275, %v4272, %v4274
      %4292 = vst [vmem:[#allocation2 + $0x240] sm:$0xff] %v4276
      %4293 = vst [vmem:[#allocation2 + $0x248] sm:$0xff] %v4277
      %4294 = vst [vmem:[#allocation2 + $0x250] sm:$0xff] %v4278
      %4295 = vst [vmem:[#allocation2 + $0x258] sm:$0xff] %v4279
      %4296 = vst [vmem:[#allocation2 + $0x260] sm:$0xff] %v4280
      %4297 = vst [vmem:[#allocation2 + $0x268] sm:$0xff] %v4281
      %4298 = vst [vmem:[#allocation2 + $0x270] sm:$0xff] %v4282
      %4299 = vst [vmem:[#allocation2 + $0x278] sm:$0xff] %v4283
      %v4300 = vld [vmem:[#allocation4] sm:$0xff]
      %v4301 = vld [vmem:[#allocation4 + $0x8] sm:$0xff]
      %v4302 = vld [vmem:[#allocation4 + $0x10] sm:$0xff]
      %v4303 = vld [vmem:[#allocation4 + $0x18] sm:$0xff]
      %v4304 = vld [vmem:[#allocation4 + $0x20] sm:$0xff]
      %v4305 = vld [vmem:[#allocation4 + $0x28] sm:$0xff]
      %v4306 = vld [vmem:[#allocation4 + $0x30] sm:$0xff]
      %v4307 = vld [vmem:[#allocation4 + $0x38] sm:$0xff]
      %v4308 = vld [vmem:[#allocation4 + $0x40] sm:$0xff]
      %4318 = vrot.lane.b32.xlu0 %v4300, 10
      %v4319 = vpop.permute.xlu0 %4318
      %4320 = vrot.lane.b32.xlu0 %v4301, 10
      %v4321 = vpop.permute.xlu0 %4320
      %4322 = vrot.lane.b32.xlu0 %v4302, 10
      %v4323 = vpop.permute.xlu0 %4322
      %4324 = vrot.lane.b32.xlu0 %v4303, 10
      %v4325 = vpop.permute.xlu0 %4324
      %4326 = vrot.lane.b32.xlu0 %v4304, 10
      %v4327 = vpop.permute.xlu0 %4326
      %4328 = vrot.lane.b32.xlu0 %v4305, 10
      %v4329 = vpop.permute.xlu0 %4328
      %4330 = vrot.lane.b32.xlu0 %v4306, 10
      %v4331 = vpop.permute.xlu0 %4330
      %4332 = vrot.lane.b32.xlu0 %v4307, 10
      %v4333 = vpop.permute.xlu0 %4332
      %4334 = vrot.lane.b32.xlu0 %v4308, 10
      %v4335 = vpop.permute.xlu0 %4334
      %vm4336 = vcmask 80896
      %v4337 = vsel %vm4336, %v4319, %v4321
      %v4338 = vsel %vm4336, %v4321, %v4323
      %v4339 = vsel %vm4336, %v4323, %v4325
      %v4340 = vsel %vm4336, %v4325, %v4327
      %v4341 = vsel %vm4336, %v4327, %v4329
      %v4342 = vsel %vm4336, %v4329, %v4331
      %v4343 = vsel %vm4336, %v4331, %v4333
      %v4344 = vsel %vm4336, %v4333, %v4335
      %4353 = vst [vmem:[#allocation2 + $0x280] sm:$0xff] %v4337
      %4354 = vst [vmem:[#allocation2 + $0x288] sm:$0xff] %v4338
      %4355 = vst [vmem:[#allocation2 + $0x290] sm:$0xff] %v4339
      %4356 = vst [vmem:[#allocation2 + $0x298] sm:$0xff] %v4340
      %4357 = vst [vmem:[#allocation2 + $0x2a0] sm:$0xff] %v4341
      %4358 = vst [vmem:[#allocation2 + $0x2a8] sm:$0xff] %v4342
      %4359 = vst [vmem:[#allocation2 + $0x2b0] sm:$0xff] %v4343
      %4360 = vst [vmem:[#allocation2 + $0x2b8] sm:$0xff] %v4344
      %v4361 = vld [vmem:[#allocation4] sm:$0xff]
      %v4362 = vld [vmem:[#allocation4 + $0x8] sm:$0xff]
      %v4363 = vld [vmem:[#allocation4 + $0x10] sm:$0xff]
      %v4364 = vld [vmem:[#allocation4 + $0x18] sm:$0xff]
      %v4365 = vld [vmem:[#allocation4 + $0x20] sm:$0xff]
      %v4366 = vld [vmem:[#allocation4 + $0x28] sm:$0xff]
      %v4367 = vld [vmem:[#allocation4 + $0x30] sm:$0xff]
      %v4368 = vld [vmem:[#allocation4 + $0x38] sm:$0xff]
      %v4369 = vld [vmem:[#allocation4 + $0x40] sm:$0xff]
      %4379 = vrot.lane.b32.xlu0 %v4361, 9
      %v4380 = vpop.permute.xlu0 %4379
      %4381 = vrot.lane.b32.xlu0 %v4362, 9
      %v4382 = vpop.permute.xlu0 %4381
      %4383 = vrot.lane.b32.xlu0 %v4363, 9
      %v4384 = vpop.permute.xlu0 %4383
      %4385 = vrot.lane.b32.xlu0 %v4364, 9
      %v4386 = vpop.permute.xlu0 %4385
      %4387 = vrot.lane.b32.xlu0 %v4365, 9
      %v4388 = vpop.permute.xlu0 %4387
      %4389 = vrot.lane.b32.xlu0 %v4366, 9
      %v4390 = vpop.permute.xlu0 %4389
      %4391 = vrot.lane.b32.xlu0 %v4367, 9
      %v4392 = vpop.permute.xlu0 %4391
      %4393 = vrot.lane.b32.xlu0 %v4368, 9
      %v4394 = vpop.permute.xlu0 %4393
      %4395 = vrot.lane.b32.xlu0 %v4369, 9
      %v4396 = vpop.permute.xlu0 %4395
      %vm4397 = vcmask 72704
      %v4398 = vsel %vm4397, %v4380, %v4382
      %v4399 = vsel %vm4397, %v4382, %v4384
      %v4400 = vsel %vm4397, %v4384, %v4386
      %v4401 = vsel %vm4397, %v4386, %v4388
      %v4402 = vsel %vm4397, %v4388, %v4390
      %v4403 = vsel %vm4397, %v4390, %v4392
      %v4404 = vsel %vm4397, %v4392, %v4394
      %v4405 = vsel %vm4397, %v4394, %v4396
      %4414 = vst [vmem:[#allocation2 + $0x2c0] sm:$0xff] %v4398
      %4415 = vst [vmem:[#allocation2 + $0x2c8] sm:$0xff] %v4399
      %4416 = vst [vmem:[#allocation2 + $0x2d0] sm:$0xff] %v4400
      %4417 = vst [vmem:[#allocation2 + $0x2d8] sm:$0xff] %v4401
      %4418 = vst [vmem:[#allocation2 + $0x2e0] sm:$0xff] %v4402
      %4419 = vst [vmem:[#allocation2 + $0x2e8] sm:$0xff] %v4403
      %4420 = vst [vmem:[#allocation2 + $0x2f0] sm:$0xff] %v4404
      %4421 = vst [vmem:[#allocation2 + $0x2f8] sm:$0xff] %v4405
      %v4422 = vld [vmem:[#allocation4] sm:$0xff]
      %v4423 = vld [vmem:[#allocation4 + $0x8] sm:$0xff]
      %v4424 = vld [vmem:[#allocation4 + $0x10] sm:$0xff]
      %v4425 = vld [vmem:[#allocation4 + $0x18] sm:$0xff]
      %v4426 = vld [vmem:[#allocation4 + $0x20] sm:$0xff]
      %v4427 = vld [vmem:[#allocation4 + $0x28] sm:$0xff]
      %v4428 = vld [vmem:[#allocation4 + $0x30] sm:$0xff]
      %v4429 = vld [vmem:[#allocation4 + $0x38] sm:$0xff]
      %v4430 = vld [vmem:[#allocation4 + $0x40] sm:$0xff]
      %4440 = vrot.lane.b32.xlu0 %v4422, 1
      %v4441 = vpop.permute.xlu0 %4440
      %4442 = vrot.lane.b32.xlu0 %v4423, 1
      %v4443 = vpop.permute.xlu0 %4442
      %4444 = vrot.lane.b32.xlu0 %v4424, 1
      %v4445 = vpop.permute.xlu0 %4444
      %4446 = vrot.lane.b32.xlu0 %v4425, 1
      %v4447 = vpop.permute.xlu0 %4446
      %4448 = vrot.lane.b32.xlu0 %v4426, 1
      %v4449 = vpop.permute.xlu0 %4448
      %4450 = vrot.lane.b32.xlu0 %v4427, 1
      %v4451 = vpop.permute.xlu0 %4450
      %4452 = vrot.lane.b32.xlu0 %v4428, 1
      %v4453 = vpop.permute.xlu0 %4452
      %4454 = vrot.lane.b32.xlu0 %v4429, 1
      %v4455 = vpop.permute.xlu0 %4454
      %4456 = vrot.lane.b32.xlu0 %v4430, 1
      %v4457 = vpop.permute.xlu0 %4456
      %vm4458 = vcmask 7168
      %v4459 = vsel %vm4458, %v4441, %v4443
      %v4460 = vsel %vm4458, %v4443, %v4445
      %v4461 = vsel %vm4458, %v4445, %v4447
      %v4462 = vsel %vm4458, %v4447, %v4449
      %v4463 = vsel %vm4458, %v4449, %v4451
      %v4464 = vsel %vm4458, %v4451, %v4453
      %v4465 = vsel %vm4458, %v4453, %v4455
      %v4466 = vsel %vm4458, %v4455, %v4457
      %4475 = vst [vmem:[#allocation2 + $0x300] sm:$0xff] %v4459
      %4476 = vst [vmem:[#allocation2 + $0x308] sm:$0xff] %v4460
      %4477 = vst [vmem:[#allocation2 + $0x310] sm:$0xff] %v4461
      %4478 = vst [vmem:[#allocation2 + $0x318] sm:$0xff] %v4462
      %4479 = vst [vmem:[#allocation2 + $0x320] sm:$0xff] %v4463
      %4480 = vst [vmem:[#allocation2 + $0x328] sm:$0xff] %v4464
      %4481 = vst [vmem:[#allocation2 + $0x330] sm:$0xff] %v4465
      %4482 = vst [vmem:[#allocation2 + $0x338] sm:$0xff] %v4466
      %v4483 = vld [vmem:[#allocation4 + $0x8] sm:$0xff]
      %v4484 = vld [vmem:[#allocation4 + $0x10] sm:$0xff]
      %v4485 = vld [vmem:[#allocation4 + $0x18] sm:$0xff]
      %v4486 = vld [vmem:[#allocation4 + $0x20] sm:$0xff]
      %v4487 = vld [vmem:[#allocation4 + $0x28] sm:$0xff]
      %v4488 = vld [vmem:[#allocation4 + $0x30] sm:$0xff]
      %v4489 = vld [vmem:[#allocation4 + $0x38] sm:$0xff]
      %v4490 = vld [vmem:[#allocation4 + $0x40] sm:$0xff]
      %4491 = vst [vmem:[#allocation2 + $0x340] sm:$0xff] %v4483
      %4492 = vst [vmem:[#allocation2 + $0x348] sm:$0xff] %v4484
      %4493 = vst [vmem:[#allocation2 + $0x350] sm:$0xff] %v4485
      %4494 = vst [vmem:[#allocation2 + $0x358] sm:$0xff] %v4486
      %4495 = vst [vmem:[#allocation2 + $0x360] sm:$0xff] %v4487
      %4496 = vst [vmem:[#allocation2 + $0x368] sm:$0xff] %v4488
      %4497 = vst [vmem:[#allocation2 + $0x370] sm:$0xff] %v4489
      %4498 = vst [vmem:[#allocation2 + $0x378] sm:$0xff] %v4490
      %v4499 = vld [vmem:[#allocation4 + $0x8] sm:$0xff]
      %v4500 = vld [vmem:[#allocation4 + $0x10] sm:$0xff]
      %v4501 = vld [vmem:[#allocation4 + $0x18] sm:$0xff]
      %v4502 = vld [vmem:[#allocation4 + $0x20] sm:$0xff]
      %v4503 = vld [vmem:[#allocation4 + $0x28] sm:$0xff]
      %v4504 = vld [vmem:[#allocation4 + $0x30] sm:$0xff]
      %v4505 = vld [vmem:[#allocation4 + $0x38] sm:$0xff]
      %v4506 = vld [vmem:[#allocation4 + $0x40] sm:$0xff]
      %v4507 = vld [vmem:[#allocation4 + $0x48] sm:$0xff]
      %4517 = vrot.lane.b32.xlu0 %v4499, 127
      %v4518 = vpop.permute.xlu0 %4517
      %4519 = vrot.lane.b32.xlu0 %v4500, 127
      %v4520 = vpop.permute.xlu0 %4519
      %4521 = vrot.lane.b32.xlu0 %v4501, 127
      %v4522 = vpop.permute.xlu0 %4521
      %4523 = vrot.lane.b32.xlu0 %v4502, 127
      %v4524 = vpop.permute.xlu0 %4523
      %4525 = vrot.lane.b32.xlu0 %v4503, 127
      %v4526 = vpop.permute.xlu0 %4525
      %4527 = vrot.lane.b32.xlu0 %v4504, 127
      %v4528 = vpop.permute.xlu0 %4527
      %4529 = vrot.lane.b32.xlu0 %v4505, 127
      %v4530 = vpop.permute.xlu0 %4529
      %4531 = vrot.lane.b32.xlu0 %v4506, 127
      %v4532 = vpop.permute.xlu0 %4531
      %4533 = vrot.lane.b32.xlu0 %v4507, 127
      %v4534 = vpop.permute.xlu0 %4533
      %v4535 = vsel %vm509, %v4518, %v4520
      %v4536 = vsel %vm509, %v4520, %v4522
      %v4537 = vsel %vm509, %v4522, %v4524
      %v4538 = vsel %vm509, %v4524, %v4526
      %v4539 = vsel %vm509, %v4526, %v4528
      %v4540 = vsel %vm509, %v4528, %v4530
      %v4541 = vsel %vm509, %v4530, %v4532
      %v4542 = vsel %vm509, %v4532, %v4534
      %4551 = vst [vmem:[#allocation2 + $0x380] sm:$0xff] %v4535
      %4552 = vst [vmem:[#allocation2 + $0x388] sm:$0xff] %v4536
      %4553 = vst [vmem:[#allocation2 + $0x390] sm:$0xff] %v4537
      %4554 = vst [vmem:[#allocation2 + $0x398] sm:$0xff] %v4538
      %4555 = vst [vmem:[#allocation2 + $0x3a0] sm:$0xff] %v4539
      %4556 = vst [vmem:[#allocation2 + $0x3a8] sm:$0xff] %v4540
      %4557 = vst [vmem:[#allocation2 + $0x3b0] sm:$0xff] %v4541
      %4558 = vst [vmem:[#allocation2 + $0x3b8] sm:$0xff] %v4542
      %v4559 = vld [vmem:[#allocation4 + $0x8] sm:$0xff]
      %v4560 = vld [vmem:[#allocation4 + $0x10] sm:$0xff]
      %v4561 = vld [vmem:[#allocation4 + $0x18] sm:$0xff]
      %v4562 = vld [vmem:[#allocation4 + $0x20] sm:$0xff]
      %v4563 = vld [vmem:[#allocation4 + $0x28] sm:$0xff]
      %v4564 = vld [vmem:[#allocation4 + $0x30] sm:$0xff]
      %v4565 = vld [vmem:[#allocation4 + $0x38] sm:$0xff]
      %v4566 = vld [vmem:[#allocation4 + $0x40] sm:$0xff]
      %v4567 = vld [vmem:[#allocation4 + $0x48] sm:$0xff]
      %4577 = vrot.lane.b32.xlu0 %v4559, 119
      %v4578 = vpop.permute.xlu0 %4577
      %4579 = vrot.lane.b32.xlu0 %v4560, 119
      %v4580 = vpop.permute.xlu0 %4579
      %4581 = vrot.lane.b32.xlu0 %v4561, 119
      %v4582 = vpop.permute.xlu0 %4581
      %4583 = vrot.lane.b32.xlu0 %v4562, 119
      %v4584 = vpop.permute.xlu0 %4583
      %4585 = vrot.lane.b32.xlu0 %v4563, 119
      %v4586 = vpop.permute.xlu0 %4585
      %4587 = vrot.lane.b32.xlu0 %v4564, 119
      %v4588 = vpop.permute.xlu0 %4587
      %4589 = vrot.lane.b32.xlu0 %v4565, 119
      %v4590 = vpop.permute.xlu0 %4589
      %4591 = vrot.lane.b32.xlu0 %v4566, 119
      %v4592 = vpop.permute.xlu0 %4591
      %4593 = vrot.lane.b32.xlu0 %v4567, 119
      %v4594 = vpop.permute.xlu0 %4593
      %vm4595 = vcmask 973824
      %v4596 = vsel %vm4595, %v4578, %v4580
      %v4597 = vsel %vm4595, %v4580, %v4582
      %v4598 = vsel %vm4595, %v4582, %v4584
      %v4599 = vsel %vm4595, %v4584, %v4586
      %v4600 = vsel %vm4595, %v4586, %v4588
      %v4601 = vsel %vm4595, %v4588, %v4590
      %v4602 = vsel %vm4595, %v4590, %v4592
      %v4603 = vsel %vm4595, %v4592, %v4594
      %4612 = vst [vmem:[#allocation2 + $0x3c0] sm:$0xff] %v4596
      %4613 = vst [vmem:[#allocation2 + $0x3c8] sm:$0xff] %v4597
      %4614 = vst [vmem:[#allocation2 + $0x3d0] sm:$0xff] %v4598
      %4615 = vst [vmem:[#allocation2 + $0x3d8] sm:$0xff] %v4599
      %4616 = vst [vmem:[#allocation2 + $0x3e0] sm:$0xff] %v4600
      %4617 = vst [vmem:[#allocation2 + $0x3e8] sm:$0xff] %v4601
      %4618 = vst [vmem:[#allocation2 + $0x3f0] sm:$0xff] %v4602
      %4619 = vst [vmem:[#allocation2 + $0x3f8] sm:$0xff] %v4603
      %v4620 = vld [vmem:[#allocation4 + $0x8] sm:$0xff]
      %v4621 = vld [vmem:[#allocation4 + $0x10] sm:$0xff]
      %v4622 = vld [vmem:[#allocation4 + $0x18] sm:$0xff]
      %v4623 = vld [vmem:[#allocation4 + $0x20] sm:$0xff]
      %v4624 = vld [vmem:[#allocation4 + $0x28] sm:$0xff]
      %v4625 = vld [vmem:[#allocation4 + $0x30] sm:$0xff]
      %v4626 = vld [vmem:[#allocation4 + $0x38] sm:$0xff]
      %v4627 = vld [vmem:[#allocation4 + $0x40] sm:$0xff]
      %v4628 = vld [vmem:[#allocation4 + $0x48] sm:$0xff]
      %4638 = vrot.lane.b32.xlu0 %v4620, 118
      %v4639 = vpop.permute.xlu0 %4638
      %4640 = vrot.lane.b32.xlu0 %v4621, 118
      %v4641 = vpop.permute.xlu0 %4640
      %4642 = vrot.lane.b32.xlu0 %v4622, 118
      %v4643 = vpop.permute.xlu0 %4642
      %4644 = vrot.lane.b32.xlu0 %v4623, 118
      %v4645 = vpop.permute.xlu0 %4644
      %4646 = vrot.lane.b32.xlu0 %v4624, 118
      %v4647 = vpop.permute.xlu0 %4646
      %4648 = vrot.lane.b32.xlu0 %v4625, 118
      %v4649 = vpop.permute.xlu0 %4648
      %4650 = vrot.lane.b32.xlu0 %v4626, 118
      %v4651 = vpop.permute.xlu0 %4650
      %4652 = vrot.lane.b32.xlu0 %v4627, 118
      %v4653 = vpop.permute.xlu0 %4652
      %4654 = vrot.lane.b32.xlu0 %v4628, 118
      %v4655 = vpop.permute.xlu0 %4654
      %v4656 = vsel %vm689, %v4639, %v4641
      %v4657 = vsel %vm689, %v4641, %v4643
      %v4658 = vsel %vm689, %v4643, %v4645
      %v4659 = vsel %vm689, %v4645, %v4647
      %v4660 = vsel %vm689, %v4647, %v4649
      %v4661 = vsel %vm689, %v4649, %v4651
      %v4662 = vsel %vm689, %v4651, %v4653
      %v4663 = vsel %vm689, %v4653, %v4655
      %4672 = vst [vmem:[#allocation2 + $0x400] sm:$0xff] %v4656
      %4673 = vst [vmem:[#allocation2 + $0x408] sm:$0xff] %v4657
      %4674 = vst [vmem:[#allocation2 + $0x410] sm:$0xff] %v4658
      %4675 = vst [vmem:[#allocation2 + $0x418] sm:$0xff] %v4659
      %4676 = vst [vmem:[#allocation2 + $0x420] sm:$0xff] %v4660
      %4677 = vst [vmem:[#allocation2 + $0x428] sm:$0xff] %v4661
      %4678 = vst [vmem:[#allocation2 + $0x430] sm:$0xff] %v4662
      %4679 = vst [vmem:[#allocation2 + $0x438] sm:$0xff] %v4663
      %v4680 = vld [vmem:[#allocation4 + $0x8] sm:$0xff]
      %v4681 = vld [vmem:[#allocation4 + $0x10] sm:$0xff]
      %v4682 = vld [vmem:[#allocation4 + $0x18] sm:$0xff]
      %v4683 = vld [vmem:[#allocation4 + $0x20] sm:$0xff]
      %v4684 = vld [vmem:[#allocation4 + $0x28] sm:$0xff]
      %v4685 = vld [vmem:[#allocation4 + $0x30] sm:$0xff]
      %v4686 = vld [vmem:[#allocation4 + $0x38] sm:$0xff]
      %v4687 = vld [vmem:[#allocation4 + $0x40] sm:$0xff]
      %v4688 = vld [vmem:[#allocation4 + $0x48] sm:$0xff]
      %4698 = vrot.lane.b32.xlu0 %v4680, 117
      %v4699 = vpop.permute.xlu0 %4698
      %4700 = vrot.lane.b32.xlu0 %v4681, 117
      %v4701 = vpop.permute.xlu0 %4700
      %4702 = vrot.lane.b32.xlu0 %v4682, 117
      %v4703 = vpop.permute.xlu0 %4702
      %4704 = vrot.lane.b32.xlu0 %v4683, 117
      %v4705 = vpop.permute.xlu0 %4704
      %4706 = vrot.lane.b32.xlu0 %v4684, 117
      %v4707 = vpop.permute.xlu0 %4706
      %4708 = vrot.lane.b32.xlu0 %v4685, 117
      %v4709 = vpop.permute.xlu0 %4708
      %4710 = vrot.lane.b32.xlu0 %v4686, 117
      %v4711 = vpop.permute.xlu0 %4710
      %4712 = vrot.lane.b32.xlu0 %v4687, 117
      %v4713 = vpop.permute.xlu0 %4712
      %4714 = vrot.lane.b32.xlu0 %v4688, 117
      %v4715 = vpop.permute.xlu0 %4714
      %v4716 = vsel %vm779, %v4699, %v4701
      %v4717 = vsel %vm779, %v4701, %v4703
      %v4718 = vsel %vm779, %v4703, %v4705
      %v4719 = vsel %vm779, %v4705, %v4707
      %v4720 = vsel %vm779, %v4707, %v4709
      %v4721 = vsel %vm779, %v4709, %v4711
      %v4722 = vsel %vm779, %v4711, %v4713
      %v4723 = vsel %vm779, %v4713, %v4715
      %4732 = vst [vmem:[#allocation2 + $0x440] sm:$0xff] %v4716
      %4733 = vst [vmem:[#allocation2 + $0x448] sm:$0xff] %v4717
      %4734 = vst [vmem:[#allocation2 + $0x450] sm:$0xff] %v4718
      %4735 = vst [vmem:[#allocation2 + $0x458] sm:$0xff] %v4719
      %4736 = vst [vmem:[#allocation2 + $0x460] sm:$0xff] %v4720
      %4737 = vst [vmem:[#allocation2 + $0x468] sm:$0xff] %v4721
      %4738 = vst [vmem:[#allocation2 + $0x470] sm:$0xff] %v4722
      %4739 = vst [vmem:[#allocation2 + $0x478] sm:$0xff] %v4723
      %v4740 = vld [vmem:[#allocation4 + $0x8] sm:$0xff]
      %v4741 = vld [vmem:[#allocation4 + $0x10] sm:$0xff]
      %v4742 = vld [vmem:[#allocation4 + $0x18] sm:$0xff]
      %v4743 = vld [vmem:[#allocation4 + $0x20] sm:$0xff]
      %v4744 = vld [vmem:[#allocation4 + $0x28] sm:$0xff]
      %v4745 = vld [vmem:[#allocation4 + $0x30] sm:$0xff]
      %v4746 = vld [vmem:[#allocation4 + $0x38] sm:$0xff]
      %v4747 = vld [vmem:[#allocation4 + $0x40] sm:$0xff]
      %v4748 = vld [vmem:[#allocation4 + $0x48] sm:$0xff]
      %4758 = vrot.lane.b32.xlu0 %v4740, 39
      %v4759 = vpop.permute.xlu0 %4758
      %4760 = vrot.lane.b32.xlu0 %v4741, 39
      %v4761 = vpop.permute.xlu0 %4760
      %4762 = vrot.lane.b32.xlu0 %v4742, 39
      %v4763 = vpop.permute.xlu0 %4762
      %4764 = vrot.lane.b32.xlu0 %v4743, 39
      %v4765 = vpop.permute.xlu0 %4764
      %4766 = vrot.lane.b32.xlu0 %v4744, 39
      %v4767 = vpop.permute.xlu0 %4766
      %4768 = vrot.lane.b32.xlu0 %v4745, 39
      %v4769 = vpop.permute.xlu0 %4768
      %4770 = vrot.lane.b32.xlu0 %v4746, 39
      %v4771 = vpop.permute.xlu0 %4770
      %4772 = vrot.lane.b32.xlu0 %v4747, 39
      %v4773 = vpop.permute.xlu0 %4772
      %4774 = vrot.lane.b32.xlu0 %v4748, 39
      %v4775 = vpop.permute.xlu0 %4774
      %vm4776 = vcmask 318464
      %v4777 = vsel %vm4776, %v4759, %v4761
      %v4778 = vsel %vm4776, %v4761, %v4763
      %v4779 = vsel %vm4776, %v4763, %v4765
      %v4780 = vsel %vm4776, %v4765, %v4767
      %v4781 = vsel %vm4776, %v4767, %v4769
      %v4782 = vsel %vm4776, %v4769, %v4771
      %v4783 = vsel %vm4776, %v4771, %v4773
      %v4784 = vsel %vm4776, %v4773, %v4775
      %4793 = vst [vmem:[#allocation2 + $0x480] sm:$0xff] %v4777
      %4794 = vst [vmem:[#allocation2 + $0x488] sm:$0xff] %v4778
      %4795 = vst [vmem:[#allocation2 + $0x490] sm:$0xff] %v4779
      %4796 = vst [vmem:[#allocation2 + $0x498] sm:$0xff] %v4780
      %4797 = vst [vmem:[#allocation2 + $0x4a0] sm:$0xff] %v4781
      %4798 = vst [vmem:[#allocation2 + $0x4a8] sm:$0xff] %v4782
      %4799 = vst [vmem:[#allocation2 + $0x4b0] sm:$0xff] %v4783
      %4800 = vst [vmem:[#allocation2 + $0x4b8] sm:$0xff] %v4784
      %v4801 = vld [vmem:[#allocation4 + $0x8] sm:$0xff]
      %v4802 = vld [vmem:[#allocation4 + $0x10] sm:$0xff]
      %v4803 = vld [vmem:[#allocation4 + $0x18] sm:$0xff]
      %v4804 = vld [vmem:[#allocation4 + $0x20] sm:$0xff]
      %v4805 = vld [vmem:[#allocation4 + $0x28] sm:$0xff]
      %v4806 = vld [vmem:[#allocation4 + $0x30] sm:$0xff]
      %v4807 = vld [vmem:[#allocation4 + $0x38] sm:$0xff]
      %v4808 = vld [vmem:[#allocation4 + $0x40] sm:$0xff]
      %v4809 = vld [vmem:[#allocation4 + $0x48] sm:$0xff]
      %4819 = vrot.lane.b32.xlu0 %v4801, 38
      %v4820 = vpop.permute.xlu0 %4819
      %4821 = vrot.lane.b32.xlu0 %v4802, 38
      %v4822 = vpop.permute.xlu0 %4821
      %4823 = vrot.lane.b32.xlu0 %v4803, 38
      %v4824 = vpop.permute.xlu0 %4823
      %4825 = vrot.lane.b32.xlu0 %v4804, 38
      %v4826 = vpop.permute.xlu0 %4825
      %4827 = vrot.lane.b32.xlu0 %v4805, 38
      %v4828 = vpop.permute.xlu0 %4827
      %4829 = vrot.lane.b32.xlu0 %v4806, 38
      %v4830 = vpop.permute.xlu0 %4829
      %4831 = vrot.lane.b32.xlu0 %v4807, 38
      %v4832 = vpop.permute.xlu0 %4831
      %4833 = vrot.lane.b32.xlu0 %v4808, 38
      %v4834 = vpop.permute.xlu0 %4833
      %4835 = vrot.lane.b32.xlu0 %v4809, 38
      %v4836 = vpop.permute.xlu0 %4835
      %vm4837 = vcmask 310272
      %v4838 = vsel %vm4837, %v4820, %v4822
      %v4839 = vsel %vm4837, %v4822, %v4824
      %v4840 = vsel %vm4837, %v4824, %v4826
      %v4841 = vsel %vm4837, %v4826, %v4828
      %v4842 = vsel %vm4837, %v4828, %v4830
      %v4843 = vsel %vm4837, %v4830, %v4832
      %v4844 = vsel %vm4837, %v4832, %v4834
      %v4845 = vsel %vm4837, %v4834, %v4836
      %4854 = vst [vmem:[#allocation2 + $0x4c0] sm:$0xff] %v4838
      %4855 = vst [vmem:[#allocation2 + $0x4c8] sm:$0xff] %v4839
      %4856 = vst [vmem:[#allocation2 + $0x4d0] sm:$0xff] %v4840
      %4857 = vst [vmem:[#allocation2 + $0x4d8] sm:$0xff] %v4841
      %4858 = vst [vmem:[#allocation2 + $0x4e0] sm:$0xff] %v4842
      %4859 = vst [vmem:[#allocation2 + $0x4e8] sm:$0xff] %v4843
      %4860 = vst [vmem:[#allocation2 + $0x4f0] sm:$0xff] %v4844
      %4861 = vst [vmem:[#allocation2 + $0x4f8] sm:$0xff] %v4845
      %v4862 = vld [vmem:[#allocation4 + $0x8] sm:$0xff]
      %v4863 = vld [vmem:[#allocation4 + $0x10] sm:$0xff]
      %v4864 = vld [vmem:[#allocation4 + $0x18] sm:$0xff]
      %v4865 = vld [vmem:[#allocation4 + $0x20] sm:$0xff]
      %v4866 = vld [vmem:[#allocation4 + $0x28] sm:$0xff]
      %v4867 = vld [vmem:[#allocation4 + $0x30] sm:$0xff]
      %v4868 = vld [vmem:[#allocation4 + $0x38] sm:$0xff]
      %v4869 = vld [vmem:[#allocation4 + $0x40] sm:$0xff]
      %v4870 = vld [vmem:[#allocation4 + $0x48] sm:$0xff]
      %4880 = vrot.lane.b32.xlu0 %v4862, 37
      %v4881 = vpop.permute.xlu0 %4880
      %4882 = vrot.lane.b32.xlu0 %v4863, 37
      %v4883 = vpop.permute.xlu0 %4882
      %4884 = vrot.lane.b32.xlu0 %v4864, 37
      %v4885 = vpop.permute.xlu0 %4884
      %4886 = vrot.lane.b32.xlu0 %v4865, 37
      %v4887 = vpop.permute.xlu0 %4886
      %4888 = vrot.lane.b32.xlu0 %v4866, 37
      %v4889 = vpop.permute.xlu0 %4888
      %4890 = vrot.lane.b32.xlu0 %v4867, 37
      %v4891 = vpop.permute.xlu0 %4890
      %4892 = vrot.lane.b32.xlu0 %v4868, 37
      %v4893 = vpop.permute.xlu0 %4892
      %4894 = vrot.lane.b32.xlu0 %v4869, 37
      %v4895 = vpop.permute.xlu0 %4894
      %4896 = vrot.lane.b32.xlu0 %v4870, 37
      %v4897 = vpop.permute.xlu0 %4896
      %vm4898 = vcmask 302080
      %v4899 = vsel %vm4898, %v4881, %v4883
      %v4900 = vsel %vm4898, %v4883, %v4885
      %v4901 = vsel %vm4898, %v4885, %v4887
      %v4902 = vsel %vm4898, %v4887, %v4889
      %v4903 = vsel %vm4898, %v4889, %v4891
      %v4904 = vsel %vm4898, %v4891, %v4893
      %v4905 = vsel %vm4898, %v4893, %v4895
      %v4906 = vsel %vm4898, %v4895, %v4897
      %4915 = vst [vmem:[#allocation2 + $0x500] sm:$0xff] %v4899
      %4916 = vst [vmem:[#allocation2 + $0x508] sm:$0xff] %v4900
      %4917 = vst [vmem:[#allocation2 + $0x510] sm:$0xff] %v4901
      %4918 = vst [vmem:[#allocation2 + $0x518] sm:$0xff] %v4902
      %4919 = vst [vmem:[#allocation2 + $0x520] sm:$0xff] %v4903
      %4920 = vst [vmem:[#allocation2 + $0x528] sm:$0xff] %v4904
      %4921 = vst [vmem:[#allocation2 + $0x530] sm:$0xff] %v4905
      %4922 = vst [vmem:[#allocation2 + $0x538] sm:$0xff] %v4906
      %v4923 = vld [vmem:[#allocation4 + $0x8] sm:$0xff]
      %v4924 = vld [vmem:[#allocation4 + $0x10] sm:$0xff]
      %v4925 = vld [vmem:[#allocation4 + $0x18] sm:$0xff]
      %v4926 = vld [vmem:[#allocation4 + $0x20] sm:$0xff]
      %v4927 = vld [vmem:[#allocation4 + $0x28] sm:$0xff]
      %v4928 = vld [vmem:[#allocation4 + $0x30] sm:$0xff]
      %v4929 = vld [vmem:[#allocation4 + $0x38] sm:$0xff]
      %v4930 = vld [vmem:[#allocation4 + $0x40] sm:$0xff]
      %v4931 = vld [vmem:[#allocation4 + $0x48] sm:$0xff]
      %4941 = vrot.lane.b32.xlu0 %v4923, 29
      %v4942 = vpop.permute.xlu0 %4941
      %4943 = vrot.lane.b32.xlu0 %v4924, 29
      %v4944 = vpop.permute.xlu0 %4943
      %4945 = vrot.lane.b32.xlu0 %v4925, 29
      %v4946 = vpop.permute.xlu0 %4945
      %4947 = vrot.lane.b32.xlu0 %v4926, 29
      %v4948 = vpop.permute.xlu0 %4947
      %4949 = vrot.lane.b32.xlu0 %v4927, 29
      %v4950 = vpop.permute.xlu0 %4949
      %4951 = vrot.lane.b32.xlu0 %v4928, 29
      %v4952 = vpop.permute.xlu0 %4951
      %4953 = vrot.lane.b32.xlu0 %v4929, 29
      %v4954 = vpop.permute.xlu0 %4953
      %4955 = vrot.lane.b32.xlu0 %v4930, 29
      %v4956 = vpop.permute.xlu0 %4955
      %4957 = vrot.lane.b32.xlu0 %v4931, 29
      %v4958 = vpop.permute.xlu0 %4957
      %vm4959 = vcmask 236544
      %v4960 = vsel %vm4959, %v4942, %v4944
      %v4961 = vsel %vm4959, %v4944, %v4946
      %v4962 = vsel %vm4959, %v4946, %v4948
      %v4963 = vsel %vm4959, %v4948, %v4950
      %v4964 = vsel %vm4959, %v4950, %v4952
      %v4965 = vsel %vm4959, %v4952, %v4954
      %v4966 = vsel %vm4959, %v4954, %v4956
      %v4967 = vsel %vm4959, %v4956, %v4958
      %4976 = vst [vmem:[#allocation2 + $0x540] sm:$0xff] %v4960
      %4977 = vst [vmem:[#allocation2 + $0x548] sm:$0xff] %v4961
      %4978 = vst [vmem:[#allocation2 + $0x550] sm:$0xff] %v4962
      %4979 = vst [vmem:[#allocation2 + $0x558] sm:$0xff] %v4963
      %4980 = vst [vmem:[#allocation2 + $0x560] sm:$0xff] %v4964
      %4981 = vst [vmem:[#allocation2 + $0x568] sm:$0xff] %v4965
      %4982 = vst [vmem:[#allocation2 + $0x570] sm:$0xff] %v4966
      %4983 = vst [vmem:[#allocation2 + $0x578] sm:$0xff] %v4967
      %v4984 = vld [vmem:[#allocation4 + $0x8] sm:$0xff]
      %v4985 = vld [vmem:[#allocation4 + $0x10] sm:$0xff]
      %v4986 = vld [vmem:[#allocation4 + $0x18] sm:$0xff]
      %v4987 = vld [vmem:[#allocation4 + $0x20] sm:$0xff]
      %v4988 = vld [vmem:[#allocation4 + $0x28] sm:$0xff]
      %v4989 = vld [vmem:[#allocation4 + $0x30] sm:$0xff]
      %v4990 = vld [vmem:[#allocation4 + $0x38] sm:$0xff]
      %v4991 = vld [vmem:[#allocation4 + $0x40] sm:$0xff]
      %v4992 = vld [vmem:[#allocation4 + $0x48] sm:$0xff]
      %5002 = vrot.lane.b32.xlu0 %v4984, 28
      %v5003 = vpop.permute.xlu0 %5002
      %5004 = vrot.lane.b32.xlu0 %v4985, 28
      %v5005 = vpop.permute.xlu0 %5004
      %5006 = vrot.lane.b32.xlu0 %v4986, 28
      %v5007 = vpop.permute.xlu0 %5006
      %5008 = vrot.lane.b32.xlu0 %v4987, 28
      %v5009 = vpop.permute.xlu0 %5008
      %5010 = vrot.lane.b32.xlu0 %v4988, 28
      %v5011 = vpop.permute.xlu0 %5010
      %5012 = vrot.lane.b32.xlu0 %v4989, 28
      %v5013 = vpop.permute.xlu0 %5012
      %5014 = vrot.lane.b32.xlu0 %v4990, 28
      %v5015 = vpop.permute.xlu0 %5014
      %5016 = vrot.lane.b32.xlu0 %v4991, 28
      %v5017 = vpop.permute.xlu0 %5016
      %5018 = vrot.lane.b32.xlu0 %v4992, 28
      %v5019 = vpop.permute.xlu0 %5018
      %v5020 = vsel %vm1229, %v5003, %v5005
      %v5021 = vsel %vm1229, %v5005, %v5007
      %v5022 = vsel %vm1229, %v5007, %v5009
      %v5023 = vsel %vm1229, %v5009, %v5011
      %v5024 = vsel %vm1229, %v5011, %v5013
      %v5025 = vsel %vm1229, %v5013, %v5015
      %v5026 = vsel %vm1229, %v5015, %v5017
      %v5027 = vsel %vm1229, %v5017, %v5019
      %5036 = vst [vmem:[#allocation2 + $0x580] sm:$0xff] %v5020
      %5037 = vst [vmem:[#allocation2 + $0x588] sm:$0xff] %v5021
      %5038 = vst [vmem:[#allocation2 + $0x590] sm:$0xff] %v5022
      %5039 = vst [vmem:[#allocation2 + $0x598] sm:$0xff] %v5023
      %5040 = vst [vmem:[#allocation2 + $0x5a0] sm:$0xff] %v5024
      %5041 = vst [vmem:[#allocation2 + $0x5a8] sm:$0xff] %v5025
      %5042 = vst [vmem:[#allocation2 + $0x5b0] sm:$0xff] %v5026
      %5043 = vst [vmem:[#allocation2 + $0x5b8] sm:$0xff] %v5027
      %v5044 = vld [vmem:[#allocation4 + $0x8] sm:$0xff]
      %v5045 = vld [vmem:[#allocation4 + $0x10] sm:$0xff]
      %v5046 = vld [vmem:[#allocation4 + $0x18] sm:$0xff]
      %v5047 = vld [vmem:[#allocation4 + $0x20] sm:$0xff]
      %v5048 = vld [vmem:[#allocation4 + $0x28] sm:$0xff]
      %v5049 = vld [vmem:[#allocation4 + $0x30] sm:$0xff]
      %v5050 = vld [vmem:[#allocation4 + $0x38] sm:$0xff]
      %v5051 = vld [vmem:[#allocation4 + $0x40] sm:$0xff]
      %v5052 = vld [vmem:[#allocation4 + $0x48] sm:$0xff]
      %5062 = vrot.lane.b32.xlu0 %v5044, 27
      %v5063 = vpop.permute.xlu0 %5062
      %5064 = vrot.lane.b32.xlu0 %v5045, 27
      %v5065 = vpop.permute.xlu0 %5064
      %5066 = vrot.lane.b32.xlu0 %v5046, 27
      %v5067 = vpop.permute.xlu0 %5066
      %5068 = vrot.lane.b32.xlu0 %v5047, 27
      %v5069 = vpop.permute.xlu0 %5068
      %5070 = vrot.lane.b32.xlu0 %v5048, 27
      %v5071 = vpop.permute.xlu0 %5070
      %5072 = vrot.lane.b32.xlu0 %v5049, 27
      %v5073 = vpop.permute.xlu0 %5072
      %5074 = vrot.lane.b32.xlu0 %v5050, 27
      %v5075 = vpop.permute.xlu0 %5074
      %5076 = vrot.lane.b32.xlu0 %v5051, 27
      %v5077 = vpop.permute.xlu0 %5076
      %5078 = vrot.lane.b32.xlu0 %v5052, 27
      %v5079 = vpop.permute.xlu0 %5078
      %v5080 = vsel %vm1319, %v5063, %v5065
      %v5081 = vsel %vm1319, %v5065, %v5067
      %v5082 = vsel %vm1319, %v5067, %v5069
      %v5083 = vsel %vm1319, %v5069, %v5071
      %v5084 = vsel %vm1319, %v5071, %v5073
      %v5085 = vsel %vm1319, %v5073, %v5075
      %v5086 = vsel %vm1319, %v5075, %v5077
      %v5087 = vsel %vm1319, %v5077, %v5079
      %5096 = vst [vmem:[#allocation2 + $0x5c0] sm:$0xff] %v5080
      %5097 = vst [vmem:[#allocation2 + $0x5c8] sm:$0xff] %v5081
      %5098 = vst [vmem:[#allocation2 + $0x5d0] sm:$0xff] %v5082
      %5099 = vst [vmem:[#allocation2 + $0x5d8] sm:$0xff] %v5083
      %5100 = vst [vmem:[#allocation2 + $0x5e0] sm:$0xff] %v5084
      %5101 = vst [vmem:[#allocation2 + $0x5e8] sm:$0xff] %v5085
      %5102 = vst [vmem:[#allocation2 + $0x5f0] sm:$0xff] %v5086
      %5103 = vst [vmem:[#allocation2 + $0x5f8] sm:$0xff] %v5087
      %v5104 = vld [vmem:[#allocation4 + $0x8] sm:$0xff]
      %v5105 = vld [vmem:[#allocation4 + $0x10] sm:$0xff]
      %v5106 = vld [vmem:[#allocation4 + $0x18] sm:$0xff]
      %v5107 = vld [vmem:[#allocation4 + $0x20] sm:$0xff]
      %v5108 = vld [vmem:[#allocation4 + $0x28] sm:$0xff]
      %v5109 = vld [vmem:[#allocation4 + $0x30] sm:$0xff]
      %v5110 = vld [vmem:[#allocation4 + $0x38] sm:$0xff]
      %v5111 = vld [vmem:[#allocation4 + $0x40] sm:$0xff]
      %v5112 = vld [vmem:[#allocation4 + $0x48] sm:$0xff]
      %5122 = vrot.lane.b32.xlu0 %v5104, 19
      %v5123 = vpop.permute.xlu0 %5122
      %5124 = vrot.lane.b32.xlu0 %v5105, 19
      %v5125 = vpop.permute.xlu0 %5124
      %5126 = vrot.lane.b32.xlu0 %v5106, 19
      %v5127 = vpop.permute.xlu0 %5126
      %5128 = vrot.lane.b32.xlu0 %v5107, 19
      %v5129 = vpop.permute.xlu0 %5128
      %5130 = vrot.lane.b32.xlu0 %v5108, 19
      %v5131 = vpop.permute.xlu0 %5130
      %5132 = vrot.lane.b32.xlu0 %v5109, 19
      %v5133 = vpop.permute.xlu0 %5132
      %5134 = vrot.lane.b32.xlu0 %v5110, 19
      %v5135 = vpop.permute.xlu0 %5134
      %5136 = vrot.lane.b32.xlu0 %v5111, 19
      %v5137 = vpop.permute.xlu0 %5136
      %5138 = vrot.lane.b32.xlu0 %v5112, 19
      %v5139 = vpop.permute.xlu0 %5138
      %vm5140 = vcmask 154624
      %v5141 = vsel %vm5140, %v5123, %v5125
      %v5142 = vsel %vm5140, %v5125, %v5127
      %v5143 = vsel %vm5140, %v5127, %v5129
      %v5144 = vsel %vm5140, %v5129, %v5131
      %v5145 = vsel %vm5140, %v5131, %v5133
      %v5146 = vsel %vm5140, %v5133, %v5135
      %v5147 = vsel %vm5140, %v5135, %v5137
      %v5148 = vsel %vm5140, %v5137, %v5139
      %5157 = vst [vmem:[#allocation2 + $0x600] sm:$0xff] %v5141
      %5158 = vst [vmem:[#allocation2 + $0x608] sm:$0xff] %v5142
      %5159 = vst [vmem:[#allocation2 + $0x610] sm:$0xff] %v5143
      %5160 = vst [vmem:[#allocation2 + $0x618] sm:$0xff] %v5144
      %5161 = vst [vmem:[#allocation2 + $0x620] sm:$0xff] %v5145
      %5162 = vst [vmem:[#allocation2 + $0x628] sm:$0xff] %v5146
      %5163 = vst [vmem:[#allocation2 + $0x630] sm:$0xff] %v5147
      %5164 = vst [vmem:[#allocation2 + $0x638] sm:$0xff] %v5148
      %v5165 = vld [vmem:[#allocation4 + $0x8] sm:$0xff]
      %v5166 = vld [vmem:[#allocation4 + $0x10] sm:$0xff]
      %v5167 = vld [vmem:[#allocation4 + $0x18] sm:$0xff]
      %v5168 = vld [vmem:[#allocation4 + $0x20] sm:$0xff]
      %v5169 = vld [vmem:[#allocation4 + $0x28] sm:$0xff]
      %v5170 = vld [vmem:[#allocation4 + $0x30] sm:$0xff]
      %v5171 = vld [vmem:[#allocation4 + $0x38] sm:$0xff]
      %v5172 = vld [vmem:[#allocation4 + $0x40] sm:$0xff]
      %v5173 = vld [vmem:[#allocation4 + $0x48] sm:$0xff]
      %5183 = vrot.lane.b32.xlu0 %v5165, 18
      %v5184 = vpop.permute.xlu0 %5183
      %5185 = vrot.lane.b32.xlu0 %v5166, 18
      %v5186 = vpop.permute.xlu0 %5185
      %5187 = vrot.lane.b32.xlu0 %v5167, 18
      %v5188 = vpop.permute.xlu0 %5187
      %5189 = vrot.lane.b32.xlu0 %v5168, 18
      %v5190 = vpop.permute.xlu0 %5189
      %5191 = vrot.lane.b32.xlu0 %v5169, 18
      %v5192 = vpop.permute.xlu0 %5191
      %5193 = vrot.lane.b32.xlu0 %v5170, 18
      %v5194 = vpop.permute.xlu0 %5193
      %5195 = vrot.lane.b32.xlu0 %v5171, 18
      %v5196 = vpop.permute.xlu0 %5195
      %5197 = vrot.lane.b32.xlu0 %v5172, 18
      %v5198 = vpop.permute.xlu0 %5197
      %5199 = vrot.lane.b32.xlu0 %v5173, 18
      %v5200 = vpop.permute.xlu0 %5199
      %v5201 = vsel %vm1499, %v5184, %v5186
      %v5202 = vsel %vm1499, %v5186, %v5188
      %v5203 = vsel %vm1499, %v5188, %v5190
      %v5204 = vsel %vm1499, %v5190, %v5192
      %v5205 = vsel %vm1499, %v5192, %v5194
      %v5206 = vsel %vm1499, %v5194, %v5196
      %v5207 = vsel %vm1499, %v5196, %v5198
      %v5208 = vsel %vm1499, %v5198, %v5200
      %5217 = vst [vmem:[#allocation2 + $0x640] sm:$0xff] %v5201
      %5218 = vst [vmem:[#allocation2 + $0x648] sm:$0xff] %v5202
      %5219 = vst [vmem:[#allocation2 + $0x650] sm:$0xff] %v5203
      %5220 = vst [vmem:[#allocation2 + $0x658] sm:$0xff] %v5204
      %5221 = vst [vmem:[#allocation2 + $0x660] sm:$0xff] %v5205
      %5222 = vst [vmem:[#allocation2 + $0x668] sm:$0xff] %v5206
      %5223 = vst [vmem:[#allocation2 + $0x670] sm:$0xff] %v5207
      %5224 = vst [vmem:[#allocation2 + $0x678] sm:$0xff] %v5208
      %v5225 = vld [vmem:[#allocation4 + $0x8] sm:$0xff]
      %v5226 = vld [vmem:[#allocation4 + $0x10] sm:$0xff]
      %v5227 = vld [vmem:[#allocation4 + $0x18] sm:$0xff]
      %v5228 = vld [vmem:[#allocation4 + $0x20] sm:$0xff]
      %v5229 = vld [vmem:[#allocation4 + $0x28] sm:$0xff]
      %v5230 = vld [vmem:[#allocation4 + $0x30] sm:$0xff]
      %v5231 = vld [vmem:[#allocation4 + $0x38] sm:$0xff]
      %v5232 = vld [vmem:[#allocation4 + $0x40] sm:$0xff]
      %v5233 = vld [vmem:[#allocation4 + $0x48] sm:$0xff]
      %5243 = vrot.lane.b32.xlu0 %v5225, 17
      %v5244 = vpop.permute.xlu0 %5243
      %5245 = vrot.lane.b32.xlu0 %v5226, 17
      %v5246 = vpop.permute.xlu0 %5245
      %5247 = vrot.lane.b32.xlu0 %v5227, 17
      %v5248 = vpop.permute.xlu0 %5247
      %5249 = vrot.lane.b32.xlu0 %v5228, 17
      %v5250 = vpop.permute.xlu0 %5249
      %5251 = vrot.lane.b32.xlu0 %v5229, 17
      %v5252 = vpop.permute.xlu0 %5251
      %5253 = vrot.lane.b32.xlu0 %v5230, 17
      %v5254 = vpop.permute.xlu0 %5253
      %5255 = vrot.lane.b32.xlu0 %v5231, 17
      %v5256 = vpop.permute.xlu0 %5255
      %5257 = vrot.lane.b32.xlu0 %v5232, 17
      %v5258 = vpop.permute.xlu0 %5257
      %5259 = vrot.lane.b32.xlu0 %v5233, 17
      %v5260 = vpop.permute.xlu0 %5259
      %v5261 = vsel %vm1589, %v5244, %v5246
      %v5262 = vsel %vm1589, %v5246, %v5248
      %v5263 = vsel %vm1589, %v5248, %v5250
      %v5264 = vsel %vm1589, %v5250, %v5252
      %v5265 = vsel %vm1589, %v5252, %v5254
      %v5266 = vsel %vm1589, %v5254, %v5256
      %v5267 = vsel %vm1589, %v5256, %v5258
      %v5268 = vsel %vm1589, %v5258, %v5260
      %5277 = vst [vmem:[#allocation2 + $0x680] sm:$0xff] %v5261
      %5278 = vst [vmem:[#allocation2 + $0x688] sm:$0xff] %v5262
      %5279 = vst [vmem:[#allocation2 + $0x690] sm:$0xff] %v5263
      %5280 = vst [vmem:[#allocation2 + $0x698] sm:$0xff] %v5264
      %5281 = vst [vmem:[#allocation2 + $0x6a0] sm:$0xff] %v5265
      %5282 = vst [vmem:[#allocation2 + $0x6a8] sm:$0xff] %v5266
      %5283 = vst [vmem:[#allocation2 + $0x6b0] sm:$0xff] %v5267
      %5284 = vst [vmem:[#allocation2 + $0x6b8] sm:$0xff] %v5268
      %v5285 = vld [vmem:[%s3] sm:$0xff]
      %v5286 = vld [vmem:[%s3 + $0x8] sm:$0xff]
      %v5287 = vld [vmem:[%s3 + $0x10] sm:$0xff]
      %v5288 = vld [vmem:[%s3 + $0x18] sm:$0xff]
      %v5289 = vld [vmem:[#allocation2] sm:$0xff]
      %v5290 = vld [vmem:[#allocation2 + $0x8] sm:$0xff]
      %v5291 = vld [vmem:[#allocation2 + $0x10] sm:$0xff]
      %v5292 = vld [vmem:[#allocation2 + $0x18] sm:$0xff]
      %v5293 = vld [vmem:[#allocation2 + $0x20] sm:$0xff]
      %v5294 = vld [vmem:[#allocation2 + $0x28] sm:$0xff]
      %v5295 = vld [vmem:[#allocation2 + $0x30] sm:$0xff]
      %v5296 = vld [vmem:[#allocation2 + $0x38] sm:$0xff]
      %v5297 = vld [vmem:[#allocation2 + $0x40] sm:$0xff]
      %v5298 = vld [vmem:[#allocation2 + $0x48] sm:$0xff]
      %v5299 = vld [vmem:[#allocation2 + $0x50] sm:$0xff]
      %v5300 = vld [vmem:[#allocation2 + $0x58] sm:$0xff]
      %v5301 = vld [vmem:[#allocation2 + $0x60] sm:$0xff]
      %v5302 = vld [vmem:[#allocation2 + $0x68] sm:$0xff]
      %v5303 = vld [vmem:[#allocation2 + $0x70] sm:$0xff]
      %v5304 = vld [vmem:[#allocation2 + $0x78] sm:$0xff]
      %v5305 = vld [vmem:[#allocation2 + $0x80] sm:$0xff]
      %v5306 = vld [vmem:[#allocation2 + $0x88] sm:$0xff]
      %v5307 = vld [vmem:[#allocation2 + $0x90] sm:$0xff]
      %v5308 = vld [vmem:[#allocation2 + $0x98] sm:$0xff]
      %v5309 = vld [vmem:[#allocation2 + $0xa0] sm:$0xff]
      %v5310 = vld [vmem:[#allocation2 + $0xa8] sm:$0xff]
      %v5311 = vld [vmem:[#allocation2 + $0xb0] sm:$0xff]
      %v5312 = vld [vmem:[#allocation2 + $0xb8] sm:$0xff]
      %v5313 = vld [vmem:[#allocation2 + $0xc0] sm:$0xff]
      %v5314 = vld [vmem:[#allocation2 + $0xc8] sm:$0xff]
      %v5315 = vld [vmem:[#allocation2 + $0xd0] sm:$0xff]
      %v5316 = vld [vmem:[#allocation2 + $0xd8] sm:$0xff]
      %v5317 = vld [vmem:[#allocation2 + $0xe0] sm:$0xff]
      %v5318 = vld [vmem:[#allocation2 + $0xe8] sm:$0xff]
      %v5319 = vld [vmem:[#allocation2 + $0xf0] sm:$0xff]
      %v5320 = vld [vmem:[#allocation2 + $0xf8] sm:$0xff]
      %v5321 = vld [vmem:[#allocation2 + $0x100] sm:$0xff]
      %v5322 = vld [vmem:[#allocation2 + $0x108] sm:$0xff]
      %v5323 = vld [vmem:[#allocation2 + $0x110] sm:$0xff]
      %v5324 = vld [vmem:[#allocation2 + $0x118] sm:$0xff]
      %v5325 = vld [vmem:[#allocation2 + $0x120] sm:$0xff]
      %v5326 = vld [vmem:[#allocation2 + $0x128] sm:$0xff]
      %v5327 = vld [vmem:[#allocation2 + $0x130] sm:$0xff]
      %v5328 = vld [vmem:[#allocation2 + $0x138] sm:$0xff]
      %v5329 = vld [vmem:[#allocation2 + $0x140] sm:$0xff]
      %v5330 = vld [vmem:[#allocation2 + $0x148] sm:$0xff]
      %v5331 = vld [vmem:[#allocation2 + $0x150] sm:$0xff]
      %v5332 = vld [vmem:[#allocation2 + $0x158] sm:$0xff]
      %v5333 = vld [vmem:[#allocation2 + $0x160] sm:$0xff]
      %v5334 = vld [vmem:[#allocation2 + $0x168] sm:$0xff]
      %v5335 = vld [vmem:[#allocation2 + $0x170] sm:$0xff]
      %v5336 = vld [vmem:[#allocation2 + $0x178] sm:$0xff]
      %v5337 = vld [vmem:[#allocation2 + $0x180] sm:$0xff]
      %v5338 = vld [vmem:[#allocation2 + $0x188] sm:$0xff]
      %v5339 = vld [vmem:[#allocation2 + $0x190] sm:$0xff]
      %v5340 = vld [vmem:[#allocation2 + $0x198] sm:$0xff]
      %v5341 = vld [vmem:[#allocation2 + $0x1a0] sm:$0xff]
      %v5342 = vld [vmem:[#allocation2 + $0x1a8] sm:$0xff]
      %v5343 = vld [vmem:[#allocation2 + $0x1b0] sm:$0xff]
      %v5344 = vld [vmem:[#allocation2 + $0x1b8] sm:$0xff]
      %v5345 = vld [vmem:[#allocation2 + $0x1c0] sm:$0xff]
      %v5346 = vld [vmem:[#allocation2 + $0x1c8] sm:$0xff]
      %v5347 = vld [vmem:[#allocation2 + $0x1d0] sm:$0xff]
      %v5348 = vld [vmem:[#allocation2 + $0x1d8] sm:$0xff]
      %v5349 = vld [vmem:[#allocation2 + $0x1e0] sm:$0xff]
      %v5350 = vld [vmem:[#allocation2 + $0x1e8] sm:$0xff]
      %v5351 = vld [vmem:[#allocation2 + $0x1f0] sm:$0xff]
      %v5352 = vld [vmem:[#allocation2 + $0x1f8] sm:$0xff]
      %v5353 = vld [vmem:[#allocation2 + $0x200] sm:$0xff]
      %v5354 = vld [vmem:[#allocation2 + $0x208] sm:$0xff]
      %v5355 = vld [vmem:[#allocation2 + $0x210] sm:$0xff]
      %v5356 = vld [vmem:[#allocation2 + $0x218] sm:$0xff]
      %v5357 = vld [vmem:[#allocation2 + $0x220] sm:$0xff]
      %v5358 = vld [vmem:[#allocation2 + $0x228] sm:$0xff]
      %v5359 = vld [vmem:[#allocation2 + $0x230] sm:$0xff]
      %v5360 = vld [vmem:[#allocation2 + $0x238] sm:$0xff]
      %v5361 = vld [vmem:[#allocation2 + $0x240] sm:$0xff]
      %v5362 = vld [vmem:[#allocation2 + $0x248] sm:$0xff]
      %v5363 = vld [vmem:[#allocation2 + $0x250] sm:$0xff]
      %v5364 = vld [vmem:[#allocation2 + $0x258] sm:$0xff]
      %v5365 = vld [vmem:[#allocation2 + $0x260] sm:$0xff]
      %v5366 = vld [vmem:[#allocation2 + $0x268] sm:$0xff]
      %v5367 = vld [vmem:[#allocation2 + $0x270] sm:$0xff]
      %v5368 = vld [vmem:[#allocation2 + $0x278] sm:$0xff]
      %v5369 = vld [vmem:[#allocation2 + $0x280] sm:$0xff]
      %v5370 = vld [vmem:[#allocation2 + $0x288] sm:$0xff]
      %v5371 = vld [vmem:[#allocation2 + $0x290] sm:$0xff]
      %v5372 = vld [vmem:[#allocation2 + $0x298] sm:$0xff]
      %v5373 = vld [vmem:[#allocation2 + $0x2a0] sm:$0xff]
      %v5374 = vld [vmem:[#allocation2 + $0x2a8] sm:$0xff]
      %v5375 = vld [vmem:[#allocation2 + $0x2b0] sm:$0xff]
      %v5376 = vld [vmem:[#allocation2 + $0x2b8] sm:$0xff]
      %v5377 = vld [vmem:[#allocation2 + $0x2c0] sm:$0xff]
      %v5378 = vld [vmem:[#allocation2 + $0x2c8] sm:$0xff]
      %v5379 = vld [vmem:[#allocation2 + $0x2d0] sm:$0xff]
      %v5380 = vld [vmem:[#allocation2 + $0x2d8] sm:$0xff]
      %v5381 = vld [vmem:[#allocation2 + $0x2e0] sm:$0xff]
      %v5382 = vld [vmem:[#allocation2 + $0x2e8] sm:$0xff]
      %v5383 = vld [vmem:[#allocation2 + $0x2f0] sm:$0xff]
      %v5384 = vld [vmem:[#allocation2 + $0x2f8] sm:$0xff]
      %v5385 = vld [vmem:[#allocation2 + $0x300] sm:$0xff]
      %v5386 = vld [vmem:[#allocation2 + $0x308] sm:$0xff]
      %v5387 = vld [vmem:[#allocation2 + $0x310] sm:$0xff]
      %v5388 = vld [vmem:[#allocation2 + $0x318] sm:$0xff]
      %v5389 = vld [vmem:[#allocation2 + $0x320] sm:$0xff]
      %v5390 = vld [vmem:[#allocation2 + $0x328] sm:$0xff]
      %v5391 = vld [vmem:[#allocation2 + $0x330] sm:$0xff]
      %v5392 = vld [vmem:[#allocation2 + $0x338] sm:$0xff]
      %v5393 = vld [vmem:[#allocation2 + $0x340] sm:$0xff]
      %v5394 = vld [vmem:[#allocation2 + $0x348] sm:$0xff]
      %v5395 = vld [vmem:[#allocation2 + $0x350] sm:$0xff]
      %v5396 = vld [vmem:[#allocation2 + $0x358] sm:$0xff]
      %v5397 = vld [vmem:[#allocation2 + $0x360] sm:$0xff]
      %v5398 = vld [vmem:[#allocation2 + $0x368] sm:$0xff]
      %v5399 = vld [vmem:[#allocation2 + $0x370] sm:$0xff]
      %v5400 = vld [vmem:[#allocation2 + $0x378] sm:$0xff]
      %v5401 = vld [vmem:[#allocation2 + $0x380] sm:$0xff]
      %v5402 = vld [vmem:[#allocation2 + $0x388] sm:$0xff]
      %v5403 = vld [vmem:[#allocation2 + $0x390] sm:$0xff]
      %v5404 = vld [vmem:[#allocation2 + $0x398] sm:$0xff]
      %v5405 = vld [vmem:[#allocation2 + $0x3a0] sm:$0xff]
      %v5406 = vld [vmem:[#allocation2 + $0x3a8] sm:$0xff]
      %v5407 = vld [vmem:[#allocation2 + $0x3b0] sm:$0xff]
      %v5408 = vld [vmem:[#allocation2 + $0x3b8] sm:$0xff]
      %v5409 = vld [vmem:[#allocation2 + $0x3c0] sm:$0xff]
      %v5410 = vld [vmem:[#allocation2 + $0x3c8] sm:$0xff]
      %v5411 = vld [vmem:[#allocation2 + $0x3d0] sm:$0xff]
      %v5412 = vld [vmem:[#allocation2 + $0x3d8] sm:$0xff]
      %v5413 = vld [vmem:[#allocation2 + $0x3e0] sm:$0xff]
      %v5414 = vld [vmem:[#allocation2 + $0x3e8] sm:$0xff]
      %v5415 = vld [vmem:[#allocation2 + $0x3f0] sm:$0xff]
      %v5416 = vld [vmem:[#allocation2 + $0x3f8] sm:$0xff]
      %v5417 = vld [vmem:[#allocation2 + $0x400] sm:$0xff]
      %v5418 = vld [vmem:[#allocation2 + $0x408] sm:$0xff]
      %v5419 = vld [vmem:[#allocation2 + $0x410] sm:$0xff]
      %v5420 = vld [vmem:[#allocation2 + $0x418] sm:$0xff]
      %v5421 = vld [vmem:[#allocation2 + $0x420] sm:$0xff]
      %v5422 = vld [vmem:[#allocation2 + $0x428] sm:$0xff]
      %v5423 = vld [vmem:[#allocation2 + $0x430] sm:$0xff]
      %v5424 = vld [vmem:[#allocation2 + $0x438] sm:$0xff]
      %v5425 = vld [vmem:[#allocation2 + $0x440] sm:$0xff]
      %v5426 = vld [vmem:[#allocation2 + $0x448] sm:$0xff]
      %v5427 = vld [vmem:[#allocation2 + $0x450] sm:$0xff]
      %v5428 = vld [vmem:[#allocation2 + $0x458] sm:$0xff]
      %v5429 = vld [vmem:[#allocation2 + $0x460] sm:$0xff]
      %v5430 = vld [vmem:[#allocation2 + $0x468] sm:$0xff]
      %v5431 = vld [vmem:[#allocation2 + $0x470] sm:$0xff]
      %v5432 = vld [vmem:[#allocation2 + $0x478] sm:$0xff]
      %v5433 = vld [vmem:[#allocation2 + $0x480] sm:$0xff]
      %v5434 = vld [vmem:[#allocation2 + $0x488] sm:$0xff]
      %v5435 = vld [vmem:[#allocation2 + $0x490] sm:$0xff]
      %v5436 = vld [vmem:[#allocation2 + $0x498] sm:$0xff]
      %v5437 = vld [vmem:[#allocation2 + $0x4a0] sm:$0xff]
      %v5438 = vld [vmem:[#allocation2 + $0x4a8] sm:$0xff]
      %v5439 = vld [vmem:[#allocation2 + $0x4b0] sm:$0xff]
      %v5440 = vld [vmem:[#allocation2 + $0x4b8] sm:$0xff]
      %v5441 = vld [vmem:[#allocation2 + $0x4c0] sm:$0xff]
      %v5442 = vld [vmem:[#allocation2 + $0x4c8] sm:$0xff]
      %v5443 = vld [vmem:[#allocation2 + $0x4d0] sm:$0xff]
      %v5444 = vld [vmem:[#allocation2 + $0x4d8] sm:$0xff]
      %v5445 = vld [vmem:[#allocation2 + $0x4e0] sm:$0xff]
      %v5446 = vld [vmem:[#allocation2 + $0x4e8] sm:$0xff]
      %v5447 = vld [vmem:[#allocation2 + $0x4f0] sm:$0xff]
      %v5448 = vld [vmem:[#allocation2 + $0x4f8] sm:$0xff]
      %v5449 = vld [vmem:[#allocation2 + $0x500] sm:$0xff]
      %v5450 = vld [vmem:[#allocation2 + $0x508] sm:$0xff]
      %v5451 = vld [vmem:[#allocation2 + $0x510] sm:$0xff]
      %v5452 = vld [vmem:[#allocation2 + $0x518] sm:$0xff]
      %v5453 = vld [vmem:[#allocation2 + $0x520] sm:$0xff]
      %v5454 = vld [vmem:[#allocation2 + $0x528] sm:$0xff]
      %v5455 = vld [vmem:[#allocation2 + $0x530] sm:$0xff]
      %v5456 = vld [vmem:[#allocation2 + $0x538] sm:$0xff]
      %v5457 = vld [vmem:[#allocation2 + $0x540] sm:$0xff]
      %v5458 = vld [vmem:[#allocation2 + $0x548] sm:$0xff]
      %v5459 = vld [vmem:[#allocation2 + $0x550] sm:$0xff]
      %v5460 = vld [vmem:[#allocation2 + $0x558] sm:$0xff]
      %v5461 = vld [vmem:[#allocation2 + $0x560] sm:$0xff]
      %v5462 = vld [vmem:[#allocation2 + $0x568] sm:$0xff]
      %v5463 = vld [vmem:[#allocation2 + $0x570] sm:$0xff]
      %v5464 = vld [vmem:[#allocation2 + $0x578] sm:$0xff]
      %v5465 = vld [vmem:[#allocation2 + $0x580] sm:$0xff]
      %v5466 = vld [vmem:[#allocation2 + $0x588] sm:$0xff]
      %v5467 = vld [vmem:[#allocation2 + $0x590] sm:$0xff]
      %v5468 = vld [vmem:[#allocation2 + $0x598] sm:$0xff]
      %v5469 = vld [vmem:[#allocation2 + $0x5a0] sm:$0xff]
      %v5470 = vld [vmem:[#allocation2 + $0x5a8] sm:$0xff]
      %v5471 = vld [vmem:[#allocation2 + $0x5b0] sm:$0xff]
      %v5472 = vld [vmem:[#allocation2 + $0x5b8] sm:$0xff]
      %v5473 = vld [vmem:[#allocation2 + $0x5c0] sm:$0xff]
      %v5474 = vld [vmem:[#allocation2 + $0x5c8] sm:$0xff]
      %v5475 = vld [vmem:[#allocation2 + $0x5d0] sm:$0xff]
      %v5476 = vld [vmem:[#allocation2 + $0x5d8] sm:$0xff]
      %v5477 = vld [vmem:[#allocation2 + $0x5e0] sm:$0xff]
      %v5478 = vld [vmem:[#allocation2 + $0x5e8] sm:$0xff]
      %v5479 = vld [vmem:[#allocation2 + $0x5f0] sm:$0xff]
      %v5480 = vld [vmem:[#allocation2 + $0x5f8] sm:$0xff]
      %v5481 = vld [vmem:[#allocation2 + $0x600] sm:$0xff]
      %v5482 = vld [vmem:[#allocation2 + $0x608] sm:$0xff]
      %v5483 = vld [vmem:[#allocation2 + $0x610] sm:$0xff]
      %v5484 = vld [vmem:[#allocation2 + $0x618] sm:$0xff]
      %v5485 = vld [vmem:[#allocation2 + $0x620] sm:$0xff]
      %v5486 = vld [vmem:[#allocation2 + $0x628] sm:$0xff]
      %v5487 = vld [vmem:[#allocation2 + $0x630] sm:$0xff]
      %v5488 = vld [vmem:[#allocation2 + $0x638] sm:$0xff]
      %v5489 = vld [vmem:[#allocation2 + $0x640] sm:$0xff]
      %v5490 = vld [vmem:[#allocation2 + $0x648] sm:$0xff]
      %v5491 = vld [vmem:[#allocation2 + $0x650] sm:$0xff]
      %v5492 = vld [vmem:[#allocation2 + $0x658] sm:$0xff]
      %v5493 = vld [vmem:[#allocation2 + $0x660] sm:$0xff]
      %v5494 = vld [vmem:[#allocation2 + $0x668] sm:$0xff]
      %v5495 = vld [vmem:[#allocation2 + $0x670] sm:$0xff]
      %v5496 = vld [vmem:[#allocation2 + $0x678] sm:$0xff]
      %v5497 = vld [vmem:[#allocation2 + $0x680] sm:$0xff]
      %v5498 = vld [vmem:[#allocation2 + $0x688] sm:$0xff]
      %v5499 = vld [vmem:[#allocation2 + $0x690] sm:$0xff]
      %v5500 = vld [vmem:[#allocation2 + $0x698] sm:$0xff]
      %v5501 = vld [vmem:[#allocation2 + $0x6a0] sm:$0xff]
      %v5502 = vld [vmem:[#allocation2 + $0x6a8] sm:$0xff]
      %v5503 = vld [vmem:[#allocation2 + $0x6b0] sm:$0xff]
      %v5504 = vld [vmem:[#allocation2 + $0x6b8] sm:$0xff]
      %v5509 = vunpack.c.l.b16 %v5285
      %v5510 = vunpack.c.h.b16 %v5285
      %v5511 = vunpack.c.l.b16 %v5286
      %v5512 = vunpack.c.h.b16 %v5286
      %v5513 = vunpack.c.l.b16 %v5287
      %v5514 = vunpack.c.h.b16 %v5287
      %v5515 = vunpack.c.l.b16 %v5288
      %v5516 = vunpack.c.h.b16 %v5288
      %v5517 = vpack.c.b16 %v5513, %v5509
      %v5518 = vpack.c.b16 %v5514, %v5510
      %v5519 = vpack.c.b16 %v5515, %v5511
      %v5520 = vpack.c.b16 %v5516, %v5512
      %v5525 = vsel %vm3023, %v5520, 0
      %5527 = vmatprep.subr.bf16.mxu0 %v5290
      %5528 = vmatpush1.bf16.msra.mxu0 %v5289
      %5529 = vmatprep.subr.bf16.mxu0 %v5298
      %5530 = vmatpush1.bf16.msra.mxu0 %v5297
      %5531 = vmatprep.subr.bf16.mxu0 %v5306
      %5532 = vmatpush1.bf16.msra.mxu0 %v5305
      %5533 = vmatprep.subr.bf16.mxu0 %v5314
      %5534 = vmatpush1.bf16.msra.mxu0 %v5313
      %5535 = vmatprep.subr.bf16.mxu0 %v5322
      %5536 = vmatpush1.bf16.msra.mxu0 %v5321
      %5537 = vmatprep.subr.bf16.mxu0 %v5330
      %5538 = vmatpush1.bf16.msra.mxu0 %v5329
      %5539 = vmatprep.subr.bf16.mxu0 %v5338
      %5540 = vmatpush1.bf16.msra.mxu0 %v5337
      %5541 = vmatprep.subr.bf16.mxu0 %v5346
      %5542 = vmatpush1.bf16.msra.mxu0 %v5345
      %5543 = vmatprep.subr.bf16.mxu0 %v5354
      %5544 = vmatpush1.bf16.msra.mxu0 %v5353
      %5545 = vmatprep.subr.bf16.mxu0 %v5362
      %5546 = vmatpush1.bf16.msra.mxu0 %v5361
      %5547 = vmatprep.subr.bf16.mxu0 %v5370
      %5548 = vmatpush1.bf16.msra.mxu0 %v5369
      %5549 = vmatprep.subr.bf16.mxu0 %v5378
      %5550 = vmatpush1.bf16.msra.mxu0 %v5377
      %5551 = vmatprep.subr.bf16.mxu0 %v5386
      %5552 = vmatpush1.bf16.msra.mxu0 %v5385
      %5553 = vmatprep.subr.bf16.mxu0 %v5394
      %5554 = vmatpush1.bf16.msra.mxu0 %v5393
      %5555 = vmatprep.subr.bf16.mxu0 %v5402
      %5556 = vmatpush1.bf16.msra.mxu0 %v5401
      %5557 = vmatprep.subr.bf16.mxu0 %v5410
      %5558 = vmatpush1.bf16.msra.mxu0 %v5409
      %5559 = vmatprep.mubr.bf16.mxu0 %v5518
      %5560 = vmatmul.mubr.bf16.gmra.mrb[0].mxu0 %v5517
      %v5561 = vpop.f32.mrb[0].mxu0
      %v5562 = vadd.f32 0.0, %v5561
      %v5563 = vpop.f32.mrb[0].mxu0
      %v5564 = vadd.f32 0.0, %v5563
      %v5565 = vpop.f32.mrb[0].mxu0
      %v5566 = vadd.f32 0.0, %v5565
      %v5567 = vpop.f32.mrb[0].mxu0
      %v5568 = vadd.f32 0.0, %v5567
      %5569 = vdwg.mxu0
      %5570 = vmatprep.subr.bf16.mxu0 %v5418
      %5571 = vmatpush1.bf16.msra.mxu0 %v5417
      %5572 = vmatprep.subr.bf16.mxu0 %v5426
      %5573 = vmatpush1.bf16.msra.mxu0 %v5425
      %5574 = vmatprep.subr.bf16.mxu0 %v5434
      %5575 = vmatpush1.bf16.msra.mxu0 %v5433
      %5576 = vmatprep.subr.bf16.mxu0 %v5442
      %5577 = vmatpush1.bf16.msra.mxu0 %v5441
      %5578 = vmatprep.subr.bf16.mxu0 %v5450
      %5579 = vmatpush1.bf16.msra.mxu0 %v5449
      %5580 = vmatprep.subr.bf16.mxu0 %v5458
      %5581 = vmatpush1.bf16.msra.mxu0 %v5457
      %5582 = vmatprep.subr.bf16.mxu0 %v5466
      %5583 = vmatpush1.bf16.msra.mxu0 %v5465
      %5584 = vmatprep.subr.bf16.mxu0 %v5474
      %5585 = vmatpush1.bf16.msra.mxu0 %v5473
      %5586 = vmatprep.subr.bf16.mxu0 %v5482
      %5587 = vmatpush1.bf16.msra.mxu0 %v5481
      %5588 = vmatprep.subr.bf16.mxu0 %v5490
      %5589 = vmatpush1.bf16.msra.mxu0 %v5489
      %5590 = vmatprep.subr.bf16.mxu0 %v5498
      %5591 = vmatpush1.bf16.msra.mxu0 %v5497
      %5592 = vmatprep.subr.bf16.mxu0 0
      %5593 = vmatpush1.bf16.msra.mxu0 0
      %5594 = vmatprep.subr.bf16.mxu0 0
      %5595 = vmatpush1.bf16.msra.mxu0 0
      %5596 = vmatprep.subr.bf16.mxu0 0
      %5597 = vmatpush1.bf16.msra.mxu0 0
      %5598 = vmatprep.subr.bf16.mxu0 0
      %5599 = vmatpush1.bf16.msra.mxu0 0
      %5600 = vmatprep.subr.bf16.mxu0 0
      %5601 = vmatpush1.bf16.msra.mxu0 0
      %5602 = vmatprep.mubr.bf16.mxu0 %v5525
      %5603 = vmatmul.mubr.bf16.gmra.mrb[0].mxu0 %v5519
      %v5604 = vpop.f32.mrb[0].mxu0
      %v5605 = vadd.f32 %v5562, %v5604
      %v5606 = vpop.f32.mrb[0].mxu0
      %v5607 = vadd.f32 %v5564, %v5606
      %v5608 = vpop.f32.mrb[0].mxu0
      %v5609 = vadd.f32 %v5566, %v5608
      %v5610 = vpop.f32.mrb[0].mxu0
      %v5611 = vadd.f32 %v5568, %v5610
      %5612 = vdwg.mxu0
      %5613 = vmatprep.subr.bf16.mxu0 %v5292
      %5614 = vmatpush1.bf16.msra.mxu0 %v5291
      %5615 = vmatprep.subr.bf16.mxu0 %v5300
      %5616 = vmatpush1.bf16.msra.mxu0 %v5299
      %5617 = vmatprep.subr.bf16.mxu0 %v5308
      %5618 = vmatpush1.bf16.msra.mxu0 %v5307
      %5619 = vmatprep.subr.bf16.mxu0 %v5316
      %5620 = vmatpush1.bf16.msra.mxu0 %v5315
      %5621 = vmatprep.subr.bf16.mxu0 %v5324
      %5622 = vmatpush1.bf16.msra.mxu0 %v5323
      %5623 = vmatprep.subr.bf16.mxu0 %v5332
      %5624 = vmatpush1.bf16.msra.mxu0 %v5331
      %5625 = vmatprep.subr.bf16.mxu0 %v5340
      %5626 = vmatpush1.bf16.msra.mxu0 %v5339
      %5627 = vmatprep.subr.bf16.mxu0 %v5348
      %5628 = vmatpush1.bf16.msra.mxu0 %v5347
      %5629 = vmatprep.subr.bf16.mxu0 %v5356
      %5630 = vmatpush1.bf16.msra.mxu0 %v5355
      %5631 = vmatprep.subr.bf16.mxu0 %v5364
      %5632 = vmatpush1.bf16.msra.mxu0 %v5363
      %5633 = vmatprep.subr.bf16.mxu0 %v5372
      %5634 = vmatpush1.bf16.msra.mxu0 %v5371
      %5635 = vmatprep.subr.bf16.mxu0 %v5380
      %5636 = vmatpush1.bf16.msra.mxu0 %v5379
      %5637 = vmatprep.subr.bf16.mxu0 %v5388
      %5638 = vmatpush1.bf16.msra.mxu0 %v5387
      %5639 = vmatprep.subr.bf16.mxu0 %v5396
      %5640 = vmatpush1.bf16.msra.mxu0 %v5395
      %5641 = vmatprep.subr.bf16.mxu0 %v5404
      %5642 = vmatpush1.bf16.msra.mxu0 %v5403
      %5643 = vmatprep.subr.bf16.mxu0 %v5412
      %5644 = vmatpush1.bf16.msra.mxu0 %v5411
      %5645 = vmatprep.mubr.bf16.mxu0 %v5518
      %5646 = vmatmul.mubr.bf16.gmra.mrb[0].mxu0 %v5517
      %v5647 = vpop.f32.mrb[0].mxu0
      %v5648 = vadd.f32 0.0, %v5647
      %v5649 = vpop.f32.mrb[0].mxu0
      %v5650 = vadd.f32 0.0, %v5649
      %v5651 = vpop.f32.mrb[0].mxu0
      %v5652 = vadd.f32 0.0, %v5651
      %v5653 = vpop.f32.mrb[0].mxu0
      %v5654 = vadd.f32 0.0, %v5653
      %5655 = vdwg.mxu0
      %5656 = vmatprep.subr.bf16.mxu0 %v5420
      %5657 = vmatpush1.bf16.msra.mxu0 %v5419
      %5658 = vmatprep.subr.bf16.mxu0 %v5428
      %5659 = vmatpush1.bf16.msra.mxu0 %v5427
      %5660 = vmatprep.subr.bf16.mxu0 %v5436
      %5661 = vmatpush1.bf16.msra.mxu0 %v5435
      %5662 = vmatprep.subr.bf16.mxu0 %v5444
      %5663 = vmatpush1.bf16.msra.mxu0 %v5443
      %5664 = vmatprep.subr.bf16.mxu0 %v5452
      %5665 = vmatpush1.bf16.msra.mxu0 %v5451
      %5666 = vmatprep.subr.bf16.mxu0 %v5460
      %5667 = vmatpush1.bf16.msra.mxu0 %v5459
      %5668 = vmatprep.subr.bf16.mxu0 %v5468
      %5669 = vmatpush1.bf16.msra.mxu0 %v5467
      %5670 = vmatprep.subr.bf16.mxu0 %v5476
      %5671 = vmatpush1.bf16.msra.mxu0 %v5475
      %5672 = vmatprep.subr.bf16.mxu0 %v5484
      %5673 = vmatpush1.bf16.msra.mxu0 %v5483
      %5674 = vmatprep.subr.bf16.mxu0 %v5492
      %5675 = vmatpush1.bf16.msra.mxu0 %v5491
      %5676 = vmatprep.subr.bf16.mxu0 %v5500
      %5677 = vmatpush1.bf16.msra.mxu0 %v5499
      %5678 = vmatprep.subr.bf16.mxu0 0
      %5679 = vmatpush1.bf16.msra.mxu0 0
      %5680 = vmatprep.subr.bf16.mxu0 0
      %5681 = vmatpush1.bf16.msra.mxu0 0
      %5682 = vmatprep.subr.bf16.mxu0 0
      %5683 = vmatpush1.bf16.msra.mxu0 0
      %5684 = vmatprep.subr.bf16.mxu0 0
      %5685 = vmatpush1.bf16.msra.mxu0 0
      %5686 = vmatprep.subr.bf16.mxu0 0
      %5687 = vmatpush1.bf16.msra.mxu0 0
      %5688 = vmatprep.mubr.bf16.mxu0 %v5525
      %5689 = vmatmul.mubr.bf16.gmra.mrb[0].mxu0 %v5519
      %v5690 = vpop.f32.mrb[0].mxu0
      %v5691 = vadd.f32 %v5648, %v5690
      %v5692 = vpop.f32.mrb[0].mxu0
      %v5693 = vadd.f32 %v5650, %v5692
      %v5694 = vpop.f32.mrb[0].mxu0
      %v5695 = vadd.f32 %v5652, %v5694
      %v5696 = vpop.f32.mrb[0].mxu0
      %v5697 = vadd.f32 %v5654, %v5696
      %5698 = vdwg.mxu0
      %5699 = vmatprep.subr.bf16.mxu0 %v5294
      %5700 = vmatpush1.bf16.msra.mxu0 %v5293
      %5701 = vmatprep.subr.bf16.mxu0 %v5302
      %5702 = vmatpush1.bf16.msra.mxu0 %v5301
      %5703 = vmatprep.subr.bf16.mxu0 %v5310
      %5704 = vmatpush1.bf16.msra.mxu0 %v5309
      %5705 = vmatprep.subr.bf16.mxu0 %v5318
      %5706 = vmatpush1.bf16.msra.mxu0 %v5317
      %5707 = vmatprep.subr.bf16.mxu0 %v5326
      %5708 = vmatpush1.bf16.msra.mxu0 %v5325
      %5709 = vmatprep.subr.bf16.mxu0 %v5334
      %5710 = vmatpush1.bf16.msra.mxu0 %v5333
      %5711 = vmatprep.subr.bf16.mxu0 %v5342
      %5712 = vmatpush1.bf16.msra.mxu0 %v5341
      %5713 = vmatprep.subr.bf16.mxu0 %v5350
      %5714 = vmatpush1.bf16.msra.mxu0 %v5349
      %5715 = vmatprep.subr.bf16.mxu0 %v5358
      %5716 = vmatpush1.bf16.msra.mxu0 %v5357
      %5717 = vmatprep.subr.bf16.mxu0 %v5366
      %5718 = vmatpush1.bf16.msra.mxu0 %v5365
      %5719 = vmatprep.subr.bf16.mxu0 %v5374
      %5720 = vmatpush1.bf16.msra.mxu0 %v5373
      %5721 = vmatprep.subr.bf16.mxu0 %v5382
      %5722 = vmatpush1.bf16.msra.mxu0 %v5381
      %5723 = vmatprep.subr.bf16.mxu0 %v5390
      %5724 = vmatpush1.bf16.msra.mxu0 %v5389
      %5725 = vmatprep.subr.bf16.mxu0 %v5398
      %5726 = vmatpush1.bf16.msra.mxu0 %v5397
      %5727 = vmatprep.subr.bf16.mxu0 %v5406
      %5728 = vmatpush1.bf16.msra.mxu0 %v5405
      %5729 = vmatprep.subr.bf16.mxu0 %v5414
      %5730 = vmatpush1.bf16.msra.mxu0 %v5413
      %5731 = vmatprep.mubr.bf16.mxu0 %v5518
      %5732 = vmatmul.mubr.bf16.gmra.mrb[0].mxu0 %v5517
      %v5733 = vpop.f32.mrb[0].mxu0
      %v5734 = vadd.f32 0.0, %v5733
      %v5735 = vpop.f32.mrb[0].mxu0
      %v5736 = vadd.f32 0.0, %v5735
      %v5737 = vpop.f32.mrb[0].mxu0
      %v5738 = vadd.f32 0.0, %v5737
      %v5739 = vpop.f32.mrb[0].mxu0
      %v5740 = vadd.f32 0.0, %v5739
      %5741 = vdwg.mxu0
      %5742 = vmatprep.subr.bf16.mxu0 %v5422
      %5743 = vmatpush1.bf16.msra.mxu0 %v5421
      %5744 = vmatprep.subr.bf16.mxu0 %v5430
      %5745 = vmatpush1.bf16.msra.mxu0 %v5429
      %5746 = vmatprep.subr.bf16.mxu0 %v5438
      %5747 = vmatpush1.bf16.msra.mxu0 %v5437
      %5748 = vmatprep.subr.bf16.mxu0 %v5446
      %5749 = vmatpush1.bf16.msra.mxu0 %v5445
      %5750 = vmatprep.subr.bf16.mxu0 %v5454
      %5751 = vmatpush1.bf16.msra.mxu0 %v5453
      %5752 = vmatprep.subr.bf16.mxu0 %v5462
      %5753 = vmatpush1.bf16.msra.mxu0 %v5461
      %5754 = vmatprep.subr.bf16.mxu0 %v5470
      %5755 = vmatpush1.bf16.msra.mxu0 %v5469
      %5756 = vmatprep.subr.bf16.mxu0 %v5478
      %5757 = vmatpush1.bf16.msra.mxu0 %v5477
      %5758 = vmatprep.subr.bf16.mxu0 %v5486
      %5759 = vmatpush1.bf16.msra.mxu0 %v5485
      %5760 = vmatprep.subr.bf16.mxu0 %v5494
      %5761 = vmatpush1.bf16.msra.mxu0 %v5493
      %5762 = vmatprep.subr.bf16.mxu0 %v5502
      %5763 = vmatpush1.bf16.msra.mxu0 %v5501
      %5764 = vmatprep.subr.bf16.mxu0 0
      %5765 = vmatpush1.bf16.msra.mxu0 0
      %5766 = vmatprep.subr.bf16.mxu0 0
      %5767 = vmatpush1.bf16.msra.mxu0 0
      %5768 = vmatprep.subr.bf16.mxu0 0
      %5769 = vmatpush1.bf16.msra.mxu0 0
      %5770 = vmatprep.subr.bf16.mxu0 0
      %5771 = vmatpush1.bf16.msra.mxu0 0
      %5772 = vmatprep.subr.bf16.mxu0 0
      %5773 = vmatpush1.bf16.msra.mxu0 0
      %5774 = vmatprep.mubr.bf16.mxu0 %v5525
      %5775 = vmatmul.mubr.bf16.gmra.mrb[0].mxu0 %v5519
      %v5776 = vpop.f32.mrb[0].mxu0
      %v5777 = vadd.f32 %v5734, %v5776
      %v5778 = vpop.f32.mrb[0].mxu0
      %v5779 = vadd.f32 %v5736, %v5778
      %v5780 = vpop.f32.mrb[0].mxu0
      %v5781 = vadd.f32 %v5738, %v5780
      %v5782 = vpop.f32.mrb[0].mxu0
      %v5783 = vadd.f32 %v5740, %v5782
      %5784 = vdwg.mxu0
      %5785 = vmatprep.subr.bf16.mxu0 %v5296
      %5786 = vmatpush1.bf16.msra.mxu0 %v5295
      %5787 = vmatprep.subr.bf16.mxu0 %v5304
      %5788 = vmatpush1.bf16.msra.mxu0 %v5303
      %5789 = vmatprep.subr.bf16.mxu0 %v5312
      %5790 = vmatpush1.bf16.msra.mxu0 %v5311
      %5791 = vmatprep.subr.bf16.mxu0 %v5320
      %5792 = vmatpush1.bf16.msra.mxu0 %v5319
      %5793 = vmatprep.subr.bf16.mxu0 %v5328
      %5794 = vmatpush1.bf16.msra.mxu0 %v5327
      %5795 = vmatprep.subr.bf16.mxu0 %v5336
      %5796 = vmatpush1.bf16.msra.mxu0 %v5335
      %5797 = vmatprep.subr.bf16.mxu0 %v5344
      %5798 = vmatpush1.bf16.msra.mxu0 %v5343
      %5799 = vmatprep.subr.bf16.mxu0 %v5352
      %5800 = vmatpush1.bf16.msra.mxu0 %v5351
      %5801 = vmatprep.subr.bf16.mxu0 %v5360
      %5802 = vmatpush1.bf16.msra.mxu0 %v5359
      %5803 = vmatprep.subr.bf16.mxu0 %v5368
      %5804 = vmatpush1.bf16.msra.mxu0 %v5367
      %5805 = vmatprep.subr.bf16.mxu0 %v5376
      %5806 = vmatpush1.bf16.msra.mxu0 %v5375
      %5807 = vmatprep.subr.bf16.mxu0 %v5384
      %5808 = vmatpush1.bf16.msra.mxu0 %v5383
      %5809 = vmatprep.subr.bf16.mxu0 %v5392
      %5810 = vmatpush1.bf16.msra.mxu0 %v5391
      %5811 = vmatprep.subr.bf16.mxu0 %v5400
      %5812 = vmatpush1.bf16.msra.mxu0 %v5399
      %5813 = vmatprep.subr.bf16.mxu0 %v5408
      %5814 = vmatpush1.bf16.msra.mxu0 %v5407
      %5815 = vmatprep.subr.bf16.mxu0 %v5416
      %5816 = vmatpush1.bf16.msra.mxu0 %v5415
      %5817 = vmatprep.mubr.bf16.mxu0 %v5518
      %5818 = vmatmul.mubr.bf16.gmra.mrb[0].mxu0 %v5517
      %v5819 = vpop.f32.mrb[0].mxu0
      %v5820 = vadd.f32 0.0, %v5819
      %v5821 = vpop.f32.mrb[0].mxu0
      %v5822 = vadd.f32 0.0, %v5821
      %v5823 = vpop.f32.mrb[0].mxu0
      %v5824 = vadd.f32 0.0, %v5823
      %v5825 = vpop.f32.mrb[0].mxu0
      %v5826 = vadd.f32 0.0, %v5825
      %5827 = vdwg.mxu0
      %5828 = vmatprep.subr.bf16.mxu0 %v5424
      %5829 = vmatpush1.bf16.msra.mxu0 %v5423
      %5830 = vmatprep.subr.bf16.mxu0 %v5432
      %5831 = vmatpush1.bf16.msra.mxu0 %v5431
      %5832 = vmatprep.subr.bf16.mxu0 %v5440
      %5833 = vmatpush1.bf16.msra.mxu0 %v5439
      %5834 = vmatprep.subr.bf16.mxu0 %v5448
      %5835 = vmatpush1.bf16.msra.mxu0 %v5447
      %5836 = vmatprep.subr.bf16.mxu0 %v5456
      %5837 = vmatpush1.bf16.msra.mxu0 %v5455
      %5838 = vmatprep.subr.bf16.mxu0 %v5464
      %5839 = vmatpush1.bf16.msra.mxu0 %v5463
      %5840 = vmatprep.subr.bf16.mxu0 %v5472
      %5841 = vmatpush1.bf16.msra.mxu0 %v5471
      %5842 = vmatprep.subr.bf16.mxu0 %v5480
      %5843 = vmatpush1.bf16.msra.mxu0 %v5479
      %5844 = vmatprep.subr.bf16.mxu0 %v5488
      %5845 = vmatpush1.bf16.msra.mxu0 %v5487
      %5846 = vmatprep.subr.bf16.mxu0 %v5496
      %5847 = vmatpush1.bf16.msra.mxu0 %v5495
      %5848 = vmatprep.subr.bf16.mxu0 %v5504
      %5849 = vmatpush1.bf16.msra.mxu0 %v5503
      %5850 = vmatprep.subr.bf16.mxu0 0
      %5851 = vmatpush1.bf16.msra.mxu0 0
      %5852 = vmatprep.subr.bf16.mxu0 0
      %5853 = vmatpush1.bf16.msra.mxu0 0
      %5854 = vmatprep.subr.bf16.mxu0 0
      %5855 = vmatpush1.bf16.msra.mxu0 0
      %5856 = vmatprep.subr.bf16.mxu0 0
      %5857 = vmatpush1.bf16.msra.mxu0 0
      %5858 = vmatprep.subr.bf16.mxu0 0
      %5859 = vmatpush1.bf16.msra.mxu0 0
      %5860 = vmatprep.mubr.bf16.mxu0 %v5525
      %5861 = vmatmul.mubr.bf16.gmra.mrb[0].mxu0 %v5519
      %v5862 = vpop.f32.mrb[0].mxu0
      %v5863 = vadd.f32 %v5820, %v5862
      %v5864 = vpop.f32.mrb[0].mxu0
      %v5865 = vadd.f32 %v5822, %v5864
      %v5866 = vpop.f32.mrb[0].mxu0
      %v5867 = vadd.f32 %v5824, %v5866
      %v5868 = vpop.f32.mrb[0].mxu0
      %v5869 = vadd.f32 %v5826, %v5868
      %5870 = vdwg.mxu0
      %5871 = vst [vmem:[#allocation3] sm:$0xff] %v5605
      %5872 = vst [vmem:[#allocation3 + $0x8] sm:$0xff] %v5607
      %5873 = vst [vmem:[#allocation3 + $0x10] sm:$0xff] %v5691
      %5874 = vst [vmem:[#allocation3 + $0x18] sm:$0xff] %v5693
      %5875 = vst [vmem:[#allocation3 + $0x20] sm:$0xff] %v5777
      %5876 = vst [vmem:[#allocation3 + $0x28] sm:$0xff] %v5779
      %5877 = vst [vmem:[#allocation3 + $0x30] sm:$0xff] %v5863
      %5878 = vst [vmem:[#allocation3 + $0x38] sm:$0xff] %v5865
      %5879 = vst [vmem:[#allocation3 + $0x40] sm:$0xff] %v5609
      %5880 = vst [vmem:[#allocation3 + $0x48] sm:$0xff] %v5611
      %5881 = vst [vmem:[#allocation3 + $0x50] sm:$0xff] %v5695
      %5882 = vst [vmem:[#allocation3 + $0x58] sm:$0xff] %v5697
      %5883 = vst [vmem:[#allocation3 + $0x60] sm:$0xff] %v5781
      %5884 = vst [vmem:[#allocation3 + $0x68] sm:$0xff] %v5783
      %5885 = vst [vmem:[#allocation3 + $0x70] sm:$0xff] %v5867
      %5886 = vst [vmem:[#allocation3 + $0x78] sm:$0xff] %v5869
      %v5887 = vld [vmem:[#allocation3] sm:$0xff]
      %v5888 = vld [vmem:[#allocation3 + $0x8] sm:$0xff]
      %v5889 = vld [vmem:[#allocation3 + $0x10] sm:$0xff]
      %v5890 = vld [vmem:[#allocation3 + $0x18] sm:$0xff]
      %v5891 = vld [vmem:[#allocation3 + $0x20] sm:$0xff]
      %v5892 = vld [vmem:[#allocation3 + $0x28] sm:$0xff]
      %v5893 = vld [vmem:[#allocation3 + $0x30] sm:$0xff]
      %v5894 = vld [vmem:[#allocation3 + $0x38] sm:$0xff]
      %v5895 = vld [vmem:[#allocation3 + $0x40] sm:$0xff]
      %v5896 = vld [vmem:[#allocation3 + $0x48] sm:$0xff]
      %v5897 = vld [vmem:[#allocation3 + $0x50] sm:$0xff]
      %v5898 = vld [vmem:[#allocation3 + $0x58] sm:$0xff]
      %v5899 = vld [vmem:[#allocation3 + $0x60] sm:$0xff]
      %v5900 = vld [vmem:[#allocation3 + $0x68] sm:$0xff]
      %v5901 = vld [vmem:[#allocation3 + $0x70] sm:$0xff]
      %v5902 = vld [vmem:[#allocation3 + $0x78] sm:$0xff]
      %v5903 = vld [vmem:[%s375] sm:$0xff]
      %v5904 = vld [vmem:[%s375 + $0x8] sm:$0xff]
      %v5905 = vld [vmem:[%s380] sm:$0xff]
      %v5906 = vld [vmem:[%s380 + $0x8] sm:$0xff]
      %v5907 = vmul.f32 %v5887, %v3411
      %v5908 = vmul.f32 %v5888, %v3415
      %v5909 = vmul.f32 %v5889, %v3419
      %v5910 = vmul.f32 %v5890, %v3423
      %v5911 = vmul.f32 %v5891, %v3427
      %v5912 = vmul.f32 %v5892, %v3431
      %v5913 = vmul.f32 %v5893, %v3435
      %v5914 = vmul.f32 %v5894, %v3439
      %v5915 = vmul.f32 %v5895, %v3411
      %v5916 = vmul.f32 %v5896, %v3415
      %v5917 = vmul.f32 %v5897, %v3419
      %v5918 = vmul.f32 %v5898, %v3423
      %v5919 = vmul.f32 %v5899, %v3427
      %v5920 = vmul.f32 %v5900, %v3431
      %v5921 = vmul.f32 %v5901, %v3435
      %v5922 = vmul.f32 %v5902, %v3439
      %v5923 = vadd.f32 %v5907, %v5908
      %v5924 = vadd.f32 %v5923, %v5909
      %v5925 = vadd.f32 %v5924, %v5910
      %v5926 = vadd.f32 %v5925, %v5911
      %v5927 = vadd.f32 %v5926, %v5912
      %v5928 = vadd.f32 %v5927, %v5913
      %v5929 = vadd.f32 %v5928, %v5914
      %5930 = vadd.xlane.f32.xlu0 %v5929
      %v5931 = vpop.xlane.xlu0 %5930
      %v5932 = vadd.f32 %v5915, %v5916
      %v5933 = vadd.f32 %v5932, %v5917
      %v5934 = vadd.f32 %v5933, %v5918
      %v5935 = vadd.f32 %v5934, %v5919
      %v5936 = vadd.f32 %v5935, %v5920
      %v5937 = vadd.f32 %v5936, %v5921
      %v5938 = vadd.f32 %v5937, %v5922
      %5939 = vadd.xlane.f32.xlu0 %v5938
      %v5940 = vpop.xlane.xlu0 %5939
      %v5941 = vmul.f32 %v5931, 0.001953125
      %v5942 = vmul.f32 %v5940, 0.001953125
      %v5943 = vsub.f32 %v5887, %v5941
      %v5944 = vsub.f32 %v5888, %v5941
      %v5945 = vsub.f32 %v5889, %v5941
      %v5946 = vsub.f32 %v5890, %v5941
      %v5947 = vsub.f32 %v5891, %v5941
      %v5948 = vsub.f32 %v5892, %v5941
      %v5949 = vsub.f32 %v5893, %v5941
      %v5950 = vsub.f32 %v5894, %v5941
      %v5951 = vsub.f32 %v5895, %v5942
      %v5952 = vsub.f32 %v5896, %v5942
      %v5953 = vsub.f32 %v5897, %v5942
      %v5954 = vsub.f32 %v5898, %v5942
      %v5955 = vsub.f32 %v5899, %v5942
      %v5956 = vsub.f32 %v5900, %v5942
      %v5957 = vsub.f32 %v5901, %v5942
      %v5958 = vsub.f32 %v5902, %v5942
      %v5959 = vmul.f32 %v5943, %v5907
      %v5960 = vmul.f32 %v5944, %v5908
      %v5961 = vmul.f32 %v5945, %v5909
      %v5962 = vmul.f32 %v5946, %v5910
      %v5963 = vmul.f32 %v5947, %v5911
      %v5964 = vmul.f32 %v5948, %v5912
      %v5965 = vmul.f32 %v5949, %v5913
      %v5966 = vmul.f32 %v5950, %v5914
      %v5967 = vmul.f32 %v5951, %v5915
      %v5968 = vmul.f32 %v5952, %v5916
      %v5969 = vmul.f32 %v5953, %v5917
      %v5970 = vmul.f32 %v5954, %v5918
      %v5971 = vmul.f32 %v5955, %v5919
      %v5972 = vmul.f32 %v5956, %v5920
      %v5973 = vmul.f32 %v5957, %v5921
      %v5974 = vmul.f32 %v5958, %v5922
      %v5975 = vadd.f32 %v5959, %v5960
      %v5976 = vadd.f32 %v5975, %v5961
      %v5977 = vadd.f32 %v5976, %v5962
      %v5978 = vadd.f32 %v5977, %v5963
      %v5979 = vadd.f32 %v5978, %v5964
      %v5980 = vadd.f32 %v5979, %v5965
      %v5981 = vadd.f32 %v5980, %v5966
      %5982 = vadd.xlane.f32.xlu0 %v5981
      %v5983 = vpop.xlane.xlu0 %5982
      %v5984 = vadd.f32 %v5967, %v5968
      %v5985 = vadd.f32 %v5984, %v5969
      %v5986 = vadd.f32 %v5985, %v5970
      %v5987 = vadd.f32 %v5986, %v5971
      %v5988 = vadd.f32 %v5987, %v5972
      %v5989 = vadd.f32 %v5988, %v5973
      %v5990 = vadd.f32 %v5989, %v5974
      %5991 = vadd.xlane.f32.xlu0 %v5990
      %v5992 = vpop.xlane.xlu0 %5991
      %v5993 = vmul.f32 %v5983, 0.001953125
      %v5994 = vmul.f32 %v5992, 0.001953125
      %v5995 = vadd.f32 %v5993, 1e-05
      %v5996 = vadd.f32 %v5994, 1e-05
      %v5997 = vrsqrt.pop %v5995
      %v5998 = vrsqrt.pop %v5996
      %v5999 = vmul.f32 %v5943, %v5997
      %v6000 = vmul.f32 %v5944, %v5997
      %v6001 = vmul.f32 %v5945, %v5997
      %v6002 = vmul.f32 %v5946, %v5997
      %v6003 = vmul.f32 %v5947, %v5997
      %v6004 = vmul.f32 %v5948, %v5997
      %v6005 = vmul.f32 %v5949, %v5997
      %v6006 = vmul.f32 %v5950, %v5997
      %v6007 = vmul.f32 %v5951, %v5998
      %v6008 = vmul.f32 %v5952, %v5998
      %v6009 = vmul.f32 %v5953, %v5998
      %v6010 = vmul.f32 %v5954, %v5998
      %v6011 = vmul.f32 %v5955, %v5998
      %v6012 = vmul.f32 %v5956, %v5998
      %v6013 = vmul.f32 %v5957, %v5998
      %v6014 = vmul.f32 %v5958, %v5998
      %6016 = vset.pattern.permute.xlu0 0
      %6017 = vperm.xlu0 %6016, %v5903
      %v6018 = vpop.permute.xlu0 %6017
      %6021 = vset.pattern.permute.xlu0 0
      %6022 = vperm.xlu0 %6021, %v5904
      %v6023 = vpop.permute.xlu0 %6022
      %v6025 = vmul.f32 %v6018, %v5999
      %v6026 = vmul.f32 %v6018, %v6000
      %v6027 = vmul.f32 %v6018, %v6001
      %v6028 = vmul.f32 %v6018, %v6002
      %v6029 = vmul.f32 %v6018, %v6003
      %v6030 = vmul.f32 %v6018, %v6004
      %v6031 = vmul.f32 %v6018, %v6005
      %v6032 = vmul.f32 %v6018, %v6006
      %v6033 = vmul.f32 %v6023, %v6007
      %v6034 = vmul.f32 %v6023, %v6008
      %v6035 = vmul.f32 %v6023, %v6009
      %v6036 = vmul.f32 %v6023, %v6010
      %v6037 = vmul.f32 %v6023, %v6011
      %v6038 = vmul.f32 %v6023, %v6012
      %v6039 = vmul.f32 %v6023, %v6013
      %v6040 = vmul.f32 %v6023, %v6014
      %6042 = vset.pattern.permute.xlu0 0
      %6043 = vperm.xlu0 %6042, %v5905
      %v6044 = vpop.permute.xlu0 %6043
      %6047 = vset.pattern.permute.xlu0 0
      %6048 = vperm.xlu0 %6047, %v5906
      %v6049 = vpop.permute.xlu0 %6048
      %v6051 = vadd.f32 %v6025, %v6044
      %v6052 = vadd.f32 %v6026, %v6044
      %v6053 = vadd.f32 %v6027, %v6044
      %v6054 = vadd.f32 %v6028, %v6044
      %v6055 = vadd.f32 %v6029, %v6044
      %v6056 = vadd.f32 %v6030, %v6044
      %v6057 = vadd.f32 %v6031, %v6044
      %v6058 = vadd.f32 %v6032, %v6044
      %v6059 = vadd.f32 %v6033, %v6049
      %v6060 = vadd.f32 %v6034, %v6049
      %v6061 = vadd.f32 %v6035, %v6049
      %v6062 = vadd.f32 %v6036, %v6049
      %v6063 = vadd.f32 %v6037, %v6049
      %v6064 = vadd.f32 %v6038, %v6049
      %v6065 = vadd.f32 %v6039, %v6049
      %v6066 = vadd.f32 %v6040, %v6049
      %vm6067 = vcmp.ge.f32.partialorder %v6051, 0.0
      %vm6068 = vcmp.ge.f32.partialorder %v6052, 0.0
      %vm6069 = vcmp.ge.f32.partialorder %v6053, 0.0
      %vm6070 = vcmp.ge.f32.partialorder %v6054, 0.0
      %vm6071 = vcmp.ge.f32.partialorder %v6055, 0.0
      %vm6072 = vcmp.ge.f32.partialorder %v6056, 0.0
      %vm6073 = vcmp.ge.f32.partialorder %v6057, 0.0
      %vm6074 = vcmp.ge.f32.partialorder %v6058, 0.0
      %vm6075 = vcmp.ge.f32.partialorder %v6059, 0.0
      %vm6076 = vcmp.ge.f32.partialorder %v6060, 0.0
      %vm6077 = vcmp.ge.f32.partialorder %v6061, 0.0
      %vm6078 = vcmp.ge.f32.partialorder %v6062, 0.0
      %vm6079 = vcmp.ge.f32.partialorder %v6063, 0.0
      %vm6080 = vcmp.ge.f32.partialorder %v6064, 0.0
      %vm6081 = vcmp.ge.f32.partialorder %v6065, 0.0
      %vm6082 = vcmp.ge.f32.partialorder %v6066, 0.0
      %v6083 = vmul.f32 %v6051, 0.2
      %v6084 = vmul.f32 %v6052, 0.2
      %v6085 = vmul.f32 %v6053, 0.2
      %v6086 = vmul.f32 %v6054, 0.2
      %v6087 = vmul.f32 %v6055, 0.2
      %v6088 = vmul.f32 %v6056, 0.2
      %v6089 = vmul.f32 %v6057, 0.2
      %v6090 = vmul.f32 %v6058, 0.2
      %v6091 = vmul.f32 %v6059, 0.2
      %v6092 = vmul.f32 %v6060, 0.2
      %v6093 = vmul.f32 %v6061, 0.2
      %v6094 = vmul.f32 %v6062, 0.2
      %v6095 = vmul.f32 %v6063, 0.2
      %v6096 = vmul.f32 %v6064, 0.2
      %v6097 = vmul.f32 %v6065, 0.2
      %v6098 = vmul.f32 %v6066, 0.2
      %v6099 = vsel %vm6067, %v6051, %v6083
      %v6100 = vsel %vm6068, %v6052, %v6084
      %v6101 = vsel %vm6069, %v6053, %v6085
      %v6102 = vsel %vm6070, %v6054, %v6086
      %v6103 = vsel %vm6071, %v6055, %v6087
      %v6104 = vsel %vm6072, %v6056, %v6088
      %v6105 = vsel %vm6073, %v6057, %v6089
      %v6106 = vsel %vm6074, %v6058, %v6090
      %v6107 = vsel %vm6075, %v6059, %v6091
      %v6108 = vsel %vm6076, %v6060, %v6092
      %v6109 = vsel %vm6077, %v6061, %v6093
      %v6110 = vsel %vm6078, %v6062, %v6094
      %v6111 = vsel %vm6079, %v6063, %v6095
      %v6112 = vsel %vm6080, %v6064, %v6096
      %v6113 = vsel %vm6081, %v6065, %v6097
      %v6114 = vsel %vm6082, %v6066, %v6098
      %v6115 = vpack.c.bf16 %v6107, %v6099
      %v6116 = vpack.c.bf16 %v6108, %v6100
      %v6117 = vpack.c.bf16 %v6109, %v6101
      %v6118 = vpack.c.bf16 %v6110, %v6102
      %v6119 = vpack.c.bf16 %v6111, %v6103
      %v6120 = vpack.c.bf16 %v6112, %v6104
      %v6121 = vpack.c.bf16 %v6113, %v6105
      %v6122 = vpack.c.bf16 %v6114, %v6106
      %v6131 = vunpack.c.l.b16 %v6115
      %v6132 = vunpack.c.l.b16 %v6116
      %v6133 = vunpack.c.l.b16 %v6117
      %v6134 = vunpack.c.l.b16 %v6118
      %v6135 = vunpack.c.l.b16 %v6119
      %v6136 = vunpack.c.l.b16 %v6120
      %v6137 = vunpack.c.l.b16 %v6121
      %v6138 = vunpack.c.l.b16 %v6122
      %v6139 = vunpack.c.h.b16 %v6115
      %v6140 = vunpack.c.h.b16 %v6116
      %v6141 = vunpack.c.h.b16 %v6117
      %v6142 = vunpack.c.h.b16 %v6118
      %v6143 = vunpack.c.h.b16 %v6119
      %v6144 = vunpack.c.h.b16 %v6120
      %v6145 = vunpack.c.h.b16 %v6121
      %v6146 = vunpack.c.h.b16 %v6122
      %v6147 = vpack.c.b16 %v6132, %v6131
      %v6148 = vpack.c.b16 %v6134, %v6133
      %v6149 = vpack.c.b16 %v6136, %v6135
      %v6150 = vpack.c.b16 %v6138, %v6137
      %v6151 = vpack.c.b16 %v6140, %v6139
      %v6152 = vpack.c.b16 %v6142, %v6141
      %v6153 = vpack.c.b16 %v6144, %v6143
      %v6154 = vpack.c.b16 %v6146, %v6145
      %6163 = vst [vmem:[%s385] sm:$0xff] %v6147
      %6164 = vst [vmem:[%s385 + $0x8] sm:$0xff] %v6148
      %6165 = vst [vmem:[%s385 + $0x10] sm:$0xff] %v6149
      %6166 = vst [vmem:[%s385 + $0x18] sm:$0xff] %v6150
      %6167 = vst [vmem:[%s385 + $0x20] sm:$0xff] %v6151
      %6168 = vst [vmem:[%s385 + $0x28] sm:$0xff] %v6152
      %6169 = vst [vmem:[%s385 + $0x30] sm:$0xff] %v6153
      %6170 = vst [vmem:[%s385 + $0x38] sm:$0xff] %v6154
      %p6171 = scmp.lt.s32.totalorder %s19, 1
      %s6172 = scalar_select %p6171, %s19, 1
      %s6173 = smul.addr %s6172, 16
      %s6174 = smul.addr %s6173, 4
      %s6175 = scalar_lea.vmem %s8, %s6174
      // Predicated region
      $region53: #{styled_conv_block3.1} parent=51 // pred_check
        %p6176 = pneg %p230
      $region54: #{styled_conv_block3.1} parent=51 // pred_check_branch
        %6178 = sbr.rel (%p6176) target = $region56
      $region55: #{styled_conv_block3.1} parent=51 // pred_region
        _
      $region56: #{styled_conv_block3.1} parent=51 // pred_fallthru
        _
    $region52: #{styled_conv_block3.1} parent=5 // pred_fallthru
      _
    %p6179 = scmp.le.s32.totalorder 2, %s14
    // Predicated region
    $region57: #{styled_conv_block3.1} parent=5 // pred_check
      %p6180 = pneg %p6179
    $region58: #{styled_conv_block3.1} parent=5 // pred_check_branch
      %6182 = sbr.rel (%p6180) target = $region60
    $region59: #{styled_conv_block3.1} parent=5 // pred_region
      %s6183 = ssub.s32 %s14, 2
      // Predicated region
      $region61: #{styled_conv_block3.1} parent=59 // pred_check
        %p6184 = pneg %p236
      $region62: #{styled_conv_block3.1} parent=59 // pred_check_branch
        %6186 = sbr.rel (%p6184) target = $region64
      $region63: #{styled_conv_block3.1} parent=59 // pred_region
        %p6187 = scmp.lt.s32.totalorder %s20, 1
        %s6188 = scalar_select %p6187, %s20, 1
        %s6189 = smul.addr %s6188, 16
        %s6190 = smul.addr %s6189, 4
        %s6191 = scalar_lea.vmem %s8, %s6190
      $region64: #{styled_conv_block3.1} parent=59 // pred_fallthru
        _
    $region60: #{styled_conv_block3.1} parent=5 // pred_fallthru
      _
  $region6: #{styled_conv_block3.1} parent=0 // loop_footer
    %s18 = sadd.s32 1, %s14
  $region7: #{styled_conv_block3.1} parent=0 // loop_footer_branch
    %13 = sbr.rel target = $region3
  $region8: #{styled_conv_block3.1} parent=0 // loop_exit
    _

</llo_original>
